<compile_context>
chip_gen: v6e
topology: v6e:2x2x1
jax: 0.10.0
libtpu: 0.0.40
codegen_flags: <defaults>
</compile_context>

<pallas_src>
import jax
import jax.numpy as jnp
from jax import lax
from jax.experimental import pallas as pl
from jax.experimental.pallas import tpu as pltpu

K = 11          # conv kernel width (1, 11)
PAD = 5         # conv padding (0, 5)
LPAD = 16       # left halo rounded up to the bf16 sublane tile -> aligned staging store
CHUNK = 2       # im2col taps per MXU matmul (2*C = 256-deep contraction)
BN_EPS = 1e-5


def _block_kernel(x_ref, w1_ref, bn1s_ref, bn1b_ref, w2_ref, bn2s_ref, bn2b_ref,
                  fc1_ref, fc2_ref, o_ref, xpad_ref):
    # x_ref / o_ref blocks: (Bt, H, W, C) bf16 — Bt batch elements per grid step.
    Bt, H, W, C = x_ref.shape
    R = Bt * H           # rows staged into the padded scratch
    N = R * W            # matmul M dimension
    HW = H * W

    # Zero only the halo columns the conv taps actually read:
    # [LPAD-PAD, LPAD) and [LPAD+W, LPAD+W+PAD).  They are never dirtied by the
    # staging write, but under megacore sharding there is no reliable
    # "first step on this core" predicate, so re-zero each step (2*PAD columns,
    # negligible vs. the staging/store traffic).
    zhalo = jnp.zeros((R, PAD, C), xpad_ref.dtype)
    xpad_ref[:, LPAD - PAD:LPAD, :] = zhalo
    xpad_ref[:, LPAD + W:LPAD + W + PAD, :] = zhalo

    x_bf16 = x_ref[...].reshape(R, W, C)             # (R, W, C) bf16

    def conv_1x11(inp_bf16, w_flat_ref):
        # Stage between the zero halos.  LPAD=16 keeps this (R, W, C) store
        # tile-aligned on the sublane axis (unmasked vst for W % 16 == 0).
        xpad_ref[:, LPAD:LPAD + W, :] = inp_bf16
        # Chunked im2col: CHUNK shifted taps stacked on the lane (channel)
        # axis -> one (N, CHUNK*C) x (CHUNK*C, C) bf16 MXU matmul per chunk,
        # accumulated in f32.  Keeps MXU depth at 256 while bounding the peak
        # col buffer to CHUNK*N*C and overlapping copy/matmul across chunks.
        acc = None
        for k0 in range(0, K, CHUNK):
            nk = min(CHUNK, K - k0)
            base = LPAD - PAD + k0
            taps = [xpad_ref[:, base + t:base + t + W, :] for t in range(nk)]
            col = taps[0] if nk == 1 else jnp.concatenate(taps, axis=-1)
            part = jnp.dot(col.reshape(N, nk * C),
                           w_flat_ref[k0 * C:(k0 + nk) * C, :],
                           preferred_element_type=jnp.float32)
            acc = part if acc is None else acc + part
        return acc                                     # (N, C) f32

    # conv1 -> folded BN1 -> ReLU
    h1 = jnp.maximum(conv_1x11(x_bf16, w1_ref) * bn1s_ref[...] + bn1b_ref[...], 0.0)

    # conv2 -> folded BN2 (no ReLU before the SE gate)
    h2 = (conv_1x11(h1.reshape(R, W, C).astype(jnp.bfloat16), w2_ref)
          * bn2s_ref[...] + bn2b_ref[...])             # (N, C) f32

    # SELayer (batched over the Bt elements of this step): exact global average
    # pool (each element's full H*W is owned by this step), then (Bt,C)x(C,hid)
    # and (Bt,hid)x(hid,C) matmuls instead of per-element M=1 MXU round-trips.
    h2b = h2.reshape(Bt, HW, C)
    pooled = jnp.sum(h2b, axis=1) * (1.0 / HW)         # (Bt, C)
    z = jnp.maximum(jnp.dot(pooled, fc1_ref[...],
                            preferred_element_type=jnp.float32), 0.0)
    s = jax.nn.sigmoid(jnp.dot(z, fc2_ref[...],
                               preferred_element_type=jnp.float32))   # (Bt, C)

    # SE scale + identity residual + final ReLU in f32; single cast at store.
    # Channels sit on the 128-lane axis so the tail and the store are lane-dense.
    x_f32 = x_ref[...].reshape(Bt, HW, C).astype(jnp.float32)
    out = jnp.maximum(h2b * s[:, None, :] + x_f32, 0.0)
    o_ref[...] = out.reshape(Bt, H, W, C).astype(o_ref.dtype)


def _vmem_bytes_per_step(bt, H, W, C):
    """Rough per-grid-step VMEM working set (bytes), including double buffers."""
    n = bt * H * W
    io = 2 * (2 * n * C * 2)                   # bf16 in + out blocks, double-buffered
    wts = 2 * (2 * K * C * C * 2)              # bf16 w1 + w2, double-buffered
    xpad = bt * H * (LPAD + W + PAD) * C * 2   # padded staging scratch (bf16)
    col = n * CHUNK * C * 2                    # im2col chunk (bf16)
    live_f32 = 5 * n * C * 4                   # x_f32 / h1 / h2 / acc / out tail
    misc = 1 << 20                             # BN/FC params, compiler scratch slack
    return io + wts + xpad + col + live_f32 + misc


def _vmem_budget_bytes():
    """Generation-aware VMEM budget (~48 MiB on v7x 64 MiB/TC, ~96 MiB on v5e/v6e)."""
    cap = 64 * 1024 * 1024                     # conservative fallback: v7x per-core
    try:
        info = pltpu.get_tpu_info()
        cap = int(getattr(info, "vmem_capacity_bytes", cap) or cap)
    except Exception:
        pass
    return (cap * 3) // 4


def _choose_bt(B, H, W, C, budget_bytes):
    """Batch elements per grid step: fit VMEM, keep >=2 steps when possible
    (megacore on v7x), and reach M = Bt*H*W >= 256 to fill the MXU pass."""
    divs = [d for d in range(1, B + 1) if B % d == 0]
    cands = [d for d in divs if _vmem_bytes_per_step(d, H, W, C) <= budget_bytes]
    assert cands, ("single batch element exceeds the VMEM budget; "
                   "TODO(synk): H-tiling with a two-pass SE pool")
    two_step = [d for d in cands if B // d >= 2] or cands
    big_m = [d for d in two_step if d * H * W >= 256]
    return min(big_m) if big_m else max(two_step)


def block_forward_nhwc(x_nhwc, params):
    """Block.forward (same_shape=True) on NHWC input; bf16 in / bf16 out.

    Keep activations bf16 + NHWC across stacked Blocks: the Block is
    HBM-bandwidth-bound at realistic sizes, so halving boundary bytes is the
    largest single win, and no layout transposes are needed between Blocks.
    """
    B, H, W, Cin = x_nhwc.shape
    Cout = params["w1"].shape[-1]
    assert Cin == Cout, "same_shape=True path requires in_channel == out_channel"
    x_nhwc = x_nhwc.astype(jnp.bfloat16)

    # bf16 MXU operands; conv weights flattened to (K*C, C) to match im2col.
    w1_flat = params["w1"].reshape(K * Cin, Cout).astype(jnp.bfloat16)
    w2_flat = params["w2"].reshape(K * Cout, Cout).astype(jnp.bfloat16)

    budget = _vmem_budget_bytes()
    Bt = _choose_bt(B, H, W, Cin, budget)

    def whole(a):  # small parameter arrays: whole-array VMEM-resident blocks
        nd = a.ndim
        return pl.BlockSpec(a.shape, lambda b, _nd=nd: (0,) * _nd)
        # NOTE: if profiling ever shows exposed DMA, add
        # pipeline_mode=pl.Buffered(3) on the activation specs and
        # pl.Buffered(1) here (constant block index -> no need for 2 buffers).

    out = pl.pallas_call(
        _block_kernel,
        out_shape=jax.ShapeDtypeStruct((B, H, W, Cout), jnp.bfloat16),
        grid_spec=pltpu.PrefetchScalarGridSpec(
            num_scalar_prefetch=0,
            grid=(B // Bt,),                           # Bt batch elements / step
            in_specs=[
                pl.BlockSpec((Bt, H, W, Cin), lambda b: (b, 0, 0, 0)),
                whole(w1_flat),
                whole(params["bn1_scale"]), whole(params["bn1_bias"]),
                whole(w2_flat),
                whole(params["bn2_scale"]), whole(params["bn2_bias"]),
                whole(params["fc1"]), whole(params["fc2"]),
            ],
            out_specs=pl.BlockSpec((Bt, H, W, Cout), lambda b: (b, 0, 0, 0)),
            # zero-halo padded staging buffer shared by conv1/conv2 (Cin == Cout);
            # LPAD=16 aligns the staging region to the bf16 sublane tile.
            scratch_shapes=[pltpu.VMEM((Bt * H, LPAD + W + PAD, Cout),
                                       jnp.bfloat16)],
        ),
        compiler_params=pltpu.CompilerParams(
            dimension_semantics=("parallel",),          # megacore-shard batch (v7x)
            vmem_limit_bytes=budget,
        ),
    )(x_nhwc, w1_flat, params["bn1_scale"], params["bn1_bias"],
      w2_flat, params["bn2_scale"], params["bn2_bias"],
      params["fc1"], params["fc2"])
    return out


def block_forward_nchw(x_nchw, params):
    """PyTorch-layout (NCHW) compatibility wrapper.  Prefer block_forward_nhwc
    and keep activations bf16/NHWC across stacked Blocks (the boundary
    transposes roughly double HBM traffic around a memory-bound kernel)."""
    out = block_forward_nhwc(jnp.transpose(x_nchw, (0, 2, 3, 1)), params)
    return jnp.transpose(out, (0, 3, 1, 2))


def init_params(key, c_in, c_out, reduction=16):
    """Deterministic synthetic parameters (kernel-friendly shapes).

    Conv weights stored as (K, C_in, C_out) == pytorch (C_out, C_in, 1, K).transpose(3,1,0)
    Linear weights stored already transposed (in_features, out_features), no bias.
    BatchNorm folded to (1, C) scale / bias using synthetic running stats.
    """
    hidden = c_out // reduction
    ks = jax.random.split(key, 12)

    def bn_fold(kg, kb, km, kv, c):
        gamma = 1.0 + 0.1 * jax.random.normal(kg, (c,), jnp.float32)
        beta = 0.1 * jax.random.normal(kb, (c,), jnp.float32)
        mean = 0.1 * jax.random.normal(km, (c,), jnp.float32)
        var = jnp.abs(jax.random.normal(kv, (c,), jnp.float32)) + 0.5
        scale = gamma / jnp.sqrt(var + BN_EPS)
        bias = beta - mean * scale
        return scale.reshape(1, c), bias.reshape(1, c)

    w1 = 0.1 * jax.random.normal(ks[0], (K, c_in, c_out), jnp.float32)
    w2 = 0.1 * jax.random.normal(ks[1], (K, c_out, c_out), jnp.float32)
    bn1_scale, bn1_bias = bn_fold(ks[2], ks[3], ks[4], ks[5], c_out)
    bn2_scale, bn2_bias = bn_fold(ks[6], ks[7], ks[8], ks[9], c_out)
    fc1 = 0.2 * jax.random.normal(ks[10], (c_out, hidden), jnp.float32)
    fc2 = 0.2 * jax.random.normal(ks[11], (hidden, c_out), jnp.float32)
    return dict(w1=w1, w2=w2, bn1_scale=bn1_scale, bn1_bias=bn1_bias,
                bn2_scale=bn2_scale, bn2_bias=bn2_bias, fc1=fc1, fc2=fc2)


def ref_forward_nhwc(x, params):
    """Pure-JAX/XLA reference of Block.forward (same_shape=True), NHWC in (bf16),
    f32 out.  Conv operands are bf16 with f32 accumulation, like the kernel."""
    _, _, _, Cin = x.shape
    Cout = params["w1"].shape[-1]
    dn = ("NHWC", "HWIO", "NHWC")
    x = x.astype(jnp.bfloat16)
    w1 = params["w1"].astype(jnp.bfloat16).reshape(1, K, Cin, Cout)
    w2 = params["w2"].astype(jnp.bfloat16).reshape(1, K, Cout, Cout)
    y = lax.conv_general_dilated(x, w1, (1, 1), ((0, 0), (PAD, PAD)),
                                 dimension_numbers=dn,
                                 preferred_element_type=jnp.float32)
    y = jnp.maximum(y * params["bn1_scale"][0] + params["bn1_bias"][0], 0.0)
    y = lax.conv_general_dilated(y.astype(jnp.bfloat16), w2, (1, 1),
                                 ((0, 0), (PAD, PAD)), dimension_numbers=dn,
                                 preferred_element_type=jnp.float32)
    y = y * params["bn2_scale"][0] + params["bn2_bias"][0]
    pooled = jnp.mean(y, axis=(1, 2))
    z = jnp.maximum(pooled @ params["fc1"], 0.0)
    s = jax.nn.sigmoid(z @ params["fc2"])
    y = y * s[:, None, None, :]
    return jnp.maximum(y + x.astype(jnp.float32), 0.0)


if __name__ == "__main__":
    # same_shape=True => in_channel == out_channel.  C=128 puts channels on the
    # full 128-lane axis; B=8 lets the wrapper pick Bt=4 -> M = Bt*H*W = 256
    # rows per conv matmul with 2 grid steps (megacore on v7x).
    B, H, W, C = 8, 4, 16, 128
    key = jax.random.PRNGKey(0)
    kx, kp = jax.random.split(key)
    x_nhwc = jax.random.normal(kx, (B, H, W, C), jnp.float32).astype(jnp.bfloat16)
    params = init_params(kp, C, C, reduction=16)

    out = jax.block_until_ready(jax.jit(block_forward_nhwc)(x_nhwc, params))
    ref = jax.block_until_ready(jax.jit(ref_forward_nhwc)(x_nhwc, params))

    assert out.shape == (B, H, W, C) and out.dtype == jnp.bfloat16
    diff = jnp.abs(out.astype(jnp.float32) - ref)
    max_err = float(jnp.max(diff))
    assert bool(jnp.all(diff <= 1e-1 + 2e-2 * jnp.abs(ref))), f"max abs err {max_err}"
    print("KERNEL_OK")
</pallas_src>

<mosaic_0001>
module attributes {stable_mosaic.version = 11 : i64} {
  func.func @_block_kernel(%arg0: i32, %arg1: memref<4x4x16x128xbf16, #tpu.memory_space<vmem>>, %arg2: memref<1408x128xbf16, #tpu.memory_space<vmem>>, %arg3: memref<1x128xf32, #tpu.memory_space<vmem>>, %arg4: memref<1x128xf32, #tpu.memory_space<vmem>>, %arg5: memref<1408x128xbf16, #tpu.memory_space<vmem>>, %arg6: memref<1x128xf32, #tpu.memory_space<vmem>>, %arg7: memref<1x128xf32, #tpu.memory_space<vmem>>, %arg8: memref<128x8xf32, #tpu.memory_space<vmem>>, %arg9: memref<8x128xf32, #tpu.memory_space<vmem>>, %arg10: memref<4x4x16x128xbf16, #tpu.memory_space<vmem>>, %arg11: memref<16x37x128xbf16, #tpu.memory_space<vmem>>) attributes {dimension_semantics = [#tpu.dimension_semantics<parallel>], iteration_bounds = array<i64: 2>, scalar_prefetch = 0 : i64, scratch_operands = 1 : i64, tpu.core_type = #tpu.core_type<tc>, window_params = [{transform_indices = @transform_0, window_bounds = array<i64: 4, 4, 16, 128>}, {pipeline_mode = #tpu.pipeline_mode<synchronous>, transform_indices = @transform_1, window_bounds = array<i64: 1408, 128>}, {pipeline_mode = #tpu.pipeline_mode<synchronous>, transform_indices = @transform_2, window_bounds = array<i64: 1, 128>}, {pipeline_mode = #tpu.pipeline_mode<synchronous>, transform_indices = @transform_3, window_bounds = array<i64: 1, 128>}, {pipeline_mode = #tpu.pipeline_mode<synchronous>, transform_indices = @transform_4, window_bounds = array<i64: 1408, 128>}, {pipeline_mode = #tpu.pipeline_mode<synchronous>, transform_indices = @transform_5, window_bounds = array<i64: 1, 128>}, {pipeline_mode = #tpu.pipeline_mode<synchronous>, transform_indices = @transform_6, window_bounds = array<i64: 1, 128>}, {pipeline_mode = #tpu.pipeline_mode<synchronous>, transform_indices = @transform_7, window_bounds = array<i64: 128, 8>}, {pipeline_mode = #tpu.pipeline_mode<synchronous>, transform_indices = @transform_8, window_bounds = array<i64: 8, 128>}, {transform_indices = @transform_9, window_bounds = array<i64: 4, 4, 16, 128>}]} {
    %cst = arith.constant 0.000000e+00 : bf16
    %0 = vector.broadcast %cst : bf16 to vector<16x5x128xbf16>
    %c0 = arith.constant 0 : index
    %c11 = arith.constant 11 : index
    %c0_0 = arith.constant 0 : index
    %1 = vector.load %arg11[%c0, %c11, %c0_0] : memref<16x37x128xbf16, #tpu.memory_space<vmem>>, vector<16x5x128xbf16>
    tpu.vector_store %arg11[%c0, %c11, %c0_0], %0 {strides = array<i32>} : memref<16x37x128xbf16, #tpu.memory_space<vmem>>, vector<16x5x128xbf16>,
    %c0_1 = arith.constant 0 : index
    %c32 = arith.constant 32 : index
    %c0_2 = arith.constant 0 : index
    %2 = vector.load %arg11[%c0_1, %c32, %c0_2] : memref<16x37x128xbf16, #tpu.memory_space<vmem>>, vector<16x5x128xbf16>
    tpu.vector_store %arg11[%c0_1, %c32, %c0_2], %0 {strides = array<i32>} : memref<16x37x128xbf16, #tpu.memory_space<vmem>>, vector<16x5x128xbf16>,
    %c0_3 = arith.constant 0 : index
    %c0_4 = arith.constant 0 : index
    %c0_5 = arith.constant 0 : index
    %c0_6 = arith.constant 0 : index
    %3 = vector.load %arg1[%c0_3, %c0_4, %c0_5, %c0_6] : memref<4x4x16x128xbf16, #tpu.memory_space<vmem>>, vector<4x4x16x128xbf16>
    %4 = vector.shape_cast %3 : vector<4x4x16x128xbf16> to vector<16x16x128xbf16>
    %c0_7 = arith.constant 0 : index
    %c16 = arith.constant 16 : index
    %c0_8 = arith.constant 0 : index
    %5 = vector.load %arg11[%c0_7, %c16, %c0_8] : memref<16x37x128xbf16, #tpu.memory_space<vmem>>, vector<16x16x128xbf16>
    tpu.vector_store %arg11[%c0_7, %c16, %c0_8], %4 {strides = array<i32>} : memref<16x37x128xbf16, #tpu.memory_space<vmem>>, vector<16x16x128xbf16>,
    %c0_9 = arith.constant 0 : index
    %c11_10 = arith.constant 11 : index
    %c0_11 = arith.constant 0 : index
    %6 = vector.load %arg11[%c0_9, %c11_10, %c0_11] : memref<16x37x128xbf16, #tpu.memory_space<vmem>>, vector<16x16x128xbf16>
    %c0_12 = arith.constant 0 : index
    %c12 = arith.constant 12 : index
    %c0_13 = arith.constant 0 : index
    %7 = vector.load %arg11[%c0_12, %c12, %c0_13] : memref<16x37x128xbf16, #tpu.memory_space<vmem>>, vector<16x16x128xbf16>
    %8 = tpu.concatenate %6, %7 in 2 : vector<16x16x128xbf16>, vector<16x16x128xbf16> -> vector<16x16x256xbf16>
    %9 = vector.shape_cast %8 : vector<16x16x256xbf16> to vector<256x256xbf16>
    %c0_14 = arith.constant 0 : index
    %c0_15 = arith.constant 0 : index
    %10 = vector.load %arg2[%c0_14, %c0_15] : memref<1408x128xbf16, #tpu.memory_space<vmem>>, vector<256x128xbf16>
    %cst_16 = arith.constant dense<0.000000e+00> : vector<256x128xf32>
    %11 = tpu.matmul %9, %10, %cst_16 {dimension_numbers = #tpu.dot_dimension_numbers<[1], [0], [0], [1], [0, 0, 1, 1], [], []>} : vector<256x256xbf16>, vector<256x128xbf16>, vector<256x128xf32> -> vector<256x128xf32>
    %c0_17 = arith.constant 0 : index
    %c13 = arith.constant 13 : index
    %c0_18 = arith.constant 0 : index
    %12 = vector.load %arg11[%c0_17, %c13, %c0_18] : memref<16x37x128xbf16, #tpu.memory_space<vmem>>, vector<16x16x128xbf16>
    %c0_19 = arith.constant 0 : index
    %c14 = arith.constant 14 : index
    %c0_20 = arith.constant 0 : index
    %13 = vector.load %arg11[%c0_19, %c14, %c0_20] : memref<16x37x128xbf16, #tpu.memory_space<vmem>>, vector<16x16x128xbf16>
    %14 = tpu.concatenate %12, %13 in 2 : vector<16x16x128xbf16>, vector<16x16x128xbf16> -> vector<16x16x256xbf16>
    %15 = vector.shape_cast %14 : vector<16x16x256xbf16> to vector<256x256xbf16>
    %c256 = arith.constant 256 : index
    %c0_21 = arith.constant 0 : index
    %16 = vector.load %arg2[%c256, %c0_21] : memref<1408x128xbf16, #tpu.memory_space<vmem>>, vector<256x128xbf16>
    %cst_22 = arith.constant dense<0.000000e+00> : vector<256x128xf32>
    %17 = tpu.matmul %15, %16, %cst_22 {dimension_numbers = #tpu.dot_dimension_numbers<[1], [0], [0], [1], [0, 0, 1, 1], [], []>} : vector<256x256xbf16>, vector<256x128xbf16>, vector<256x128xf32> -> vector<256x128xf32>
    %18 = arith.addf %11, %17 : vector<256x128xf32>
    %c0_23 = arith.constant 0 : index
    %c15 = arith.constant 15 : index
    %c0_24 = arith.constant 0 : index
    %19 = vector.load %arg11[%c0_23, %c15, %c0_24] : memref<16x37x128xbf16, #tpu.memory_space<vmem>>, vector<16x16x128xbf16>
    %c0_25 = arith.constant 0 : index
    %c16_26 = arith.constant 16 : index
    %c0_27 = arith.constant 0 : index
    %20 = vector.load %arg11[%c0_25, %c16_26, %c0_27] : memref<16x37x128xbf16, #tpu.memory_space<vmem>>, vector<16x16x128xbf16>
    %21 = tpu.concatenate %19, %20 in 2 : vector<16x16x128xbf16>, vector<16x16x128xbf16> -> vector<16x16x256xbf16>
    %22 = vector.shape_cast %21 : vector<16x16x256xbf16> to vector<256x256xbf16>
    %c512 = arith.constant 512 : index
    %c0_28 = arith.constant 0 : index
    %23 = vector.load %arg2[%c512, %c0_28] : memref<1408x128xbf16, #tpu.memory_space<vmem>>, vector<256x128xbf16>
    %cst_29 = arith.constant dense<0.000000e+00> : vector<256x128xf32>
    %24 = tpu.matmul %22, %23, %cst_29 {dimension_numbers = #tpu.dot_dimension_numbers<[1], [0], [0], [1], [0, 0, 1, 1], [], []>} : vector<256x256xbf16>, vector<256x128xbf16>, vector<256x128xf32> -> vector<256x128xf32>
    %25 = arith.addf %18, %24 : vector<256x128xf32>
    %c0_30 = arith.constant 0 : index
    %c17 = arith.constant 17 : index
    %c0_31 = arith.constant 0 : index
    %26 = vector.load %arg11[%c0_30, %c17, %c0_31] : memref<16x37x128xbf16, #tpu.memory_space<vmem>>, vector<16x16x128xbf16>
    %c0_32 = arith.constant 0 : index
    %c18 = arith.constant 18 : index
    %c0_33 = arith.constant 0 : index
    %27 = vector.load %arg11[%c0_32, %c18, %c0_33] : memref<16x37x128xbf16, #tpu.memory_space<vmem>>, vector<16x16x128xbf16>
    %28 = tpu.concatenate %26, %27 in 2 : vector<16x16x128xbf16>, vector<16x16x128xbf16> -> vector<16x16x256xbf16>
    %29 = vector.shape_cast %28 : vector<16x16x256xbf16> to vector<256x256xbf16>
    %c768 = arith.constant 768 : index
    %c0_34 = arith.constant 0 : index
    %30 = vector.load %arg2[%c768, %c0_34] : memref<1408x128xbf16, #tpu.memory_space<vmem>>, vector<256x128xbf16>
    %cst_35 = arith.constant dense<0.000000e+00> : vector<256x128xf32>
    %31 = tpu.matmul %29, %30, %cst_35 {dimension_numbers = #tpu.dot_dimension_numbers<[1], [0], [0], [1], [0, 0, 1, 1], [], []>} : vector<256x256xbf16>, vector<256x128xbf16>, vector<256x128xf32> -> vector<256x128xf32>
    %32 = arith.addf %25, %31 : vector<256x128xf32>
    %c0_36 = arith.constant 0 : index
    %c19 = arith.constant 19 : index
    %c0_37 = arith.constant 0 : index
    %33 = vector.load %arg11[%c0_36, %c19, %c0_37] : memref<16x37x128xbf16, #tpu.memory_space<vmem>>, vector<16x16x128xbf16>
    %c0_38 = arith.constant 0 : index
    %c20 = arith.constant 20 : index
    %c0_39 = arith.constant 0 : index
    %34 = vector.load %arg11[%c0_38, %c20, %c0_39] : memref<16x37x128xbf16, #tpu.memory_space<vmem>>, vector<16x16x128xbf16>
    %35 = tpu.concatenate %33, %34 in 2 : vector<16x16x128xbf16>, vector<16x16x128xbf16> -> vector<16x16x256xbf16>
    %36 = vector.shape_cast %35 : vector<16x16x256xbf16> to vector<256x256xbf16>
    %c1024 = arith.constant 1024 : index
    %c0_40 = arith.constant 0 : index
    %37 = vector.load %arg2[%c1024, %c0_40] : memref<1408x128xbf16, #tpu.memory_space<vmem>>, vector<256x128xbf16>
    %cst_41 = arith.constant dense<0.000000e+00> : vector<256x128xf32>
    %38 = tpu.matmul %36, %37, %cst_41 {dimension_numbers = #tpu.dot_dimension_numbers<[1], [0], [0], [1], [0, 0, 1, 1], [], []>} : vector<256x256xbf16>, vector<256x128xbf16>, vector<256x128xf32> -> vector<256x128xf32>
    %39 = arith.addf %32, %38 : vector<256x128xf32>
    %c0_42 = arith.constant 0 : index
    %c21 = arith.constant 21 : index
    %c0_43 = arith.constant 0 : index
    %40 = vector.load %arg11[%c0_42, %c21, %c0_43] : memref<16x37x128xbf16, #tpu.memory_space<vmem>>, vector<16x16x128xbf16>
    %41 = vector.shape_cast %40 : vector<16x16x128xbf16> to vector<256x128xbf16>
    %c1280 = arith.constant 1280 : index
    %c0_44 = arith.constant 0 : index
    %42 = vector.load %arg2[%c1280, %c0_44] : memref<1408x128xbf16, #tpu.memory_space<vmem>>, vector<128x128xbf16>
    %cst_45 = arith.constant dense<0.000000e+00> : vector<256x128xf32>
    %43 = tpu.matmul %41, %42, %cst_45 {dimension_numbers = #tpu.dot_dimension_numbers<[1], [0], [0], [1], [0, 0, 1, 1], [], []>} : vector<256x128xbf16>, vector<128x128xbf16>, vector<256x128xf32> -> vector<256x128xf32>
    %44 = arith.addf %39, %43 : vector<256x128xf32>
    %c0_46 = arith.constant 0 : index
    %c0_47 = arith.constant 0 : index
    %45 = vector.load %arg3[%c0_46, %c0_47] : memref<1x128xf32, #tpu.memory_space<vmem>>, vector<1x128xf32>
    %46 = vector.broadcast %45 : vector<1x128xf32> to vector<256x128xf32>
    %47 = arith.mulf %44, %46 : vector<256x128xf32>
    %c0_48 = arith.constant 0 : index
    %c0_49 = arith.constant 0 : index
    %48 = vector.load %arg4[%c0_48, %c0_49] : memref<1x128xf32, #tpu.memory_space<vmem>>, vector<1x128xf32>
    %49 = vector.broadcast %48 : vector<1x128xf32> to vector<256x128xf32>
    %50 = arith.addf %47, %49 : vector<256x128xf32>
    %cst_50 = arith.constant 0.000000e+00 : f32
    %51 = vector.broadcast %cst_50 : f32 to vector<256x128xf32>
    %52 = arith.maximumf %50, %51 : vector<256x128xf32>
    %53 = vector.shape_cast %52 : vector<256x128xf32> to vector<16x16x128xf32>
    %54 = arith.truncf %53 : vector<16x16x128xf32> to vector<16x16x128xbf16>
    %c0_51 = arith.constant 0 : index
    %c16_52 = arith.constant 16 : index
    %c0_53 = arith.constant 0 : index
    %55 = vector.load %arg11[%c0_51, %c16_52, %c0_53] : memref<16x37x128xbf16, #tpu.memory_space<vmem>>, vector<16x16x128xbf16>
    tpu.vector_store %arg11[%c0_51, %c16_52, %c0_53], %54 {strides = array<i32>} : memref<16x37x128xbf16, #tpu.memory_space<vmem>>, vector<16x16x128xbf16>,
    %c0_54 = arith.constant 0 : index
    %c11_55 = arith.constant 11 : index
    %c0_56 = arith.constant 0 : index
    %56 = vector.load %arg11[%c0_54, %c11_55, %c0_56] : memref<16x37x128xbf16, #tpu.memory_space<vmem>>, vector<16x16x128xbf16>
    %c0_57 = arith.constant 0 : index
    %c12_58 = arith.constant 12 : index
    %c0_59 = arith.constant 0 : index
    %57 = vector.load %arg11[%c0_57, %c12_58, %c0_59] : memref<16x37x128xbf16, #tpu.memory_space<vmem>>, vector<16x16x128xbf16>
    %58 = tpu.concatenate %56, %57 in 2 : vector<16x16x128xbf16>, vector<16x16x128xbf16> -> vector<16x16x256xbf16>
    %59 = vector.shape_cast %58 : vector<16x16x256xbf16> to vector<256x256xbf16>
    %c0_60 = arith.constant 0 : index
    %c0_61 = arith.constant 0 : index
    %60 = vector.load %arg5[%c0_60, %c0_61] : memref<1408x128xbf16, #tpu.memory_space<vmem>>, vector<256x128xbf16>
    %cst_62 = arith.constant dense<0.000000e+00> : vector<256x128xf32>
    %61 = tpu.matmul %59, %60, %cst_62 {dimension_numbers = #tpu.dot_dimension_numbers<[1], [0], [0], [1], [0, 0, 1, 1], [], []>} : vector<256x256xbf16>, vector<256x128xbf16>, vector<256x128xf32> -> vector<256x128xf32>
    %c0_63 = arith.constant 0 : index
    %c13_64 = arith.constant 13 : index
    %c0_65 = arith.constant 0 : index
    %62 = vector.load %arg11[%c0_63, %c13_64, %c0_65] : memref<16x37x128xbf16, #tpu.memory_space<vmem>>, vector<16x16x128xbf16>
    %c0_66 = arith.constant 0 : index
    %c14_67 = arith.constant 14 : index
    %c0_68 = arith.constant 0 : index
    %63 = vector.load %arg11[%c0_66, %c14_67, %c0_68] : memref<16x37x128xbf16, #tpu.memory_space<vmem>>, vector<16x16x128xbf16>
    %64 = tpu.concatenate %62, %63 in 2 : vector<16x16x128xbf16>, vector<16x16x128xbf16> -> vector<16x16x256xbf16>
    %65 = vector.shape_cast %64 : vector<16x16x256xbf16> to vector<256x256xbf16>
    %c256_69 = arith.constant 256 : index
    %c0_70 = arith.constant 0 : index
    %66 = vector.load %arg5[%c256_69, %c0_70] : memref<1408x128xbf16, #tpu.memory_space<vmem>>, vector<256x128xbf16>
    %cst_71 = arith.constant dense<0.000000e+00> : vector<256x128xf32>
    %67 = tpu.matmul %65, %66, %cst_71 {dimension_numbers = #tpu.dot_dimension_numbers<[1], [0], [0], [1], [0, 0, 1, 1], [], []>} : vector<256x256xbf16>, vector<256x128xbf16>, vector<256x128xf32> -> vector<256x128xf32>
    %68 = arith.addf %61, %67 : vector<256x128xf32>
    %c0_72 = arith.constant 0 : index
    %c15_73 = arith.constant 15 : index
    %c0_74 = arith.constant 0 : index
    %69 = vector.load %arg11[%c0_72, %c15_73, %c0_74] : memref<16x37x128xbf16, #tpu.memory_space<vmem>>, vector<16x16x128xbf16>
    %c0_75 = arith.constant 0 : index
    %c16_76 = arith.constant 16 : index
    %c0_77 = arith.constant 0 : index
    %70 = vector.load %arg11[%c0_75, %c16_76, %c0_77] : memref<16x37x128xbf16, #tpu.memory_space<vmem>>, vector<16x16x128xbf16>
    %71 = tpu.concatenate %69, %70 in 2 : vector<16x16x128xbf16>, vector<16x16x128xbf16> -> vector<16x16x256xbf16>
    %72 = vector.shape_cast %71 : vector<16x16x256xbf16> to vector<256x256xbf16>
    %c512_78 = arith.constant 512 : index
    %c0_79 = arith.constant 0 : index
    %73 = vector.load %arg5[%c512_78, %c0_79] : memref<1408x128xbf16, #tpu.memory_space<vmem>>, vector<256x128xbf16>
    %cst_80 = arith.constant dense<0.000000e+00> : vector<256x128xf32>
    %74 = tpu.matmul %72, %73, %cst_80 {dimension_numbers = #tpu.dot_dimension_numbers<[1], [0], [0], [1], [0, 0, 1, 1], [], []>} : vector<256x256xbf16>, vector<256x128xbf16>, vector<256x128xf32> -> vector<256x128xf32>
    %75 = arith.addf %68, %74 : vector<256x128xf32>
    %c0_81 = arith.constant 0 : index
    %c17_82 = arith.constant 17 : index
    %c0_83 = arith.constant 0 : index
    %76 = vector.load %arg11[%c0_81, %c17_82, %c0_83] : memref<16x37x128xbf16, #tpu.memory_space<vmem>>, vector<16x16x128xbf16>
    %c0_84 = arith.constant 0 : index
    %c18_85 = arith.constant 18 : index
    %c0_86 = arith.constant 0 : index
    %77 = vector.load %arg11[%c0_84, %c18_85, %c0_86] : memref<16x37x128xbf16, #tpu.memory_space<vmem>>, vector<16x16x128xbf16>
    %78 = tpu.concatenate %76, %77 in 2 : vector<16x16x128xbf16>, vector<16x16x128xbf16> -> vector<16x16x256xbf16>
    %79 = vector.shape_cast %78 : vector<16x16x256xbf16> to vector<256x256xbf16>
    %c768_87 = arith.constant 768 : index
    %c0_88 = arith.constant 0 : index
    %80 = vector.load %arg5[%c768_87, %c0_88] : memref<1408x128xbf16, #tpu.memory_space<vmem>>, vector<256x128xbf16>
    %cst_89 = arith.constant dense<0.000000e+00> : vector<256x128xf32>
    %81 = tpu.matmul %79, %80, %cst_89 {dimension_numbers = #tpu.dot_dimension_numbers<[1], [0], [0], [1], [0, 0, 1, 1], [], []>} : vector<256x256xbf16>, vector<256x128xbf16>, vector<256x128xf32> -> vector<256x128xf32>
    %82 = arith.addf %75, %81 : vector<256x128xf32>
    %c0_90 = arith.constant 0 : index
    %c19_91 = arith.constant 19 : index
    %c0_92 = arith.constant 0 : index
    %83 = vector.load %arg11[%c0_90, %c19_91, %c0_92] : memref<16x37x128xbf16, #tpu.memory_space<vmem>>, vector<16x16x128xbf16>
    %c0_93 = arith.constant 0 : index
    %c20_94 = arith.constant 20 : index
    %c0_95 = arith.constant 0 : index
    %84 = vector.load %arg11[%c0_93, %c20_94, %c0_95] : memref<16x37x128xbf16, #tpu.memory_space<vmem>>, vector<16x16x128xbf16>
    %85 = tpu.concatenate %83, %84 in 2 : vector<16x16x128xbf16>, vector<16x16x128xbf16> -> vector<16x16x256xbf16>
    %86 = vector.shape_cast %85 : vector<16x16x256xbf16> to vector<256x256xbf16>
    %c1024_96 = arith.constant 1024 : index
    %c0_97 = arith.constant 0 : index
    %87 = vector.load %arg5[%c1024_96, %c0_97] : memref<1408x128xbf16, #tpu.memory_space<vmem>>, vector<256x128xbf16>
    %cst_98 = arith.constant dense<0.000000e+00> : vector<256x128xf32>
    %88 = tpu.matmul %86, %87, %cst_98 {dimension_numbers = #tpu.dot_dimension_numbers<[1], [0], [0], [1], [0, 0, 1, 1], [], []>} : vector<256x256xbf16>, vector<256x128xbf16>, vector<256x128xf32> -> vector<256x128xf32>
    %89 = arith.addf %82, %88 : vector<256x128xf32>
    %c0_99 = arith.constant 0 : index
    %c21_100 = arith.constant 21 : index
    %c0_101 = arith.constant 0 : index
    %90 = vector.load %arg11[%c0_99, %c21_100, %c0_101] : memref<16x37x128xbf16, #tpu.memory_space<vmem>>, vector<16x16x128xbf16>
    %91 = vector.shape_cast %90 : vector<16x16x128xbf16> to vector<256x128xbf16>
    %c1280_102 = arith.constant 1280 : index
    %c0_103 = arith.constant 0 : index
    %92 = vector.load %arg5[%c1280_102, %c0_103] : memref<1408x128xbf16, #tpu.memory_space<vmem>>, vector<128x128xbf16>
    %cst_104 = arith.constant dense<0.000000e+00> : vector<256x128xf32>
    %93 = tpu.matmul %91, %92, %cst_104 {dimension_numbers = #tpu.dot_dimension_numbers<[1], [0], [0], [1], [0, 0, 1, 1], [], []>} : vector<256x128xbf16>, vector<128x128xbf16>, vector<256x128xf32> -> vector<256x128xf32>
    %94 = arith.addf %89, %93 : vector<256x128xf32>
    %c0_105 = arith.constant 0 : index
    %c0_106 = arith.constant 0 : index
    %95 = vector.load %arg6[%c0_105, %c0_106] : memref<1x128xf32, #tpu.memory_space<vmem>>, vector<1x128xf32>
    %96 = vector.broadcast %95 : vector<1x128xf32> to vector<256x128xf32>
    %97 = arith.mulf %94, %96 : vector<256x128xf32>
    %c0_107 = arith.constant 0 : index
    %c0_108 = arith.constant 0 : index
    %98 = vector.load %arg7[%c0_107, %c0_108] : memref<1x128xf32, #tpu.memory_space<vmem>>, vector<1x128xf32>
    %99 = vector.broadcast %98 : vector<1x128xf32> to vector<256x128xf32>
    %100 = arith.addf %97, %99 : vector<256x128xf32>
    %101 = vector.shape_cast %100 : vector<256x128xf32> to vector<4x64x128xf32>
    %cst_109 = arith.constant dense<0.000000e+00> : vector<4x128xf32>
    %102 = vector.multi_reduction <add>, %101, %cst_109 [1] : vector<4x64x128xf32> to vector<4x128xf32>
    %cst_110 = arith.constant 1.562500e-02 : f32
    %103 = vector.broadcast %cst_110 : f32 to vector<4x128xf32>
    %104 = arith.mulf %102, %103 : vector<4x128xf32>
    %c0_111 = arith.constant 0 : index
    %c0_112 = arith.constant 0 : index
    %105 = vector.load %arg8[%c0_111, %c0_112] : memref<128x8xf32, #tpu.memory_space<vmem>>, vector<128x8xf32>
    %cst_113 = arith.constant dense<0.000000e+00> : vector<4x8xf32>
    %106 = tpu.matmul %104, %105, %cst_113 {dimension_numbers = #tpu.dot_dimension_numbers<[1], [0], [0], [1], [0, 0, 1, 1], [], []>} : vector<4x128xf32>, vector<128x8xf32>, vector<4x8xf32> -> vector<4x8xf32>
    %cst_114 = arith.constant 0.000000e+00 : f32
    %107 = vector.broadcast %cst_114 : f32 to vector<4x8xf32>
    %108 = arith.maximumf %106, %107 : vector<4x8xf32>
    %c0_115 = arith.constant 0 : index
    %c0_116 = arith.constant 0 : index
    %109 = vector.load %arg9[%c0_115, %c0_116] : memref<8x128xf32, #tpu.memory_space<vmem>>, vector<8x128xf32>
    %cst_117 = arith.constant dense<0.000000e+00> : vector<4x128xf32>
    %110 = tpu.matmul %108, %109, %cst_117 {dimension_numbers = #tpu.dot_dimension_numbers<[1], [0], [0], [1], [0, 0, 1, 1], [], []>} : vector<4x8xf32>, vector<8x128xf32>, vector<4x128xf32> -> vector<4x128xf32>
    %111 = arith.negf %110 : vector<4x128xf32>
    %112 = math.exp %111 : vector<4x128xf32>
    %cst_118 = arith.constant 1.000000e+00 : f32
    %113 = vector.broadcast %cst_118 : f32 to vector<4x128xf32>
    %114 = arith.addf %113, %112 : vector<4x128xf32>
    %115 = arith.divf %113, %114 : vector<4x128xf32>
    %c0_119 = arith.constant 0 : index
    %c0_120 = arith.constant 0 : index
    %c0_121 = arith.constant 0 : index
    %c0_122 = arith.constant 0 : index
    %116 = vector.load %arg1[%c0_119, %c0_120, %c0_121, %c0_122] : memref<4x4x16x128xbf16, #tpu.memory_space<vmem>>, vector<4x4x16x128xbf16>
    %117 = vector.shape_cast %116 : vector<4x4x16x128xbf16> to vector<4x64x128xbf16>
    %118 = arith.extf %117 : vector<4x64x128xbf16> to vector<4x64x128xf32>
    %119 = vector.shape_cast %115 : vector<4x128xf32> to vector<4x1x128xf32>
    %120 = vector.broadcast %119 : vector<4x1x128xf32> to vector<4x64x128xf32>
    %121 = arith.mulf %101, %120 : vector<4x64x128xf32>
    %122 = arith.addf %121, %118 : vector<4x64x128xf32>
    %cst_123 = arith.constant 0.000000e+00 : f32
    %123 = vector.broadcast %cst_123 : f32 to vector<4x64x128xf32>
    %124 = arith.maximumf %122, %123 : vector<4x64x128xf32>
    %125 = vector.shape_cast %124 : vector<4x64x128xf32> to vector<4x4x16x128xf32>
    %126 = arith.truncf %125 : vector<4x4x16x128xf32> to vector<4x4x16x128xbf16>
    %c0_124 = arith.constant 0 : index
    %c0_125 = arith.constant 0 : index
    %c0_126 = arith.constant 0 : index
    %c0_127 = arith.constant 0 : index
    %127 = vector.load %arg10[%c0_124, %c0_125, %c0_126, %c0_127] : memref<4x4x16x128xbf16, #tpu.memory_space<vmem>>, vector<4x4x16x128xbf16>
    tpu.vector_store %arg10[%c0_124, %c0_125, %c0_126, %c0_127], %126 {strides = array<i32>} : memref<4x4x16x128xbf16, #tpu.memory_space<vmem>>, vector<4x4x16x128xbf16>,
    return
  }
  func.func @transform_0(%arg0: i32) -> (i32, i32, i32, i32) {
    %c0_i32 = arith.constant 0 : i32
    %c0_i32_0 = arith.constant 0 : i32
    %c0_i32_1 = arith.constant 0 : i32
    %c0_i32_2 = arith.constant 0 : i32
    return %arg0, %c0_i32, %c0_i32_0, %c0_i32_1 : i32, i32, i32, i32
  }
  func.func @transform_1(%arg0: i32) -> (i32, i32) {
    %c0_i32 = arith.constant 0 : i32
    %c0_i32_0 = arith.constant 0 : i32
    %c0_i32_1 = arith.constant 0 : i32
    return %c0_i32, %c0_i32_0 : i32, i32
  }
  func.func @transform_2(%arg0: i32) -> (i32, i32) {
    %c0_i32 = arith.constant 0 : i32
    %c0_i32_0 = arith.constant 0 : i32
    %c0_i32_1 = arith.constant 0 : i32
    return %c0_i32, %c0_i32_0 : i32, i32
  }
  func.func @transform_3(%arg0: i32) -> (i32, i32) {
    %c0_i32 = arith.constant 0 : i32
    %c0_i32_0 = arith.constant 0 : i32
    %c0_i32_1 = arith.constant 0 : i32
    return %c0_i32, %c0_i32_0 : i32, i32
  }
  func.func @transform_4(%arg0: i32) -> (i32, i32) {
    %c0_i32 = arith.constant 0 : i32
    %c0_i32_0 = arith.constant 0 : i32
    %c0_i32_1 = arith.constant 0 : i32
    return %c0_i32, %c0_i32_0 : i32, i32
  }
  func.func @transform_5(%arg0: i32) -> (i32, i32) {
    %c0_i32 = arith.constant 0 : i32
    %c0_i32_0 = arith.constant 0 : i32
    %c0_i32_1 = arith.constant 0 : i32
    return %c0_i32, %c0_i32_0 : i32, i32
  }
  func.func @transform_6(%arg0: i32) -> (i32, i32) {
    %c0_i32 = arith.constant 0 : i32
    %c0_i32_0 = arith.constant 0 : i32
    %c0_i32_1 = arith.constant 0 : i32
    return %c0_i32, %c0_i32_0 : i32, i32
  }
  func.func @transform_7(%arg0: i32) -> (i32, i32) {
    %c0_i32 = arith.constant 0 : i32
    %c0_i32_0 = arith.constant 0 : i32
    %c0_i32_1 = arith.constant 0 : i32
    return %c0_i32, %c0_i32_0 : i32, i32
  }
  func.func @transform_8(%arg0: i32) -> (i32, i32) {
    %c0_i32 = arith.constant 0 : i32
    %c0_i32_0 = arith.constant 0 : i32
    %c0_i32_1 = arith.constant 0 : i32
    return %c0_i32, %c0_i32_0 : i32, i32
  }
  func.func @transform_9(%arg0: i32) -> (i32, i32, i32, i32) {
    %c0_i32 = arith.constant 0 : i32
    %c0_i32_0 = arith.constant 0 : i32
    %c0_i32_1 = arith.constant 0 : i32
    %c0_i32_2 = arith.constant 0 : i32
    return %arg0, %c0_i32, %c0_i32_0, %c0_i32_1 : i32, i32, i32, i32
  }
}

</mosaic_0001>

<llo_original>
// kernel: block_forward_nhwc.1
$region0: #{block_forward_nhwc.1}
  #allocation0 [shape = 'u32[]', space=smem, size = 0x4, offset = 0x4, fixed_abs, tag = 'smem constant byte address 0x4 - core index']
  #allocation1 [shape = 'u32[144,128]{1,0:T(1,128)}', space=vmem, size = 0x12000, scoped, tag = 'internal scratch']
  #allocation2 [shape = 'bf16[16,37,128]{2,1,0:T(8,128)(2,1)}', space=vmem, size = 0x28000, scoped, tag = 'scratch operand']
  %s0 = inlined_call_operand.vmem [shape: bf16[8,4,16,128], index: 0, kind: input, shape index: {}]
  %s1 = inlined_call_operand.vmem [shape: bf16[1408,128], index: 1, kind: input, shape index: {}]
  %s2 = inlined_call_operand.vmem [shape: f32[1,128], index: 2, kind: input, shape index: {}]
  %s3 = inlined_call_operand.vmem [shape: f32[1,128], index: 3, kind: input, shape index: {}]
  %s4 = inlined_call_operand.vmem [shape: bf16[1408,128], index: 4, kind: input, shape index: {}]
  %s5 = inlined_call_operand.vmem [shape: f32[1,128], index: 5, kind: input, shape index: {}]
  %s6 = inlined_call_operand.vmem [shape: f32[1,128], index: 6, kind: input, shape index: {}]
  %s7 = inlined_call_operand.vmem [shape: f32[128,8], index: 7, kind: input, shape index: {}]
  %s8 = inlined_call_operand.vmem [shape: f32[8,128], index: 8, kind: input, shape index: {}]
  %s9 = inlined_call_operand.hbm [shape: bf16[8,4,16,128], index: 9, kind: output, shape index: {}]
  %s10 = sld [smem:[#allocation0]]
  $region69: #{block_forward_nhwc.1} parent=0
    _
  %s12 = ssub.s32 1, %s10
  %s13 = scalar_select 0, %s12, %s10
  $region1: #{block_forward_nhwc.1} parent=0
    #allocation3 [shape = 'u8[131072]{0}', space=vmem, size = 0x20000, scoped, tag = 'output window, operand 0']
    #allocation4 [shape = 's32[2]{0}', space=sflag, size = 0x8, scoped, tag = 'scoped memory for block_forward_nhwc.1']
    %14 = vsyncpa [#allocation4], 0
    %s15 = scalar_lea.sflag [#allocation4], 1
    %16 = vsyncpa %s15, 0
    loop: start=0, step=1, limit=4
    $region2: #{block_forward_nhwc.1} parent=1 // loop_pre_header
      _
    $region3: #{block_forward_nhwc.1} parent=1 // loop_header
      %s18 = sphi 0, %s22
      %p19 = scmp.ge.s32.totalorder %s18, 4
      %s28 = sphi 0, %s30
      %s31 = sphi 0, %s28
      %s32 = sphi 0, %s31
      %s48 = sphi 0, %s32
      %s52 = sphi 0, %s52
      %s54 = sphi 0, %s52
      %s55 = sphi 0, %s54
      %s69 = sphi 0, %s55
      %s73 = sphi 0, %s73
      %s75 = sphi 0, %s73
      %s76 = sphi 0, %s75
      %s90 = sphi 0, %s76
      %s94 = sphi 0, %s94
      %s96 = sphi 0, %s94
      %s97 = sphi 0, %s96
      %s111 = sphi 0, %s97
      %s115 = sphi 0, %s115
      %s117 = sphi 0, %s115
      %s118 = sphi 0, %s117
      %s132 = sphi 0, %s118
      %s136 = sphi 0, %s136
      %s138 = sphi 0, %s136
      %s139 = sphi 0, %s138
      %s153 = sphi 0, %s139
      %s157 = sphi 0, %s157
      %s159 = sphi 0, %s157
      %s160 = sphi 0, %s159
      %s174 = sphi 0, %s160
      %s178 = sphi 0, %s178
      %s180 = sphi 0, %s178
      %s181 = sphi 0, %s180
      %s195 = sphi 0, %s181
      %s199 = sphi 0, %s199
      %s201 = sphi 0, %s199
      %s202 = sphi 0, %s201
      %s216 = sphi 0, %s202
      %s222 = sphi 0, %s224
      %s225 = sphi 0, %s222
      %s226 = sphi 0, %s225
      %s242 = sphi 0, %s226
    $region4: #{block_forward_nhwc.1} parent=1 // loop_header_branch
      %21 = sbr.rel (%p19) target = $region8
    $region5: #{block_forward_nhwc.1} parent=1 // loop_body
      %s23 = ssub.s32 %s18, 1
      %s24 = ssub.s32 %s18, 2
      %s25 = sadd.s32 %s18, 1
      %s26 = ssub.s32 %s18, %s25
      %p27 = scmp.eq.s32.totalorder %s26, 0
      %s29 = sadd.s32 %s28, 1
      %s30 = scalar_select %p27, %s28, %s29
      %p33 = pneg %p27
      %p34 = scmp.eq.s32.totalorder %s18, 1
      %p35 = por %p33, %p34
      %p36 = scmp.ne.s32.totalorder %s28, %s31
      %p37 = scmp.eq.s32.totalorder %s18, 0
      %p38 = por %p36, %p37
      %p39 = scmp.ne.s32.totalorder %s28, %s31
      %p40 = scmp.eq.s32.totalorder %s23, 1
      %p41 = por %p39, %p40
      %p42 = scmp.ne.s32.totalorder %s31, %s32
      %p43 = scmp.eq.s32.totalorder %s23, 0
      %p44 = por %p42, %p43
      %p45 = scmp.ne.s32.totalorder %s31, %s32
      %p46 = scmp.eq.s32.totalorder %s24, 1
      %p47 = por %p45, %p46
      %p49 = scmp.ne.s32.totalorder %s32, %s48
      %p50 = scmp.eq.s32.totalorder %s24, 0
      %p51 = por %p49, %p50
      %s53 = sadd.s32 %s52, 1
      %p56 = scmp.eq.s32.totalorder %s18, 1
      %p57 = scmp.ne.s32.totalorder %s52, %s54
      %p58 = scmp.eq.s32.totalorder %s18, 0
      %p59 = por %p57, %p58
      %p60 = scmp.ne.s32.totalorder %s52, %s54
      %p61 = scmp.eq.s32.totalorder %s23, 1
      %p62 = por %p60, %p61
      %p63 = scmp.ne.s32.totalorder %s54, %s55
      %p64 = scmp.eq.s32.totalorder %s23, 0
      %p65 = por %p63, %p64
      %p66 = scmp.ne.s32.totalorder %s54, %s55
      %p67 = scmp.eq.s32.totalorder %s24, 1
      %p68 = por %p66, %p67
      %p70 = scmp.ne.s32.totalorder %s55, %s69
      %p71 = scmp.eq.s32.totalorder %s24, 0
      %p72 = por %p70, %p71
      %s74 = sadd.s32 %s73, 1
      %p77 = scmp.eq.s32.totalorder %s18, 1
      %p78 = scmp.ne.s32.totalorder %s73, %s75
      %p79 = scmp.eq.s32.totalorder %s18, 0
      %p80 = por %p78, %p79
      %p81 = scmp.ne.s32.totalorder %s73, %s75
      %p82 = scmp.eq.s32.totalorder %s23, 1
      %p83 = por %p81, %p82
      %p84 = scmp.ne.s32.totalorder %s75, %s76
      %p85 = scmp.eq.s32.totalorder %s23, 0
      %p86 = por %p84, %p85
      %p87 = scmp.ne.s32.totalorder %s75, %s76
      %p88 = scmp.eq.s32.totalorder %s24, 1
      %p89 = por %p87, %p88
      %p91 = scmp.ne.s32.totalorder %s76, %s90
      %p92 = scmp.eq.s32.totalorder %s24, 0
      %p93 = por %p91, %p92
      %s95 = sadd.s32 %s94, 1
      %p98 = scmp.eq.s32.totalorder %s18, 1
      %p99 = scmp.ne.s32.totalorder %s94, %s96
      %p100 = scmp.eq.s32.totalorder %s18, 0
      %p101 = por %p99, %p100
      %p102 = scmp.ne.s32.totalorder %s94, %s96
      %p103 = scmp.eq.s32.totalorder %s23, 1
      %p104 = por %p102, %p103
      %p105 = scmp.ne.s32.totalorder %s96, %s97
      %p106 = scmp.eq.s32.totalorder %s23, 0
      %p107 = por %p105, %p106
      %p108 = scmp.ne.s32.totalorder %s96, %s97
      %p109 = scmp.eq.s32.totalorder %s24, 1
      %p110 = por %p108, %p109
      %p112 = scmp.ne.s32.totalorder %s97, %s111
      %p113 = scmp.eq.s32.totalorder %s24, 0
      %p114 = por %p112, %p113
      %s116 = sadd.s32 %s115, 1
      %p119 = scmp.eq.s32.totalorder %s18, 1
      %p120 = scmp.ne.s32.totalorder %s115, %s117
      %p121 = scmp.eq.s32.totalorder %s18, 0
      %p122 = por %p120, %p121
      %p123 = scmp.ne.s32.totalorder %s115, %s117
      %p124 = scmp.eq.s32.totalorder %s23, 1
      %p125 = por %p123, %p124
      %p126 = scmp.ne.s32.totalorder %s117, %s118
      %p127 = scmp.eq.s32.totalorder %s23, 0
      %p128 = por %p126, %p127
      %p129 = scmp.ne.s32.totalorder %s117, %s118
      %p130 = scmp.eq.s32.totalorder %s24, 1
      %p131 = por %p129, %p130
      %p133 = scmp.ne.s32.totalorder %s118, %s132
      %p134 = scmp.eq.s32.totalorder %s24, 0
      %p135 = por %p133, %p134
      %s137 = sadd.s32 %s136, 1
      %p140 = scmp.eq.s32.totalorder %s18, 1
      %p141 = scmp.ne.s32.totalorder %s136, %s138
      %p142 = scmp.eq.s32.totalorder %s18, 0
      %p143 = por %p141, %p142
      %p144 = scmp.ne.s32.totalorder %s136, %s138
      %p145 = scmp.eq.s32.totalorder %s23, 1
      %p146 = por %p144, %p145
      %p147 = scmp.ne.s32.totalorder %s138, %s139
      %p148 = scmp.eq.s32.totalorder %s23, 0
      %p149 = por %p147, %p148
      %p150 = scmp.ne.s32.totalorder %s138, %s139
      %p151 = scmp.eq.s32.totalorder %s24, 1
      %p152 = por %p150, %p151
      %p154 = scmp.ne.s32.totalorder %s139, %s153
      %p155 = scmp.eq.s32.totalorder %s24, 0
      %p156 = por %p154, %p155
      %s158 = sadd.s32 %s157, 1
      %p161 = scmp.eq.s32.totalorder %s18, 1
      %p162 = scmp.ne.s32.totalorder %s157, %s159
      %p163 = scmp.eq.s32.totalorder %s18, 0
      %p164 = por %p162, %p163
      %p165 = scmp.ne.s32.totalorder %s157, %s159
      %p166 = scmp.eq.s32.totalorder %s23, 1
      %p167 = por %p165, %p166
      %p168 = scmp.ne.s32.totalorder %s159, %s160
      %p169 = scmp.eq.s32.totalorder %s23, 0
      %p170 = por %p168, %p169
      %p171 = scmp.ne.s32.totalorder %s159, %s160
      %p172 = scmp.eq.s32.totalorder %s24, 1
      %p173 = por %p171, %p172
      %p175 = scmp.ne.s32.totalorder %s160, %s174
      %p176 = scmp.eq.s32.totalorder %s24, 0
      %p177 = por %p175, %p176
      %s179 = sadd.s32 %s178, 1
      %p182 = scmp.eq.s32.totalorder %s18, 1
      %p183 = scmp.ne.s32.totalorder %s178, %s180
      %p184 = scmp.eq.s32.totalorder %s18, 0
      %p185 = por %p183, %p184
      %p186 = scmp.ne.s32.totalorder %s178, %s180
      %p187 = scmp.eq.s32.totalorder %s23, 1
      %p188 = por %p186, %p187
      %p189 = scmp.ne.s32.totalorder %s180, %s181
      %p190 = scmp.eq.s32.totalorder %s23, 0
      %p191 = por %p189, %p190
      %p192 = scmp.ne.s32.totalorder %s180, %s181
      %p193 = scmp.eq.s32.totalorder %s24, 1
      %p194 = por %p192, %p193
      %p196 = scmp.ne.s32.totalorder %s181, %s195
      %p197 = scmp.eq.s32.totalorder %s24, 0
      %p198 = por %p196, %p197
      %s200 = sadd.s32 %s199, 1
      %p203 = scmp.eq.s32.totalorder %s18, 1
      %p204 = scmp.ne.s32.totalorder %s199, %s201
      %p205 = scmp.eq.s32.totalorder %s18, 0
      %p206 = por %p204, %p205
      %p207 = scmp.ne.s32.totalorder %s199, %s201
      %p208 = scmp.eq.s32.totalorder %s23, 1
      %p209 = por %p207, %p208
      %p210 = scmp.ne.s32.totalorder %s201, %s202
      %p211 = scmp.eq.s32.totalorder %s23, 0
      %p212 = por %p210, %p211
      %p213 = scmp.ne.s32.totalorder %s201, %s202
      %p214 = scmp.eq.s32.totalorder %s24, 1
      %p215 = por %p213, %p214
      %p217 = scmp.ne.s32.totalorder %s202, %s216
      %p218 = scmp.eq.s32.totalorder %s24, 0
      %p219 = por %p217, %p218
      %s220 = ssub.s32 %s18, %s25
      %p221 = scmp.eq.s32.totalorder %s220, 0
      %s223 = sadd.s32 %s222, 1
      %s224 = scalar_select %p221, %s222, %s223
      %p227 = pneg %p221
      %p228 = scmp.eq.s32.totalorder %s18, 1
      %p229 = por %p227, %p228
      %p230 = scmp.ne.s32.totalorder %s222, %s225
      %p231 = scmp.eq.s32.totalorder %s18, 0
      %p232 = por %p230, %p231
      %p233 = scmp.ne.s32.totalorder %s222, %s225
      %p234 = scmp.eq.s32.totalorder %s23, 1
      %p235 = por %p233, %p234
      %p236 = scmp.ne.s32.totalorder %s225, %s226
      %p237 = scmp.eq.s32.totalorder %s23, 0
      %p238 = por %p236, %p237
      %p239 = scmp.ne.s32.totalorder %s225, %s226
      %p240 = scmp.eq.s32.totalorder %s24, 1
      %p241 = por %p239, %p240
      %p243 = scmp.ne.s32.totalorder %s226, %s242
      %p244 = scmp.eq.s32.totalorder %s24, 0
      %p245 = por %p243, %p244
      %p246 = scmp.le.s32.totalorder 1, %s18
      %p247 = scmp.lt.s32.totalorder %s18, 3
      %p248 = pnand %p246, %p247
      %p249 = pneg %p248
      // Predicated region
      $region9: #{block_forward_nhwc.1} parent=5 // pred_check
        _
      $region10: #{block_forward_nhwc.1} parent=5 // pred_check_branch
        %251 = sbr.rel (%p248) target = $region12
      $region11: #{block_forward_nhwc.1} parent=5 // pred_region
        %s252 = ssub.s32 %s18, 1
        // Predicated region
        $region13: #{block_forward_nhwc.1} parent=11 // pred_check
          %p253 = pneg %p65
        $region14: #{block_forward_nhwc.1} parent=11 // pred_check_branch
          %255 = sbr.rel (%p253) target = $region16
        $region15: #{block_forward_nhwc.1} parent=11 // pred_region
          _
        $region16: #{block_forward_nhwc.1} parent=11 // pred_fallthru
          _
        // Predicated region
        $region17: #{block_forward_nhwc.1} parent=11 // pred_check
          %p256 = pneg %p86
        $region18: #{block_forward_nhwc.1} parent=11 // pred_check_branch
          %258 = sbr.rel (%p256) target = $region20
        $region19: #{block_forward_nhwc.1} parent=11 // pred_region
          _
        $region20: #{block_forward_nhwc.1} parent=11 // pred_fallthru
          _
        // Predicated region
        $region21: #{block_forward_nhwc.1} parent=11 // pred_check
          %p259 = pneg %p107
        $region22: #{block_forward_nhwc.1} parent=11 // pred_check_branch
          %261 = sbr.rel (%p259) target = $region24
        $region23: #{block_forward_nhwc.1} parent=11 // pred_region
          _
        $region24: #{block_forward_nhwc.1} parent=11 // pred_fallthru
          _
        // Predicated region
        $region25: #{block_forward_nhwc.1} parent=11 // pred_check
          %p262 = pneg %p128
        $region26: #{block_forward_nhwc.1} parent=11 // pred_check_branch
          %264 = sbr.rel (%p262) target = $region28
        $region27: #{block_forward_nhwc.1} parent=11 // pred_region
          _
        $region28: #{block_forward_nhwc.1} parent=11 // pred_fallthru
          _
        // Predicated region
        $region29: #{block_forward_nhwc.1} parent=11 // pred_check
          %p265 = pneg %p149
        $region30: #{block_forward_nhwc.1} parent=11 // pred_check_branch
          %267 = sbr.rel (%p265) target = $region32
        $region31: #{block_forward_nhwc.1} parent=11 // pred_region
          _
        $region32: #{block_forward_nhwc.1} parent=11 // pred_fallthru
          _
        // Predicated region
        $region33: #{block_forward_nhwc.1} parent=11 // pred_check
          %p268 = pneg %p170
        $region34: #{block_forward_nhwc.1} parent=11 // pred_check_branch
          %270 = sbr.rel (%p268) target = $region36
        $region35: #{block_forward_nhwc.1} parent=11 // pred_region
          _
        $region36: #{block_forward_nhwc.1} parent=11 // pred_fallthru
          _
        // Predicated region
        $region37: #{block_forward_nhwc.1} parent=11 // pred_check
          %p271 = pneg %p191
        $region38: #{block_forward_nhwc.1} parent=11 // pred_check_branch
          %273 = sbr.rel (%p271) target = $region40
        $region39: #{block_forward_nhwc.1} parent=11 // pred_region
          _
        $region40: #{block_forward_nhwc.1} parent=11 // pred_fallthru
          _
        // Predicated region
        $region41: #{block_forward_nhwc.1} parent=11 // pred_check
          %p274 = pneg %p212
        $region42: #{block_forward_nhwc.1} parent=11 // pred_check_branch
          %276 = sbr.rel (%p274) target = $region44
        $region43: #{block_forward_nhwc.1} parent=11 // pred_region
          _
        $region44: #{block_forward_nhwc.1} parent=11 // pred_fallthru
          _
      $region12: #{block_forward_nhwc.1} parent=5 // pred_fallthru
        _
      %p277 = scmp.lt.s32.totalorder %s18, 2
      // Predicated region
      $region45: #{block_forward_nhwc.1} parent=5 // pred_check
        %p278 = pneg %p277
      $region46: #{block_forward_nhwc.1} parent=5 // pred_check_branch
        %280 = sbr.rel (%p278) target = $region48
      $region47: #{block_forward_nhwc.1} parent=5 // pred_region
        // Predicated region
        $region49: #{block_forward_nhwc.1} parent=47 // pred_check
          %p281 = pneg %p38
        $region50: #{block_forward_nhwc.1} parent=47 // pred_check_branch
          %283 = sbr.rel (%p281) target = $region52
        $region51: #{block_forward_nhwc.1} parent=47 // pred_region
          %s284 = smul.u32 4, %s18
          %p285 = scmp.lt.s32.totalorder %s284, 7
          %s286 = scalar_select %p285, %s284, 7
          %s287 = smul.addr %s286, 8
          %s288 = smul.addr %s287, 4
          %s289 = scalar_lea.vmem %s0, %s288
          %s290 = smul.u32 4, %s18
        $region52: #{block_forward_nhwc.1} parent=47 // pred_fallthru
          _
      $region48: #{block_forward_nhwc.1} parent=5 // pred_fallthru
        _
      %p291 = scmp.le.s32.totalorder 1, %s18
      %p292 = scmp.lt.s32.totalorder %s18, 3
      %p293 = pnand %p291, %p292
      %p294 = pneg %p293
      // Predicated region
      $region53: #{block_forward_nhwc.1} parent=5 // pred_check
        _
      $region54: #{block_forward_nhwc.1} parent=5 // pred_check_branch
        %296 = sbr.rel (%p293) target = $region56
      $region55: #{block_forward_nhwc.1} parent=5 // pred_region
        %s297 = ssub.s32 %s18, 1
        %s298 = smul.u32 4, %s23
        %p299 = scmp.lt.s32.totalorder %s298, 7
        %s300 = scalar_select %p299, %s298, 7
        %s301 = smul.addr %s300, 8
        %s302 = smul.addr %s301, 4
        %s303 = scalar_lea.vmem %s0, %s302
        %p304 = pneg %p44
        %p305 = pneg %p41
        %p306 = pneg %p65
        %p307 = pneg %p62
        %p308 = pneg %p86
        %p309 = pneg %p83
        %p310 = pneg %p107
        %p311 = pneg %p104
        %p312 = pneg %p128
        %p313 = pneg %p125
        %p314 = pneg %p149
        %p315 = pneg %p146
        %p316 = pneg %p170
        %p317 = pneg %p167
        %p318 = pneg %p191
        %p319 = pneg %p188
        %p320 = pneg %p212
        %p321 = pneg %p209
        %p322 = pneg %p238
        %p323 = pneg %p235
        %s324 = sand.u32 %s225, 1
        %s325 = scalar_lea.sflag [#allocation4], %s324
        %s326 = sand.u32 %s225, 1
        %s327 = smul.addr %s326, 128
        %s328 = scalar_lea.vmem [#allocation3], %s327
        %s329 = smul.u32 4, %s23
        %p330 = scmp.lt.s32.totalorder %s329, 7
        %s331 = scalar_select %p330, %s329, 7
        %s332 = smul.addr %s331, 8
        %s333 = smul.addr %s332, 4
        %s334 = scalar_lea.vmem %s0, %s333
        %s335 = smul.u32 4, %s23
        %s336 = smul.u32 4, %s23
        %vm338 = vcmask 1043457
        %vm339 = vsmask.f32 7942
        %vm340 = vmand %vm338, %vm339
        %v341 = vld [vmem:[#allocation2 + $0x4] sm:$0xe]
        %v342 = vsel %vm340, 0, %v341
        %343 = vst [vmem:[#allocation2 + $0x4] sm:$0xe] %v342
        %v344 = vld [vmem:[#allocation2 + $0x18] sm:$0xe]
        %v345 = vsel %vm340, 0, %v344
        %346 = vst [vmem:[#allocation2 + $0x18] sm:$0xe] %v345
        %v347 = vld [vmem:[#allocation2 + $0x2c] sm:$0xe]
        %v348 = vsel %vm340, 0, %v347
        %349 = vst [vmem:[#allocation2 + $0x2c] sm:$0xe] %v348
        %v350 = vld [vmem:[#allocation2 + $0x40] sm:$0xe]
        %v351 = vsel %vm340, 0, %v350
        %352 = vst [vmem:[#allocation2 + $0x40] sm:$0xe] %v351
        %v353 = vld [vmem:[#allocation2 + $0x54] sm:$0xe]
        %v354 = vsel %vm340, 0, %v353
        %355 = vst [vmem:[#allocation2 + $0x54] sm:$0xe] %v354
        %v356 = vld [vmem:[#allocation2 + $0x68] sm:$0xe]
        %v357 = vsel %vm340, 0, %v356
        %358 = vst [vmem:[#allocation2 + $0x68] sm:$0xe] %v357
        %v359 = vld [vmem:[#allocation2 + $0x7c] sm:$0xe]
        %v360 = vsel %vm340, 0, %v359
        %361 = vst [vmem:[#allocation2 + $0x7c] sm:$0xe] %v360
        %v362 = vld [vmem:[#allocation2 + $0x90] sm:$0xe]
        %v363 = vsel %vm340, 0, %v362
        %364 = vst [vmem:[#allocation2 + $0x90] sm:$0xe] %v363
        %v365 = vld [vmem:[#allocation2 + $0xa4] sm:$0xe]
        %v366 = vsel %vm340, 0, %v365
        %367 = vst [vmem:[#allocation2 + $0xa4] sm:$0xe] %v366
        %v368 = vld [vmem:[#allocation2 + $0xb8] sm:$0xe]
        %v369 = vsel %vm340, 0, %v368
        %370 = vst [vmem:[#allocation2 + $0xb8] sm:$0xe] %v369
        %v371 = vld [vmem:[#allocation2 + $0xcc] sm:$0xe]
        %v372 = vsel %vm340, 0, %v371
        %373 = vst [vmem:[#allocation2 + $0xcc] sm:$0xe] %v372
        %v374 = vld [vmem:[#allocation2 + $0xe0] sm:$0xe]
        %v375 = vsel %vm340, 0, %v374
        %376 = vst [vmem:[#allocation2 + $0xe0] sm:$0xe] %v375
        %v377 = vld [vmem:[#allocation2 + $0xf4] sm:$0xe]
        %v378 = vsel %vm340, 0, %v377
        %379 = vst [vmem:[#allocation2 + $0xf4] sm:$0xe] %v378
        %v380 = vld [vmem:[#allocation2 + $0x108] sm:$0xe]
        %v381 = vsel %vm340, 0, %v380
        %382 = vst [vmem:[#allocation2 + $0x108] sm:$0xe] %v381
        %v383 = vld [vmem:[#allocation2 + $0x11c] sm:$0xe]
        %v384 = vsel %vm340, 0, %v383
        %385 = vst [vmem:[#allocation2 + $0x11c] sm:$0xe] %v384
        %v386 = vld [vmem:[#allocation2 + $0x130] sm:$0xe]
        %v387 = vsel %vm340, 0, %v386
        %388 = vst [vmem:[#allocation2 + $0x130] sm:$0xe] %v387
        %vm389 = vcmask 1042432
        %vm390 = vsmask.f32 2304
        %vm391 = vmand %vm389, %vm390
        %v392 = vld [vmem:[#allocation2 + $0x10] sm:$0x7]
        %v393 = vsel %vm391, 0, %v392
        %394 = vst [vmem:[#allocation2 + $0x10] sm:$0x7] %v393
        %v395 = vld [vmem:[#allocation2 + $0x24] sm:$0x7]
        %v396 = vsel %vm391, 0, %v395
        %397 = vst [vmem:[#allocation2 + $0x24] sm:$0x7] %v396
        %v398 = vld [vmem:[#allocation2 + $0x38] sm:$0x7]
        %v399 = vsel %vm391, 0, %v398
        %400 = vst [vmem:[#allocation2 + $0x38] sm:$0x7] %v399
        %v401 = vld [vmem:[#allocation2 + $0x4c] sm:$0x7]
        %v402 = vsel %vm391, 0, %v401
        %403 = vst [vmem:[#allocation2 + $0x4c] sm:$0x7] %v402
        %v404 = vld [vmem:[#allocation2 + $0x60] sm:$0x7]
        %v405 = vsel %vm391, 0, %v404
        %406 = vst [vmem:[#allocation2 + $0x60] sm:$0x7] %v405
        %v407 = vld [vmem:[#allocation2 + $0x74] sm:$0x7]
        %v408 = vsel %vm391, 0, %v407
        %409 = vst [vmem:[#allocation2 + $0x74] sm:$0x7] %v408
        %v410 = vld [vmem:[#allocation2 + $0x88] sm:$0x7]
        %v411 = vsel %vm391, 0, %v410
        %412 = vst [vmem:[#allocation2 + $0x88] sm:$0x7] %v411
        %v413 = vld [vmem:[#allocation2 + $0x9c] sm:$0x7]
        %v414 = vsel %vm391, 0, %v413
        %415 = vst [vmem:[#allocation2 + $0x9c] sm:$0x7] %v414
        %v416 = vld [vmem:[#allocation2 + $0xb0] sm:$0x7]
        %v417 = vsel %vm391, 0, %v416
        %418 = vst [vmem:[#allocation2 + $0xb0] sm:$0x7] %v417
        %v419 = vld [vmem:[#allocation2 + $0xc4] sm:$0x7]
        %v420 = vsel %vm391, 0, %v419
        %421 = vst [vmem:[#allocation2 + $0xc4] sm:$0x7] %v420
        %v422 = vld [vmem:[#allocation2 + $0xd8] sm:$0x7]
        %v423 = vsel %vm391, 0, %v422
        %424 = vst [vmem:[#allocation2 + $0xd8] sm:$0x7] %v423
        %v425 = vld [vmem:[#allocation2 + $0xec] sm:$0x7]
        %v426 = vsel %vm391, 0, %v425
        %427 = vst [vmem:[#allocation2 + $0xec] sm:$0x7] %v426
        %v428 = vld [vmem:[#allocation2 + $0x100] sm:$0x7]
        %v429 = vsel %vm391, 0, %v428
        %430 = vst [vmem:[#allocation2 + $0x100] sm:$0x7] %v429
        %v431 = vld [vmem:[#allocation2 + $0x114] sm:$0x7]
        %v432 = vsel %vm391, 0, %v431
        %433 = vst [vmem:[#allocation2 + $0x114] sm:$0x7] %v432
        %v434 = vld [vmem:[#allocation2 + $0x128] sm:$0x7]
        %v435 = vsel %vm391, 0, %v434
        %436 = vst [vmem:[#allocation2 + $0x128] sm:$0x7] %v435
        %v437 = vld [vmem:[#allocation2 + $0x13c] sm:$0x7]
        %v438 = vsel %vm391, 0, %v437
        %439 = vst [vmem:[#allocation2 + $0x13c] sm:$0x7] %v438
        %v440 = vld [vmem:[%s334] sm:$0xf]
        %v441 = vld [vmem:[%s334 + $0x4] sm:$0xf]
        %v442 = vld [vmem:[%s334 + $0x8] sm:$0xf]
        %v443 = vld [vmem:[%s334 + $0xc] sm:$0xf]
        %v444 = vld [vmem:[%s334 + $0x10] sm:$0xf]
        %v445 = vld [vmem:[%s334 + $0x14] sm:$0xf]
        %v446 = vld [vmem:[%s334 + $0x18] sm:$0xf]
        %v447 = vld [vmem:[%s334 + $0x1c] sm:$0xf]
        %v448 = vld [vmem:[%s334 + $0x20] sm:$0xf]
        %v449 = vld [vmem:[%s334 + $0x24] sm:$0xf]
        %v450 = vld [vmem:[%s334 + $0x28] sm:$0xf]
        %v451 = vld [vmem:[%s334 + $0x2c] sm:$0xf]
        %v452 = vld [vmem:[%s334 + $0x30] sm:$0xf]
        %v453 = vld [vmem:[%s334 + $0x34] sm:$0xf]
        %v454 = vld [vmem:[%s334 + $0x38] sm:$0xf]
        %v455 = vld [vmem:[%s334 + $0x3c] sm:$0xf]
        %v456 = vld [vmem:[%s334 + $0x40] sm:$0xf]
        %v457 = vld [vmem:[%s334 + $0x44] sm:$0xf]
        %v458 = vld [vmem:[%s334 + $0x48] sm:$0xf]
        %v459 = vld [vmem:[%s334 + $0x4c] sm:$0xf]
        %v460 = vld [vmem:[%s334 + $0x50] sm:$0xf]
        %v461 = vld [vmem:[%s334 + $0x54] sm:$0xf]
        %v462 = vld [vmem:[%s334 + $0x58] sm:$0xf]
        %v463 = vld [vmem:[%s334 + $0x5c] sm:$0xf]
        %v464 = vld [vmem:[%s334 + $0x60] sm:$0xf]
        %v465 = vld [vmem:[%s334 + $0x64] sm:$0xf]
        %v466 = vld [vmem:[%s334 + $0x68] sm:$0xf]
        %v467 = vld [vmem:[%s334 + $0x6c] sm:$0xf]
        %v468 = vld [vmem:[%s334 + $0x70] sm:$0xf]
        %v469 = vld [vmem:[%s334 + $0x74] sm:$0xf]
        %v470 = vld [vmem:[%s334 + $0x78] sm:$0xf]
        %v471 = vld [vmem:[%s334 + $0x7c] sm:$0xf]
        %472 = vst [vmem:[#allocation2 + $0x8] sm:$0xf] %v440
        %473 = vst [vmem:[#allocation2 + $0xc] sm:$0xf] %v441
        %474 = vst [vmem:[#allocation2 + $0x1c] sm:$0xf] %v442
        %475 = vst [vmem:[#allocation2 + $0x20] sm:$0xf] %v443
        %476 = vst [vmem:[#allocation2 + $0x30] sm:$0xf] %v444
        %477 = vst [vmem:[#allocation2 + $0x34] sm:$0xf] %v445
        %478 = vst [vmem:[#allocation2 + $0x44] sm:$0xf] %v446
        %479 = vst [vmem:[#allocation2 + $0x48] sm:$0xf] %v447
        %480 = vst [vmem:[#allocation2 + $0x58] sm:$0xf] %v448
        %481 = vst [vmem:[#allocation2 + $0x5c] sm:$0xf] %v449
        %482 = vst [vmem:[#allocation2 + $0x6c] sm:$0xf] %v450
        %483 = vst [vmem:[#allocation2 + $0x70] sm:$0xf] %v451
        %484 = vst [vmem:[#allocation2 + $0x80] sm:$0xf] %v452
        %485 = vst [vmem:[#allocation2 + $0x84] sm:$0xf] %v453
        %486 = vst [vmem:[#allocation2 + $0x94] sm:$0xf] %v454
        %487 = vst [vmem:[#allocation2 + $0x98] sm:$0xf] %v455
        %488 = vst [vmem:[#allocation2 + $0xa8] sm:$0xf] %v456
        %489 = vst [vmem:[#allocation2 + $0xac] sm:$0xf] %v457
        %490 = vst [vmem:[#allocation2 + $0xbc] sm:$0xf] %v458
        %491 = vst [vmem:[#allocation2 + $0xc0] sm:$0xf] %v459
        %492 = vst [vmem:[#allocation2 + $0xd0] sm:$0xf] %v460
        %493 = vst [vmem:[#allocation2 + $0xd4] sm:$0xf] %v461
        %494 = vst [vmem:[#allocation2 + $0xe4] sm:$0xf] %v462
        %495 = vst [vmem:[#allocation2 + $0xe8] sm:$0xf] %v463
        %496 = vst [vmem:[#allocation2 + $0xf8] sm:$0xf] %v464
        %497 = vst [vmem:[#allocation2 + $0xfc] sm:$0xf] %v465
        %498 = vst [vmem:[#allocation2 + $0x10c] sm:$0xf] %v466
        %499 = vst [vmem:[#allocation2 + $0x110] sm:$0xf] %v467
        %500 = vst [vmem:[#allocation2 + $0x120] sm:$0xf] %v468
        %501 = vst [vmem:[#allocation2 + $0x124] sm:$0xf] %v469
        %502 = vst [vmem:[#allocation2 + $0x134] sm:$0xf] %v470
        %503 = vst [vmem:[#allocation2 + $0x138] sm:$0xf] %v471
        %v504 = vld [vmem:[#allocation2 + $0x4] sm:$0xe]
        %v505 = vld [vmem:[#allocation2 + $0x8] sm:$0xf]
        %v506 = vld [vmem:[#allocation2 + $0xc] sm:$0x3]
        %v507 = vld [vmem:[#allocation2 + $0x18] sm:$0xe]
        %v508 = vld [vmem:[#allocation2 + $0x1c] sm:$0xf]
        %v509 = vld [vmem:[#allocation2 + $0x20] sm:$0x3]
        %v510 = vld [vmem:[#allocation2 + $0x2c] sm:$0xe]
        %v511 = vld [vmem:[#allocation2 + $0x30] sm:$0xf]
        %v512 = vld [vmem:[#allocation2 + $0x34] sm:$0x3]
        %v513 = vld [vmem:[#allocation2 + $0x40] sm:$0xe]
        %v514 = vld [vmem:[#allocation2 + $0x44] sm:$0xf]
        %v515 = vld [vmem:[#allocation2 + $0x48] sm:$0x3]
        %v516 = vld [vmem:[#allocation2 + $0x54] sm:$0xe]
        %v517 = vld [vmem:[#allocation2 + $0x58] sm:$0xf]
        %v518 = vld [vmem:[#allocation2 + $0x5c] sm:$0x3]
        %v519 = vld [vmem:[#allocation2 + $0x68] sm:$0xe]
        %v520 = vld [vmem:[#allocation2 + $0x6c] sm:$0xf]
        %v521 = vld [vmem:[#allocation2 + $0x70] sm:$0x3]
        %v522 = vld [vmem:[#allocation2 + $0x7c] sm:$0xe]
        %v523 = vld [vmem:[#allocation2 + $0x80] sm:$0xf]
        %v524 = vld [vmem:[#allocation2 + $0x84] sm:$0x3]
        %v525 = vld [vmem:[#allocation2 + $0x90] sm:$0xe]
        %v526 = vld [vmem:[#allocation2 + $0x94] sm:$0xf]
        %v527 = vld [vmem:[#allocation2 + $0x98] sm:$0x3]
        %v528 = vld [vmem:[#allocation2 + $0xa4] sm:$0xe]
        %v529 = vld [vmem:[#allocation2 + $0xa8] sm:$0xf]
        %v530 = vld [vmem:[#allocation2 + $0xac] sm:$0x3]
        %v531 = vld [vmem:[#allocation2 + $0xb8] sm:$0xe]
        %v532 = vld [vmem:[#allocation2 + $0xbc] sm:$0xf]
        %v533 = vld [vmem:[#allocation2 + $0xc0] sm:$0x3]
        %v534 = vld [vmem:[#allocation2 + $0xcc] sm:$0xe]
        %v535 = vld [vmem:[#allocation2 + $0xd0] sm:$0xf]
        %v536 = vld [vmem:[#allocation2 + $0xd4] sm:$0x3]
        %v537 = vld [vmem:[#allocation2 + $0xe0] sm:$0xe]
        %v538 = vld [vmem:[#allocation2 + $0xe4] sm:$0xf]
        %v539 = vld [vmem:[#allocation2 + $0xe8] sm:$0x3]
        %v540 = vld [vmem:[#allocation2 + $0xf4] sm:$0xe]
        %v541 = vld [vmem:[#allocation2 + $0xf8] sm:$0xf]
        %v542 = vld [vmem:[#allocation2 + $0xfc] sm:$0x3]
        %v543 = vld [vmem:[#allocation2 + $0x108] sm:$0xe]
        %v544 = vld [vmem:[#allocation2 + $0x10c] sm:$0xf]
        %v545 = vld [vmem:[#allocation2 + $0x110] sm:$0x3]
        %v546 = vld [vmem:[#allocation2 + $0x11c] sm:$0xe]
        %v547 = vld [vmem:[#allocation2 + $0x120] sm:$0xf]
        %v548 = vld [vmem:[#allocation2 + $0x124] sm:$0x3]
        %v549 = vld [vmem:[#allocation2 + $0x130] sm:$0xe]
        %v550 = vld [vmem:[#allocation2 + $0x134] sm:$0xf]
        %v551 = vld [vmem:[#allocation2 + $0x138] sm:$0x3]
        %v552 = vld [vmem:[#allocation2 + $0x4] sm:$0xc]
        %v553 = vld [vmem:[#allocation2 + $0x18] sm:$0xc]
        %v554 = vld [vmem:[#allocation2 + $0x2c] sm:$0xc]
        %v555 = vld [vmem:[#allocation2 + $0x40] sm:$0xc]
        %v556 = vld [vmem:[#allocation2 + $0x54] sm:$0xc]
        %v557 = vld [vmem:[#allocation2 + $0x68] sm:$0xc]
        %v558 = vld [vmem:[#allocation2 + $0x7c] sm:$0xc]
        %v559 = vld [vmem:[#allocation2 + $0x90] sm:$0xc]
        %v560 = vld [vmem:[#allocation2 + $0xa4] sm:$0xc]
        %v561 = vld [vmem:[#allocation2 + $0xb8] sm:$0xc]
        %v562 = vld [vmem:[#allocation2 + $0xcc] sm:$0xc]
        %v563 = vld [vmem:[#allocation2 + $0xe0] sm:$0xc]
        %v564 = vld [vmem:[#allocation2 + $0xf4] sm:$0xc]
        %v565 = vld [vmem:[#allocation2 + $0x108] sm:$0xc]
        %v566 = vld [vmem:[#allocation2 + $0x11c] sm:$0xc]
        %v567 = vld [vmem:[#allocation2 + $0x130] sm:$0xc]
        %v616 = vunpack.c.l.b16 %v504
        %v617 = vunpack.c.l.b16 %v505
        %v618 = vunpack.c.l.b16 %v506
        %v619 = vunpack.c.l.b16 %v507
        %v620 = vunpack.c.l.b16 %v508
        %v621 = vunpack.c.l.b16 %v509
        %v622 = vunpack.c.l.b16 %v510
        %v623 = vunpack.c.l.b16 %v511
        %v624 = vunpack.c.l.b16 %v512
        %v625 = vunpack.c.l.b16 %v513
        %v626 = vunpack.c.l.b16 %v514
        %v627 = vunpack.c.l.b16 %v515
        %v628 = vunpack.c.l.b16 %v516
        %v629 = vunpack.c.l.b16 %v517
        %v630 = vunpack.c.l.b16 %v518
        %v631 = vunpack.c.l.b16 %v519
        %v632 = vunpack.c.l.b16 %v520
        %v633 = vunpack.c.l.b16 %v521
        %v634 = vunpack.c.l.b16 %v522
        %v635 = vunpack.c.l.b16 %v523
        %v636 = vunpack.c.l.b16 %v524
        %v637 = vunpack.c.l.b16 %v525
        %v638 = vunpack.c.l.b16 %v526
        %v639 = vunpack.c.l.b16 %v527
        %v640 = vunpack.c.l.b16 %v528
        %v641 = vunpack.c.l.b16 %v529
        %v642 = vunpack.c.l.b16 %v530
        %v643 = vunpack.c.l.b16 %v531
        %v644 = vunpack.c.l.b16 %v532
        %v645 = vunpack.c.l.b16 %v533
        %v646 = vunpack.c.l.b16 %v534
        %v647 = vunpack.c.l.b16 %v535
        %v648 = vunpack.c.l.b16 %v536
        %v649 = vunpack.c.l.b16 %v537
        %v650 = vunpack.c.l.b16 %v538
        %v651 = vunpack.c.l.b16 %v539
        %v652 = vunpack.c.l.b16 %v540
        %v653 = vunpack.c.l.b16 %v541
        %v654 = vunpack.c.l.b16 %v542
        %v655 = vunpack.c.l.b16 %v543
        %v656 = vunpack.c.l.b16 %v544
        %v657 = vunpack.c.l.b16 %v545
        %v658 = vunpack.c.l.b16 %v546
        %v659 = vunpack.c.l.b16 %v547
        %v660 = vunpack.c.l.b16 %v548
        %v661 = vunpack.c.l.b16 %v549
        %v662 = vunpack.c.l.b16 %v550
        %v663 = vunpack.c.l.b16 %v551
        %v664 = vpack.c.b16 %v617, %v616
        %v665 = vpack.c.b16 %v618, %v618
        %v666 = vpack.c.b16 %v620, %v619
        %v667 = vpack.c.b16 %v621, %v621
        %v668 = vpack.c.b16 %v623, %v622
        %v669 = vpack.c.b16 %v624, %v624
        %v670 = vpack.c.b16 %v626, %v625
        %v671 = vpack.c.b16 %v627, %v627
        %v672 = vpack.c.b16 %v629, %v628
        %v673 = vpack.c.b16 %v630, %v630
        %v674 = vpack.c.b16 %v632, %v631
        %v675 = vpack.c.b16 %v633, %v633
        %v676 = vpack.c.b16 %v635, %v634
        %v677 = vpack.c.b16 %v636, %v636
        %v678 = vpack.c.b16 %v638, %v637
        %v679 = vpack.c.b16 %v639, %v639
        %v680 = vpack.c.b16 %v641, %v640
        %v681 = vpack.c.b16 %v642, %v642
        %v682 = vpack.c.b16 %v644, %v643
        %v683 = vpack.c.b16 %v645, %v645
        %v684 = vpack.c.b16 %v647, %v646
        %v685 = vpack.c.b16 %v648, %v648
        %v686 = vpack.c.b16 %v650, %v649
        %v687 = vpack.c.b16 %v651, %v651
        %v688 = vpack.c.b16 %v653, %v652
        %v689 = vpack.c.b16 %v654, %v654
        %v690 = vpack.c.b16 %v656, %v655
        %v691 = vpack.c.b16 %v657, %v657
        %v692 = vpack.c.b16 %v659, %v658
        %v693 = vpack.c.b16 %v660, %v660
        %v694 = vpack.c.b16 %v662, %v661
        %v695 = vpack.c.b16 %v663, %v663
        %v712 = vunpack.c.l.b16 %v552
        %v713 = vunpack.c.l.b16 %v553
        %v714 = vunpack.c.l.b16 %v554
        %v715 = vunpack.c.l.b16 %v555
        %v716 = vunpack.c.l.b16 %v556
        %v717 = vunpack.c.l.b16 %v557
        %v718 = vunpack.c.l.b16 %v558
        %v719 = vunpack.c.l.b16 %v559
        %v720 = vunpack.c.l.b16 %v560
        %v721 = vunpack.c.l.b16 %v561
        %v722 = vunpack.c.l.b16 %v562
        %v723 = vunpack.c.l.b16 %v563
        %v724 = vunpack.c.l.b16 %v564
        %v725 = vunpack.c.l.b16 %v565
        %v726 = vunpack.c.l.b16 %v566
        %v727 = vunpack.c.l.b16 %v567
        %v728 = vpack.c.b16 %v617, %v712
        %v729 = vpack.c.b16 %v620, %v713
        %v730 = vpack.c.b16 %v623, %v714
        %v731 = vpack.c.b16 %v626, %v715
        %v732 = vpack.c.b16 %v629, %v716
        %v733 = vpack.c.b16 %v632, %v717
        %v734 = vpack.c.b16 %v635, %v718
        %v735 = vpack.c.b16 %v638, %v719
        %v736 = vpack.c.b16 %v641, %v720
        %v737 = vpack.c.b16 %v644, %v721
        %v738 = vpack.c.b16 %v647, %v722
        %v739 = vpack.c.b16 %v650, %v723
        %v740 = vpack.c.b16 %v653, %v724
        %v741 = vpack.c.b16 %v656, %v725
        %v742 = vpack.c.b16 %v659, %v726
        %v743 = vpack.c.b16 %v662, %v727
        %vm744 = vsmask.f32 7424
        %v746 = vshrl.u32 %v728, 16
        %v748 = vshll.u32 %v728, 16
        %v750 = vrot.slane %v748, 1
        %v751 = vor.u32 %v746, %v750
        %v753 = vshll.u32 %v665, 16
        %v755 = vrot.slane %v753, 1
        %v756 = vsel %vm744, %v751, %v755
        %v757 = vshrl.u32 %v665, 16
        %v759 = vor.u32 %v757, %v755
        %v761 = vshrl.u32 %v729, 16
        %v763 = vshll.u32 %v729, 16
        %v765 = vrot.slane %v763, 1
        %v766 = vor.u32 %v761, %v765
        %v768 = vshll.u32 %v667, 16
        %v770 = vrot.slane %v768, 1
        %v771 = vsel %vm744, %v766, %v770
        %v772 = vshrl.u32 %v667, 16
        %v774 = vor.u32 %v772, %v770
        %v776 = vshrl.u32 %v730, 16
        %v778 = vshll.u32 %v730, 16
        %v780 = vrot.slane %v778, 1
        %v781 = vor.u32 %v776, %v780
        %v783 = vshll.u32 %v669, 16
        %v785 = vrot.slane %v783, 1
        %v786 = vsel %vm744, %v781, %v785
        %v787 = vshrl.u32 %v669, 16
        %v789 = vor.u32 %v787, %v785
        %v791 = vshrl.u32 %v731, 16
        %v793 = vshll.u32 %v731, 16
        %v795 = vrot.slane %v793, 1
        %v796 = vor.u32 %v791, %v795
        %v798 = vshll.u32 %v671, 16
        %v800 = vrot.slane %v798, 1
        %v801 = vsel %vm744, %v796, %v800
        %v802 = vshrl.u32 %v671, 16
        %v804 = vor.u32 %v802, %v800
        %v806 = vshrl.u32 %v732, 16
        %v808 = vshll.u32 %v732, 16
        %v810 = vrot.slane %v808, 1
        %v811 = vor.u32 %v806, %v810
        %v813 = vshll.u32 %v673, 16
        %v815 = vrot.slane %v813, 1
        %v816 = vsel %vm744, %v811, %v815
        %v817 = vshrl.u32 %v673, 16
        %v819 = vor.u32 %v817, %v815
        %v821 = vshrl.u32 %v733, 16
        %v823 = vshll.u32 %v733, 16
        %v825 = vrot.slane %v823, 1
        %v826 = vor.u32 %v821, %v825
        %v828 = vshll.u32 %v675, 16
        %v830 = vrot.slane %v828, 1
        %v831 = vsel %vm744, %v826, %v830
        %v832 = vshrl.u32 %v675, 16
        %v834 = vor.u32 %v832, %v830
        %v836 = vshrl.u32 %v734, 16
        %v838 = vshll.u32 %v734, 16
        %v840 = vrot.slane %v838, 1
        %v841 = vor.u32 %v836, %v840
        %v843 = vshll.u32 %v677, 16
        %v845 = vrot.slane %v843, 1
        %v846 = vsel %vm744, %v841, %v845
        %v847 = vshrl.u32 %v677, 16
        %v849 = vor.u32 %v847, %v845
        %v851 = vshrl.u32 %v735, 16
        %v853 = vshll.u32 %v735, 16
        %v855 = vrot.slane %v853, 1
        %v856 = vor.u32 %v851, %v855
        %v858 = vshll.u32 %v679, 16
        %v860 = vrot.slane %v858, 1
        %v861 = vsel %vm744, %v856, %v860
        %v862 = vshrl.u32 %v679, 16
        %v864 = vor.u32 %v862, %v860
        %v866 = vshrl.u32 %v736, 16
        %v868 = vshll.u32 %v736, 16
        %v870 = vrot.slane %v868, 1
        %v871 = vor.u32 %v866, %v870
        %v873 = vshll.u32 %v681, 16
        %v875 = vrot.slane %v873, 1
        %v876 = vsel %vm744, %v871, %v875
        %v877 = vshrl.u32 %v681, 16
        %v879 = vor.u32 %v877, %v875
        %v881 = vshrl.u32 %v737, 16
        %v883 = vshll.u32 %v737, 16
        %v885 = vrot.slane %v883, 1
        %v886 = vor.u32 %v881, %v885
        %v888 = vshll.u32 %v683, 16
        %v890 = vrot.slane %v888, 1
        %v891 = vsel %vm744, %v886, %v890
        %v892 = vshrl.u32 %v683, 16
        %v894 = vor.u32 %v892, %v890
        %v896 = vshrl.u32 %v738, 16
        %v898 = vshll.u32 %v738, 16
        %v900 = vrot.slane %v898, 1
        %v901 = vor.u32 %v896, %v900
        %v903 = vshll.u32 %v685, 16
        %v905 = vrot.slane %v903, 1
        %v906 = vsel %vm744, %v901, %v905
        %v907 = vshrl.u32 %v685, 16
        %v909 = vor.u32 %v907, %v905
        %v911 = vshrl.u32 %v739, 16
        %v913 = vshll.u32 %v739, 16
        %v915 = vrot.slane %v913, 1
        %v916 = vor.u32 %v911, %v915
        %v918 = vshll.u32 %v687, 16
        %v920 = vrot.slane %v918, 1
        %v921 = vsel %vm744, %v916, %v920
        %v922 = vshrl.u32 %v687, 16
        %v924 = vor.u32 %v922, %v920
        %v926 = vshrl.u32 %v740, 16
        %v928 = vshll.u32 %v740, 16
        %v930 = vrot.slane %v928, 1
        %v931 = vor.u32 %v926, %v930
        %v933 = vshll.u32 %v689, 16
        %v935 = vrot.slane %v933, 1
        %v936 = vsel %vm744, %v931, %v935
        %v937 = vshrl.u32 %v689, 16
        %v939 = vor.u32 %v937, %v935
        %v941 = vshrl.u32 %v741, 16
        %v943 = vshll.u32 %v741, 16
        %v945 = vrot.slane %v943, 1
        %v946 = vor.u32 %v941, %v945
        %v948 = vshll.u32 %v691, 16
        %v950 = vrot.slane %v948, 1
        %v951 = vsel %vm744, %v946, %v950
        %v952 = vshrl.u32 %v691, 16
        %v954 = vor.u32 %v952, %v950
        %v956 = vshrl.u32 %v742, 16
        %v958 = vshll.u32 %v742, 16
        %v960 = vrot.slane %v958, 1
        %v961 = vor.u32 %v956, %v960
        %v963 = vshll.u32 %v693, 16
        %v965 = vrot.slane %v963, 1
        %v966 = vsel %vm744, %v961, %v965
        %v967 = vshrl.u32 %v693, 16
        %v969 = vor.u32 %v967, %v965
        %v971 = vshrl.u32 %v743, 16
        %v973 = vshll.u32 %v743, 16
        %v975 = vrot.slane %v973, 1
        %v976 = vor.u32 %v971, %v975
        %v978 = vshll.u32 %v695, 16
        %v980 = vrot.slane %v978, 1
        %v981 = vsel %vm744, %v976, %v980
        %v982 = vshrl.u32 %v695, 16
        %v984 = vor.u32 %v982, %v980
        %vm985 = vsmask.f32 6400
        %v987 = vshrl.u32 %v664, 16
        %v989 = vrot.slane %v987, 1
        %v990 = vshll.u32 %v664, 16
        %v992 = vrot.slane %v990, 2
        %v993 = vor.u32 %v989, %v992
        %v994 = vrot.slane %v757, 1
        %v995 = vrot.slane %v753, 2
        %v996 = vor.u32 %v994, %v995
        %v997 = vsel %vm985, %v993, %v996
        %v999 = vshrl.u32 %v756, 16
        %v1001 = vrot.slane %v999, 1
        %v1002 = vshll.u32 %v756, 16
        %v1004 = vrot.slane %v1002, 2
        %v1005 = vor.u32 %v1001, %v1004
        %v1007 = vshrl.u32 %v759, 16
        %v1009 = vrot.slane %v1007, 1
        %v1010 = vshll.u32 %v759, 16
        %v1012 = vrot.slane %v1010, 2
        %v1013 = vor.u32 %v1009, %v1012
        %v1014 = vsel %vm985, %v1005, %v1013
        %v1016 = vshrl.u32 %v666, 16
        %v1018 = vrot.slane %v1016, 1
        %v1019 = vshll.u32 %v666, 16
        %v1021 = vrot.slane %v1019, 2
        %v1022 = vor.u32 %v1018, %v1021
        %v1023 = vrot.slane %v772, 1
        %v1024 = vrot.slane %v768, 2
        %v1025 = vor.u32 %v1023, %v1024
        %v1026 = vsel %vm985, %v1022, %v1025
        %v1028 = vshrl.u32 %v771, 16
        %v1030 = vrot.slane %v1028, 1
        %v1031 = vshll.u32 %v771, 16
        %v1033 = vrot.slane %v1031, 2
        %v1034 = vor.u32 %v1030, %v1033
        %v1036 = vshrl.u32 %v774, 16
        %v1038 = vrot.slane %v1036, 1
        %v1039 = vshll.u32 %v774, 16
        %v1041 = vrot.slane %v1039, 2
        %v1042 = vor.u32 %v1038, %v1041
        %v1043 = vsel %vm985, %v1034, %v1042
        %v1045 = vshrl.u32 %v668, 16
        %v1047 = vrot.slane %v1045, 1
        %v1048 = vshll.u32 %v668, 16
        %v1050 = vrot.slane %v1048, 2
        %v1051 = vor.u32 %v1047, %v1050
        %v1052 = vrot.slane %v787, 1
        %v1053 = vrot.slane %v783, 2
        %v1054 = vor.u32 %v1052, %v1053
        %v1055 = vsel %vm985, %v1051, %v1054
        %v1057 = vshrl.u32 %v786, 16
        %v1059 = vrot.slane %v1057, 1
        %v1060 = vshll.u32 %v786, 16
        %v1062 = vrot.slane %v1060, 2
        %v1063 = vor.u32 %v1059, %v1062
        %v1065 = vshrl.u32 %v789, 16
        %v1067 = vrot.slane %v1065, 1
        %v1068 = vshll.u32 %v789, 16
        %v1070 = vrot.slane %v1068, 2
        %v1071 = vor.u32 %v1067, %v1070
        %v1072 = vsel %vm985, %v1063, %v1071
        %v1074 = vshrl.u32 %v670, 16
        %v1076 = vrot.slane %v1074, 1
        %v1077 = vshll.u32 %v670, 16
        %v1079 = vrot.slane %v1077, 2
        %v1080 = vor.u32 %v1076, %v1079
        %v1081 = vrot.slane %v802, 1
        %v1082 = vrot.slane %v798, 2
        %v1083 = vor.u32 %v1081, %v1082
        %v1084 = vsel %vm985, %v1080, %v1083
        %v1086 = vshrl.u32 %v801, 16
        %v1088 = vrot.slane %v1086, 1
        %v1089 = vshll.u32 %v801, 16
        %v1091 = vrot.slane %v1089, 2
        %v1092 = vor.u32 %v1088, %v1091
        %v1094 = vshrl.u32 %v804, 16
        %v1096 = vrot.slane %v1094, 1
        %v1097 = vshll.u32 %v804, 16
        %v1099 = vrot.slane %v1097, 2
        %v1100 = vor.u32 %v1096, %v1099
        %v1101 = vsel %vm985, %v1092, %v1100
        %v1103 = vshrl.u32 %v672, 16
        %v1105 = vrot.slane %v1103, 1
        %v1106 = vshll.u32 %v672, 16
        %v1108 = vrot.slane %v1106, 2
        %v1109 = vor.u32 %v1105, %v1108
        %v1110 = vrot.slane %v817, 1
        %v1111 = vrot.slane %v813, 2
        %v1112 = vor.u32 %v1110, %v1111
        %v1113 = vsel %vm985, %v1109, %v1112
        %v1115 = vshrl.u32 %v816, 16
        %v1117 = vrot.slane %v1115, 1
        %v1118 = vshll.u32 %v816, 16
        %v1120 = vrot.slane %v1118, 2
        %v1121 = vor.u32 %v1117, %v1120
        %v1123 = vshrl.u32 %v819, 16
        %v1125 = vrot.slane %v1123, 1
        %v1126 = vshll.u32 %v819, 16
        %v1128 = vrot.slane %v1126, 2
        %v1129 = vor.u32 %v1125, %v1128
        %v1130 = vsel %vm985, %v1121, %v1129
        %v1132 = vshrl.u32 %v674, 16
        %v1134 = vrot.slane %v1132, 1
        %v1135 = vshll.u32 %v674, 16
        %v1137 = vrot.slane %v1135, 2
        %v1138 = vor.u32 %v1134, %v1137
        %v1139 = vrot.slane %v832, 1
        %v1140 = vrot.slane %v828, 2
        %v1141 = vor.u32 %v1139, %v1140
        %v1142 = vsel %vm985, %v1138, %v1141
        %v1144 = vshrl.u32 %v831, 16
        %v1146 = vrot.slane %v1144, 1
        %v1147 = vshll.u32 %v831, 16
        %v1149 = vrot.slane %v1147, 2
        %v1150 = vor.u32 %v1146, %v1149
        %v1152 = vshrl.u32 %v834, 16
        %v1154 = vrot.slane %v1152, 1
        %v1155 = vshll.u32 %v834, 16
        %v1157 = vrot.slane %v1155, 2
        %v1158 = vor.u32 %v1154, %v1157
        %v1159 = vsel %vm985, %v1150, %v1158
        %v1161 = vshrl.u32 %v676, 16
        %v1163 = vrot.slane %v1161, 1
        %v1164 = vshll.u32 %v676, 16
        %v1166 = vrot.slane %v1164, 2
        %v1167 = vor.u32 %v1163, %v1166
        %v1168 = vrot.slane %v847, 1
        %v1169 = vrot.slane %v843, 2
        %v1170 = vor.u32 %v1168, %v1169
        %v1171 = vsel %vm985, %v1167, %v1170
        %v1173 = vshrl.u32 %v846, 16
        %v1175 = vrot.slane %v1173, 1
        %v1176 = vshll.u32 %v846, 16
        %v1178 = vrot.slane %v1176, 2
        %v1179 = vor.u32 %v1175, %v1178
        %v1181 = vshrl.u32 %v849, 16
        %v1183 = vrot.slane %v1181, 1
        %v1184 = vshll.u32 %v849, 16
        %v1186 = vrot.slane %v1184, 2
        %v1187 = vor.u32 %v1183, %v1186
        %v1188 = vsel %vm985, %v1179, %v1187
        %v1190 = vshrl.u32 %v678, 16
        %v1192 = vrot.slane %v1190, 1
        %v1193 = vshll.u32 %v678, 16
        %v1195 = vrot.slane %v1193, 2
        %v1196 = vor.u32 %v1192, %v1195
        %v1197 = vrot.slane %v862, 1
        %v1198 = vrot.slane %v858, 2
        %v1199 = vor.u32 %v1197, %v1198
        %v1200 = vsel %vm985, %v1196, %v1199
        %v1202 = vshrl.u32 %v861, 16
        %v1204 = vrot.slane %v1202, 1
        %v1205 = vshll.u32 %v861, 16
        %v1207 = vrot.slane %v1205, 2
        %v1208 = vor.u32 %v1204, %v1207
        %v1210 = vshrl.u32 %v864, 16
        %v1212 = vrot.slane %v1210, 1
        %v1213 = vshll.u32 %v864, 16
        %v1215 = vrot.slane %v1213, 2
        %v1216 = vor.u32 %v1212, %v1215
        %v1217 = vsel %vm985, %v1208, %v1216
        %v1219 = vshrl.u32 %v680, 16
        %v1221 = vrot.slane %v1219, 1
        %v1222 = vshll.u32 %v680, 16
        %v1224 = vrot.slane %v1222, 2
        %v1225 = vor.u32 %v1221, %v1224
        %v1226 = vrot.slane %v877, 1
        %v1227 = vrot.slane %v873, 2
        %v1228 = vor.u32 %v1226, %v1227
        %v1229 = vsel %vm985, %v1225, %v1228
        %v1231 = vshrl.u32 %v876, 16
        %v1233 = vrot.slane %v1231, 1
        %v1234 = vshll.u32 %v876, 16
        %v1236 = vrot.slane %v1234, 2
        %v1237 = vor.u32 %v1233, %v1236
        %v1239 = vshrl.u32 %v879, 16
        %v1241 = vrot.slane %v1239, 1
        %v1242 = vshll.u32 %v879, 16
        %v1244 = vrot.slane %v1242, 2
        %v1245 = vor.u32 %v1241, %v1244
        %v1246 = vsel %vm985, %v1237, %v1245
        %v1248 = vshrl.u32 %v682, 16
        %v1250 = vrot.slane %v1248, 1
        %v1251 = vshll.u32 %v682, 16
        %v1253 = vrot.slane %v1251, 2
        %v1254 = vor.u32 %v1250, %v1253
        %v1255 = vrot.slane %v892, 1
        %v1256 = vrot.slane %v888, 2
        %v1257 = vor.u32 %v1255, %v1256
        %v1258 = vsel %vm985, %v1254, %v1257
        %v1260 = vshrl.u32 %v891, 16
        %v1262 = vrot.slane %v1260, 1
        %v1263 = vshll.u32 %v891, 16
        %v1265 = vrot.slane %v1263, 2
        %v1266 = vor.u32 %v1262, %v1265
        %v1268 = vshrl.u32 %v894, 16
        %v1270 = vrot.slane %v1268, 1
        %v1271 = vshll.u32 %v894, 16
        %v1273 = vrot.slane %v1271, 2
        %v1274 = vor.u32 %v1270, %v1273
        %v1275 = vsel %vm985, %v1266, %v1274
        %v1277 = vshrl.u32 %v684, 16
        %v1279 = vrot.slane %v1277, 1
        %v1280 = vshll.u32 %v684, 16
        %v1282 = vrot.slane %v1280, 2
        %v1283 = vor.u32 %v1279, %v1282
        %v1284 = vrot.slane %v907, 1
        %v1285 = vrot.slane %v903, 2
        %v1286 = vor.u32 %v1284, %v1285
        %v1287 = vsel %vm985, %v1283, %v1286
        %v1289 = vshrl.u32 %v906, 16
        %v1291 = vrot.slane %v1289, 1
        %v1292 = vshll.u32 %v906, 16
        %v1294 = vrot.slane %v1292, 2
        %v1295 = vor.u32 %v1291, %v1294
        %v1297 = vshrl.u32 %v909, 16
        %v1299 = vrot.slane %v1297, 1
        %v1300 = vshll.u32 %v909, 16
        %v1302 = vrot.slane %v1300, 2
        %v1303 = vor.u32 %v1299, %v1302
        %v1304 = vsel %vm985, %v1295, %v1303
        %v1306 = vshrl.u32 %v686, 16
        %v1308 = vrot.slane %v1306, 1
        %v1309 = vshll.u32 %v686, 16
        %v1311 = vrot.slane %v1309, 2
        %v1312 = vor.u32 %v1308, %v1311
        %v1313 = vrot.slane %v922, 1
        %v1314 = vrot.slane %v918, 2
        %v1315 = vor.u32 %v1313, %v1314
        %v1316 = vsel %vm985, %v1312, %v1315
        %v1318 = vshrl.u32 %v921, 16
        %v1320 = vrot.slane %v1318, 1
        %v1321 = vshll.u32 %v921, 16
        %v1323 = vrot.slane %v1321, 2
        %v1324 = vor.u32 %v1320, %v1323
        %v1326 = vshrl.u32 %v924, 16
        %v1328 = vrot.slane %v1326, 1
        %v1329 = vshll.u32 %v924, 16
        %v1331 = vrot.slane %v1329, 2
        %v1332 = vor.u32 %v1328, %v1331
        %v1333 = vsel %vm985, %v1324, %v1332
        %v1335 = vshrl.u32 %v688, 16
        %v1337 = vrot.slane %v1335, 1
        %v1338 = vshll.u32 %v688, 16
        %v1340 = vrot.slane %v1338, 2
        %v1341 = vor.u32 %v1337, %v1340
        %v1342 = vrot.slane %v937, 1
        %v1343 = vrot.slane %v933, 2
        %v1344 = vor.u32 %v1342, %v1343
        %v1345 = vsel %vm985, %v1341, %v1344
        %v1347 = vshrl.u32 %v936, 16
        %v1349 = vrot.slane %v1347, 1
        %v1350 = vshll.u32 %v936, 16
        %v1352 = vrot.slane %v1350, 2
        %v1353 = vor.u32 %v1349, %v1352
        %v1355 = vshrl.u32 %v939, 16
        %v1357 = vrot.slane %v1355, 1
        %v1358 = vshll.u32 %v939, 16
        %v1360 = vrot.slane %v1358, 2
        %v1361 = vor.u32 %v1357, %v1360
        %v1362 = vsel %vm985, %v1353, %v1361
        %v1364 = vshrl.u32 %v690, 16
        %v1366 = vrot.slane %v1364, 1
        %v1367 = vshll.u32 %v690, 16
        %v1369 = vrot.slane %v1367, 2
        %v1370 = vor.u32 %v1366, %v1369
        %v1371 = vrot.slane %v952, 1
        %v1372 = vrot.slane %v948, 2
        %v1373 = vor.u32 %v1371, %v1372
        %v1374 = vsel %vm985, %v1370, %v1373
        %v1376 = vshrl.u32 %v951, 16
        %v1378 = vrot.slane %v1376, 1
        %v1379 = vshll.u32 %v951, 16
        %v1381 = vrot.slane %v1379, 2
        %v1382 = vor.u32 %v1378, %v1381
        %v1384 = vshrl.u32 %v954, 16
        %v1386 = vrot.slane %v1384, 1
        %v1387 = vshll.u32 %v954, 16
        %v1389 = vrot.slane %v1387, 2
        %v1390 = vor.u32 %v1386, %v1389
        %v1391 = vsel %vm985, %v1382, %v1390
        %v1393 = vshrl.u32 %v692, 16
        %v1395 = vrot.slane %v1393, 1
        %v1396 = vshll.u32 %v692, 16
        %v1398 = vrot.slane %v1396, 2
        %v1399 = vor.u32 %v1395, %v1398
        %v1400 = vrot.slane %v967, 1
        %v1401 = vrot.slane %v963, 2
        %v1402 = vor.u32 %v1400, %v1401
        %v1403 = vsel %vm985, %v1399, %v1402
        %v1405 = vshrl.u32 %v966, 16
        %v1407 = vrot.slane %v1405, 1
        %v1408 = vshll.u32 %v966, 16
        %v1410 = vrot.slane %v1408, 2
        %v1411 = vor.u32 %v1407, %v1410
        %v1413 = vshrl.u32 %v969, 16
        %v1415 = vrot.slane %v1413, 1
        %v1416 = vshll.u32 %v969, 16
        %v1418 = vrot.slane %v1416, 2
        %v1419 = vor.u32 %v1415, %v1418
        %v1420 = vsel %vm985, %v1411, %v1419
        %v1422 = vshrl.u32 %v694, 16
        %v1424 = vrot.slane %v1422, 1
        %v1425 = vshll.u32 %v694, 16
        %v1427 = vrot.slane %v1425, 2
        %v1428 = vor.u32 %v1424, %v1427
        %v1429 = vrot.slane %v982, 1
        %v1430 = vrot.slane %v978, 2
        %v1431 = vor.u32 %v1429, %v1430
        %v1432 = vsel %vm985, %v1428, %v1431
        %v1434 = vshrl.u32 %v981, 16
        %v1436 = vrot.slane %v1434, 1
        %v1437 = vshll.u32 %v981, 16
        %v1439 = vrot.slane %v1437, 2
        %v1440 = vor.u32 %v1436, %v1439
        %v1442 = vshrl.u32 %v984, 16
        %v1444 = vrot.slane %v1442, 1
        %v1445 = vshll.u32 %v984, 16
        %v1447 = vrot.slane %v1445, 2
        %v1448 = vor.u32 %v1444, %v1447
        %v1449 = vsel %vm985, %v1440, %v1448
        %v1482 = vld [vmem:[%s1] sm:$0xf]
        %v1483 = vld [vmem:[%s1 + $0x4] sm:$0xf]
        %v1484 = vld [vmem:[%s1 + $0x8] sm:$0xf]
        %v1485 = vld [vmem:[%s1 + $0xc] sm:$0xf]
        %v1486 = vld [vmem:[%s1 + $0x10] sm:$0xf]
        %v1487 = vld [vmem:[%s1 + $0x14] sm:$0xf]
        %v1488 = vld [vmem:[%s1 + $0x18] sm:$0xf]
        %v1489 = vld [vmem:[%s1 + $0x1c] sm:$0xf]
        %v1490 = vld [vmem:[%s1 + $0x20] sm:$0xf]
        %v1491 = vld [vmem:[%s1 + $0x24] sm:$0xf]
        %v1492 = vld [vmem:[%s1 + $0x28] sm:$0xf]
        %v1493 = vld [vmem:[%s1 + $0x2c] sm:$0xf]
        %v1494 = vld [vmem:[%s1 + $0x30] sm:$0xf]
        %v1495 = vld [vmem:[%s1 + $0x34] sm:$0xf]
        %v1496 = vld [vmem:[%s1 + $0x38] sm:$0xf]
        %v1497 = vld [vmem:[%s1 + $0x3c] sm:$0xf]
        %v1498 = vld [vmem:[%s1 + $0x40] sm:$0xf]
        %v1499 = vld [vmem:[%s1 + $0x44] sm:$0xf]
        %v1500 = vld [vmem:[%s1 + $0x48] sm:$0xf]
        %v1501 = vld [vmem:[%s1 + $0x4c] sm:$0xf]
        %v1502 = vld [vmem:[%s1 + $0x50] sm:$0xf]
        %v1503 = vld [vmem:[%s1 + $0x54] sm:$0xf]
        %v1504 = vld [vmem:[%s1 + $0x58] sm:$0xf]
        %v1505 = vld [vmem:[%s1 + $0x5c] sm:$0xf]
        %v1506 = vld [vmem:[%s1 + $0x60] sm:$0xf]
        %v1507 = vld [vmem:[%s1 + $0x64] sm:$0xf]
        %v1508 = vld [vmem:[%s1 + $0x68] sm:$0xf]
        %v1509 = vld [vmem:[%s1 + $0x6c] sm:$0xf]
        %v1510 = vld [vmem:[%s1 + $0x70] sm:$0xf]
        %v1511 = vld [vmem:[%s1 + $0x74] sm:$0xf]
        %v1512 = vld [vmem:[%s1 + $0x78] sm:$0xf]
        %v1513 = vld [vmem:[%s1 + $0x7c] sm:$0xf]
        %v1514 = vld [vmem:[#allocation2 + $0xc] sm:$0x7]
        %v1515 = vld [vmem:[#allocation2 + $0x20] sm:$0x7]
        %v1516 = vld [vmem:[#allocation2 + $0x34] sm:$0x7]
        %v1517 = vld [vmem:[#allocation2 + $0x48] sm:$0x7]
        %v1518 = vld [vmem:[#allocation2 + $0x5c] sm:$0x7]
        %v1519 = vld [vmem:[#allocation2 + $0x70] sm:$0x7]
        %v1520 = vld [vmem:[#allocation2 + $0x84] sm:$0x7]
        %v1521 = vld [vmem:[#allocation2 + $0x98] sm:$0x7]
        %v1522 = vld [vmem:[#allocation2 + $0xac] sm:$0x7]
        %v1523 = vld [vmem:[#allocation2 + $0xc0] sm:$0x7]
        %v1524 = vld [vmem:[#allocation2 + $0xd4] sm:$0x7]
        %v1525 = vld [vmem:[#allocation2 + $0xe8] sm:$0x7]
        %v1526 = vld [vmem:[#allocation2 + $0xfc] sm:$0x7]
        %v1527 = vld [vmem:[#allocation2 + $0x110] sm:$0x7]
        %v1528 = vld [vmem:[#allocation2 + $0x124] sm:$0x7]
        %v1529 = vld [vmem:[#allocation2 + $0x138] sm:$0x7]
        %v1530 = vld [vmem:[#allocation2 + $0x4] sm:$0x8]
        %v1531 = vld [vmem:[#allocation2 + $0x18] sm:$0x8]
        %v1532 = vld [vmem:[#allocation2 + $0x2c] sm:$0x8]
        %v1533 = vld [vmem:[#allocation2 + $0x40] sm:$0x8]
        %v1534 = vld [vmem:[#allocation2 + $0x54] sm:$0x8]
        %v1535 = vld [vmem:[#allocation2 + $0x68] sm:$0x8]
        %v1536 = vld [vmem:[#allocation2 + $0x7c] sm:$0x8]
        %v1537 = vld [vmem:[#allocation2 + $0x90] sm:$0x8]
        %v1538 = vld [vmem:[#allocation2 + $0xa4] sm:$0x8]
        %v1539 = vld [vmem:[#allocation2 + $0xb8] sm:$0x8]
        %v1540 = vld [vmem:[#allocation2 + $0xcc] sm:$0x8]
        %v1541 = vld [vmem:[#allocation2 + $0xe0] sm:$0x8]
        %v1542 = vld [vmem:[#allocation2 + $0xf4] sm:$0x8]
        %v1543 = vld [vmem:[#allocation2 + $0x108] sm:$0x8]
        %v1544 = vld [vmem:[#allocation2 + $0x11c] sm:$0x8]
        %v1545 = vld [vmem:[#allocation2 + $0x130] sm:$0x8]
        %v1562 = vunpack.c.l.b16 %v1514
        %v1563 = vunpack.c.l.b16 %v1515
        %v1564 = vunpack.c.l.b16 %v1516
        %v1565 = vunpack.c.l.b16 %v1517
        %v1566 = vunpack.c.l.b16 %v1518
        %v1567 = vunpack.c.l.b16 %v1519
        %v1568 = vunpack.c.l.b16 %v1520
        %v1569 = vunpack.c.l.b16 %v1521
        %v1570 = vunpack.c.l.b16 %v1522
        %v1571 = vunpack.c.l.b16 %v1523
        %v1572 = vunpack.c.l.b16 %v1524
        %v1573 = vunpack.c.l.b16 %v1525
        %v1574 = vunpack.c.l.b16 %v1526
        %v1575 = vunpack.c.l.b16 %v1527
        %v1576 = vunpack.c.l.b16 %v1528
        %v1577 = vunpack.c.l.b16 %v1529
        %v1578 = vpack.c.b16 %v1562, %v1562
        %v1579 = vpack.c.b16 %v1563, %v1563
        %v1580 = vpack.c.b16 %v1564, %v1564
        %v1581 = vpack.c.b16 %v1565, %v1565
        %v1582 = vpack.c.b16 %v1566, %v1566
        %v1583 = vpack.c.b16 %v1567, %v1567
        %v1584 = vpack.c.b16 %v1568, %v1568
        %v1585 = vpack.c.b16 %v1569, %v1569
        %v1586 = vpack.c.b16 %v1570, %v1570
        %v1587 = vpack.c.b16 %v1571, %v1571
        %v1588 = vpack.c.b16 %v1572, %v1572
        %v1589 = vpack.c.b16 %v1573, %v1573
        %v1590 = vpack.c.b16 %v1574, %v1574
        %v1591 = vpack.c.b16 %v1575, %v1575
        %v1592 = vpack.c.b16 %v1576, %v1576
        %v1593 = vpack.c.b16 %v1577, %v1577
        %v1610 = vunpack.c.l.b16 %v1530
        %v1611 = vunpack.c.l.b16 %v1531
        %v1612 = vunpack.c.l.b16 %v1532
        %v1613 = vunpack.c.l.b16 %v1533
        %v1614 = vunpack.c.l.b16 %v1534
        %v1615 = vunpack.c.l.b16 %v1535
        %v1616 = vunpack.c.l.b16 %v1536
        %v1617 = vunpack.c.l.b16 %v1537
        %v1618 = vunpack.c.l.b16 %v1538
        %v1619 = vunpack.c.l.b16 %v1539
        %v1620 = vunpack.c.l.b16 %v1540
        %v1621 = vunpack.c.l.b16 %v1541
        %v1622 = vunpack.c.l.b16 %v1542
        %v1623 = vunpack.c.l.b16 %v1543
        %v1624 = vunpack.c.l.b16 %v1544
        %v1625 = vunpack.c.l.b16 %v1545
        %v1626 = vpack.c.b16 %v617, %v1610
        %v1627 = vpack.c.b16 %v620, %v1611
        %v1628 = vpack.c.b16 %v623, %v1612
        %v1629 = vpack.c.b16 %v626, %v1613
        %v1630 = vpack.c.b16 %v629, %v1614
        %v1631 = vpack.c.b16 %v632, %v1615
        %v1632 = vpack.c.b16 %v635, %v1616
        %v1633 = vpack.c.b16 %v638, %v1617
        %v1634 = vpack.c.b16 %v641, %v1618
        %v1635 = vpack.c.b16 %v644, %v1619
        %v1636 = vpack.c.b16 %v647, %v1620
        %v1637 = vpack.c.b16 %v650, %v1621
        %v1638 = vpack.c.b16 %v653, %v1622
        %v1639 = vpack.c.b16 %v656, %v1623
        %v1640 = vpack.c.b16 %v659, %v1624
        %v1641 = vpack.c.b16 %v662, %v1625
        %v1643 = vshrl.u32 %v1626, 16
        %v1645 = vshll.u32 %v1626, 16
        %v1647 = vrot.slane %v1645, 1
        %v1648 = vor.u32 %v1643, %v1647
        %v1650 = vshll.u32 %v1578, 16
        %v1652 = vrot.slane %v1650, 1
        %v1653 = vsel %vm744, %v1648, %v1652
        %v1654 = vshrl.u32 %v1578, 16
        %v1656 = vor.u32 %v1654, %v1652
        %v1658 = vshrl.u32 %v1627, 16
        %v1660 = vshll.u32 %v1627, 16
        %v1662 = vrot.slane %v1660, 1
        %v1663 = vor.u32 %v1658, %v1662
        %v1665 = vshll.u32 %v1579, 16
        %v1667 = vrot.slane %v1665, 1
        %v1668 = vsel %vm744, %v1663, %v1667
        %v1669 = vshrl.u32 %v1579, 16
        %v1671 = vor.u32 %v1669, %v1667
        %v1673 = vshrl.u32 %v1628, 16
        %v1675 = vshll.u32 %v1628, 16
        %v1677 = vrot.slane %v1675, 1
        %v1678 = vor.u32 %v1673, %v1677
        %v1680 = vshll.u32 %v1580, 16
        %v1682 = vrot.slane %v1680, 1
        %v1683 = vsel %vm744, %v1678, %v1682
        %v1684 = vshrl.u32 %v1580, 16
        %v1686 = vor.u32 %v1684, %v1682
        %v1688 = vshrl.u32 %v1629, 16
        %v1690 = vshll.u32 %v1629, 16
        %v1692 = vrot.slane %v1690, 1
        %v1693 = vor.u32 %v1688, %v1692
        %v1695 = vshll.u32 %v1581, 16
        %v1697 = vrot.slane %v1695, 1
        %v1698 = vsel %vm744, %v1693, %v1697
        %v1699 = vshrl.u32 %v1581, 16
        %v1701 = vor.u32 %v1699, %v1697
        %v1703 = vshrl.u32 %v1630, 16
        %v1705 = vshll.u32 %v1630, 16
        %v1707 = vrot.slane %v1705, 1
        %v1708 = vor.u32 %v1703, %v1707
        %v1710 = vshll.u32 %v1582, 16
        %v1712 = vrot.slane %v1710, 1
        %v1713 = vsel %vm744, %v1708, %v1712
        %v1714 = vshrl.u32 %v1582, 16
        %v1716 = vor.u32 %v1714, %v1712
        %v1718 = vshrl.u32 %v1631, 16
        %v1720 = vshll.u32 %v1631, 16
        %v1722 = vrot.slane %v1720, 1
        %v1723 = vor.u32 %v1718, %v1722
        %v1725 = vshll.u32 %v1583, 16
        %v1727 = vrot.slane %v1725, 1
        %v1728 = vsel %vm744, %v1723, %v1727
        %v1729 = vshrl.u32 %v1583, 16
        %v1731 = vor.u32 %v1729, %v1727
        %v1733 = vshrl.u32 %v1632, 16
        %v1735 = vshll.u32 %v1632, 16
        %v1737 = vrot.slane %v1735, 1
        %v1738 = vor.u32 %v1733, %v1737
        %v1740 = vshll.u32 %v1584, 16
        %v1742 = vrot.slane %v1740, 1
        %v1743 = vsel %vm744, %v1738, %v1742
        %v1744 = vshrl.u32 %v1584, 16
        %v1746 = vor.u32 %v1744, %v1742
        %v1748 = vshrl.u32 %v1633, 16
        %v1750 = vshll.u32 %v1633, 16
        %v1752 = vrot.slane %v1750, 1
        %v1753 = vor.u32 %v1748, %v1752
        %v1755 = vshll.u32 %v1585, 16
        %v1757 = vrot.slane %v1755, 1
        %v1758 = vsel %vm744, %v1753, %v1757
        %v1759 = vshrl.u32 %v1585, 16
        %v1761 = vor.u32 %v1759, %v1757
        %v1763 = vshrl.u32 %v1634, 16
        %v1765 = vshll.u32 %v1634, 16
        %v1767 = vrot.slane %v1765, 1
        %v1768 = vor.u32 %v1763, %v1767
        %v1770 = vshll.u32 %v1586, 16
        %v1772 = vrot.slane %v1770, 1
        %v1773 = vsel %vm744, %v1768, %v1772
        %v1774 = vshrl.u32 %v1586, 16
        %v1776 = vor.u32 %v1774, %v1772
        %v1778 = vshrl.u32 %v1635, 16
        %v1780 = vshll.u32 %v1635, 16
        %v1782 = vrot.slane %v1780, 1
        %v1783 = vor.u32 %v1778, %v1782
        %v1785 = vshll.u32 %v1587, 16
        %v1787 = vrot.slane %v1785, 1
        %v1788 = vsel %vm744, %v1783, %v1787
        %v1789 = vshrl.u32 %v1587, 16
        %v1791 = vor.u32 %v1789, %v1787
        %v1793 = vshrl.u32 %v1636, 16
        %v1795 = vshll.u32 %v1636, 16
        %v1797 = vrot.slane %v1795, 1
        %v1798 = vor.u32 %v1793, %v1797
        %v1800 = vshll.u32 %v1588, 16
        %v1802 = vrot.slane %v1800, 1
        %v1803 = vsel %vm744, %v1798, %v1802
        %v1804 = vshrl.u32 %v1588, 16
        %v1806 = vor.u32 %v1804, %v1802
        %v1808 = vshrl.u32 %v1637, 16
        %v1810 = vshll.u32 %v1637, 16
        %v1812 = vrot.slane %v1810, 1
        %v1813 = vor.u32 %v1808, %v1812
        %v1815 = vshll.u32 %v1589, 16
        %v1817 = vrot.slane %v1815, 1
        %v1818 = vsel %vm744, %v1813, %v1817
        %v1819 = vshrl.u32 %v1589, 16
        %v1821 = vor.u32 %v1819, %v1817
        %v1823 = vshrl.u32 %v1638, 16
        %v1825 = vshll.u32 %v1638, 16
        %v1827 = vrot.slane %v1825, 1
        %v1828 = vor.u32 %v1823, %v1827
        %v1830 = vshll.u32 %v1590, 16
        %v1832 = vrot.slane %v1830, 1
        %v1833 = vsel %vm744, %v1828, %v1832
        %v1834 = vshrl.u32 %v1590, 16
        %v1836 = vor.u32 %v1834, %v1832
        %v1838 = vshrl.u32 %v1639, 16
        %v1840 = vshll.u32 %v1639, 16
        %v1842 = vrot.slane %v1840, 1
        %v1843 = vor.u32 %v1838, %v1842
        %v1845 = vshll.u32 %v1591, 16
        %v1847 = vrot.slane %v1845, 1
        %v1848 = vsel %vm744, %v1843, %v1847
        %v1849 = vshrl.u32 %v1591, 16
        %v1851 = vor.u32 %v1849, %v1847
        %v1853 = vshrl.u32 %v1640, 16
        %v1855 = vshll.u32 %v1640, 16
        %v1857 = vrot.slane %v1855, 1
        %v1858 = vor.u32 %v1853, %v1857
        %v1860 = vshll.u32 %v1592, 16
        %v1862 = vrot.slane %v1860, 1
        %v1863 = vsel %vm744, %v1858, %v1862
        %v1864 = vshrl.u32 %v1592, 16
        %v1866 = vor.u32 %v1864, %v1862
        %v1868 = vshrl.u32 %v1641, 16
        %v1870 = vshll.u32 %v1641, 16
        %v1872 = vrot.slane %v1870, 1
        %v1873 = vor.u32 %v1868, %v1872
        %v1875 = vshll.u32 %v1593, 16
        %v1877 = vrot.slane %v1875, 1
        %v1878 = vsel %vm744, %v1873, %v1877
        %v1879 = vshrl.u32 %v1593, 16
        %v1881 = vor.u32 %v1879, %v1877
        %vm1882 = vsmask.f32 5376
        %v1883 = vrot.slane %v746, 2
        %v1884 = vrot.slane %v748, 3
        %v1885 = vor.u32 %v1883, %v1884
        %v1886 = vrot.slane %v1654, 2
        %v1887 = vrot.slane %v1650, 3
        %v1888 = vor.u32 %v1886, %v1887
        %v1889 = vsel %vm1882, %v1885, %v1888
        %v1891 = vshrl.u32 %v1653, 16
        %v1893 = vrot.slane %v1891, 2
        %v1894 = vshll.u32 %v1653, 16
        %v1896 = vrot.slane %v1894, 3
        %v1897 = vor.u32 %v1893, %v1896
        %v1899 = vshrl.u32 %v1656, 16
        %v1901 = vrot.slane %v1899, 2
        %v1902 = vshll.u32 %v1656, 16
        %v1904 = vrot.slane %v1902, 3
        %v1905 = vor.u32 %v1901, %v1904
        %v1906 = vsel %vm1882, %v1897, %v1905
        %v1907 = vrot.slane %v761, 2
        %v1908 = vrot.slane %v763, 3
        %v1909 = vor.u32 %v1907, %v1908
        %v1910 = vrot.slane %v1669, 2
        %v1911 = vrot.slane %v1665, 3
        %v1912 = vor.u32 %v1910, %v1911
        %v1913 = vsel %vm1882, %v1909, %v1912
        %v1915 = vshrl.u32 %v1668, 16
        %v1917 = vrot.slane %v1915, 2
        %v1918 = vshll.u32 %v1668, 16
        %v1920 = vrot.slane %v1918, 3
        %v1921 = vor.u32 %v1917, %v1920
        %v1923 = vshrl.u32 %v1671, 16
        %v1925 = vrot.slane %v1923, 2
        %v1926 = vshll.u32 %v1671, 16
        %v1928 = vrot.slane %v1926, 3
        %v1929 = vor.u32 %v1925, %v1928
        %v1930 = vsel %vm1882, %v1921, %v1929
        %v1931 = vrot.slane %v776, 2
        %v1932 = vrot.slane %v778, 3
        %v1933 = vor.u32 %v1931, %v1932
        %v1934 = vrot.slane %v1684, 2
        %v1935 = vrot.slane %v1680, 3
        %v1936 = vor.u32 %v1934, %v1935
        %v1937 = vsel %vm1882, %v1933, %v1936
        %v1939 = vshrl.u32 %v1683, 16
        %v1941 = vrot.slane %v1939, 2
        %v1942 = vshll.u32 %v1683, 16
        %v1944 = vrot.slane %v1942, 3
        %v1945 = vor.u32 %v1941, %v1944
        %v1947 = vshrl.u32 %v1686, 16
        %v1949 = vrot.slane %v1947, 2
        %v1950 = vshll.u32 %v1686, 16
        %v1952 = vrot.slane %v1950, 3
        %v1953 = vor.u32 %v1949, %v1952
        %v1954 = vsel %vm1882, %v1945, %v1953
        %v1955 = vrot.slane %v791, 2
        %v1956 = vrot.slane %v793, 3
        %v1957 = vor.u32 %v1955, %v1956
        %v1958 = vrot.slane %v1699, 2
        %v1959 = vrot.slane %v1695, 3
        %v1960 = vor.u32 %v1958, %v1959
        %v1961 = vsel %vm1882, %v1957, %v1960
        %v1963 = vshrl.u32 %v1698, 16
        %v1965 = vrot.slane %v1963, 2
        %v1966 = vshll.u32 %v1698, 16
        %v1968 = vrot.slane %v1966, 3
        %v1969 = vor.u32 %v1965, %v1968
        %v1971 = vshrl.u32 %v1701, 16
        %v1973 = vrot.slane %v1971, 2
        %v1974 = vshll.u32 %v1701, 16
        %v1976 = vrot.slane %v1974, 3
        %v1977 = vor.u32 %v1973, %v1976
        %v1978 = vsel %vm1882, %v1969, %v1977
        %v1979 = vrot.slane %v806, 2
        %v1980 = vrot.slane %v808, 3
        %v1981 = vor.u32 %v1979, %v1980
        %v1982 = vrot.slane %v1714, 2
        %v1983 = vrot.slane %v1710, 3
        %v1984 = vor.u32 %v1982, %v1983
        %v1985 = vsel %vm1882, %v1981, %v1984
        %v1987 = vshrl.u32 %v1713, 16
        %v1989 = vrot.slane %v1987, 2
        %v1990 = vshll.u32 %v1713, 16
        %v1992 = vrot.slane %v1990, 3
        %v1993 = vor.u32 %v1989, %v1992
        %v1995 = vshrl.u32 %v1716, 16
        %v1997 = vrot.slane %v1995, 2
        %v1998 = vshll.u32 %v1716, 16
        %v2000 = vrot.slane %v1998, 3
        %v2001 = vor.u32 %v1997, %v2000
        %v2002 = vsel %vm1882, %v1993, %v2001
        %v2003 = vrot.slane %v821, 2
        %v2004 = vrot.slane %v823, 3
        %v2005 = vor.u32 %v2003, %v2004
        %v2006 = vrot.slane %v1729, 2
        %v2007 = vrot.slane %v1725, 3
        %v2008 = vor.u32 %v2006, %v2007
        %v2009 = vsel %vm1882, %v2005, %v2008
        %v2011 = vshrl.u32 %v1728, 16
        %v2013 = vrot.slane %v2011, 2
        %v2014 = vshll.u32 %v1728, 16
        %v2016 = vrot.slane %v2014, 3
        %v2017 = vor.u32 %v2013, %v2016
        %v2019 = vshrl.u32 %v1731, 16
        %v2021 = vrot.slane %v2019, 2
        %v2022 = vshll.u32 %v1731, 16
        %v2024 = vrot.slane %v2022, 3
        %v2025 = vor.u32 %v2021, %v2024
        %v2026 = vsel %vm1882, %v2017, %v2025
        %v2027 = vrot.slane %v836, 2
        %v2028 = vrot.slane %v838, 3
        %v2029 = vor.u32 %v2027, %v2028
        %v2030 = vrot.slane %v1744, 2
        %v2031 = vrot.slane %v1740, 3
        %v2032 = vor.u32 %v2030, %v2031
        %v2033 = vsel %vm1882, %v2029, %v2032
        %v2035 = vshrl.u32 %v1743, 16
        %v2037 = vrot.slane %v2035, 2
        %v2038 = vshll.u32 %v1743, 16
        %v2040 = vrot.slane %v2038, 3
        %v2041 = vor.u32 %v2037, %v2040
        %v2043 = vshrl.u32 %v1746, 16
        %v2045 = vrot.slane %v2043, 2
        %v2046 = vshll.u32 %v1746, 16
        %v2048 = vrot.slane %v2046, 3
        %v2049 = vor.u32 %v2045, %v2048
        %v2050 = vsel %vm1882, %v2041, %v2049
        %v2051 = vrot.slane %v851, 2
        %v2052 = vrot.slane %v853, 3
        %v2053 = vor.u32 %v2051, %v2052
        %v2054 = vrot.slane %v1759, 2
        %v2055 = vrot.slane %v1755, 3
        %v2056 = vor.u32 %v2054, %v2055
        %v2057 = vsel %vm1882, %v2053, %v2056
        %v2059 = vshrl.u32 %v1758, 16
        %v2061 = vrot.slane %v2059, 2
        %v2062 = vshll.u32 %v1758, 16
        %v2064 = vrot.slane %v2062, 3
        %v2065 = vor.u32 %v2061, %v2064
        %v2067 = vshrl.u32 %v1761, 16
        %v2069 = vrot.slane %v2067, 2
        %v2070 = vshll.u32 %v1761, 16
        %v2072 = vrot.slane %v2070, 3
        %v2073 = vor.u32 %v2069, %v2072
        %v2074 = vsel %vm1882, %v2065, %v2073
        %v2075 = vrot.slane %v866, 2
        %v2076 = vrot.slane %v868, 3
        %v2077 = vor.u32 %v2075, %v2076
        %v2078 = vrot.slane %v1774, 2
        %v2079 = vrot.slane %v1770, 3
        %v2080 = vor.u32 %v2078, %v2079
        %v2081 = vsel %vm1882, %v2077, %v2080
        %v2083 = vshrl.u32 %v1773, 16
        %v2085 = vrot.slane %v2083, 2
        %v2086 = vshll.u32 %v1773, 16
        %v2088 = vrot.slane %v2086, 3
        %v2089 = vor.u32 %v2085, %v2088
        %v2091 = vshrl.u32 %v1776, 16
        %v2093 = vrot.slane %v2091, 2
        %v2094 = vshll.u32 %v1776, 16
        %v2096 = vrot.slane %v2094, 3
        %v2097 = vor.u32 %v2093, %v2096
        %v2098 = vsel %vm1882, %v2089, %v2097
        %v2099 = vrot.slane %v881, 2
        %v2100 = vrot.slane %v883, 3
        %v2101 = vor.u32 %v2099, %v2100
        %v2102 = vrot.slane %v1789, 2
        %v2103 = vrot.slane %v1785, 3
        %v2104 = vor.u32 %v2102, %v2103
        %v2105 = vsel %vm1882, %v2101, %v2104
        %v2107 = vshrl.u32 %v1788, 16
        %v2109 = vrot.slane %v2107, 2
        %v2110 = vshll.u32 %v1788, 16
        %v2112 = vrot.slane %v2110, 3
        %v2113 = vor.u32 %v2109, %v2112
        %v2115 = vshrl.u32 %v1791, 16
        %v2117 = vrot.slane %v2115, 2
        %v2118 = vshll.u32 %v1791, 16
        %v2120 = vrot.slane %v2118, 3
        %v2121 = vor.u32 %v2117, %v2120
        %v2122 = vsel %vm1882, %v2113, %v2121
        %v2123 = vrot.slane %v896, 2
        %v2124 = vrot.slane %v898, 3
        %v2125 = vor.u32 %v2123, %v2124
        %v2126 = vrot.slane %v1804, 2
        %v2127 = vrot.slane %v1800, 3
        %v2128 = vor.u32 %v2126, %v2127
        %v2129 = vsel %vm1882, %v2125, %v2128
        %v2131 = vshrl.u32 %v1803, 16
        %v2133 = vrot.slane %v2131, 2
        %v2134 = vshll.u32 %v1803, 16
        %v2136 = vrot.slane %v2134, 3
        %v2137 = vor.u32 %v2133, %v2136
        %v2139 = vshrl.u32 %v1806, 16
        %v2141 = vrot.slane %v2139, 2
        %v2142 = vshll.u32 %v1806, 16
        %v2144 = vrot.slane %v2142, 3
        %v2145 = vor.u32 %v2141, %v2144
        %v2146 = vsel %vm1882, %v2137, %v2145
        %v2147 = vrot.slane %v911, 2
        %v2148 = vrot.slane %v913, 3
        %v2149 = vor.u32 %v2147, %v2148
        %v2150 = vrot.slane %v1819, 2
        %v2151 = vrot.slane %v1815, 3
        %v2152 = vor.u32 %v2150, %v2151
        %v2153 = vsel %vm1882, %v2149, %v2152
        %v2155 = vshrl.u32 %v1818, 16
        %v2157 = vrot.slane %v2155, 2
        %v2158 = vshll.u32 %v1818, 16
        %v2160 = vrot.slane %v2158, 3
        %v2161 = vor.u32 %v2157, %v2160
        %v2163 = vshrl.u32 %v1821, 16
        %v2165 = vrot.slane %v2163, 2
        %v2166 = vshll.u32 %v1821, 16
        %v2168 = vrot.slane %v2166, 3
        %v2169 = vor.u32 %v2165, %v2168
        %v2170 = vsel %vm1882, %v2161, %v2169
        %v2171 = vrot.slane %v926, 2
        %v2172 = vrot.slane %v928, 3
        %v2173 = vor.u32 %v2171, %v2172
        %v2174 = vrot.slane %v1834, 2
        %v2175 = vrot.slane %v1830, 3
        %v2176 = vor.u32 %v2174, %v2175
        %v2177 = vsel %vm1882, %v2173, %v2176
        %v2179 = vshrl.u32 %v1833, 16
        %v2181 = vrot.slane %v2179, 2
        %v2182 = vshll.u32 %v1833, 16
        %v2184 = vrot.slane %v2182, 3
        %v2185 = vor.u32 %v2181, %v2184
        %v2187 = vshrl.u32 %v1836, 16
        %v2189 = vrot.slane %v2187, 2
        %v2190 = vshll.u32 %v1836, 16
        %v2192 = vrot.slane %v2190, 3
        %v2193 = vor.u32 %v2189, %v2192
        %v2194 = vsel %vm1882, %v2185, %v2193
        %v2195 = vrot.slane %v941, 2
        %v2196 = vrot.slane %v943, 3
        %v2197 = vor.u32 %v2195, %v2196
        %v2198 = vrot.slane %v1849, 2
        %v2199 = vrot.slane %v1845, 3
        %v2200 = vor.u32 %v2198, %v2199
        %v2201 = vsel %vm1882, %v2197, %v2200
        %v2203 = vshrl.u32 %v1848, 16
        %v2205 = vrot.slane %v2203, 2
        %v2206 = vshll.u32 %v1848, 16
        %v2208 = vrot.slane %v2206, 3
        %v2209 = vor.u32 %v2205, %v2208
        %v2211 = vshrl.u32 %v1851, 16
        %v2213 = vrot.slane %v2211, 2
        %v2214 = vshll.u32 %v1851, 16
        %v2216 = vrot.slane %v2214, 3
        %v2217 = vor.u32 %v2213, %v2216
        %v2218 = vsel %vm1882, %v2209, %v2217
        %v2219 = vrot.slane %v956, 2
        %v2220 = vrot.slane %v958, 3
        %v2221 = vor.u32 %v2219, %v2220
        %v2222 = vrot.slane %v1864, 2
        %v2223 = vrot.slane %v1860, 3
        %v2224 = vor.u32 %v2222, %v2223
        %v2225 = vsel %vm1882, %v2221, %v2224
        %v2227 = vshrl.u32 %v1863, 16
        %v2229 = vrot.slane %v2227, 2
        %v2230 = vshll.u32 %v1863, 16
        %v2232 = vrot.slane %v2230, 3
        %v2233 = vor.u32 %v2229, %v2232
        %v2235 = vshrl.u32 %v1866, 16
        %v2237 = vrot.slane %v2235, 2
        %v2238 = vshll.u32 %v1866, 16
        %v2240 = vrot.slane %v2238, 3
        %v2241 = vor.u32 %v2237, %v2240
        %v2242 = vsel %vm1882, %v2233, %v2241
        %v2243 = vrot.slane %v971, 2
        %v2244 = vrot.slane %v973, 3
        %v2245 = vor.u32 %v2243, %v2244
        %v2246 = vrot.slane %v1879, 2
        %v2247 = vrot.slane %v1875, 3
        %v2248 = vor.u32 %v2246, %v2247
        %v2249 = vsel %vm1882, %v2245, %v2248
        %v2251 = vshrl.u32 %v1878, 16
        %v2253 = vrot.slane %v2251, 2
        %v2254 = vshll.u32 %v1878, 16
        %v2256 = vrot.slane %v2254, 3
        %v2257 = vor.u32 %v2253, %v2256
        %v2259 = vshrl.u32 %v1881, 16
        %v2261 = vrot.slane %v2259, 2
        %v2262 = vshll.u32 %v1881, 16
        %v2264 = vrot.slane %v2262, 3
        %v2265 = vor.u32 %v2261, %v2264
        %v2266 = vsel %vm1882, %v2257, %v2265
        %v2299 = vld [vmem:[%s1 + $0x80] sm:$0xf]
        %v2300 = vld [vmem:[%s1 + $0x84] sm:$0xf]
        %v2301 = vld [vmem:[%s1 + $0x88] sm:$0xf]
        %v2302 = vld [vmem:[%s1 + $0x8c] sm:$0xf]
        %v2303 = vld [vmem:[%s1 + $0x90] sm:$0xf]
        %v2304 = vld [vmem:[%s1 + $0x94] sm:$0xf]
        %v2305 = vld [vmem:[%s1 + $0x98] sm:$0xf]
        %v2306 = vld [vmem:[%s1 + $0x9c] sm:$0xf]
        %v2307 = vld [vmem:[%s1 + $0xa0] sm:$0xf]
        %v2308 = vld [vmem:[%s1 + $0xa4] sm:$0xf]
        %v2309 = vld [vmem:[%s1 + $0xa8] sm:$0xf]
        %v2310 = vld [vmem:[%s1 + $0xac] sm:$0xf]
        %v2311 = vld [vmem:[%s1 + $0xb0] sm:$0xf]
        %v2312 = vld [vmem:[%s1 + $0xb4] sm:$0xf]
        %v2313 = vld [vmem:[%s1 + $0xb8] sm:$0xf]
        %v2314 = vld [vmem:[%s1 + $0xbc] sm:$0xf]
        %v2315 = vld [vmem:[%s1 + $0xc0] sm:$0xf]
        %v2316 = vld [vmem:[%s1 + $0xc4] sm:$0xf]
        %v2317 = vld [vmem:[%s1 + $0xc8] sm:$0xf]
        %v2318 = vld [vmem:[%s1 + $0xcc] sm:$0xf]
        %v2319 = vld [vmem:[%s1 + $0xd0] sm:$0xf]
        %v2320 = vld [vmem:[%s1 + $0xd4] sm:$0xf]
        %v2321 = vld [vmem:[%s1 + $0xd8] sm:$0xf]
        %v2322 = vld [vmem:[%s1 + $0xdc] sm:$0xf]
        %v2323 = vld [vmem:[%s1 + $0xe0] sm:$0xf]
        %v2324 = vld [vmem:[%s1 + $0xe4] sm:$0xf]
        %v2325 = vld [vmem:[%s1 + $0xe8] sm:$0xf]
        %v2326 = vld [vmem:[%s1 + $0xec] sm:$0xf]
        %v2327 = vld [vmem:[%s1 + $0xf0] sm:$0xf]
        %v2328 = vld [vmem:[%s1 + $0xf4] sm:$0xf]
        %v2329 = vld [vmem:[%s1 + $0xf8] sm:$0xf]
        %v2330 = vld [vmem:[%s1 + $0xfc] sm:$0xf]
        %v2363 = vunpack.c.l.b16 %v2299
        %v2364 = vunpack.c.l.b16 %v2300
        %v2365 = vunpack.c.l.b16 %v2301
        %v2366 = vunpack.c.l.b16 %v2302
        %v2367 = vunpack.c.l.b16 %v2303
        %v2368 = vunpack.c.l.b16 %v2304
        %v2369 = vunpack.c.l.b16 %v2305
        %v2370 = vunpack.c.l.b16 %v2306
        %v2371 = vunpack.c.l.b16 %v2307
        %v2372 = vunpack.c.l.b16 %v2308
        %v2373 = vunpack.c.l.b16 %v2309
        %v2374 = vunpack.c.l.b16 %v2310
        %v2375 = vunpack.c.l.b16 %v2311
        %v2376 = vunpack.c.l.b16 %v2312
        %v2377 = vunpack.c.l.b16 %v2313
        %v2378 = vunpack.c.l.b16 %v2314
        %v2379 = vunpack.c.l.b16 %v2315
        %v2380 = vunpack.c.l.b16 %v2316
        %v2381 = vunpack.c.l.b16 %v2317
        %v2382 = vunpack.c.l.b16 %v2318
        %v2383 = vunpack.c.l.b16 %v2319
        %v2384 = vunpack.c.l.b16 %v2320
        %v2385 = vunpack.c.l.b16 %v2321
        %v2386 = vunpack.c.l.b16 %v2322
        %v2387 = vunpack.c.l.b16 %v2323
        %v2388 = vunpack.c.l.b16 %v2324
        %v2389 = vunpack.c.l.b16 %v2325
        %v2390 = vunpack.c.l.b16 %v2326
        %v2391 = vunpack.c.l.b16 %v2327
        %v2392 = vunpack.c.l.b16 %v2328
        %v2393 = vunpack.c.l.b16 %v2329
        %v2394 = vunpack.c.l.b16 %v2330
        %v2395 = vpack.c.b16 %v2364, %v2363
        %v2396 = vpack.c.b16 %v2366, %v2365
        %v2397 = vpack.c.b16 %v2368, %v2367
        %v2398 = vpack.c.b16 %v2370, %v2369
        %v2399 = vpack.c.b16 %v2372, %v2371
        %v2400 = vpack.c.b16 %v2374, %v2373
        %v2401 = vpack.c.b16 %v2376, %v2375
        %v2402 = vpack.c.b16 %v2378, %v2377
        %v2403 = vpack.c.b16 %v2380, %v2379
        %v2404 = vpack.c.b16 %v2382, %v2381
        %v2405 = vpack.c.b16 %v2384, %v2383
        %v2406 = vpack.c.b16 %v2386, %v2385
        %v2407 = vpack.c.b16 %v2388, %v2387
        %v2408 = vpack.c.b16 %v2390, %v2389
        %v2409 = vpack.c.b16 %v2392, %v2391
        %v2410 = vpack.c.b16 %v2394, %v2393
        %2427 = vmatprep.subr.bf16.mxu0 0
        %2428 = vmatpush1.bf16.msra.mxu0 %v2402
        %2429 = vmatprep.subr.bf16.mxu0 0
        %2430 = vmatpush1.bf16.msra.mxu0 %v2401
        %2431 = vmatprep.subr.bf16.mxu0 0
        %2432 = vmatpush1.bf16.msra.mxu0 %v2400
        %2433 = vmatprep.subr.bf16.mxu0 0
        %2434 = vmatpush1.bf16.msra.mxu0 %v2399
        %2435 = vmatprep.subr.bf16.mxu0 0
        %2436 = vmatpush1.bf16.msra.mxu0 %v2398
        %2437 = vmatprep.subr.bf16.mxu0 0
        %2438 = vmatpush1.bf16.msra.mxu0 %v2397
        %2439 = vmatprep.subr.bf16.mxu0 0
        %2440 = vmatpush1.bf16.msra.mxu0 %v2396
        %2441 = vmatprep.subr.bf16.mxu0 0
        %2442 = vmatpush1.bf16.msra.mxu0 %v2395
        %2443 = vmatprep.subr.bf16.mxu0 0
        %2444 = vmatpush2.bf16.msra.mxu0 %v2410
        %2445 = vmatprep.subr.bf16.mxu0 0
        %2446 = vmatpush2.bf16.msra.mxu0 %v2409
        %2447 = vmatprep.subr.bf16.mxu0 0
        %2448 = vmatpush2.bf16.msra.mxu0 %v2408
        %2449 = vmatprep.subr.bf16.mxu0 0
        %2450 = vmatpush2.bf16.msra.mxu0 %v2407
        %2451 = vmatprep.subr.bf16.mxu0 0
        %2452 = vmatpush2.bf16.msra.mxu0 %v2406
        %2453 = vmatprep.subr.bf16.mxu0 0
        %2454 = vmatpush2.bf16.msra.mxu0 %v2405
        %2455 = vmatprep.subr.bf16.mxu0 0
        %2456 = vmatpush2.bf16.msra.mxu0 %v2404
        %2457 = vmatprep.subr.bf16.mxu0 0
        %2458 = vmatpush2.bf16.msra.mxu0 %v2403
        %2459 = vmatprep.mubr.bf16.mxu0 %v1906
        %2460 = vmatmul.mubr.bf16.gmra.mxu0 %v1889
        %v2461 = vpop.f32.mrf.mxu0
        %v2462 = vadd.f32 0.0, %v2461
        %v2463 = vpop.f32.mrf.mxu0
        %v2464 = vpop.f32.mrf.mxu0
        %v2465 = vadd.f32 0.0, %v2464
        %v2466 = vpop.f32.mrf.mxu0
        %2467 = vmatprep.mubr.bf16.mxu0 %v1930
        %2468 = vmatmul.mubr.bf16.gmra.mxu0 %v1913
        %v2469 = vpop.f32.mrf.mxu0
        %v2470 = vadd.f32 0.0, %v2469
        %v2471 = vpop.f32.mrf.mxu0
        %v2472 = vpop.f32.mrf.mxu0
        %v2473 = vadd.f32 0.0, %v2472
        %v2474 = vpop.f32.mrf.mxu0
        %2475 = vmatprep.mubr.bf16.mxu0 %v1954
        %2476 = vmatmul.mubr.bf16.gmra.mxu0 %v1937
        %v2477 = vpop.f32.mrf.mxu0
        %v2478 = vadd.f32 0.0, %v2477
        %v2479 = vpop.f32.mrf.mxu0
        %v2480 = vpop.f32.mrf.mxu0
        %v2481 = vadd.f32 0.0, %v2480
        %v2482 = vpop.f32.mrf.mxu0
        %2483 = vmatprep.mubr.bf16.mxu0 %v1978
        %2484 = vmatmul.mubr.bf16.gmra.mxu0 %v1961
        %v2485 = vpop.f32.mrf.mxu0
        %v2486 = vadd.f32 0.0, %v2485
        %v2487 = vpop.f32.mrf.mxu0
        %v2488 = vpop.f32.mrf.mxu0
        %v2489 = vadd.f32 0.0, %v2488
        %v2490 = vpop.f32.mrf.mxu0
        %2491 = vmatprep.mubr.bf16.mxu0 %v2002
        %2492 = vmatmul.mubr.bf16.gmra.mxu0 %v1985
        %v2493 = vpop.f32.mrf.mxu0
        %v2494 = vadd.f32 0.0, %v2493
        %v2495 = vpop.f32.mrf.mxu0
        %v2496 = vpop.f32.mrf.mxu0
        %v2497 = vadd.f32 0.0, %v2496
        %v2498 = vpop.f32.mrf.mxu0
        %2499 = vmatprep.mubr.bf16.mxu0 %v2026
        %2500 = vmatmul.mubr.bf16.gmra.mxu0 %v2009
        %v2501 = vpop.f32.mrf.mxu0
        %v2502 = vadd.f32 0.0, %v2501
        %v2503 = vpop.f32.mrf.mxu0
        %v2504 = vpop.f32.mrf.mxu0
        %v2505 = vadd.f32 0.0, %v2504
        %v2506 = vpop.f32.mrf.mxu0
        %2507 = vmatprep.mubr.bf16.mxu0 %v2050
        %2508 = vmatmul.mubr.bf16.gmra.mxu0 %v2033
        %v2509 = vpop.f32.mrf.mxu0
        %v2510 = vadd.f32 0.0, %v2509
        %v2511 = vpop.f32.mrf.mxu0
        %v2512 = vpop.f32.mrf.mxu0
        %v2513 = vadd.f32 0.0, %v2512
        %v2514 = vpop.f32.mrf.mxu0
        %2515 = vmatprep.mubr.bf16.mxu0 %v2074
        %2516 = vmatmul.mubr.bf16.gmra.mxu0 %v2057
        %v2517 = vpop.f32.mrf.mxu0
        %v2518 = vadd.f32 0.0, %v2517
        %v2519 = vpop.f32.mrf.mxu0
        %v2520 = vpop.f32.mrf.mxu0
        %v2521 = vadd.f32 0.0, %v2520
        %v2522 = vpop.f32.mrf.mxu0
        %2523 = vmatprep.mubr.bf16.mxu0 %v2098
        %2524 = vmatmul.mubr.bf16.gmra.mxu0 %v2081
        %v2525 = vpop.f32.mrf.mxu0
        %v2526 = vadd.f32 0.0, %v2525
        %v2527 = vpop.f32.mrf.mxu0
        %v2528 = vpop.f32.mrf.mxu0
        %v2529 = vadd.f32 0.0, %v2528
        %v2530 = vpop.f32.mrf.mxu0
        %2531 = vmatprep.mubr.bf16.mxu0 %v2122
        %2532 = vmatmul.mubr.bf16.gmra.mxu0 %v2105
        %v2533 = vpop.f32.mrf.mxu0
        %v2534 = vadd.f32 0.0, %v2533
        %v2535 = vpop.f32.mrf.mxu0
        %v2536 = vpop.f32.mrf.mxu0
        %v2537 = vadd.f32 0.0, %v2536
        %v2538 = vpop.f32.mrf.mxu0
        %2539 = vmatprep.mubr.bf16.mxu0 %v2146
        %2540 = vmatmul.mubr.bf16.gmra.mxu0 %v2129
        %v2541 = vpop.f32.mrf.mxu0
        %v2542 = vadd.f32 0.0, %v2541
        %v2543 = vpop.f32.mrf.mxu0
        %v2544 = vpop.f32.mrf.mxu0
        %v2545 = vadd.f32 0.0, %v2544
        %v2546 = vpop.f32.mrf.mxu0
        %2547 = vmatprep.mubr.bf16.mxu0 %v2170
        %2548 = vmatmul.mubr.bf16.gmra.mxu0 %v2153
        %v2549 = vpop.f32.mrf.mxu0
        %v2550 = vadd.f32 0.0, %v2549
        %v2551 = vpop.f32.mrf.mxu0
        %v2552 = vpop.f32.mrf.mxu0
        %v2553 = vadd.f32 0.0, %v2552
        %v2554 = vpop.f32.mrf.mxu0
        %2555 = vmatprep.mubr.bf16.mxu0 %v2194
        %2556 = vmatmul.mubr.bf16.gmra.mxu0 %v2177
        %v2557 = vpop.f32.mrf.mxu0
        %v2558 = vadd.f32 0.0, %v2557
        %v2559 = vpop.f32.mrf.mxu0
        %v2560 = vpop.f32.mrf.mxu0
        %v2561 = vadd.f32 0.0, %v2560
        %v2562 = vpop.f32.mrf.mxu0
        %2563 = vmatprep.mubr.bf16.mxu0 %v2218
        %2564 = vmatmul.mubr.bf16.gmra.mxu0 %v2201
        %v2565 = vpop.f32.mrf.mxu0
        %v2566 = vadd.f32 0.0, %v2565
        %v2567 = vpop.f32.mrf.mxu0
        %v2568 = vpop.f32.mrf.mxu0
        %v2569 = vadd.f32 0.0, %v2568
        %v2570 = vpop.f32.mrf.mxu0
        %2571 = vmatprep.mubr.bf16.mxu0 %v2242
        %2572 = vmatmul.mubr.bf16.gmra.mxu0 %v2225
        %v2573 = vpop.f32.mrf.mxu0
        %v2574 = vadd.f32 0.0, %v2573
        %v2575 = vpop.f32.mrf.mxu0
        %v2576 = vpop.f32.mrf.mxu0
        %v2577 = vadd.f32 0.0, %v2576
        %v2578 = vpop.f32.mrf.mxu0
        %2579 = vmatprep.mubr.bf16.mxu0 %v2266
        %2580 = vmatmul.mubr.bf16.gmra.mxu0 %v2249
        %v2581 = vpop.f32.mrf.mxu0
        %v2582 = vadd.f32 0.0, %v2581
        %v2583 = vpop.f32.mrf.mxu0
        %v2584 = vpop.f32.mrf.mxu0
        %v2585 = vadd.f32 0.0, %v2584
        %v2586 = vpop.f32.mrf.mxu0
        %2587 = vdwg.mxu0
        %v2620 = vunpack.c.l.b16 %v1482
        %v2621 = vunpack.c.l.b16 %v1483
        %v2622 = vunpack.c.l.b16 %v1484
        %v2623 = vunpack.c.l.b16 %v1485
        %v2624 = vunpack.c.l.b16 %v1486
        %v2625 = vunpack.c.l.b16 %v1487
        %v2626 = vunpack.c.l.b16 %v1488
        %v2627 = vunpack.c.l.b16 %v1489
        %v2628 = vunpack.c.l.b16 %v1490
        %v2629 = vunpack.c.l.b16 %v1491
        %v2630 = vunpack.c.l.b16 %v1492
        %v2631 = vunpack.c.l.b16 %v1493
        %v2632 = vunpack.c.l.b16 %v1494
        %v2633 = vunpack.c.l.b16 %v1495
        %v2634 = vunpack.c.l.b16 %v1496
        %v2635 = vunpack.c.l.b16 %v1497
        %v2636 = vunpack.c.l.b16 %v1498
        %v2637 = vunpack.c.l.b16 %v1499
        %v2638 = vunpack.c.l.b16 %v1500
        %v2639 = vunpack.c.l.b16 %v1501
        %v2640 = vunpack.c.l.b16 %v1502
        %v2641 = vunpack.c.l.b16 %v1503
        %v2642 = vunpack.c.l.b16 %v1504
        %v2643 = vunpack.c.l.b16 %v1505
        %v2644 = vunpack.c.l.b16 %v1506
        %v2645 = vunpack.c.l.b16 %v1507
        %v2646 = vunpack.c.l.b16 %v1508
        %v2647 = vunpack.c.l.b16 %v1509
        %v2648 = vunpack.c.l.b16 %v1510
        %v2649 = vunpack.c.l.b16 %v1511
        %v2650 = vunpack.c.l.b16 %v1512
        %v2651 = vunpack.c.l.b16 %v1513
        %v2652 = vpack.c.b16 %v2621, %v2620
        %v2653 = vpack.c.b16 %v2623, %v2622
        %v2654 = vpack.c.b16 %v2625, %v2624
        %v2655 = vpack.c.b16 %v2627, %v2626
        %v2656 = vpack.c.b16 %v2629, %v2628
        %v2657 = vpack.c.b16 %v2631, %v2630
        %v2658 = vpack.c.b16 %v2633, %v2632
        %v2659 = vpack.c.b16 %v2635, %v2634
        %v2660 = vpack.c.b16 %v2637, %v2636
        %v2661 = vpack.c.b16 %v2639, %v2638
        %v2662 = vpack.c.b16 %v2641, %v2640
        %v2663 = vpack.c.b16 %v2643, %v2642
        %v2664 = vpack.c.b16 %v2645, %v2644
        %v2665 = vpack.c.b16 %v2647, %v2646
        %v2666 = vpack.c.b16 %v2649, %v2648
        %v2667 = vpack.c.b16 %v2651, %v2650
        %2684 = vmatprep.subr.bf16.mxu0 0
        %2685 = vmatpush1.bf16.msra.mxu0 %v2659
        %2686 = vmatprep.subr.bf16.mxu0 0
        %2687 = vmatpush1.bf16.msra.mxu0 %v2658
        %2688 = vmatprep.subr.bf16.mxu0 0
        %2689 = vmatpush1.bf16.msra.mxu0 %v2657
        %2690 = vmatprep.subr.bf16.mxu0 0
        %2691 = vmatpush1.bf16.msra.mxu0 %v2656
        %2692 = vmatprep.subr.bf16.mxu0 0
        %2693 = vmatpush1.bf16.msra.mxu0 %v2655
        %2694 = vmatprep.subr.bf16.mxu0 0
        %2695 = vmatpush1.bf16.msra.mxu0 %v2654
        %2696 = vmatprep.subr.bf16.mxu0 0
        %2697 = vmatpush1.bf16.msra.mxu0 %v2653
        %2698 = vmatprep.subr.bf16.mxu0 0
        %2699 = vmatpush1.bf16.msra.mxu0 %v2652
        %2700 = vmatprep.subr.bf16.mxu0 0
        %2701 = vmatpush2.bf16.msra.mxu0 %v2667
        %2702 = vmatprep.subr.bf16.mxu0 0
        %2703 = vmatpush2.bf16.msra.mxu0 %v2666
        %2704 = vmatprep.subr.bf16.mxu0 0
        %2705 = vmatpush2.bf16.msra.mxu0 %v2665
        %2706 = vmatprep.subr.bf16.mxu0 0
        %2707 = vmatpush2.bf16.msra.mxu0 %v2664
        %2708 = vmatprep.subr.bf16.mxu0 0
        %2709 = vmatpush2.bf16.msra.mxu0 %v2663
        %2710 = vmatprep.subr.bf16.mxu0 0
        %2711 = vmatpush2.bf16.msra.mxu0 %v2662
        %2712 = vmatprep.subr.bf16.mxu0 0
        %2713 = vmatpush2.bf16.msra.mxu0 %v2661
        %2714 = vmatprep.subr.bf16.mxu0 0
        %2715 = vmatpush2.bf16.msra.mxu0 %v2660
        %2716 = vmatprep.mubr.bf16.mxu0 %v1014
        %2717 = vmatmul.mubr.bf16.gmra.mxu0 %v997
        %v2718 = vpop.f32.mrf.mxu0
        %v2719 = vadd.f32 %v2462, %v2718
        %v2720 = vpop.f32.mrf.mxu0
        %v2721 = vpop.f32.mrf.mxu0
        %v2722 = vadd.f32 %v2465, %v2721
        %v2723 = vpop.f32.mrf.mxu0
        %2724 = vmatprep.mubr.bf16.mxu0 %v1043
        %2725 = vmatmul.mubr.bf16.gmra.mxu0 %v1026
        %v2726 = vpop.f32.mrf.mxu0
        %v2727 = vadd.f32 %v2470, %v2726
        %v2728 = vpop.f32.mrf.mxu0
        %v2729 = vpop.f32.mrf.mxu0
        %v2730 = vadd.f32 %v2473, %v2729
        %v2731 = vpop.f32.mrf.mxu0
        %2732 = vmatprep.mubr.bf16.mxu0 %v1072
        %2733 = vmatmul.mubr.bf16.gmra.mxu0 %v1055
        %v2734 = vpop.f32.mrf.mxu0
        %v2735 = vadd.f32 %v2478, %v2734
        %v2736 = vpop.f32.mrf.mxu0
        %v2737 = vpop.f32.mrf.mxu0
        %v2738 = vadd.f32 %v2481, %v2737
        %v2739 = vpop.f32.mrf.mxu0
        %2740 = vmatprep.mubr.bf16.mxu0 %v1101
        %2741 = vmatmul.mubr.bf16.gmra.mxu0 %v1084
        %v2742 = vpop.f32.mrf.mxu0
        %v2743 = vadd.f32 %v2486, %v2742
        %v2744 = vpop.f32.mrf.mxu0
        %v2745 = vpop.f32.mrf.mxu0
        %v2746 = vadd.f32 %v2489, %v2745
        %v2747 = vpop.f32.mrf.mxu0
        %2748 = vmatprep.mubr.bf16.mxu0 %v1130
        %2749 = vmatmul.mubr.bf16.gmra.mxu0 %v1113
        %v2750 = vpop.f32.mrf.mxu0
        %v2751 = vadd.f32 %v2494, %v2750
        %v2752 = vpop.f32.mrf.mxu0
        %v2753 = vpop.f32.mrf.mxu0
        %v2754 = vadd.f32 %v2497, %v2753
        %v2755 = vpop.f32.mrf.mxu0
        %2756 = vmatprep.mubr.bf16.mxu0 %v1159
        %2757 = vmatmul.mubr.bf16.gmra.mxu0 %v1142
        %v2758 = vpop.f32.mrf.mxu0
        %v2759 = vadd.f32 %v2502, %v2758
        %v2760 = vpop.f32.mrf.mxu0
        %v2761 = vpop.f32.mrf.mxu0
        %v2762 = vadd.f32 %v2505, %v2761
        %v2763 = vpop.f32.mrf.mxu0
        %2764 = vmatprep.mubr.bf16.mxu0 %v1188
        %2765 = vmatmul.mubr.bf16.gmra.mxu0 %v1171
        %v2766 = vpop.f32.mrf.mxu0
        %v2767 = vadd.f32 %v2510, %v2766
        %v2768 = vpop.f32.mrf.mxu0
        %v2769 = vpop.f32.mrf.mxu0
        %v2770 = vadd.f32 %v2513, %v2769
        %v2771 = vpop.f32.mrf.mxu0
        %2772 = vmatprep.mubr.bf16.mxu0 %v1217
        %2773 = vmatmul.mubr.bf16.gmra.mxu0 %v1200
        %v2774 = vpop.f32.mrf.mxu0
        %v2775 = vadd.f32 %v2518, %v2774
        %v2776 = vpop.f32.mrf.mxu0
        %v2777 = vpop.f32.mrf.mxu0
        %v2778 = vadd.f32 %v2521, %v2777
        %v2779 = vpop.f32.mrf.mxu0
        %2780 = vmatprep.mubr.bf16.mxu0 %v1246
        %2781 = vmatmul.mubr.bf16.gmra.mxu0 %v1229
        %v2782 = vpop.f32.mrf.mxu0
        %v2783 = vadd.f32 %v2526, %v2782
        %v2784 = vpop.f32.mrf.mxu0
        %v2785 = vpop.f32.mrf.mxu0
        %v2786 = vadd.f32 %v2529, %v2785
        %v2787 = vpop.f32.mrf.mxu0
        %2788 = vmatprep.mubr.bf16.mxu0 %v1275
        %2789 = vmatmul.mubr.bf16.gmra.mxu0 %v1258
        %v2790 = vpop.f32.mrf.mxu0
        %v2791 = vadd.f32 %v2534, %v2790
        %v2792 = vpop.f32.mrf.mxu0
        %v2793 = vpop.f32.mrf.mxu0
        %v2794 = vadd.f32 %v2537, %v2793
        %v2795 = vpop.f32.mrf.mxu0
        %2796 = vmatprep.mubr.bf16.mxu0 %v1304
        %2797 = vmatmul.mubr.bf16.gmra.mxu0 %v1287
        %v2798 = vpop.f32.mrf.mxu0
        %v2799 = vadd.f32 %v2542, %v2798
        %v2800 = vpop.f32.mrf.mxu0
        %v2801 = vpop.f32.mrf.mxu0
        %v2802 = vadd.f32 %v2545, %v2801
        %v2803 = vpop.f32.mrf.mxu0
        %2804 = vmatprep.mubr.bf16.mxu0 %v1333
        %2805 = vmatmul.mubr.bf16.gmra.mxu0 %v1316
        %v2806 = vpop.f32.mrf.mxu0
        %v2807 = vadd.f32 %v2550, %v2806
        %v2808 = vpop.f32.mrf.mxu0
        %v2809 = vpop.f32.mrf.mxu0
        %v2810 = vadd.f32 %v2553, %v2809
        %v2811 = vpop.f32.mrf.mxu0
        %2812 = vmatprep.mubr.bf16.mxu0 %v1362
        %2813 = vmatmul.mubr.bf16.gmra.mxu0 %v1345
        %v2814 = vpop.f32.mrf.mxu0
        %v2815 = vadd.f32 %v2558, %v2814
        %v2816 = vpop.f32.mrf.mxu0
        %v2817 = vpop.f32.mrf.mxu0
        %v2818 = vadd.f32 %v2561, %v2817
        %v2819 = vpop.f32.mrf.mxu0
        %2820 = vmatprep.mubr.bf16.mxu0 %v1391
        %2821 = vmatmul.mubr.bf16.gmra.mxu0 %v1374
        %v2822 = vpop.f32.mrf.mxu0
        %v2823 = vadd.f32 %v2566, %v2822
        %v2824 = vpop.f32.mrf.mxu0
        %v2825 = vpop.f32.mrf.mxu0
        %v2826 = vadd.f32 %v2569, %v2825
        %v2827 = vpop.f32.mrf.mxu0
        %2828 = vmatprep.mubr.bf16.mxu0 %v1420
        %2829 = vmatmul.mubr.bf16.gmra.mxu0 %v1403
        %v2830 = vpop.f32.mrf.mxu0
        %v2831 = vadd.f32 %v2574, %v2830
        %v2832 = vpop.f32.mrf.mxu0
        %v2833 = vpop.f32.mrf.mxu0
        %v2834 = vadd.f32 %v2577, %v2833
        %v2835 = vpop.f32.mrf.mxu0
        %2836 = vmatprep.mubr.bf16.mxu0 %v1449
        %2837 = vmatmul.mubr.bf16.gmra.mxu0 %v1432
        %v2838 = vpop.f32.mrf.mxu0
        %v2839 = vadd.f32 %v2582, %v2838
        %v2840 = vpop.f32.mrf.mxu0
        %v2841 = vpop.f32.mrf.mxu0
        %v2842 = vadd.f32 %v2585, %v2841
        %v2843 = vpop.f32.mrf.mxu0
        %2844 = vdwg.mxu0
        %v2845 = vld [vmem:[#allocation2 + $0xc] sm:$0xf]
        %v2846 = vld [vmem:[#allocation2 + $0x20] sm:$0xf]
        %v2847 = vld [vmem:[#allocation2 + $0x34] sm:$0xf]
        %v2848 = vld [vmem:[#allocation2 + $0x48] sm:$0xf]
        %v2849 = vld [vmem:[#allocation2 + $0x5c] sm:$0xf]
        %v2850 = vld [vmem:[#allocation2 + $0x70] sm:$0xf]
        %v2851 = vld [vmem:[#allocation2 + $0x84] sm:$0xf]
        %v2852 = vld [vmem:[#allocation2 + $0x98] sm:$0xf]
        %v2853 = vld [vmem:[#allocation2 + $0xac] sm:$0xf]
        %v2854 = vld [vmem:[#allocation2 + $0xc0] sm:$0xf]
        %v2855 = vld [vmem:[#allocation2 + $0xd4] sm:$0xf]
        %v2856 = vld [vmem:[#allocation2 + $0xe8] sm:$0xf]
        %v2857 = vld [vmem:[#allocation2 + $0xfc] sm:$0xf]
        %v2858 = vld [vmem:[#allocation2 + $0x110] sm:$0xf]
        %v2859 = vld [vmem:[#allocation2 + $0x124] sm:$0xf]
        %v2860 = vld [vmem:[#allocation2 + $0x138] sm:$0xf]
        %v2877 = vunpack.c.l.b16 %v2845
        %v2878 = vunpack.c.l.b16 %v2846
        %v2879 = vunpack.c.l.b16 %v2847
        %v2880 = vunpack.c.l.b16 %v2848
        %v2881 = vunpack.c.l.b16 %v2849
        %v2882 = vunpack.c.l.b16 %v2850
        %v2883 = vunpack.c.l.b16 %v2851
        %v2884 = vunpack.c.l.b16 %v2852
        %v2885 = vunpack.c.l.b16 %v2853
        %v2886 = vunpack.c.l.b16 %v2854
        %v2887 = vunpack.c.l.b16 %v2855
        %v2888 = vunpack.c.l.b16 %v2856
        %v2889 = vunpack.c.l.b16 %v2857
        %v2890 = vunpack.c.l.b16 %v2858
        %v2891 = vunpack.c.l.b16 %v2859
        %v2892 = vunpack.c.l.b16 %v2860
        %v2893 = vpack.c.b16 %v2877, %v2877
        %v2894 = vpack.c.b16 %v2878, %v2878
        %v2895 = vpack.c.b16 %v2879, %v2879
        %v2896 = vpack.c.b16 %v2880, %v2880
        %v2897 = vpack.c.b16 %v2881, %v2881
        %v2898 = vpack.c.b16 %v2882, %v2882
        %v2899 = vpack.c.b16 %v2883, %v2883
        %v2900 = vpack.c.b16 %v2884, %v2884
        %v2901 = vpack.c.b16 %v2885, %v2885
        %v2902 = vpack.c.b16 %v2886, %v2886
        %v2903 = vpack.c.b16 %v2887, %v2887
        %v2904 = vpack.c.b16 %v2888, %v2888
        %v2905 = vpack.c.b16 %v2889, %v2889
        %v2906 = vpack.c.b16 %v2890, %v2890
        %v2907 = vpack.c.b16 %v2891, %v2891
        %v2908 = vpack.c.b16 %v2892, %v2892
        %v2909 = vpack.c.b16 %v2877, %v617
        %v2910 = vpack.c.b16 %v2878, %v620
        %v2911 = vpack.c.b16 %v2879, %v623
        %v2912 = vpack.c.b16 %v2880, %v626
        %v2913 = vpack.c.b16 %v2881, %v629
        %v2914 = vpack.c.b16 %v2882, %v632
        %v2915 = vpack.c.b16 %v2883, %v635
        %v2916 = vpack.c.b16 %v2884, %v638
        %v2917 = vpack.c.b16 %v2885, %v641
        %v2918 = vpack.c.b16 %v2886, %v644
        %v2919 = vpack.c.b16 %v2887, %v647
        %v2920 = vpack.c.b16 %v2888, %v650
        %v2921 = vpack.c.b16 %v2889, %v653
        %v2922 = vpack.c.b16 %v2890, %v656
        %v2923 = vpack.c.b16 %v2891, %v659
        %v2924 = vpack.c.b16 %v2892, %v662
        %v2926 = vshrl.u32 %v2909, 16
        %v2928 = vrot.slane %v2926, 4
        %v2929 = vshll.u32 %v2909, 16
        %v2931 = vrot.slane %v2929, 5
        %v2932 = vor.u32 %v2928, %v2931
        %v2934 = vshrl.u32 %v2910, 16
        %v2936 = vrot.slane %v2934, 4
        %v2937 = vshll.u32 %v2910, 16
        %v2939 = vrot.slane %v2937, 5
        %v2940 = vor.u32 %v2936, %v2939
        %v2942 = vshrl.u32 %v2911, 16
        %v2944 = vrot.slane %v2942, 4
        %v2945 = vshll.u32 %v2911, 16
        %v2947 = vrot.slane %v2945, 5
        %v2948 = vor.u32 %v2944, %v2947
        %v2950 = vshrl.u32 %v2912, 16
        %v2952 = vrot.slane %v2950, 4
        %v2953 = vshll.u32 %v2912, 16
        %v2955 = vrot.slane %v2953, 5
        %v2956 = vor.u32 %v2952, %v2955
        %v2958 = vshrl.u32 %v2913, 16
        %v2960 = vrot.slane %v2958, 4
        %v2961 = vshll.u32 %v2913, 16
        %v2963 = vrot.slane %v2961, 5
        %v2964 = vor.u32 %v2960, %v2963
        %v2966 = vshrl.u32 %v2914, 16
        %v2968 = vrot.slane %v2966, 4
        %v2969 = vshll.u32 %v2914, 16
        %v2971 = vrot.slane %v2969, 5
        %v2972 = vor.u32 %v2968, %v2971
        %v2974 = vshrl.u32 %v2915, 16
        %v2976 = vrot.slane %v2974, 4
        %v2977 = vshll.u32 %v2915, 16
        %v2979 = vrot.slane %v2977, 5
        %v2980 = vor.u32 %v2976, %v2979
        %v2982 = vshrl.u32 %v2916, 16
        %v2984 = vrot.slane %v2982, 4
        %v2985 = vshll.u32 %v2916, 16
        %v2987 = vrot.slane %v2985, 5
        %v2988 = vor.u32 %v2984, %v2987
        %v2990 = vshrl.u32 %v2917, 16
        %v2992 = vrot.slane %v2990, 4
        %v2993 = vshll.u32 %v2917, 16
        %v2995 = vrot.slane %v2993, 5
        %v2996 = vor.u32 %v2992, %v2995
        %v2998 = vshrl.u32 %v2918, 16
        %v3000 = vrot.slane %v2998, 4
        %v3001 = vshll.u32 %v2918, 16
        %v3003 = vrot.slane %v3001, 5
        %v3004 = vor.u32 %v3000, %v3003
        %v3006 = vshrl.u32 %v2919, 16
        %v3008 = vrot.slane %v3006, 4
        %v3009 = vshll.u32 %v2919, 16
        %v3011 = vrot.slane %v3009, 5
        %v3012 = vor.u32 %v3008, %v3011
        %v3014 = vshrl.u32 %v2920, 16
        %v3016 = vrot.slane %v3014, 4
        %v3017 = vshll.u32 %v2920, 16
        %v3019 = vrot.slane %v3017, 5
        %v3020 = vor.u32 %v3016, %v3019
        %v3022 = vshrl.u32 %v2921, 16
        %v3024 = vrot.slane %v3022, 4
        %v3025 = vshll.u32 %v2921, 16
        %v3027 = vrot.slane %v3025, 5
        %v3028 = vor.u32 %v3024, %v3027
        %v3030 = vshrl.u32 %v2922, 16
        %v3032 = vrot.slane %v3030, 4
        %v3033 = vshll.u32 %v2922, 16
        %v3035 = vrot.slane %v3033, 5
        %v3036 = vor.u32 %v3032, %v3035
        %v3038 = vshrl.u32 %v2923, 16
        %v3040 = vrot.slane %v3038, 4
        %v3041 = vshll.u32 %v2923, 16
        %v3043 = vrot.slane %v3041, 5
        %v3044 = vor.u32 %v3040, %v3043
        %v3046 = vshrl.u32 %v2924, 16
        %v3048 = vrot.slane %v3046, 4
        %v3049 = vshll.u32 %v2924, 16
        %v3051 = vrot.slane %v3049, 5
        %v3052 = vor.u32 %v3048, %v3051
        %vm3053 = vsmask.f32 4352
        %v3054 = vrot.slane %v1643, 3
        %v3055 = vrot.slane %v1645, 4
        %v3056 = vor.u32 %v3054, %v3055
        %v3058 = vshrl.u32 %v2893, 16
        %v3060 = vrot.slane %v3058, 3
        %v3061 = vshll.u32 %v2893, 16
        %v3063 = vrot.slane %v3061, 4
        %v3064 = vor.u32 %v3060, %v3063
        %v3065 = vsel %vm3053, %v3056, %v3064
        %v3067 = vshrl.u32 %v2932, 16
        %v3069 = vrot.slane %v3067, 3
        %v3070 = vshll.u32 %v2932, 16
        %v3072 = vrot.slane %v3070, 4
        %v3073 = vor.u32 %v3069, %v3072
        %v3074 = vsel %vm3053, %v3073, %v3073
        %v3075 = vrot.slane %v1658, 3
        %v3076 = vrot.slane %v1660, 4
        %v3077 = vor.u32 %v3075, %v3076
        %v3079 = vshrl.u32 %v2894, 16
        %v3081 = vrot.slane %v3079, 3
        %v3082 = vshll.u32 %v2894, 16
        %v3084 = vrot.slane %v3082, 4
        %v3085 = vor.u32 %v3081, %v3084
        %v3086 = vsel %vm3053, %v3077, %v3085
        %v3088 = vshrl.u32 %v2940, 16
        %v3090 = vrot.slane %v3088, 3
        %v3091 = vshll.u32 %v2940, 16
        %v3093 = vrot.slane %v3091, 4
        %v3094 = vor.u32 %v3090, %v3093
        %v3095 = vsel %vm3053, %v3094, %v3094
        %v3096 = vrot.slane %v1673, 3
        %v3097 = vrot.slane %v1675, 4
        %v3098 = vor.u32 %v3096, %v3097
        %v3100 = vshrl.u32 %v2895, 16
        %v3102 = vrot.slane %v3100, 3
        %v3103 = vshll.u32 %v2895, 16
        %v3105 = vrot.slane %v3103, 4
        %v3106 = vor.u32 %v3102, %v3105
        %v3107 = vsel %vm3053, %v3098, %v3106
        %v3109 = vshrl.u32 %v2948, 16
        %v3111 = vrot.slane %v3109, 3
        %v3112 = vshll.u32 %v2948, 16
        %v3114 = vrot.slane %v3112, 4
        %v3115 = vor.u32 %v3111, %v3114
        %v3116 = vsel %vm3053, %v3115, %v3115
        %v3117 = vrot.slane %v1688, 3
        %v3118 = vrot.slane %v1690, 4
        %v3119 = vor.u32 %v3117, %v3118
        %v3121 = vshrl.u32 %v2896, 16
        %v3123 = vrot.slane %v3121, 3
        %v3124 = vshll.u32 %v2896, 16
        %v3126 = vrot.slane %v3124, 4
        %v3127 = vor.u32 %v3123, %v3126
        %v3128 = vsel %vm3053, %v3119, %v3127
        %v3130 = vshrl.u32 %v2956, 16
        %v3132 = vrot.slane %v3130, 3
        %v3133 = vshll.u32 %v2956, 16
        %v3135 = vrot.slane %v3133, 4
        %v3136 = vor.u32 %v3132, %v3135
        %v3137 = vsel %vm3053, %v3136, %v3136
        %v3138 = vrot.slane %v1703, 3
        %v3139 = vrot.slane %v1705, 4
        %v3140 = vor.u32 %v3138, %v3139
        %v3142 = vshrl.u32 %v2897, 16
        %v3144 = vrot.slane %v3142, 3
        %v3145 = vshll.u32 %v2897, 16
        %v3147 = vrot.slane %v3145, 4
        %v3148 = vor.u32 %v3144, %v3147
        %v3149 = vsel %vm3053, %v3140, %v3148
        %v3151 = vshrl.u32 %v2964, 16
        %v3153 = vrot.slane %v3151, 3
        %v3154 = vshll.u32 %v2964, 16
        %v3156 = vrot.slane %v3154, 4
        %v3157 = vor.u32 %v3153, %v3156
        %v3158 = vsel %vm3053, %v3157, %v3157
        %v3159 = vrot.slane %v1718, 3
        %v3160 = vrot.slane %v1720, 4
        %v3161 = vor.u32 %v3159, %v3160
        %v3163 = vshrl.u32 %v2898, 16
        %v3165 = vrot.slane %v3163, 3
        %v3166 = vshll.u32 %v2898, 16
        %v3168 = vrot.slane %v3166, 4
        %v3169 = vor.u32 %v3165, %v3168
        %v3170 = vsel %vm3053, %v3161, %v3169
        %v3172 = vshrl.u32 %v2972, 16
        %v3174 = vrot.slane %v3172, 3
        %v3175 = vshll.u32 %v2972, 16
        %v3177 = vrot.slane %v3175, 4
        %v3178 = vor.u32 %v3174, %v3177
        %v3179 = vsel %vm3053, %v3178, %v3178
        %v3180 = vrot.slane %v1733, 3
        %v3181 = vrot.slane %v1735, 4
        %v3182 = vor.u32 %v3180, %v3181
        %v3184 = vshrl.u32 %v2899, 16
        %v3186 = vrot.slane %v3184, 3
        %v3187 = vshll.u32 %v2899, 16
        %v3189 = vrot.slane %v3187, 4
        %v3190 = vor.u32 %v3186, %v3189
        %v3191 = vsel %vm3053, %v3182, %v3190
        %v3193 = vshrl.u32 %v2980, 16
        %v3195 = vrot.slane %v3193, 3
        %v3196 = vshll.u32 %v2980, 16
        %v3198 = vrot.slane %v3196, 4
        %v3199 = vor.u32 %v3195, %v3198
        %v3200 = vsel %vm3053, %v3199, %v3199
        %v3201 = vrot.slane %v1748, 3
        %v3202 = vrot.slane %v1750, 4
        %v3203 = vor.u32 %v3201, %v3202
        %v3205 = vshrl.u32 %v2900, 16
        %v3207 = vrot.slane %v3205, 3
        %v3208 = vshll.u32 %v2900, 16
        %v3210 = vrot.slane %v3208, 4
        %v3211 = vor.u32 %v3207, %v3210
        %v3212 = vsel %vm3053, %v3203, %v3211
        %v3214 = vshrl.u32 %v2988, 16
        %v3216 = vrot.slane %v3214, 3
        %v3217 = vshll.u32 %v2988, 16
        %v3219 = vrot.slane %v3217, 4
        %v3220 = vor.u32 %v3216, %v3219
        %v3221 = vsel %vm3053, %v3220, %v3220
        %v3222 = vrot.slane %v1763, 3
        %v3223 = vrot.slane %v1765, 4
        %v3224 = vor.u32 %v3222, %v3223
        %v3226 = vshrl.u32 %v2901, 16
        %v3228 = vrot.slane %v3226, 3
        %v3229 = vshll.u32 %v2901, 16
        %v3231 = vrot.slane %v3229, 4
        %v3232 = vor.u32 %v3228, %v3231
        %v3233 = vsel %vm3053, %v3224, %v3232
        %v3235 = vshrl.u32 %v2996, 16
        %v3237 = vrot.slane %v3235, 3
        %v3238 = vshll.u32 %v2996, 16
        %v3240 = vrot.slane %v3238, 4
        %v3241 = vor.u32 %v3237, %v3240
        %v3242 = vsel %vm3053, %v3241, %v3241
        %v3243 = vrot.slane %v1778, 3
        %v3244 = vrot.slane %v1780, 4
        %v3245 = vor.u32 %v3243, %v3244
        %v3247 = vshrl.u32 %v2902, 16
        %v3249 = vrot.slane %v3247, 3
        %v3250 = vshll.u32 %v2902, 16
        %v3252 = vrot.slane %v3250, 4
        %v3253 = vor.u32 %v3249, %v3252
        %v3254 = vsel %vm3053, %v3245, %v3253
        %v3256 = vshrl.u32 %v3004, 16
        %v3258 = vrot.slane %v3256, 3
        %v3259 = vshll.u32 %v3004, 16
        %v3261 = vrot.slane %v3259, 4
        %v3262 = vor.u32 %v3258, %v3261
        %v3263 = vsel %vm3053, %v3262, %v3262
        %v3264 = vrot.slane %v1793, 3
        %v3265 = vrot.slane %v1795, 4
        %v3266 = vor.u32 %v3264, %v3265
        %v3268 = vshrl.u32 %v2903, 16
        %v3270 = vrot.slane %v3268, 3
        %v3271 = vshll.u32 %v2903, 16
        %v3273 = vrot.slane %v3271, 4
        %v3274 = vor.u32 %v3270, %v3273
        %v3275 = vsel %vm3053, %v3266, %v3274
        %v3277 = vshrl.u32 %v3012, 16
        %v3279 = vrot.slane %v3277, 3
        %v3280 = vshll.u32 %v3012, 16
        %v3282 = vrot.slane %v3280, 4
        %v3283 = vor.u32 %v3279, %v3282
        %v3284 = vsel %vm3053, %v3283, %v3283
        %v3285 = vrot.slane %v1808, 3
        %v3286 = vrot.slane %v1810, 4
        %v3287 = vor.u32 %v3285, %v3286
        %v3289 = vshrl.u32 %v2904, 16
        %v3291 = vrot.slane %v3289, 3
        %v3292 = vshll.u32 %v2904, 16
        %v3294 = vrot.slane %v3292, 4
        %v3295 = vor.u32 %v3291, %v3294
        %v3296 = vsel %vm3053, %v3287, %v3295
        %v3298 = vshrl.u32 %v3020, 16
        %v3300 = vrot.slane %v3298, 3
        %v3301 = vshll.u32 %v3020, 16
        %v3303 = vrot.slane %v3301, 4
        %v3304 = vor.u32 %v3300, %v3303
        %v3305 = vsel %vm3053, %v3304, %v3304
        %v3306 = vrot.slane %v1823, 3
        %v3307 = vrot.slane %v1825, 4
        %v3308 = vor.u32 %v3306, %v3307
        %v3310 = vshrl.u32 %v2905, 16
        %v3312 = vrot.slane %v3310, 3
        %v3313 = vshll.u32 %v2905, 16
        %v3315 = vrot.slane %v3313, 4
        %v3316 = vor.u32 %v3312, %v3315
        %v3317 = vsel %vm3053, %v3308, %v3316
        %v3319 = vshrl.u32 %v3028, 16
        %v3321 = vrot.slane %v3319, 3
        %v3322 = vshll.u32 %v3028, 16
        %v3324 = vrot.slane %v3322, 4
        %v3325 = vor.u32 %v3321, %v3324
        %v3326 = vsel %vm3053, %v3325, %v3325
        %v3327 = vrot.slane %v1838, 3
        %v3328 = vrot.slane %v1840, 4
        %v3329 = vor.u32 %v3327, %v3328
        %v3331 = vshrl.u32 %v2906, 16
        %v3333 = vrot.slane %v3331, 3
        %v3334 = vshll.u32 %v2906, 16
        %v3336 = vrot.slane %v3334, 4
        %v3337 = vor.u32 %v3333, %v3336
        %v3338 = vsel %vm3053, %v3329, %v3337
        %v3340 = vshrl.u32 %v3036, 16
        %v3342 = vrot.slane %v3340, 3
        %v3343 = vshll.u32 %v3036, 16
        %v3345 = vrot.slane %v3343, 4
        %v3346 = vor.u32 %v3342, %v3345
        %v3347 = vsel %vm3053, %v3346, %v3346
        %v3348 = vrot.slane %v1853, 3
        %v3349 = vrot.slane %v1855, 4
        %v3350 = vor.u32 %v3348, %v3349
        %v3352 = vshrl.u32 %v2907, 16
        %v3354 = vrot.slane %v3352, 3
        %v3355 = vshll.u32 %v2907, 16
        %v3357 = vrot.slane %v3355, 4
        %v3358 = vor.u32 %v3354, %v3357
        %v3359 = vsel %vm3053, %v3350, %v3358
        %v3361 = vshrl.u32 %v3044, 16
        %v3363 = vrot.slane %v3361, 3
        %v3364 = vshll.u32 %v3044, 16
        %v3366 = vrot.slane %v3364, 4
        %v3367 = vor.u32 %v3363, %v3366
        %v3368 = vsel %vm3053, %v3367, %v3367
        %v3369 = vrot.slane %v1868, 3
        %v3370 = vrot.slane %v1870, 4
        %v3371 = vor.u32 %v3369, %v3370
        %v3373 = vshrl.u32 %v2908, 16
        %v3375 = vrot.slane %v3373, 3
        %v3376 = vshll.u32 %v2908, 16
        %v3378 = vrot.slane %v3376, 4
        %v3379 = vor.u32 %v3375, %v3378
        %v3380 = vsel %vm3053, %v3371, %v3379
        %v3382 = vshrl.u32 %v3052, 16
        %v3384 = vrot.slane %v3382, 3
        %v3385 = vshll.u32 %v3052, 16
        %v3387 = vrot.slane %v3385, 4
        %v3388 = vor.u32 %v3384, %v3387
        %v3389 = vsel %vm3053, %v3388, %v3388
        %v3422 = vld [vmem:[%s1 + $0x100] sm:$0xf]
        %v3423 = vld [vmem:[%s1 + $0x104] sm:$0xf]
        %v3424 = vld [vmem:[%s1 + $0x108] sm:$0xf]
        %v3425 = vld [vmem:[%s1 + $0x10c] sm:$0xf]
        %v3426 = vld [vmem:[%s1 + $0x110] sm:$0xf]
        %v3427 = vld [vmem:[%s1 + $0x114] sm:$0xf]
        %v3428 = vld [vmem:[%s1 + $0x118] sm:$0xf]
        %v3429 = vld [vmem:[%s1 + $0x11c] sm:$0xf]
        %v3430 = vld [vmem:[%s1 + $0x120] sm:$0xf]
        %v3431 = vld [vmem:[%s1 + $0x124] sm:$0xf]
        %v3432 = vld [vmem:[%s1 + $0x128] sm:$0xf]
        %v3433 = vld [vmem:[%s1 + $0x12c] sm:$0xf]
        %v3434 = vld [vmem:[%s1 + $0x130] sm:$0xf]
        %v3435 = vld [vmem:[%s1 + $0x134] sm:$0xf]
        %v3436 = vld [vmem:[%s1 + $0x138] sm:$0xf]
        %v3437 = vld [vmem:[%s1 + $0x13c] sm:$0xf]
        %v3438 = vld [vmem:[%s1 + $0x140] sm:$0xf]
        %v3439 = vld [vmem:[%s1 + $0x144] sm:$0xf]
        %v3440 = vld [vmem:[%s1 + $0x148] sm:$0xf]
        %v3441 = vld [vmem:[%s1 + $0x14c] sm:$0xf]
        %v3442 = vld [vmem:[%s1 + $0x150] sm:$0xf]
        %v3443 = vld [vmem:[%s1 + $0x154] sm:$0xf]
        %v3444 = vld [vmem:[%s1 + $0x158] sm:$0xf]
        %v3445 = vld [vmem:[%s1 + $0x15c] sm:$0xf]
        %v3446 = vld [vmem:[%s1 + $0x160] sm:$0xf]
        %v3447 = vld [vmem:[%s1 + $0x164] sm:$0xf]
        %v3448 = vld [vmem:[%s1 + $0x168] sm:$0xf]
        %v3449 = vld [vmem:[%s1 + $0x16c] sm:$0xf]
        %v3450 = vld [vmem:[%s1 + $0x170] sm:$0xf]
        %v3451 = vld [vmem:[%s1 + $0x174] sm:$0xf]
        %v3452 = vld [vmem:[%s1 + $0x178] sm:$0xf]
        %v3453 = vld [vmem:[%s1 + $0x17c] sm:$0xf]
        %v3486 = vunpack.c.l.b16 %v3422
        %v3487 = vunpack.c.l.b16 %v3423
        %v3488 = vunpack.c.l.b16 %v3424
        %v3489 = vunpack.c.l.b16 %v3425
        %v3490 = vunpack.c.l.b16 %v3426
        %v3491 = vunpack.c.l.b16 %v3427
        %v3492 = vunpack.c.l.b16 %v3428
        %v3493 = vunpack.c.l.b16 %v3429
        %v3494 = vunpack.c.l.b16 %v3430
        %v3495 = vunpack.c.l.b16 %v3431
        %v3496 = vunpack.c.l.b16 %v3432
        %v3497 = vunpack.c.l.b16 %v3433
        %v3498 = vunpack.c.l.b16 %v3434
        %v3499 = vunpack.c.l.b16 %v3435
        %v3500 = vunpack.c.l.b16 %v3436
        %v3501 = vunpack.c.l.b16 %v3437
        %v3502 = vunpack.c.l.b16 %v3438
        %v3503 = vunpack.c.l.b16 %v3439
        %v3504 = vunpack.c.l.b16 %v3440
        %v3505 = vunpack.c.l.b16 %v3441
        %v3506 = vunpack.c.l.b16 %v3442
        %v3507 = vunpack.c.l.b16 %v3443
        %v3508 = vunpack.c.l.b16 %v3444
        %v3509 = vunpack.c.l.b16 %v3445
        %v3510 = vunpack.c.l.b16 %v3446
        %v3511 = vunpack.c.l.b16 %v3447
        %v3512 = vunpack.c.l.b16 %v3448
        %v3513 = vunpack.c.l.b16 %v3449
        %v3514 = vunpack.c.l.b16 %v3450
        %v3515 = vunpack.c.l.b16 %v3451
        %v3516 = vunpack.c.l.b16 %v3452
        %v3517 = vunpack.c.l.b16 %v3453
        %v3518 = vpack.c.b16 %v3487, %v3486
        %v3519 = vpack.c.b16 %v3489, %v3488
        %v3520 = vpack.c.b16 %v3491, %v3490
        %v3521 = vpack.c.b16 %v3493, %v3492
        %v3522 = vpack.c.b16 %v3495, %v3494
        %v3523 = vpack.c.b16 %v3497, %v3496
        %v3524 = vpack.c.b16 %v3499, %v3498
        %v3525 = vpack.c.b16 %v3501, %v3500
        %v3526 = vpack.c.b16 %v3503, %v3502
        %v3527 = vpack.c.b16 %v3505, %v3504
        %v3528 = vpack.c.b16 %v3507, %v3506
        %v3529 = vpack.c.b16 %v3509, %v3508
        %v3530 = vpack.c.b16 %v3511, %v3510
        %v3531 = vpack.c.b16 %v3513, %v3512
        %v3532 = vpack.c.b16 %v3515, %v3514
        %v3533 = vpack.c.b16 %v3517, %v3516
        %3550 = vmatprep.subr.bf16.mxu0 0
        %3551 = vmatpush1.bf16.msra.mxu0 %v3525
        %3552 = vmatprep.subr.bf16.mxu0 0
        %3553 = vmatpush1.bf16.msra.mxu0 %v3524
        %3554 = vmatprep.subr.bf16.mxu0 0
        %3555 = vmatpush1.bf16.msra.mxu0 %v3523
        %3556 = vmatprep.subr.bf16.mxu0 0
        %3557 = vmatpush1.bf16.msra.mxu0 %v3522
        %3558 = vmatprep.subr.bf16.mxu0 0
        %3559 = vmatpush1.bf16.msra.mxu0 %v3521
        %3560 = vmatprep.subr.bf16.mxu0 0
        %3561 = vmatpush1.bf16.msra.mxu0 %v3520
        %3562 = vmatprep.subr.bf16.mxu0 0
        %3563 = vmatpush1.bf16.msra.mxu0 %v3519
        %3564 = vmatprep.subr.bf16.mxu0 0
        %3565 = vmatpush1.bf16.msra.mxu0 %v3518
        %3566 = vmatprep.subr.bf16.mxu0 0
        %3567 = vmatpush2.bf16.msra.mxu0 %v3533
        %3568 = vmatprep.subr.bf16.mxu0 0
        %3569 = vmatpush2.bf16.msra.mxu0 %v3532
        %3570 = vmatprep.subr.bf16.mxu0 0
        %3571 = vmatpush2.bf16.msra.mxu0 %v3531
        %3572 = vmatprep.subr.bf16.mxu0 0
        %3573 = vmatpush2.bf16.msra.mxu0 %v3530
        %3574 = vmatprep.subr.bf16.mxu0 0
        %3575 = vmatpush2.bf16.msra.mxu0 %v3529
        %3576 = vmatprep.subr.bf16.mxu0 0
        %3577 = vmatpush2.bf16.msra.mxu0 %v3528
        %3578 = vmatprep.subr.bf16.mxu0 0
        %3579 = vmatpush2.bf16.msra.mxu0 %v3527
        %3580 = vmatprep.subr.bf16.mxu0 0
        %3581 = vmatpush2.bf16.msra.mxu0 %v3526
        %3582 = vmatprep.mubr.bf16.mxu0 %v3074
        %3583 = vmatmul.mubr.bf16.gmra.mxu0 %v3065
        %v3584 = vpop.f32.mrf.mxu0
        %v3585 = vadd.f32 0.0, %v3584
        %v3586 = vpop.f32.mrf.mxu0
        %v3587 = vpop.f32.mrf.mxu0
        %v3588 = vadd.f32 0.0, %v3587
        %v3589 = vpop.f32.mrf.mxu0
        %3590 = vmatprep.mubr.bf16.mxu0 %v3095
        %3591 = vmatmul.mubr.bf16.gmra.mxu0 %v3086
        %v3592 = vpop.f32.mrf.mxu0
        %v3593 = vadd.f32 0.0, %v3592
        %v3594 = vpop.f32.mrf.mxu0
        %v3595 = vpop.f32.mrf.mxu0
        %v3596 = vadd.f32 0.0, %v3595
        %v3597 = vpop.f32.mrf.mxu0
        %3598 = vmatprep.mubr.bf16.mxu0 %v3116
        %3599 = vmatmul.mubr.bf16.gmra.mxu0 %v3107
        %v3600 = vpop.f32.mrf.mxu0
        %v3601 = vadd.f32 0.0, %v3600
        %v3602 = vpop.f32.mrf.mxu0
        %v3603 = vpop.f32.mrf.mxu0
        %v3604 = vadd.f32 0.0, %v3603
        %v3605 = vpop.f32.mrf.mxu0
        %3606 = vmatprep.mubr.bf16.mxu0 %v3137
        %3607 = vmatmul.mubr.bf16.gmra.mxu0 %v3128
        %v3608 = vpop.f32.mrf.mxu0
        %v3609 = vadd.f32 0.0, %v3608
        %v3610 = vpop.f32.mrf.mxu0
        %v3611 = vpop.f32.mrf.mxu0
        %v3612 = vadd.f32 0.0, %v3611
        %v3613 = vpop.f32.mrf.mxu0
        %3614 = vmatprep.mubr.bf16.mxu0 %v3158
        %3615 = vmatmul.mubr.bf16.gmra.mxu0 %v3149
        %v3616 = vpop.f32.mrf.mxu0
        %v3617 = vadd.f32 0.0, %v3616
        %v3618 = vpop.f32.mrf.mxu0
        %v3619 = vpop.f32.mrf.mxu0
        %v3620 = vadd.f32 0.0, %v3619
        %v3621 = vpop.f32.mrf.mxu0
        %3622 = vmatprep.mubr.bf16.mxu0 %v3179
        %3623 = vmatmul.mubr.bf16.gmra.mxu0 %v3170
        %v3624 = vpop.f32.mrf.mxu0
        %v3625 = vadd.f32 0.0, %v3624
        %v3626 = vpop.f32.mrf.mxu0
        %v3627 = vpop.f32.mrf.mxu0
        %v3628 = vadd.f32 0.0, %v3627
        %v3629 = vpop.f32.mrf.mxu0
        %3630 = vmatprep.mubr.bf16.mxu0 %v3200
        %3631 = vmatmul.mubr.bf16.gmra.mxu0 %v3191
        %v3632 = vpop.f32.mrf.mxu0
        %v3633 = vadd.f32 0.0, %v3632
        %v3634 = vpop.f32.mrf.mxu0
        %v3635 = vpop.f32.mrf.mxu0
        %v3636 = vadd.f32 0.0, %v3635
        %v3637 = vpop.f32.mrf.mxu0
        %3638 = vmatprep.mubr.bf16.mxu0 %v3221
        %3639 = vmatmul.mubr.bf16.gmra.mxu0 %v3212
        %v3640 = vpop.f32.mrf.mxu0
        %v3641 = vadd.f32 0.0, %v3640
        %v3642 = vpop.f32.mrf.mxu0
        %v3643 = vpop.f32.mrf.mxu0
        %v3644 = vadd.f32 0.0, %v3643
        %v3645 = vpop.f32.mrf.mxu0
        %3646 = vmatprep.mubr.bf16.mxu0 %v3242
        %3647 = vmatmul.mubr.bf16.gmra.mxu0 %v3233
        %v3648 = vpop.f32.mrf.mxu0
        %v3649 = vadd.f32 0.0, %v3648
        %v3650 = vpop.f32.mrf.mxu0
        %v3651 = vpop.f32.mrf.mxu0
        %v3652 = vadd.f32 0.0, %v3651
        %v3653 = vpop.f32.mrf.mxu0
        %3654 = vmatprep.mubr.bf16.mxu0 %v3263
        %3655 = vmatmul.mubr.bf16.gmra.mxu0 %v3254
        %v3656 = vpop.f32.mrf.mxu0
        %v3657 = vadd.f32 0.0, %v3656
        %v3658 = vpop.f32.mrf.mxu0
        %v3659 = vpop.f32.mrf.mxu0
        %v3660 = vadd.f32 0.0, %v3659
        %v3661 = vpop.f32.mrf.mxu0
        %3662 = vmatprep.mubr.bf16.mxu0 %v3284
        %3663 = vmatmul.mubr.bf16.gmra.mxu0 %v3275
        %v3664 = vpop.f32.mrf.mxu0
        %v3665 = vadd.f32 0.0, %v3664
        %v3666 = vpop.f32.mrf.mxu0
        %v3667 = vpop.f32.mrf.mxu0
        %v3668 = vadd.f32 0.0, %v3667
        %v3669 = vpop.f32.mrf.mxu0
        %3670 = vmatprep.mubr.bf16.mxu0 %v3305
        %3671 = vmatmul.mubr.bf16.gmra.mxu0 %v3296
        %v3672 = vpop.f32.mrf.mxu0
        %v3673 = vadd.f32 0.0, %v3672
        %v3674 = vpop.f32.mrf.mxu0
        %v3675 = vpop.f32.mrf.mxu0
        %v3676 = vadd.f32 0.0, %v3675
        %v3677 = vpop.f32.mrf.mxu0
        %3678 = vmatprep.mubr.bf16.mxu0 %v3326
        %3679 = vmatmul.mubr.bf16.gmra.mxu0 %v3317
        %v3680 = vpop.f32.mrf.mxu0
        %v3681 = vadd.f32 0.0, %v3680
        %v3682 = vpop.f32.mrf.mxu0
        %v3683 = vpop.f32.mrf.mxu0
        %v3684 = vadd.f32 0.0, %v3683
        %v3685 = vpop.f32.mrf.mxu0
        %3686 = vmatprep.mubr.bf16.mxu0 %v3347
        %3687 = vmatmul.mubr.bf16.gmra.mxu0 %v3338
        %v3688 = vpop.f32.mrf.mxu0
        %v3689 = vadd.f32 0.0, %v3688
        %v3690 = vpop.f32.mrf.mxu0
        %v3691 = vpop.f32.mrf.mxu0
        %v3692 = vadd.f32 0.0, %v3691
        %v3693 = vpop.f32.mrf.mxu0
        %3694 = vmatprep.mubr.bf16.mxu0 %v3368
        %3695 = vmatmul.mubr.bf16.gmra.mxu0 %v3359
        %v3696 = vpop.f32.mrf.mxu0
        %v3697 = vadd.f32 0.0, %v3696
        %v3698 = vpop.f32.mrf.mxu0
        %v3699 = vpop.f32.mrf.mxu0
        %v3700 = vadd.f32 0.0, %v3699
        %v3701 = vpop.f32.mrf.mxu0
        %3702 = vmatprep.mubr.bf16.mxu0 %v3389
        %3703 = vmatmul.mubr.bf16.gmra.mxu0 %v3380
        %v3704 = vpop.f32.mrf.mxu0
        %v3705 = vadd.f32 0.0, %v3704
        %v3706 = vpop.f32.mrf.mxu0
        %v3707 = vpop.f32.mrf.mxu0
        %v3708 = vadd.f32 0.0, %v3707
        %v3709 = vpop.f32.mrf.mxu0
        %3710 = vdwg.mxu0
        %v3711 = vadd.f32 %v2719, %v3585
        %v3712 = vadd.f32 %v2722, %v3588
        %v3713 = vadd.f32 %v2727, %v3593
        %v3714 = vadd.f32 %v2730, %v3596
        %v3715 = vadd.f32 %v2735, %v3601
        %v3716 = vadd.f32 %v2738, %v3604
        %v3717 = vadd.f32 %v2743, %v3609
        %v3718 = vadd.f32 %v2746, %v3612
        %v3719 = vadd.f32 %v2751, %v3617
        %v3720 = vadd.f32 %v2754, %v3620
        %v3721 = vadd.f32 %v2759, %v3625
        %v3722 = vadd.f32 %v2762, %v3628
        %v3723 = vadd.f32 %v2767, %v3633
        %v3724 = vadd.f32 %v2770, %v3636
        %v3725 = vadd.f32 %v2775, %v3641
        %v3726 = vadd.f32 %v2778, %v3644
        %v3727 = vadd.f32 %v2783, %v3649
        %v3728 = vadd.f32 %v2786, %v3652
        %v3729 = vadd.f32 %v2791, %v3657
        %v3730 = vadd.f32 %v2794, %v3660
        %v3731 = vadd.f32 %v2799, %v3665
        %v3732 = vadd.f32 %v2802, %v3668
        %v3733 = vadd.f32 %v2807, %v3673
        %v3734 = vadd.f32 %v2810, %v3676
        %v3735 = vadd.f32 %v2815, %v3681
        %v3736 = vadd.f32 %v2818, %v3684
        %v3737 = vadd.f32 %v2823, %v3689
        %v3738 = vadd.f32 %v2826, %v3692
        %v3739 = vadd.f32 %v2831, %v3697
        %v3740 = vadd.f32 %v2834, %v3700
        %v3741 = vadd.f32 %v2839, %v3705
        %v3742 = vadd.f32 %v2842, %v3708
        %v3743 = vld [vmem:[#allocation2 + $0x8] sm:$0xf]
        %v3744 = vld [vmem:[#allocation2 + $0xc] sm:$0xf]
        %v3745 = vld [vmem:[#allocation2 + $0x10] sm:$0x1]
        %v3746 = vld [vmem:[#allocation2 + $0x1c] sm:$0xf]
        %v3747 = vld [vmem:[#allocation2 + $0x20] sm:$0xf]
        %v3748 = vld [vmem:[#allocation2 + $0x24] sm:$0x1]
        %v3749 = vld [vmem:[#allocation2 + $0x30] sm:$0xf]
        %v3750 = vld [vmem:[#allocation2 + $0x34] sm:$0xf]
        %v3751 = vld [vmem:[#allocation2 + $0x38] sm:$0x1]
        %v3752 = vld [vmem:[#allocation2 + $0x44] sm:$0xf]
        %v3753 = vld [vmem:[#allocation2 + $0x48] sm:$0xf]
        %v3754 = vld [vmem:[#allocation2 + $0x4c] sm:$0x1]
        %v3755 = vld [vmem:[#allocation2 + $0x58] sm:$0xf]
        %v3756 = vld [vmem:[#allocation2 + $0x5c] sm:$0xf]
        %v3757 = vld [vmem:[#allocation2 + $0x60] sm:$0x1]
        %v3758 = vld [vmem:[#allocation2 + $0x6c] sm:$0xf]
        %v3759 = vld [vmem:[#allocation2 + $0x70] sm:$0xf]
        %v3760 = vld [vmem:[#allocation2 + $0x74] sm:$0x1]
        %v3761 = vld [vmem:[#allocation2 + $0x80] sm:$0xf]
        %v3762 = vld [vmem:[#allocation2 + $0x84] sm:$0xf]
        %v3763 = vld [vmem:[#allocation2 + $0x88] sm:$0x1]
        %v3764 = vld [vmem:[#allocation2 + $0x94] sm:$0xf]
        %v3765 = vld [vmem:[#allocation2 + $0x98] sm:$0xf]
        %v3766 = vld [vmem:[#allocation2 + $0x9c] sm:$0x1]
        %v3767 = vld [vmem:[#allocation2 + $0xa8] sm:$0xf]
        %v3768 = vld [vmem:[#allocation2 + $0xac] sm:$0xf]
        %v3769 = vld [vmem:[#allocation2 + $0xb0] sm:$0x1]
        %v3770 = vld [vmem:[#allocation2 + $0xbc] sm:$0xf]
        %v3771 = vld [vmem:[#allocation2 + $0xc0] sm:$0xf]
        %v3772 = vld [vmem:[#allocation2 + $0xc4] sm:$0x1]
        %v3773 = vld [vmem:[#allocation2 + $0xd0] sm:$0xf]
        %v3774 = vld [vmem:[#allocation2 + $0xd4] sm:$0xf]
        %v3775 = vld [vmem:[#allocation2 + $0xd8] sm:$0x1]
        %v3776 = vld [vmem:[#allocation2 + $0xe4] sm:$0xf]
        %v3777 = vld [vmem:[#allocation2 + $0xe8] sm:$0xf]
        %v3778 = vld [vmem:[#allocation2 + $0xec] sm:$0x1]
        %v3779 = vld [vmem:[#allocation2 + $0xf8] sm:$0xf]
        %v3780 = vld [vmem:[#allocation2 + $0xfc] sm:$0xf]
        %v3781 = vld [vmem:[#allocation2 + $0x100] sm:$0x1]
        %v3782 = vld [vmem:[#allocation2 + $0x10c] sm:$0xf]
        %v3783 = vld [vmem:[#allocation2 + $0x110] sm:$0xf]
        %v3784 = vld [vmem:[#allocation2 + $0x114] sm:$0x1]
        %v3785 = vld [vmem:[#allocation2 + $0x120] sm:$0xf]
        %v3786 = vld [vmem:[#allocation2 + $0x124] sm:$0xf]
        %v3787 = vld [vmem:[#allocation2 + $0x128] sm:$0x1]
        %v3788 = vld [vmem:[#allocation2 + $0x134] sm:$0xf]
        %v3789 = vld [vmem:[#allocation2 + $0x138] sm:$0xf]
        %v3790 = vld [vmem:[#allocation2 + $0x13c] sm:$0x1]
        %v3791 = vld [vmem:[#allocation2 + $0x8] sm:$0xe]
        %v3792 = vld [vmem:[#allocation2 + $0x1c] sm:$0xe]
        %v3793 = vld [vmem:[#allocation2 + $0x30] sm:$0xe]
        %v3794 = vld [vmem:[#allocation2 + $0x44] sm:$0xe]
        %v3795 = vld [vmem:[#allocation2 + $0x58] sm:$0xe]
        %v3796 = vld [vmem:[#allocation2 + $0x6c] sm:$0xe]
        %v3797 = vld [vmem:[#allocation2 + $0x80] sm:$0xe]
        %v3798 = vld [vmem:[#allocation2 + $0x94] sm:$0xe]
        %v3799 = vld [vmem:[#allocation2 + $0xa8] sm:$0xe]
        %v3800 = vld [vmem:[#allocation2 + $0xbc] sm:$0xe]
        %v3801 = vld [vmem:[#allocation2 + $0xd0] sm:$0xe]
        %v3802 = vld [vmem:[#allocation2 + $0xe4] sm:$0xe]
        %v3803 = vld [vmem:[#allocation2 + $0xf8] sm:$0xe]
        %v3804 = vld [vmem:[#allocation2 + $0x10c] sm:$0xe]
        %v3805 = vld [vmem:[#allocation2 + $0x120] sm:$0xe]
        %v3806 = vld [vmem:[#allocation2 + $0x134] sm:$0xe]
        %v3855 = vunpack.c.l.b16 %v3743
        %v3856 = vunpack.c.l.b16 %v3744
        %v3857 = vunpack.c.l.b16 %v3745
        %v3858 = vunpack.c.l.b16 %v3746
        %v3859 = vunpack.c.l.b16 %v3747
        %v3860 = vunpack.c.l.b16 %v3748
        %v3861 = vunpack.c.l.b16 %v3749
        %v3862 = vunpack.c.l.b16 %v3750
        %v3863 = vunpack.c.l.b16 %v3751
        %v3864 = vunpack.c.l.b16 %v3752
        %v3865 = vunpack.c.l.b16 %v3753
        %v3866 = vunpack.c.l.b16 %v3754
        %v3867 = vunpack.c.l.b16 %v3755
        %v3868 = vunpack.c.l.b16 %v3756
        %v3869 = vunpack.c.l.b16 %v3757
        %v3870 = vunpack.c.l.b16 %v3758
        %v3871 = vunpack.c.l.b16 %v3759
        %v3872 = vunpack.c.l.b16 %v3760
        %v3873 = vunpack.c.l.b16 %v3761
        %v3874 = vunpack.c.l.b16 %v3762
        %v3875 = vunpack.c.l.b16 %v3763
        %v3876 = vunpack.c.l.b16 %v3764
        %v3877 = vunpack.c.l.b16 %v3765
        %v3878 = vunpack.c.l.b16 %v3766
        %v3879 = vunpack.c.l.b16 %v3767
        %v3880 = vunpack.c.l.b16 %v3768
        %v3881 = vunpack.c.l.b16 %v3769
        %v3882 = vunpack.c.l.b16 %v3770
        %v3883 = vunpack.c.l.b16 %v3771
        %v3884 = vunpack.c.l.b16 %v3772
        %v3885 = vunpack.c.l.b16 %v3773
        %v3886 = vunpack.c.l.b16 %v3774
        %v3887 = vunpack.c.l.b16 %v3775
        %v3888 = vunpack.c.l.b16 %v3776
        %v3889 = vunpack.c.l.b16 %v3777
        %v3890 = vunpack.c.l.b16 %v3778
        %v3891 = vunpack.c.l.b16 %v3779
        %v3892 = vunpack.c.l.b16 %v3780
        %v3893 = vunpack.c.l.b16 %v3781
        %v3894 = vunpack.c.l.b16 %v3782
        %v3895 = vunpack.c.l.b16 %v3783
        %v3896 = vunpack.c.l.b16 %v3784
        %v3897 = vunpack.c.l.b16 %v3785
        %v3898 = vunpack.c.l.b16 %v3786
        %v3899 = vunpack.c.l.b16 %v3787
        %v3900 = vunpack.c.l.b16 %v3788
        %v3901 = vunpack.c.l.b16 %v3789
        %v3902 = vunpack.c.l.b16 %v3790
        %v3903 = vpack.c.b16 %v3856, %v3855
        %v3904 = vpack.c.b16 %v3857, %v3857
        %v3905 = vpack.c.b16 %v3859, %v3858
        %v3906 = vpack.c.b16 %v3860, %v3860
        %v3907 = vpack.c.b16 %v3862, %v3861
        %v3908 = vpack.c.b16 %v3863, %v3863
        %v3909 = vpack.c.b16 %v3865, %v3864
        %v3910 = vpack.c.b16 %v3866, %v3866
        %v3911 = vpack.c.b16 %v3868, %v3867
        %v3912 = vpack.c.b16 %v3869, %v3869
        %v3913 = vpack.c.b16 %v3871, %v3870
        %v3914 = vpack.c.b16 %v3872, %v3872
        %v3915 = vpack.c.b16 %v3874, %v3873
        %v3916 = vpack.c.b16 %v3875, %v3875
        %v3917 = vpack.c.b16 %v3877, %v3876
        %v3918 = vpack.c.b16 %v3878, %v3878
        %v3919 = vpack.c.b16 %v3880, %v3879
        %v3920 = vpack.c.b16 %v3881, %v3881
        %v3921 = vpack.c.b16 %v3883, %v3882
        %v3922 = vpack.c.b16 %v3884, %v3884
        %v3923 = vpack.c.b16 %v3886, %v3885
        %v3924 = vpack.c.b16 %v3887, %v3887
        %v3925 = vpack.c.b16 %v3889, %v3888
        %v3926 = vpack.c.b16 %v3890, %v3890
        %v3927 = vpack.c.b16 %v3892, %v3891
        %v3928 = vpack.c.b16 %v3893, %v3893
        %v3929 = vpack.c.b16 %v3895, %v3894
        %v3930 = vpack.c.b16 %v3896, %v3896
        %v3931 = vpack.c.b16 %v3898, %v3897
        %v3932 = vpack.c.b16 %v3899, %v3899
        %v3933 = vpack.c.b16 %v3901, %v3900
        %v3934 = vpack.c.b16 %v3902, %v3902
        %v3951 = vunpack.c.l.b16 %v3791
        %v3952 = vunpack.c.l.b16 %v3792
        %v3953 = vunpack.c.l.b16 %v3793
        %v3954 = vunpack.c.l.b16 %v3794
        %v3955 = vunpack.c.l.b16 %v3795
        %v3956 = vunpack.c.l.b16 %v3796
        %v3957 = vunpack.c.l.b16 %v3797
        %v3958 = vunpack.c.l.b16 %v3798
        %v3959 = vunpack.c.l.b16 %v3799
        %v3960 = vunpack.c.l.b16 %v3800
        %v3961 = vunpack.c.l.b16 %v3801
        %v3962 = vunpack.c.l.b16 %v3802
        %v3963 = vunpack.c.l.b16 %v3803
        %v3964 = vunpack.c.l.b16 %v3804
        %v3965 = vunpack.c.l.b16 %v3805
        %v3966 = vunpack.c.l.b16 %v3806
        %v3967 = vpack.c.b16 %v3856, %v3951
        %v3968 = vpack.c.b16 %v3859, %v3952
        %v3969 = vpack.c.b16 %v3862, %v3953
        %v3970 = vpack.c.b16 %v3865, %v3954
        %v3971 = vpack.c.b16 %v3868, %v3955
        %v3972 = vpack.c.b16 %v3871, %v3956
        %v3973 = vpack.c.b16 %v3874, %v3957
        %v3974 = vpack.c.b16 %v3877, %v3958
        %v3975 = vpack.c.b16 %v3880, %v3959
        %v3976 = vpack.c.b16 %v3883, %v3960
        %v3977 = vpack.c.b16 %v3886, %v3961
        %v3978 = vpack.c.b16 %v3889, %v3962
        %v3979 = vpack.c.b16 %v3892, %v3963
        %v3980 = vpack.c.b16 %v3895, %v3964
        %v3981 = vpack.c.b16 %v3898, %v3965
        %v3982 = vpack.c.b16 %v3901, %v3966
        %v3984 = vshrl.u32 %v3967, 16
        %v3986 = vshll.u32 %v3967, 16
        %v3988 = vrot.slane %v3986, 1
        %v3989 = vor.u32 %v3984, %v3988
        %v3991 = vshll.u32 %v3904, 16
        %v3993 = vrot.slane %v3991, 1
        %v3994 = vsel %vm744, %v3989, %v3993
        %v3995 = vshrl.u32 %v3904, 16
        %v3998 = vshrl.u32 %v3968, 16
        %v4000 = vshll.u32 %v3968, 16
        %v4002 = vrot.slane %v4000, 1
        %v4003 = vor.u32 %v3998, %v4002
        %v4005 = vshll.u32 %v3906, 16
        %v4007 = vrot.slane %v4005, 1
        %v4008 = vsel %vm744, %v4003, %v4007
        %v4009 = vshrl.u32 %v3906, 16
        %v4012 = vshrl.u32 %v3969, 16
        %v4014 = vshll.u32 %v3969, 16
        %v4016 = vrot.slane %v4014, 1
        %v4017 = vor.u32 %v4012, %v4016
        %v4019 = vshll.u32 %v3908, 16
        %v4021 = vrot.slane %v4019, 1
        %v4022 = vsel %vm744, %v4017, %v4021
        %v4023 = vshrl.u32 %v3908, 16
        %v4026 = vshrl.u32 %v3970, 16
        %v4028 = vshll.u32 %v3970, 16
        %v4030 = vrot.slane %v4028, 1
        %v4031 = vor.u32 %v4026, %v4030
        %v4033 = vshll.u32 %v3910, 16
        %v4035 = vrot.slane %v4033, 1
        %v4036 = vsel %vm744, %v4031, %v4035
        %v4037 = vshrl.u32 %v3910, 16
        %v4040 = vshrl.u32 %v3971, 16
        %v4042 = vshll.u32 %v3971, 16
        %v4044 = vrot.slane %v4042, 1
        %v4045 = vor.u32 %v4040, %v4044
        %v4047 = vshll.u32 %v3912, 16
        %v4049 = vrot.slane %v4047, 1
        %v4050 = vsel %vm744, %v4045, %v4049
        %v4051 = vshrl.u32 %v3912, 16
        %v4054 = vshrl.u32 %v3972, 16
        %v4056 = vshll.u32 %v3972, 16
        %v4058 = vrot.slane %v4056, 1
        %v4059 = vor.u32 %v4054, %v4058
        %v4061 = vshll.u32 %v3914, 16
        %v4063 = vrot.slane %v4061, 1
        %v4064 = vsel %vm744, %v4059, %v4063
        %v4065 = vshrl.u32 %v3914, 16
        %v4068 = vshrl.u32 %v3973, 16
        %v4070 = vshll.u32 %v3973, 16
        %v4072 = vrot.slane %v4070, 1
        %v4073 = vor.u32 %v4068, %v4072
        %v4075 = vshll.u32 %v3916, 16
        %v4077 = vrot.slane %v4075, 1
        %v4078 = vsel %vm744, %v4073, %v4077
        %v4079 = vshrl.u32 %v3916, 16
        %v4082 = vshrl.u32 %v3974, 16
        %v4084 = vshll.u32 %v3974, 16
        %v4086 = vrot.slane %v4084, 1
        %v4087 = vor.u32 %v4082, %v4086
        %v4089 = vshll.u32 %v3918, 16
        %v4091 = vrot.slane %v4089, 1
        %v4092 = vsel %vm744, %v4087, %v4091
        %v4093 = vshrl.u32 %v3918, 16
        %v4096 = vshrl.u32 %v3975, 16
        %v4098 = vshll.u32 %v3975, 16
        %v4100 = vrot.slane %v4098, 1
        %v4101 = vor.u32 %v4096, %v4100
        %v4103 = vshll.u32 %v3920, 16
        %v4105 = vrot.slane %v4103, 1
        %v4106 = vsel %vm744, %v4101, %v4105
        %v4107 = vshrl.u32 %v3920, 16
        %v4110 = vshrl.u32 %v3976, 16
        %v4112 = vshll.u32 %v3976, 16
        %v4114 = vrot.slane %v4112, 1
        %v4115 = vor.u32 %v4110, %v4114
        %v4117 = vshll.u32 %v3922, 16
        %v4119 = vrot.slane %v4117, 1
        %v4120 = vsel %vm744, %v4115, %v4119
        %v4121 = vshrl.u32 %v3922, 16
        %v4124 = vshrl.u32 %v3977, 16
        %v4126 = vshll.u32 %v3977, 16
        %v4128 = vrot.slane %v4126, 1
        %v4129 = vor.u32 %v4124, %v4128
        %v4131 = vshll.u32 %v3924, 16
        %v4133 = vrot.slane %v4131, 1
        %v4134 = vsel %vm744, %v4129, %v4133
        %v4135 = vshrl.u32 %v3924, 16
        %v4138 = vshrl.u32 %v3978, 16
        %v4140 = vshll.u32 %v3978, 16
        %v4142 = vrot.slane %v4140, 1
        %v4143 = vor.u32 %v4138, %v4142
        %v4145 = vshll.u32 %v3926, 16
        %v4147 = vrot.slane %v4145, 1
        %v4148 = vsel %vm744, %v4143, %v4147
        %v4149 = vshrl.u32 %v3926, 16
        %v4152 = vshrl.u32 %v3979, 16
        %v4154 = vshll.u32 %v3979, 16
        %v4156 = vrot.slane %v4154, 1
        %v4157 = vor.u32 %v4152, %v4156
        %v4159 = vshll.u32 %v3928, 16
        %v4161 = vrot.slane %v4159, 1
        %v4162 = vsel %vm744, %v4157, %v4161
        %v4163 = vshrl.u32 %v3928, 16
        %v4166 = vshrl.u32 %v3980, 16
        %v4168 = vshll.u32 %v3980, 16
        %v4170 = vrot.slane %v4168, 1
        %v4171 = vor.u32 %v4166, %v4170
        %v4173 = vshll.u32 %v3930, 16
        %v4175 = vrot.slane %v4173, 1
        %v4176 = vsel %vm744, %v4171, %v4175
        %v4177 = vshrl.u32 %v3930, 16
        %v4180 = vshrl.u32 %v3981, 16
        %v4182 = vshll.u32 %v3981, 16
        %v4184 = vrot.slane %v4182, 1
        %v4185 = vor.u32 %v4180, %v4184
        %v4187 = vshll.u32 %v3932, 16
        %v4189 = vrot.slane %v4187, 1
        %v4190 = vsel %vm744, %v4185, %v4189
        %v4191 = vshrl.u32 %v3932, 16
        %v4194 = vshrl.u32 %v3982, 16
        %v4196 = vshll.u32 %v3982, 16
        %v4198 = vrot.slane %v4196, 1
        %v4199 = vor.u32 %v4194, %v4198
        %v4201 = vshll.u32 %v3934, 16
        %v4203 = vrot.slane %v4201, 1
        %v4204 = vsel %vm744, %v4199, %v4203
        %v4205 = vshrl.u32 %v3934, 16
        %v4208 = vshrl.u32 %v3903, 16
        %v4210 = vshll.u32 %v3903, 16
        %v4212 = vrot.slane %v4210, 1
        %v4213 = vor.u32 %v4208, %v4212
        %v4214 = vsel %vm744, %v4213, %v3993
        %v4216 = vshrl.u32 %v3994, 16
        %v4218 = vshll.u32 %v3994, 16
        %v4220 = vrot.slane %v4218, 1
        %v4221 = vor.u32 %v4216, %v4220
        %v4223 = vshll.u32 %v3995, 16
        %v4225 = vrot.slane %v4223, 1
        %v4226 = vsel %vm744, %v4221, %v4225
        %v4228 = vshrl.u32 %v3905, 16
        %v4230 = vshll.u32 %v3905, 16
        %v4232 = vrot.slane %v4230, 1
        %v4233 = vor.u32 %v4228, %v4232
        %v4234 = vsel %vm744, %v4233, %v4007
        %v4236 = vshrl.u32 %v4008, 16
        %v4238 = vshll.u32 %v4008, 16
        %v4240 = vrot.slane %v4238, 1
        %v4241 = vor.u32 %v4236, %v4240
        %v4243 = vshll.u32 %v4009, 16
        %v4245 = vrot.slane %v4243, 1
        %v4246 = vsel %vm744, %v4241, %v4245
        %v4248 = vshrl.u32 %v3907, 16
        %v4250 = vshll.u32 %v3907, 16
        %v4252 = vrot.slane %v4250, 1
        %v4253 = vor.u32 %v4248, %v4252
        %v4254 = vsel %vm744, %v4253, %v4021
        %v4256 = vshrl.u32 %v4022, 16
        %v4258 = vshll.u32 %v4022, 16
        %v4260 = vrot.slane %v4258, 1
        %v4261 = vor.u32 %v4256, %v4260
        %v4263 = vshll.u32 %v4023, 16
        %v4265 = vrot.slane %v4263, 1
        %v4266 = vsel %vm744, %v4261, %v4265
        %v4268 = vshrl.u32 %v3909, 16
        %v4270 = vshll.u32 %v3909, 16
        %v4272 = vrot.slane %v4270, 1
        %v4273 = vor.u32 %v4268, %v4272
        %v4274 = vsel %vm744, %v4273, %v4035
        %v4276 = vshrl.u32 %v4036, 16
        %v4278 = vshll.u32 %v4036, 16
        %v4280 = vrot.slane %v4278, 1
        %v4281 = vor.u32 %v4276, %v4280
        %v4283 = vshll.u32 %v4037, 16
        %v4285 = vrot.slane %v4283, 1
        %v4286 = vsel %vm744, %v4281, %v4285
        %v4288 = vshrl.u32 %v3911, 16
        %v4290 = vshll.u32 %v3911, 16
        %v4292 = vrot.slane %v4290, 1
        %v4293 = vor.u32 %v4288, %v4292
        %v4294 = vsel %vm744, %v4293, %v4049
        %v4296 = vshrl.u32 %v4050, 16
        %v4298 = vshll.u32 %v4050, 16
        %v4300 = vrot.slane %v4298, 1
        %v4301 = vor.u32 %v4296, %v4300
        %v4303 = vshll.u32 %v4051, 16
        %v4305 = vrot.slane %v4303, 1
        %v4306 = vsel %vm744, %v4301, %v4305
        %v4308 = vshrl.u32 %v3913, 16
        %v4310 = vshll.u32 %v3913, 16
        %v4312 = vrot.slane %v4310, 1
        %v4313 = vor.u32 %v4308, %v4312
        %v4314 = vsel %vm744, %v4313, %v4063
        %v4316 = vshrl.u32 %v4064, 16
        %v4318 = vshll.u32 %v4064, 16
        %v4320 = vrot.slane %v4318, 1
        %v4321 = vor.u32 %v4316, %v4320
        %v4323 = vshll.u32 %v4065, 16
        %v4325 = vrot.slane %v4323, 1
        %v4326 = vsel %vm744, %v4321, %v4325
        %v4328 = vshrl.u32 %v3915, 16
        %v4330 = vshll.u32 %v3915, 16
        %v4332 = vrot.slane %v4330, 1
        %v4333 = vor.u32 %v4328, %v4332
        %v4334 = vsel %vm744, %v4333, %v4077
        %v4336 = vshrl.u32 %v4078, 16
        %v4338 = vshll.u32 %v4078, 16
        %v4340 = vrot.slane %v4338, 1
        %v4341 = vor.u32 %v4336, %v4340
        %v4343 = vshll.u32 %v4079, 16
        %v4345 = vrot.slane %v4343, 1
        %v4346 = vsel %vm744, %v4341, %v4345
        %v4348 = vshrl.u32 %v3917, 16
        %v4350 = vshll.u32 %v3917, 16
        %v4352 = vrot.slane %v4350, 1
        %v4353 = vor.u32 %v4348, %v4352
        %v4354 = vsel %vm744, %v4353, %v4091
        %v4356 = vshrl.u32 %v4092, 16
        %v4358 = vshll.u32 %v4092, 16
        %v4360 = vrot.slane %v4358, 1
        %v4361 = vor.u32 %v4356, %v4360
        %v4363 = vshll.u32 %v4093, 16
        %v4365 = vrot.slane %v4363, 1
        %v4366 = vsel %vm744, %v4361, %v4365
        %v4368 = vshrl.u32 %v3919, 16
        %v4370 = vshll.u32 %v3919, 16
        %v4372 = vrot.slane %v4370, 1
        %v4373 = vor.u32 %v4368, %v4372
        %v4374 = vsel %vm744, %v4373, %v4105
        %v4376 = vshrl.u32 %v4106, 16
        %v4378 = vshll.u32 %v4106, 16
        %v4380 = vrot.slane %v4378, 1
        %v4381 = vor.u32 %v4376, %v4380
        %v4383 = vshll.u32 %v4107, 16
        %v4385 = vrot.slane %v4383, 1
        %v4386 = vsel %vm744, %v4381, %v4385
        %v4388 = vshrl.u32 %v3921, 16
        %v4390 = vshll.u32 %v3921, 16
        %v4392 = vrot.slane %v4390, 1
        %v4393 = vor.u32 %v4388, %v4392
        %v4394 = vsel %vm744, %v4393, %v4119
        %v4396 = vshrl.u32 %v4120, 16
        %v4398 = vshll.u32 %v4120, 16
        %v4400 = vrot.slane %v4398, 1
        %v4401 = vor.u32 %v4396, %v4400
        %v4403 = vshll.u32 %v4121, 16
        %v4405 = vrot.slane %v4403, 1
        %v4406 = vsel %vm744, %v4401, %v4405
        %v4408 = vshrl.u32 %v3923, 16
        %v4410 = vshll.u32 %v3923, 16
        %v4412 = vrot.slane %v4410, 1
        %v4413 = vor.u32 %v4408, %v4412
        %v4414 = vsel %vm744, %v4413, %v4133
        %v4416 = vshrl.u32 %v4134, 16
        %v4418 = vshll.u32 %v4134, 16
        %v4420 = vrot.slane %v4418, 1
        %v4421 = vor.u32 %v4416, %v4420
        %v4423 = vshll.u32 %v4135, 16
        %v4425 = vrot.slane %v4423, 1
        %v4426 = vsel %vm744, %v4421, %v4425
        %v4428 = vshrl.u32 %v3925, 16
        %v4430 = vshll.u32 %v3925, 16
        %v4432 = vrot.slane %v4430, 1
        %v4433 = vor.u32 %v4428, %v4432
        %v4434 = vsel %vm744, %v4433, %v4147
        %v4436 = vshrl.u32 %v4148, 16
        %v4438 = vshll.u32 %v4148, 16
        %v4440 = vrot.slane %v4438, 1
        %v4441 = vor.u32 %v4436, %v4440
        %v4443 = vshll.u32 %v4149, 16
        %v4445 = vrot.slane %v4443, 1
        %v4446 = vsel %vm744, %v4441, %v4445
        %v4448 = vshrl.u32 %v3927, 16
        %v4450 = vshll.u32 %v3927, 16
        %v4452 = vrot.slane %v4450, 1
        %v4453 = vor.u32 %v4448, %v4452
        %v4454 = vsel %vm744, %v4453, %v4161
        %v4456 = vshrl.u32 %v4162, 16
        %v4458 = vshll.u32 %v4162, 16
        %v4460 = vrot.slane %v4458, 1
        %v4461 = vor.u32 %v4456, %v4460
        %v4463 = vshll.u32 %v4163, 16
        %v4465 = vrot.slane %v4463, 1
        %v4466 = vsel %vm744, %v4461, %v4465
        %v4468 = vshrl.u32 %v3929, 16
        %v4470 = vshll.u32 %v3929, 16
        %v4472 = vrot.slane %v4470, 1
        %v4473 = vor.u32 %v4468, %v4472
        %v4474 = vsel %vm744, %v4473, %v4175
        %v4476 = vshrl.u32 %v4176, 16
        %v4478 = vshll.u32 %v4176, 16
        %v4480 = vrot.slane %v4478, 1
        %v4481 = vor.u32 %v4476, %v4480
        %v4483 = vshll.u32 %v4177, 16
        %v4485 = vrot.slane %v4483, 1
        %v4486 = vsel %vm744, %v4481, %v4485
        %v4488 = vshrl.u32 %v3931, 16
        %v4490 = vshll.u32 %v3931, 16
        %v4492 = vrot.slane %v4490, 1
        %v4493 = vor.u32 %v4488, %v4492
        %v4494 = vsel %vm744, %v4493, %v4189
        %v4496 = vshrl.u32 %v4190, 16
        %v4498 = vshll.u32 %v4190, 16
        %v4500 = vrot.slane %v4498, 1
        %v4501 = vor.u32 %v4496, %v4500
        %v4503 = vshll.u32 %v4191, 16
        %v4505 = vrot.slane %v4503, 1
        %v4506 = vsel %vm744, %v4501, %v4505
        %v4508 = vshrl.u32 %v3933, 16
        %v4510 = vshll.u32 %v3933, 16
        %v4512 = vrot.slane %v4510, 1
        %v4513 = vor.u32 %v4508, %v4512
        %v4514 = vsel %vm744, %v4513, %v4203
        %v4516 = vshrl.u32 %v4204, 16
        %v4518 = vshll.u32 %v4204, 16
        %v4520 = vrot.slane %v4518, 1
        %v4521 = vor.u32 %v4516, %v4520
        %v4523 = vshll.u32 %v4205, 16
        %v4525 = vrot.slane %v4523, 1
        %v4526 = vsel %vm744, %v4521, %v4525
        %v4559 = vld [vmem:[%s1 + $0x180] sm:$0xf]
        %v4560 = vld [vmem:[%s1 + $0x184] sm:$0xf]
        %v4561 = vld [vmem:[%s1 + $0x188] sm:$0xf]
        %v4562 = vld [vmem:[%s1 + $0x18c] sm:$0xf]
        %v4563 = vld [vmem:[%s1 + $0x190] sm:$0xf]
        %v4564 = vld [vmem:[%s1 + $0x194] sm:$0xf]
        %v4565 = vld [vmem:[%s1 + $0x198] sm:$0xf]
        %v4566 = vld [vmem:[%s1 + $0x19c] sm:$0xf]
        %v4567 = vld [vmem:[%s1 + $0x1a0] sm:$0xf]
        %v4568 = vld [vmem:[%s1 + $0x1a4] sm:$0xf]
        %v4569 = vld [vmem:[%s1 + $0x1a8] sm:$0xf]
        %v4570 = vld [vmem:[%s1 + $0x1ac] sm:$0xf]
        %v4571 = vld [vmem:[%s1 + $0x1b0] sm:$0xf]
        %v4572 = vld [vmem:[%s1 + $0x1b4] sm:$0xf]
        %v4573 = vld [vmem:[%s1 + $0x1b8] sm:$0xf]
        %v4574 = vld [vmem:[%s1 + $0x1bc] sm:$0xf]
        %v4575 = vld [vmem:[%s1 + $0x1c0] sm:$0xf]
        %v4576 = vld [vmem:[%s1 + $0x1c4] sm:$0xf]
        %v4577 = vld [vmem:[%s1 + $0x1c8] sm:$0xf]
        %v4578 = vld [vmem:[%s1 + $0x1cc] sm:$0xf]
        %v4579 = vld [vmem:[%s1 + $0x1d0] sm:$0xf]
        %v4580 = vld [vmem:[%s1 + $0x1d4] sm:$0xf]
        %v4581 = vld [vmem:[%s1 + $0x1d8] sm:$0xf]
        %v4582 = vld [vmem:[%s1 + $0x1dc] sm:$0xf]
        %v4583 = vld [vmem:[%s1 + $0x1e0] sm:$0xf]
        %v4584 = vld [vmem:[%s1 + $0x1e4] sm:$0xf]
        %v4585 = vld [vmem:[%s1 + $0x1e8] sm:$0xf]
        %v4586 = vld [vmem:[%s1 + $0x1ec] sm:$0xf]
        %v4587 = vld [vmem:[%s1 + $0x1f0] sm:$0xf]
        %v4588 = vld [vmem:[%s1 + $0x1f4] sm:$0xf]
        %v4589 = vld [vmem:[%s1 + $0x1f8] sm:$0xf]
        %v4590 = vld [vmem:[%s1 + $0x1fc] sm:$0xf]
        %v4623 = vunpack.c.l.b16 %v4559
        %v4624 = vunpack.c.l.b16 %v4560
        %v4625 = vunpack.c.l.b16 %v4561
        %v4626 = vunpack.c.l.b16 %v4562
        %v4627 = vunpack.c.l.b16 %v4563
        %v4628 = vunpack.c.l.b16 %v4564
        %v4629 = vunpack.c.l.b16 %v4565
        %v4630 = vunpack.c.l.b16 %v4566
        %v4631 = vunpack.c.l.b16 %v4567
        %v4632 = vunpack.c.l.b16 %v4568
        %v4633 = vunpack.c.l.b16 %v4569
        %v4634 = vunpack.c.l.b16 %v4570
        %v4635 = vunpack.c.l.b16 %v4571
        %v4636 = vunpack.c.l.b16 %v4572
        %v4637 = vunpack.c.l.b16 %v4573
        %v4638 = vunpack.c.l.b16 %v4574
        %v4639 = vunpack.c.l.b16 %v4575
        %v4640 = vunpack.c.l.b16 %v4576
        %v4641 = vunpack.c.l.b16 %v4577
        %v4642 = vunpack.c.l.b16 %v4578
        %v4643 = vunpack.c.l.b16 %v4579
        %v4644 = vunpack.c.l.b16 %v4580
        %v4645 = vunpack.c.l.b16 %v4581
        %v4646 = vunpack.c.l.b16 %v4582
        %v4647 = vunpack.c.l.b16 %v4583
        %v4648 = vunpack.c.l.b16 %v4584
        %v4649 = vunpack.c.l.b16 %v4585
        %v4650 = vunpack.c.l.b16 %v4586
        %v4651 = vunpack.c.l.b16 %v4587
        %v4652 = vunpack.c.l.b16 %v4588
        %v4653 = vunpack.c.l.b16 %v4589
        %v4654 = vunpack.c.l.b16 %v4590
        %v4655 = vpack.c.b16 %v4624, %v4623
        %v4656 = vpack.c.b16 %v4626, %v4625
        %v4657 = vpack.c.b16 %v4628, %v4627
        %v4658 = vpack.c.b16 %v4630, %v4629
        %v4659 = vpack.c.b16 %v4632, %v4631
        %v4660 = vpack.c.b16 %v4634, %v4633
        %v4661 = vpack.c.b16 %v4636, %v4635
        %v4662 = vpack.c.b16 %v4638, %v4637
        %v4663 = vpack.c.b16 %v4640, %v4639
        %v4664 = vpack.c.b16 %v4642, %v4641
        %v4665 = vpack.c.b16 %v4644, %v4643
        %v4666 = vpack.c.b16 %v4646, %v4645
        %v4667 = vpack.c.b16 %v4648, %v4647
        %v4668 = vpack.c.b16 %v4650, %v4649
        %v4669 = vpack.c.b16 %v4652, %v4651
        %v4670 = vpack.c.b16 %v4654, %v4653
        %4687 = vmatprep.subr.bf16.mxu0 0
        %4688 = vmatpush1.bf16.msra.mxu0 %v4662
        %4689 = vmatprep.subr.bf16.mxu0 0
        %4690 = vmatpush1.bf16.msra.mxu0 %v4661
        %4691 = vmatprep.subr.bf16.mxu0 0
        %4692 = vmatpush1.bf16.msra.mxu0 %v4660
        %4693 = vmatprep.subr.bf16.mxu0 0
        %4694 = vmatpush1.bf16.msra.mxu0 %v4659
        %4695 = vmatprep.subr.bf16.mxu0 0
        %4696 = vmatpush1.bf16.msra.mxu0 %v4658
        %4697 = vmatprep.subr.bf16.mxu0 0
        %4698 = vmatpush1.bf16.msra.mxu0 %v4657
        %4699 = vmatprep.subr.bf16.mxu0 0
        %4700 = vmatpush1.bf16.msra.mxu0 %v4656
        %4701 = vmatprep.subr.bf16.mxu0 0
        %4702 = vmatpush1.bf16.msra.mxu0 %v4655
        %4703 = vmatprep.subr.bf16.mxu0 0
        %4704 = vmatpush2.bf16.msra.mxu0 %v4670
        %4705 = vmatprep.subr.bf16.mxu0 0
        %4706 = vmatpush2.bf16.msra.mxu0 %v4669
        %4707 = vmatprep.subr.bf16.mxu0 0
        %4708 = vmatpush2.bf16.msra.mxu0 %v4668
        %4709 = vmatprep.subr.bf16.mxu0 0
        %4710 = vmatpush2.bf16.msra.mxu0 %v4667
        %4711 = vmatprep.subr.bf16.mxu0 0
        %4712 = vmatpush2.bf16.msra.mxu0 %v4666
        %4713 = vmatprep.subr.bf16.mxu0 0
        %4714 = vmatpush2.bf16.msra.mxu0 %v4665
        %4715 = vmatprep.subr.bf16.mxu0 0
        %4716 = vmatpush2.bf16.msra.mxu0 %v4664
        %4717 = vmatprep.subr.bf16.mxu0 0
        %4718 = vmatpush2.bf16.msra.mxu0 %v4663
        %4719 = vmatprep.mubr.bf16.mxu0 %v4226
        %4720 = vmatmul.mubr.bf16.gmra.mxu0 %v4214
        %v4721 = vpop.f32.mrf.mxu0
        %v4722 = vadd.f32 0.0, %v4721
        %v4723 = vpop.f32.mrf.mxu0
        %v4724 = vpop.f32.mrf.mxu0
        %v4725 = vadd.f32 0.0, %v4724
        %v4726 = vpop.f32.mrf.mxu0
        %4727 = vmatprep.mubr.bf16.mxu0 %v4246
        %4728 = vmatmul.mubr.bf16.gmra.mxu0 %v4234
        %v4729 = vpop.f32.mrf.mxu0
        %v4730 = vadd.f32 0.0, %v4729
        %v4731 = vpop.f32.mrf.mxu0
        %v4732 = vpop.f32.mrf.mxu0
        %v4733 = vadd.f32 0.0, %v4732
        %v4734 = vpop.f32.mrf.mxu0
        %4735 = vmatprep.mubr.bf16.mxu0 %v4266
        %4736 = vmatmul.mubr.bf16.gmra.mxu0 %v4254
        %v4737 = vpop.f32.mrf.mxu0
        %v4738 = vadd.f32 0.0, %v4737
        %v4739 = vpop.f32.mrf.mxu0
        %v4740 = vpop.f32.mrf.mxu0
        %v4741 = vadd.f32 0.0, %v4740
        %v4742 = vpop.f32.mrf.mxu0
        %4743 = vmatprep.mubr.bf16.mxu0 %v4286
        %4744 = vmatmul.mubr.bf16.gmra.mxu0 %v4274
        %v4745 = vpop.f32.mrf.mxu0
        %v4746 = vadd.f32 0.0, %v4745
        %v4747 = vpop.f32.mrf.mxu0
        %v4748 = vpop.f32.mrf.mxu0
        %v4749 = vadd.f32 0.0, %v4748
        %v4750 = vpop.f32.mrf.mxu0
        %4751 = vmatprep.mubr.bf16.mxu0 %v4306
        %4752 = vmatmul.mubr.bf16.gmra.mxu0 %v4294
        %v4753 = vpop.f32.mrf.mxu0
        %v4754 = vadd.f32 0.0, %v4753
        %v4755 = vpop.f32.mrf.mxu0
        %v4756 = vpop.f32.mrf.mxu0
        %v4757 = vadd.f32 0.0, %v4756
        %v4758 = vpop.f32.mrf.mxu0
        %4759 = vmatprep.mubr.bf16.mxu0 %v4326
        %4760 = vmatmul.mubr.bf16.gmra.mxu0 %v4314
        %v4761 = vpop.f32.mrf.mxu0
        %v4762 = vadd.f32 0.0, %v4761
        %v4763 = vpop.f32.mrf.mxu0
        %v4764 = vpop.f32.mrf.mxu0
        %v4765 = vadd.f32 0.0, %v4764
        %v4766 = vpop.f32.mrf.mxu0
        %4767 = vmatprep.mubr.bf16.mxu0 %v4346
        %4768 = vmatmul.mubr.bf16.gmra.mxu0 %v4334
        %v4769 = vpop.f32.mrf.mxu0
        %v4770 = vadd.f32 0.0, %v4769
        %v4771 = vpop.f32.mrf.mxu0
        %v4772 = vpop.f32.mrf.mxu0
        %v4773 = vadd.f32 0.0, %v4772
        %v4774 = vpop.f32.mrf.mxu0
        %4775 = vmatprep.mubr.bf16.mxu0 %v4366
        %4776 = vmatmul.mubr.bf16.gmra.mxu0 %v4354
        %v4777 = vpop.f32.mrf.mxu0
        %v4778 = vadd.f32 0.0, %v4777
        %v4779 = vpop.f32.mrf.mxu0
        %v4780 = vpop.f32.mrf.mxu0
        %v4781 = vadd.f32 0.0, %v4780
        %v4782 = vpop.f32.mrf.mxu0
        %4783 = vmatprep.mubr.bf16.mxu0 %v4386
        %4784 = vmatmul.mubr.bf16.gmra.mxu0 %v4374
        %v4785 = vpop.f32.mrf.mxu0
        %v4786 = vadd.f32 0.0, %v4785
        %v4787 = vpop.f32.mrf.mxu0
        %v4788 = vpop.f32.mrf.mxu0
        %v4789 = vadd.f32 0.0, %v4788
        %v4790 = vpop.f32.mrf.mxu0
        %4791 = vmatprep.mubr.bf16.mxu0 %v4406
        %4792 = vmatmul.mubr.bf16.gmra.mxu0 %v4394
        %v4793 = vpop.f32.mrf.mxu0
        %v4794 = vadd.f32 0.0, %v4793
        %v4795 = vpop.f32.mrf.mxu0
        %v4796 = vpop.f32.mrf.mxu0
        %v4797 = vadd.f32 0.0, %v4796
        %v4798 = vpop.f32.mrf.mxu0
        %4799 = vmatprep.mubr.bf16.mxu0 %v4426
        %4800 = vmatmul.mubr.bf16.gmra.mxu0 %v4414
        %v4801 = vpop.f32.mrf.mxu0
        %v4802 = vadd.f32 0.0, %v4801
        %v4803 = vpop.f32.mrf.mxu0
        %v4804 = vpop.f32.mrf.mxu0
        %v4805 = vadd.f32 0.0, %v4804
        %v4806 = vpop.f32.mrf.mxu0
        %4807 = vmatprep.mubr.bf16.mxu0 %v4446
        %4808 = vmatmul.mubr.bf16.gmra.mxu0 %v4434
        %v4809 = vpop.f32.mrf.mxu0
        %v4810 = vadd.f32 0.0, %v4809
        %v4811 = vpop.f32.mrf.mxu0
        %v4812 = vpop.f32.mrf.mxu0
        %v4813 = vadd.f32 0.0, %v4812
        %v4814 = vpop.f32.mrf.mxu0
        %4815 = vmatprep.mubr.bf16.mxu0 %v4466
        %4816 = vmatmul.mubr.bf16.gmra.mxu0 %v4454
        %v4817 = vpop.f32.mrf.mxu0
        %v4818 = vadd.f32 0.0, %v4817
        %v4819 = vpop.f32.mrf.mxu0
        %v4820 = vpop.f32.mrf.mxu0
        %v4821 = vadd.f32 0.0, %v4820
        %v4822 = vpop.f32.mrf.mxu0
        %4823 = vmatprep.mubr.bf16.mxu0 %v4486
        %4824 = vmatmul.mubr.bf16.gmra.mxu0 %v4474
        %v4825 = vpop.f32.mrf.mxu0
        %v4826 = vadd.f32 0.0, %v4825
        %v4827 = vpop.f32.mrf.mxu0
        %v4828 = vpop.f32.mrf.mxu0
        %v4829 = vadd.f32 0.0, %v4828
        %v4830 = vpop.f32.mrf.mxu0
        %4831 = vmatprep.mubr.bf16.mxu0 %v4506
        %4832 = vmatmul.mubr.bf16.gmra.mxu0 %v4494
        %v4833 = vpop.f32.mrf.mxu0
        %v4834 = vadd.f32 0.0, %v4833
        %v4835 = vpop.f32.mrf.mxu0
        %v4836 = vpop.f32.mrf.mxu0
        %v4837 = vadd.f32 0.0, %v4836
        %v4838 = vpop.f32.mrf.mxu0
        %4839 = vmatprep.mubr.bf16.mxu0 %v4526
        %4840 = vmatmul.mubr.bf16.gmra.mxu0 %v4514
        %v4841 = vpop.f32.mrf.mxu0
        %v4842 = vadd.f32 0.0, %v4841
        %v4843 = vpop.f32.mrf.mxu0
        %v4844 = vpop.f32.mrf.mxu0
        %v4845 = vadd.f32 0.0, %v4844
        %v4846 = vpop.f32.mrf.mxu0
        %4847 = vdwg.mxu0
        %v4848 = vadd.f32 %v3711, %v4722
        %v4849 = vadd.f32 %v3712, %v4725
        %v4850 = vadd.f32 %v3713, %v4730
        %v4851 = vadd.f32 %v3714, %v4733
        %v4852 = vadd.f32 %v3715, %v4738
        %v4853 = vadd.f32 %v3716, %v4741
        %v4854 = vadd.f32 %v3717, %v4746
        %v4855 = vadd.f32 %v3718, %v4749
        %v4856 = vadd.f32 %v3719, %v4754
        %v4857 = vadd.f32 %v3720, %v4757
        %v4858 = vadd.f32 %v3721, %v4762
        %v4859 = vadd.f32 %v3722, %v4765
        %v4860 = vadd.f32 %v3723, %v4770
        %v4861 = vadd.f32 %v3724, %v4773
        %v4862 = vadd.f32 %v3725, %v4778
        %v4863 = vadd.f32 %v3726, %v4781
        %v4864 = vadd.f32 %v3727, %v4786
        %v4865 = vadd.f32 %v3728, %v4789
        %v4866 = vadd.f32 %v3729, %v4794
        %v4867 = vadd.f32 %v3730, %v4797
        %v4868 = vadd.f32 %v3731, %v4802
        %v4869 = vadd.f32 %v3732, %v4805
        %v4870 = vadd.f32 %v3733, %v4810
        %v4871 = vadd.f32 %v3734, %v4813
        %v4872 = vadd.f32 %v3735, %v4818
        %v4873 = vadd.f32 %v3736, %v4821
        %v4874 = vadd.f32 %v3737, %v4826
        %v4875 = vadd.f32 %v3738, %v4829
        %v4876 = vadd.f32 %v3739, %v4834
        %v4877 = vadd.f32 %v3740, %v4837
        %v4878 = vadd.f32 %v3741, %v4842
        %v4879 = vadd.f32 %v3742, %v4845
        %v4880 = vld [vmem:[#allocation2 + $0x10] sm:$0x3]
        %v4881 = vld [vmem:[#allocation2 + $0x24] sm:$0x3]
        %v4882 = vld [vmem:[#allocation2 + $0x38] sm:$0x3]
        %v4883 = vld [vmem:[#allocation2 + $0x4c] sm:$0x3]
        %v4884 = vld [vmem:[#allocation2 + $0x60] sm:$0x3]
        %v4885 = vld [vmem:[#allocation2 + $0x74] sm:$0x3]
        %v4886 = vld [vmem:[#allocation2 + $0x88] sm:$0x3]
        %v4887 = vld [vmem:[#allocation2 + $0x9c] sm:$0x3]
        %v4888 = vld [vmem:[#allocation2 + $0xb0] sm:$0x3]
        %v4889 = vld [vmem:[#allocation2 + $0xc4] sm:$0x3]
        %v4890 = vld [vmem:[#allocation2 + $0xd8] sm:$0x3]
        %v4891 = vld [vmem:[#allocation2 + $0xec] sm:$0x3]
        %v4892 = vld [vmem:[#allocation2 + $0x100] sm:$0x3]
        %v4893 = vld [vmem:[#allocation2 + $0x114] sm:$0x3]
        %v4894 = vld [vmem:[#allocation2 + $0x128] sm:$0x3]
        %v4895 = vld [vmem:[#allocation2 + $0x13c] sm:$0x3]
        %v4896 = vld [vmem:[#allocation2 + $0x8] sm:$0xc]
        %v4897 = vld [vmem:[#allocation2 + $0x1c] sm:$0xc]
        %v4898 = vld [vmem:[#allocation2 + $0x30] sm:$0xc]
        %v4899 = vld [vmem:[#allocation2 + $0x44] sm:$0xc]
        %v4900 = vld [vmem:[#allocation2 + $0x58] sm:$0xc]
        %v4901 = vld [vmem:[#allocation2 + $0x6c] sm:$0xc]
        %v4902 = vld [vmem:[#allocation2 + $0x80] sm:$0xc]
        %v4903 = vld [vmem:[#allocation2 + $0x94] sm:$0xc]
        %v4904 = vld [vmem:[#allocation2 + $0xa8] sm:$0xc]
        %v4905 = vld [vmem:[#allocation2 + $0xbc] sm:$0xc]
        %v4906 = vld [vmem:[#allocation2 + $0xd0] sm:$0xc]
        %v4907 = vld [vmem:[#allocation2 + $0xe4] sm:$0xc]
        %v4908 = vld [vmem:[#allocation2 + $0xf8] sm:$0xc]
        %v4909 = vld [vmem:[#allocation2 + $0x10c] sm:$0xc]
        %v4910 = vld [vmem:[#allocation2 + $0x120] sm:$0xc]
        %v4911 = vld [vmem:[#allocation2 + $0x134] sm:$0xc]
        %v4928 = vunpack.c.l.b16 %v4880
        %v4929 = vunpack.c.l.b16 %v4881
        %v4930 = vunpack.c.l.b16 %v4882
        %v4931 = vunpack.c.l.b16 %v4883
        %v4932 = vunpack.c.l.b16 %v4884
        %v4933 = vunpack.c.l.b16 %v4885
        %v4934 = vunpack.c.l.b16 %v4886
        %v4935 = vunpack.c.l.b16 %v4887
        %v4936 = vunpack.c.l.b16 %v4888
        %v4937 = vunpack.c.l.b16 %v4889
        %v4938 = vunpack.c.l.b16 %v4890
        %v4939 = vunpack.c.l.b16 %v4891
        %v4940 = vunpack.c.l.b16 %v4892
        %v4941 = vunpack.c.l.b16 %v4893
        %v4942 = vunpack.c.l.b16 %v4894
        %v4943 = vunpack.c.l.b16 %v4895
        %v4944 = vpack.c.b16 %v4928, %v4928
        %v4945 = vpack.c.b16 %v4929, %v4929
        %v4946 = vpack.c.b16 %v4930, %v4930
        %v4947 = vpack.c.b16 %v4931, %v4931
        %v4948 = vpack.c.b16 %v4932, %v4932
        %v4949 = vpack.c.b16 %v4933, %v4933
        %v4950 = vpack.c.b16 %v4934, %v4934
        %v4951 = vpack.c.b16 %v4935, %v4935
        %v4952 = vpack.c.b16 %v4936, %v4936
        %v4953 = vpack.c.b16 %v4937, %v4937
        %v4954 = vpack.c.b16 %v4938, %v4938
        %v4955 = vpack.c.b16 %v4939, %v4939
        %v4956 = vpack.c.b16 %v4940, %v4940
        %v4957 = vpack.c.b16 %v4941, %v4941
        %v4958 = vpack.c.b16 %v4942, %v4942
        %v4959 = vpack.c.b16 %v4943, %v4943
        %v4976 = vunpack.c.l.b16 %v4896
        %v4977 = vunpack.c.l.b16 %v4897
        %v4978 = vunpack.c.l.b16 %v4898
        %v4979 = vunpack.c.l.b16 %v4899
        %v4980 = vunpack.c.l.b16 %v4900
        %v4981 = vunpack.c.l.b16 %v4901
        %v4982 = vunpack.c.l.b16 %v4902
        %v4983 = vunpack.c.l.b16 %v4903
        %v4984 = vunpack.c.l.b16 %v4904
        %v4985 = vunpack.c.l.b16 %v4905
        %v4986 = vunpack.c.l.b16 %v4906
        %v4987 = vunpack.c.l.b16 %v4907
        %v4988 = vunpack.c.l.b16 %v4908
        %v4989 = vunpack.c.l.b16 %v4909
        %v4990 = vunpack.c.l.b16 %v4910
        %v4991 = vunpack.c.l.b16 %v4911
        %v4992 = vpack.c.b16 %v3856, %v4976
        %v4993 = vpack.c.b16 %v3859, %v4977
        %v4994 = vpack.c.b16 %v3862, %v4978
        %v4995 = vpack.c.b16 %v3865, %v4979
        %v4996 = vpack.c.b16 %v3868, %v4980
        %v4997 = vpack.c.b16 %v3871, %v4981
        %v4998 = vpack.c.b16 %v3874, %v4982
        %v4999 = vpack.c.b16 %v3877, %v4983
        %v5000 = vpack.c.b16 %v3880, %v4984
        %v5001 = vpack.c.b16 %v3883, %v4985
        %v5002 = vpack.c.b16 %v3886, %v4986
        %v5003 = vpack.c.b16 %v3889, %v4987
        %v5004 = vpack.c.b16 %v3892, %v4988
        %v5005 = vpack.c.b16 %v3895, %v4989
        %v5006 = vpack.c.b16 %v3898, %v4990
        %v5007 = vpack.c.b16 %v3901, %v4991
        %v5009 = vshrl.u32 %v4992, 16
        %v5011 = vshll.u32 %v4992, 16
        %v5013 = vrot.slane %v5011, 1
        %v5014 = vor.u32 %v5009, %v5013
        %v5016 = vshll.u32 %v4944, 16
        %v5018 = vrot.slane %v5016, 1
        %v5019 = vsel %vm744, %v5014, %v5018
        %v5020 = vshrl.u32 %v4944, 16
        %v5022 = vor.u32 %v5020, %v5018
        %v5024 = vshrl.u32 %v4993, 16
        %v5026 = vshll.u32 %v4993, 16
        %v5028 = vrot.slane %v5026, 1
        %v5029 = vor.u32 %v5024, %v5028
        %v5031 = vshll.u32 %v4945, 16
        %v5033 = vrot.slane %v5031, 1
        %v5034 = vsel %vm744, %v5029, %v5033
        %v5035 = vshrl.u32 %v4945, 16
        %v5037 = vor.u32 %v5035, %v5033
        %v5039 = vshrl.u32 %v4994, 16
        %v5041 = vshll.u32 %v4994, 16
        %v5043 = vrot.slane %v5041, 1
        %v5044 = vor.u32 %v5039, %v5043
        %v5046 = vshll.u32 %v4946, 16
        %v5048 = vrot.slane %v5046, 1
        %v5049 = vsel %vm744, %v5044, %v5048
        %v5050 = vshrl.u32 %v4946, 16
        %v5052 = vor.u32 %v5050, %v5048
        %v5054 = vshrl.u32 %v4995, 16
        %v5056 = vshll.u32 %v4995, 16
        %v5058 = vrot.slane %v5056, 1
        %v5059 = vor.u32 %v5054, %v5058
        %v5061 = vshll.u32 %v4947, 16
        %v5063 = vrot.slane %v5061, 1
        %v5064 = vsel %vm744, %v5059, %v5063
        %v5065 = vshrl.u32 %v4947, 16
        %v5067 = vor.u32 %v5065, %v5063
        %v5069 = vshrl.u32 %v4996, 16
        %v5071 = vshll.u32 %v4996, 16
        %v5073 = vrot.slane %v5071, 1
        %v5074 = vor.u32 %v5069, %v5073
        %v5076 = vshll.u32 %v4948, 16
        %v5078 = vrot.slane %v5076, 1
        %v5079 = vsel %vm744, %v5074, %v5078
        %v5080 = vshrl.u32 %v4948, 16
        %v5082 = vor.u32 %v5080, %v5078
        %v5084 = vshrl.u32 %v4997, 16
        %v5086 = vshll.u32 %v4997, 16
        %v5088 = vrot.slane %v5086, 1
        %v5089 = vor.u32 %v5084, %v5088
        %v5091 = vshll.u32 %v4949, 16
        %v5093 = vrot.slane %v5091, 1
        %v5094 = vsel %vm744, %v5089, %v5093
        %v5095 = vshrl.u32 %v4949, 16
        %v5097 = vor.u32 %v5095, %v5093
        %v5099 = vshrl.u32 %v4998, 16
        %v5101 = vshll.u32 %v4998, 16
        %v5103 = vrot.slane %v5101, 1
        %v5104 = vor.u32 %v5099, %v5103
        %v5106 = vshll.u32 %v4950, 16
        %v5108 = vrot.slane %v5106, 1
        %v5109 = vsel %vm744, %v5104, %v5108
        %v5110 = vshrl.u32 %v4950, 16
        %v5112 = vor.u32 %v5110, %v5108
        %v5114 = vshrl.u32 %v4999, 16
        %v5116 = vshll.u32 %v4999, 16
        %v5118 = vrot.slane %v5116, 1
        %v5119 = vor.u32 %v5114, %v5118
        %v5121 = vshll.u32 %v4951, 16
        %v5123 = vrot.slane %v5121, 1
        %v5124 = vsel %vm744, %v5119, %v5123
        %v5125 = vshrl.u32 %v4951, 16
        %v5127 = vor.u32 %v5125, %v5123
        %v5129 = vshrl.u32 %v5000, 16
        %v5131 = vshll.u32 %v5000, 16
        %v5133 = vrot.slane %v5131, 1
        %v5134 = vor.u32 %v5129, %v5133
        %v5136 = vshll.u32 %v4952, 16
        %v5138 = vrot.slane %v5136, 1
        %v5139 = vsel %vm744, %v5134, %v5138
        %v5140 = vshrl.u32 %v4952, 16
        %v5142 = vor.u32 %v5140, %v5138
        %v5144 = vshrl.u32 %v5001, 16
        %v5146 = vshll.u32 %v5001, 16
        %v5148 = vrot.slane %v5146, 1
        %v5149 = vor.u32 %v5144, %v5148
        %v5151 = vshll.u32 %v4953, 16
        %v5153 = vrot.slane %v5151, 1
        %v5154 = vsel %vm744, %v5149, %v5153
        %v5155 = vshrl.u32 %v4953, 16
        %v5157 = vor.u32 %v5155, %v5153
        %v5159 = vshrl.u32 %v5002, 16
        %v5161 = vshll.u32 %v5002, 16
        %v5163 = vrot.slane %v5161, 1
        %v5164 = vor.u32 %v5159, %v5163
        %v5166 = vshll.u32 %v4954, 16
        %v5168 = vrot.slane %v5166, 1
        %v5169 = vsel %vm744, %v5164, %v5168
        %v5170 = vshrl.u32 %v4954, 16
        %v5172 = vor.u32 %v5170, %v5168
        %v5174 = vshrl.u32 %v5003, 16
        %v5176 = vshll.u32 %v5003, 16
        %v5178 = vrot.slane %v5176, 1
        %v5179 = vor.u32 %v5174, %v5178
        %v5181 = vshll.u32 %v4955, 16
        %v5183 = vrot.slane %v5181, 1
        %v5184 = vsel %vm744, %v5179, %v5183
        %v5185 = vshrl.u32 %v4955, 16
        %v5187 = vor.u32 %v5185, %v5183
        %v5189 = vshrl.u32 %v5004, 16
        %v5191 = vshll.u32 %v5004, 16
        %v5193 = vrot.slane %v5191, 1
        %v5194 = vor.u32 %v5189, %v5193
        %v5196 = vshll.u32 %v4956, 16
        %v5198 = vrot.slane %v5196, 1
        %v5199 = vsel %vm744, %v5194, %v5198
        %v5200 = vshrl.u32 %v4956, 16
        %v5202 = vor.u32 %v5200, %v5198
        %v5204 = vshrl.u32 %v5005, 16
        %v5206 = vshll.u32 %v5005, 16
        %v5208 = vrot.slane %v5206, 1
        %v5209 = vor.u32 %v5204, %v5208
        %v5211 = vshll.u32 %v4957, 16
        %v5213 = vrot.slane %v5211, 1
        %v5214 = vsel %vm744, %v5209, %v5213
        %v5215 = vshrl.u32 %v4957, 16
        %v5217 = vor.u32 %v5215, %v5213
        %v5219 = vshrl.u32 %v5006, 16
        %v5221 = vshll.u32 %v5006, 16
        %v5223 = vrot.slane %v5221, 1
        %v5224 = vor.u32 %v5219, %v5223
        %v5226 = vshll.u32 %v4958, 16
        %v5228 = vrot.slane %v5226, 1
        %v5229 = vsel %vm744, %v5224, %v5228
        %v5230 = vshrl.u32 %v4958, 16
        %v5232 = vor.u32 %v5230, %v5228
        %v5234 = vshrl.u32 %v5007, 16
        %v5236 = vshll.u32 %v5007, 16
        %v5238 = vrot.slane %v5236, 1
        %v5239 = vor.u32 %v5234, %v5238
        %v5241 = vshll.u32 %v4959, 16
        %v5243 = vrot.slane %v5241, 1
        %v5244 = vsel %vm744, %v5239, %v5243
        %v5245 = vshrl.u32 %v4959, 16
        %v5247 = vor.u32 %v5245, %v5243
        %v5248 = vrot.slane %v3984, 1
        %v5249 = vrot.slane %v3986, 2
        %v5250 = vor.u32 %v5248, %v5249
        %v5251 = vrot.slane %v5020, 1
        %v5252 = vrot.slane %v5016, 2
        %v5253 = vor.u32 %v5251, %v5252
        %v5254 = vsel %vm985, %v5250, %v5253
        %v5256 = vshrl.u32 %v5019, 16
        %v5258 = vrot.slane %v5256, 1
        %v5259 = vshll.u32 %v5019, 16
        %v5261 = vrot.slane %v5259, 2
        %v5262 = vor.u32 %v5258, %v5261
        %v5264 = vshrl.u32 %v5022, 16
        %v5266 = vrot.slane %v5264, 1
        %v5267 = vshll.u32 %v5022, 16
        %v5269 = vrot.slane %v5267, 2
        %v5270 = vor.u32 %v5266, %v5269
        %v5271 = vsel %vm985, %v5262, %v5270
        %v5272 = vrot.slane %v3998, 1
        %v5273 = vrot.slane %v4000, 2
        %v5274 = vor.u32 %v5272, %v5273
        %v5275 = vrot.slane %v5035, 1
        %v5276 = vrot.slane %v5031, 2
        %v5277 = vor.u32 %v5275, %v5276
        %v5278 = vsel %vm985, %v5274, %v5277
        %v5280 = vshrl.u32 %v5034, 16
        %v5282 = vrot.slane %v5280, 1
        %v5283 = vshll.u32 %v5034, 16
        %v5285 = vrot.slane %v5283, 2
        %v5286 = vor.u32 %v5282, %v5285
        %v5288 = vshrl.u32 %v5037, 16
        %v5290 = vrot.slane %v5288, 1
        %v5291 = vshll.u32 %v5037, 16
        %v5293 = vrot.slane %v5291, 2
        %v5294 = vor.u32 %v5290, %v5293
        %v5295 = vsel %vm985, %v5286, %v5294
        %v5296 = vrot.slane %v4012, 1
        %v5297 = vrot.slane %v4014, 2
        %v5298 = vor.u32 %v5296, %v5297
        %v5299 = vrot.slane %v5050, 1
        %v5300 = vrot.slane %v5046, 2
        %v5301 = vor.u32 %v5299, %v5300
        %v5302 = vsel %vm985, %v5298, %v5301
        %v5304 = vshrl.u32 %v5049, 16
        %v5306 = vrot.slane %v5304, 1
        %v5307 = vshll.u32 %v5049, 16
        %v5309 = vrot.slane %v5307, 2
        %v5310 = vor.u32 %v5306, %v5309
        %v5312 = vshrl.u32 %v5052, 16
        %v5314 = vrot.slane %v5312, 1
        %v5315 = vshll.u32 %v5052, 16
        %v5317 = vrot.slane %v5315, 2
        %v5318 = vor.u32 %v5314, %v5317
        %v5319 = vsel %vm985, %v5310, %v5318
        %v5320 = vrot.slane %v4026, 1
        %v5321 = vrot.slane %v4028, 2
        %v5322 = vor.u32 %v5320, %v5321
        %v5323 = vrot.slane %v5065, 1
        %v5324 = vrot.slane %v5061, 2
        %v5325 = vor.u32 %v5323, %v5324
        %v5326 = vsel %vm985, %v5322, %v5325
        %v5328 = vshrl.u32 %v5064, 16
        %v5330 = vrot.slane %v5328, 1
        %v5331 = vshll.u32 %v5064, 16
        %v5333 = vrot.slane %v5331, 2
        %v5334 = vor.u32 %v5330, %v5333
        %v5336 = vshrl.u32 %v5067, 16
        %v5338 = vrot.slane %v5336, 1
        %v5339 = vshll.u32 %v5067, 16
        %v5341 = vrot.slane %v5339, 2
        %v5342 = vor.u32 %v5338, %v5341
        %v5343 = vsel %vm985, %v5334, %v5342
        %v5344 = vrot.slane %v4040, 1
        %v5345 = vrot.slane %v4042, 2
        %v5346 = vor.u32 %v5344, %v5345
        %v5347 = vrot.slane %v5080, 1
        %v5348 = vrot.slane %v5076, 2
        %v5349 = vor.u32 %v5347, %v5348
        %v5350 = vsel %vm985, %v5346, %v5349
        %v5352 = vshrl.u32 %v5079, 16
        %v5354 = vrot.slane %v5352, 1
        %v5355 = vshll.u32 %v5079, 16
        %v5357 = vrot.slane %v5355, 2
        %v5358 = vor.u32 %v5354, %v5357
        %v5360 = vshrl.u32 %v5082, 16
        %v5362 = vrot.slane %v5360, 1
        %v5363 = vshll.u32 %v5082, 16
        %v5365 = vrot.slane %v5363, 2
        %v5366 = vor.u32 %v5362, %v5365
        %v5367 = vsel %vm985, %v5358, %v5366
        %v5368 = vrot.slane %v4054, 1
        %v5369 = vrot.slane %v4056, 2
        %v5370 = vor.u32 %v5368, %v5369
        %v5371 = vrot.slane %v5095, 1
        %v5372 = vrot.slane %v5091, 2
        %v5373 = vor.u32 %v5371, %v5372
        %v5374 = vsel %vm985, %v5370, %v5373
        %v5376 = vshrl.u32 %v5094, 16
        %v5378 = vrot.slane %v5376, 1
        %v5379 = vshll.u32 %v5094, 16
        %v5381 = vrot.slane %v5379, 2
        %v5382 = vor.u32 %v5378, %v5381
        %v5384 = vshrl.u32 %v5097, 16
        %v5386 = vrot.slane %v5384, 1
        %v5387 = vshll.u32 %v5097, 16
        %v5389 = vrot.slane %v5387, 2
        %v5390 = vor.u32 %v5386, %v5389
        %v5391 = vsel %vm985, %v5382, %v5390
        %v5392 = vrot.slane %v4068, 1
        %v5393 = vrot.slane %v4070, 2
        %v5394 = vor.u32 %v5392, %v5393
        %v5395 = vrot.slane %v5110, 1
        %v5396 = vrot.slane %v5106, 2
        %v5397 = vor.u32 %v5395, %v5396
        %v5398 = vsel %vm985, %v5394, %v5397
        %v5400 = vshrl.u32 %v5109, 16
        %v5402 = vrot.slane %v5400, 1
        %v5403 = vshll.u32 %v5109, 16
        %v5405 = vrot.slane %v5403, 2
        %v5406 = vor.u32 %v5402, %v5405
        %v5408 = vshrl.u32 %v5112, 16
        %v5410 = vrot.slane %v5408, 1
        %v5411 = vshll.u32 %v5112, 16
        %v5413 = vrot.slane %v5411, 2
        %v5414 = vor.u32 %v5410, %v5413
        %v5415 = vsel %vm985, %v5406, %v5414
        %v5416 = vrot.slane %v4082, 1
        %v5417 = vrot.slane %v4084, 2
        %v5418 = vor.u32 %v5416, %v5417
        %v5419 = vrot.slane %v5125, 1
        %v5420 = vrot.slane %v5121, 2
        %v5421 = vor.u32 %v5419, %v5420
        %v5422 = vsel %vm985, %v5418, %v5421
        %v5424 = vshrl.u32 %v5124, 16
        %v5426 = vrot.slane %v5424, 1
        %v5427 = vshll.u32 %v5124, 16
        %v5429 = vrot.slane %v5427, 2
        %v5430 = vor.u32 %v5426, %v5429
        %v5432 = vshrl.u32 %v5127, 16
        %v5434 = vrot.slane %v5432, 1
        %v5435 = vshll.u32 %v5127, 16
        %v5437 = vrot.slane %v5435, 2
        %v5438 = vor.u32 %v5434, %v5437
        %v5439 = vsel %vm985, %v5430, %v5438
        %v5440 = vrot.slane %v4096, 1
        %v5441 = vrot.slane %v4098, 2
        %v5442 = vor.u32 %v5440, %v5441
        %v5443 = vrot.slane %v5140, 1
        %v5444 = vrot.slane %v5136, 2
        %v5445 = vor.u32 %v5443, %v5444
        %v5446 = vsel %vm985, %v5442, %v5445
        %v5448 = vshrl.u32 %v5139, 16
        %v5450 = vrot.slane %v5448, 1
        %v5451 = vshll.u32 %v5139, 16
        %v5453 = vrot.slane %v5451, 2
        %v5454 = vor.u32 %v5450, %v5453
        %v5456 = vshrl.u32 %v5142, 16
        %v5458 = vrot.slane %v5456, 1
        %v5459 = vshll.u32 %v5142, 16
        %v5461 = vrot.slane %v5459, 2
        %v5462 = vor.u32 %v5458, %v5461
        %v5463 = vsel %vm985, %v5454, %v5462
        %v5464 = vrot.slane %v4110, 1
        %v5465 = vrot.slane %v4112, 2
        %v5466 = vor.u32 %v5464, %v5465
        %v5467 = vrot.slane %v5155, 1
        %v5468 = vrot.slane %v5151, 2
        %v5469 = vor.u32 %v5467, %v5468
        %v5470 = vsel %vm985, %v5466, %v5469
        %v5472 = vshrl.u32 %v5154, 16
        %v5474 = vrot.slane %v5472, 1
        %v5475 = vshll.u32 %v5154, 16
        %v5477 = vrot.slane %v5475, 2
        %v5478 = vor.u32 %v5474, %v5477
        %v5480 = vshrl.u32 %v5157, 16
        %v5482 = vrot.slane %v5480, 1
        %v5483 = vshll.u32 %v5157, 16
        %v5485 = vrot.slane %v5483, 2
        %v5486 = vor.u32 %v5482, %v5485
        %v5487 = vsel %vm985, %v5478, %v5486
        %v5488 = vrot.slane %v4124, 1
        %v5489 = vrot.slane %v4126, 2
        %v5490 = vor.u32 %v5488, %v5489
        %v5491 = vrot.slane %v5170, 1
        %v5492 = vrot.slane %v5166, 2
        %v5493 = vor.u32 %v5491, %v5492
        %v5494 = vsel %vm985, %v5490, %v5493
        %v5496 = vshrl.u32 %v5169, 16
        %v5498 = vrot.slane %v5496, 1
        %v5499 = vshll.u32 %v5169, 16
        %v5501 = vrot.slane %v5499, 2
        %v5502 = vor.u32 %v5498, %v5501
        %v5504 = vshrl.u32 %v5172, 16
        %v5506 = vrot.slane %v5504, 1
        %v5507 = vshll.u32 %v5172, 16
        %v5509 = vrot.slane %v5507, 2
        %v5510 = vor.u32 %v5506, %v5509
        %v5511 = vsel %vm985, %v5502, %v5510
        %v5512 = vrot.slane %v4138, 1
        %v5513 = vrot.slane %v4140, 2
        %v5514 = vor.u32 %v5512, %v5513
        %v5515 = vrot.slane %v5185, 1
        %v5516 = vrot.slane %v5181, 2
        %v5517 = vor.u32 %v5515, %v5516
        %v5518 = vsel %vm985, %v5514, %v5517
        %v5520 = vshrl.u32 %v5184, 16
        %v5522 = vrot.slane %v5520, 1
        %v5523 = vshll.u32 %v5184, 16
        %v5525 = vrot.slane %v5523, 2
        %v5526 = vor.u32 %v5522, %v5525
        %v5528 = vshrl.u32 %v5187, 16
        %v5530 = vrot.slane %v5528, 1
        %v5531 = vshll.u32 %v5187, 16
        %v5533 = vrot.slane %v5531, 2
        %v5534 = vor.u32 %v5530, %v5533
        %v5535 = vsel %vm985, %v5526, %v5534
        %v5536 = vrot.slane %v4152, 1
        %v5537 = vrot.slane %v4154, 2
        %v5538 = vor.u32 %v5536, %v5537
        %v5539 = vrot.slane %v5200, 1
        %v5540 = vrot.slane %v5196, 2
        %v5541 = vor.u32 %v5539, %v5540
        %v5542 = vsel %vm985, %v5538, %v5541
        %v5544 = vshrl.u32 %v5199, 16
        %v5546 = vrot.slane %v5544, 1
        %v5547 = vshll.u32 %v5199, 16
        %v5549 = vrot.slane %v5547, 2
        %v5550 = vor.u32 %v5546, %v5549
        %v5552 = vshrl.u32 %v5202, 16
        %v5554 = vrot.slane %v5552, 1
        %v5555 = vshll.u32 %v5202, 16
        %v5557 = vrot.slane %v5555, 2
        %v5558 = vor.u32 %v5554, %v5557
        %v5559 = vsel %vm985, %v5550, %v5558
        %v5560 = vrot.slane %v4166, 1
        %v5561 = vrot.slane %v4168, 2
        %v5562 = vor.u32 %v5560, %v5561
        %v5563 = vrot.slane %v5215, 1
        %v5564 = vrot.slane %v5211, 2
        %v5565 = vor.u32 %v5563, %v5564
        %v5566 = vsel %vm985, %v5562, %v5565
        %v5568 = vshrl.u32 %v5214, 16
        %v5570 = vrot.slane %v5568, 1
        %v5571 = vshll.u32 %v5214, 16
        %v5573 = vrot.slane %v5571, 2
        %v5574 = vor.u32 %v5570, %v5573
        %v5576 = vshrl.u32 %v5217, 16
        %v5578 = vrot.slane %v5576, 1
        %v5579 = vshll.u32 %v5217, 16
        %v5581 = vrot.slane %v5579, 2
        %v5582 = vor.u32 %v5578, %v5581
        %v5583 = vsel %vm985, %v5574, %v5582
        %v5584 = vrot.slane %v4180, 1
        %v5585 = vrot.slane %v4182, 2
        %v5586 = vor.u32 %v5584, %v5585
        %v5587 = vrot.slane %v5230, 1
        %v5588 = vrot.slane %v5226, 2
        %v5589 = vor.u32 %v5587, %v5588
        %v5590 = vsel %vm985, %v5586, %v5589
        %v5592 = vshrl.u32 %v5229, 16
        %v5594 = vrot.slane %v5592, 1
        %v5595 = vshll.u32 %v5229, 16
        %v5597 = vrot.slane %v5595, 2
        %v5598 = vor.u32 %v5594, %v5597
        %v5600 = vshrl.u32 %v5232, 16
        %v5602 = vrot.slane %v5600, 1
        %v5603 = vshll.u32 %v5232, 16
        %v5605 = vrot.slane %v5603, 2
        %v5606 = vor.u32 %v5602, %v5605
        %v5607 = vsel %vm985, %v5598, %v5606
        %v5608 = vrot.slane %v4194, 1
        %v5609 = vrot.slane %v4196, 2
        %v5610 = vor.u32 %v5608, %v5609
        %v5611 = vrot.slane %v5245, 1
        %v5612 = vrot.slane %v5241, 2
        %v5613 = vor.u32 %v5611, %v5612
        %v5614 = vsel %vm985, %v5610, %v5613
        %v5616 = vshrl.u32 %v5244, 16
        %v5618 = vrot.slane %v5616, 1
        %v5619 = vshll.u32 %v5244, 16
        %v5621 = vrot.slane %v5619, 2
        %v5622 = vor.u32 %v5618, %v5621
        %v5624 = vshrl.u32 %v5247, 16
        %v5626 = vrot.slane %v5624, 1
        %v5627 = vshll.u32 %v5247, 16
        %v5629 = vrot.slane %v5627, 2
        %v5630 = vor.u32 %v5626, %v5629
        %v5631 = vsel %vm985, %v5622, %v5630
        %v5664 = vld [vmem:[%s1 + $0x200] sm:$0xf]
        %v5665 = vld [vmem:[%s1 + $0x204] sm:$0xf]
        %v5666 = vld [vmem:[%s1 + $0x208] sm:$0xf]
        %v5667 = vld [vmem:[%s1 + $0x20c] sm:$0xf]
        %v5668 = vld [vmem:[%s1 + $0x210] sm:$0xf]
        %v5669 = vld [vmem:[%s1 + $0x214] sm:$0xf]
        %v5670 = vld [vmem:[%s1 + $0x218] sm:$0xf]
        %v5671 = vld [vmem:[%s1 + $0x21c] sm:$0xf]
        %v5672 = vld [vmem:[%s1 + $0x220] sm:$0xf]
        %v5673 = vld [vmem:[%s1 + $0x224] sm:$0xf]
        %v5674 = vld [vmem:[%s1 + $0x228] sm:$0xf]
        %v5675 = vld [vmem:[%s1 + $0x22c] sm:$0xf]
        %v5676 = vld [vmem:[%s1 + $0x230] sm:$0xf]
        %v5677 = vld [vmem:[%s1 + $0x234] sm:$0xf]
        %v5678 = vld [vmem:[%s1 + $0x238] sm:$0xf]
        %v5679 = vld [vmem:[%s1 + $0x23c] sm:$0xf]
        %v5680 = vld [vmem:[%s1 + $0x240] sm:$0xf]
        %v5681 = vld [vmem:[%s1 + $0x244] sm:$0xf]
        %v5682 = vld [vmem:[%s1 + $0x248] sm:$0xf]
        %v5683 = vld [vmem:[%s1 + $0x24c] sm:$0xf]
        %v5684 = vld [vmem:[%s1 + $0x250] sm:$0xf]
        %v5685 = vld [vmem:[%s1 + $0x254] sm:$0xf]
        %v5686 = vld [vmem:[%s1 + $0x258] sm:$0xf]
        %v5687 = vld [vmem:[%s1 + $0x25c] sm:$0xf]
        %v5688 = vld [vmem:[%s1 + $0x260] sm:$0xf]
        %v5689 = vld [vmem:[%s1 + $0x264] sm:$0xf]
        %v5690 = vld [vmem:[%s1 + $0x268] sm:$0xf]
        %v5691 = vld [vmem:[%s1 + $0x26c] sm:$0xf]
        %v5692 = vld [vmem:[%s1 + $0x270] sm:$0xf]
        %v5693 = vld [vmem:[%s1 + $0x274] sm:$0xf]
        %v5694 = vld [vmem:[%s1 + $0x278] sm:$0xf]
        %v5695 = vld [vmem:[%s1 + $0x27c] sm:$0xf]
        %v5728 = vunpack.c.l.b16 %v5664
        %v5729 = vunpack.c.l.b16 %v5665
        %v5730 = vunpack.c.l.b16 %v5666
        %v5731 = vunpack.c.l.b16 %v5667
        %v5732 = vunpack.c.l.b16 %v5668
        %v5733 = vunpack.c.l.b16 %v5669
        %v5734 = vunpack.c.l.b16 %v5670
        %v5735 = vunpack.c.l.b16 %v5671
        %v5736 = vunpack.c.l.b16 %v5672
        %v5737 = vunpack.c.l.b16 %v5673
        %v5738 = vunpack.c.l.b16 %v5674
        %v5739 = vunpack.c.l.b16 %v5675
        %v5740 = vunpack.c.l.b16 %v5676
        %v5741 = vunpack.c.l.b16 %v5677
        %v5742 = vunpack.c.l.b16 %v5678
        %v5743 = vunpack.c.l.b16 %v5679
        %v5744 = vunpack.c.l.b16 %v5680
        %v5745 = vunpack.c.l.b16 %v5681
        %v5746 = vunpack.c.l.b16 %v5682
        %v5747 = vunpack.c.l.b16 %v5683
        %v5748 = vunpack.c.l.b16 %v5684
        %v5749 = vunpack.c.l.b16 %v5685
        %v5750 = vunpack.c.l.b16 %v5686
        %v5751 = vunpack.c.l.b16 %v5687
        %v5752 = vunpack.c.l.b16 %v5688
        %v5753 = vunpack.c.l.b16 %v5689
        %v5754 = vunpack.c.l.b16 %v5690
        %v5755 = vunpack.c.l.b16 %v5691
        %v5756 = vunpack.c.l.b16 %v5692
        %v5757 = vunpack.c.l.b16 %v5693
        %v5758 = vunpack.c.l.b16 %v5694
        %v5759 = vunpack.c.l.b16 %v5695
        %v5760 = vpack.c.b16 %v5729, %v5728
        %v5761 = vpack.c.b16 %v5731, %v5730
        %v5762 = vpack.c.b16 %v5733, %v5732
        %v5763 = vpack.c.b16 %v5735, %v5734
        %v5764 = vpack.c.b16 %v5737, %v5736
        %v5765 = vpack.c.b16 %v5739, %v5738
        %v5766 = vpack.c.b16 %v5741, %v5740
        %v5767 = vpack.c.b16 %v5743, %v5742
        %v5768 = vpack.c.b16 %v5745, %v5744
        %v5769 = vpack.c.b16 %v5747, %v5746
        %v5770 = vpack.c.b16 %v5749, %v5748
        %v5771 = vpack.c.b16 %v5751, %v5750
        %v5772 = vpack.c.b16 %v5753, %v5752
        %v5773 = vpack.c.b16 %v5755, %v5754
        %v5774 = vpack.c.b16 %v5757, %v5756
        %v5775 = vpack.c.b16 %v5759, %v5758
        %5792 = vmatprep.subr.bf16.mxu0 0
        %5793 = vmatpush1.bf16.msra.mxu0 %v5767
        %5794 = vmatprep.subr.bf16.mxu0 0
        %5795 = vmatpush1.bf16.msra.mxu0 %v5766
        %5796 = vmatprep.subr.bf16.mxu0 0
        %5797 = vmatpush1.bf16.msra.mxu0 %v5765
        %5798 = vmatprep.subr.bf16.mxu0 0
        %5799 = vmatpush1.bf16.msra.mxu0 %v5764
        %5800 = vmatprep.subr.bf16.mxu0 0
        %5801 = vmatpush1.bf16.msra.mxu0 %v5763
        %5802 = vmatprep.subr.bf16.mxu0 0
        %5803 = vmatpush1.bf16.msra.mxu0 %v5762
        %5804 = vmatprep.subr.bf16.mxu0 0
        %5805 = vmatpush1.bf16.msra.mxu0 %v5761
        %5806 = vmatprep.subr.bf16.mxu0 0
        %5807 = vmatpush1.bf16.msra.mxu0 %v5760
        %5808 = vmatprep.subr.bf16.mxu0 0
        %5809 = vmatpush2.bf16.msra.mxu0 %v5775
        %5810 = vmatprep.subr.bf16.mxu0 0
        %5811 = vmatpush2.bf16.msra.mxu0 %v5774
        %5812 = vmatprep.subr.bf16.mxu0 0
        %5813 = vmatpush2.bf16.msra.mxu0 %v5773
        %5814 = vmatprep.subr.bf16.mxu0 0
        %5815 = vmatpush2.bf16.msra.mxu0 %v5772
        %5816 = vmatprep.subr.bf16.mxu0 0
        %5817 = vmatpush2.bf16.msra.mxu0 %v5771
        %5818 = vmatprep.subr.bf16.mxu0 0
        %5819 = vmatpush2.bf16.msra.mxu0 %v5770
        %5820 = vmatprep.subr.bf16.mxu0 0
        %5821 = vmatpush2.bf16.msra.mxu0 %v5769
        %5822 = vmatprep.subr.bf16.mxu0 0
        %5823 = vmatpush2.bf16.msra.mxu0 %v5768
        %5824 = vmatprep.mubr.bf16.mxu0 %v5271
        %5825 = vmatmul.mubr.bf16.gmra.mxu0 %v5254
        %v5826 = vpop.f32.mrf.mxu0
        %v5827 = vadd.f32 0.0, %v5826
        %v5828 = vpop.f32.mrf.mxu0
        %v5829 = vpop.f32.mrf.mxu0
        %v5830 = vadd.f32 0.0, %v5829
        %v5831 = vpop.f32.mrf.mxu0
        %5832 = vmatprep.mubr.bf16.mxu0 %v5295
        %5833 = vmatmul.mubr.bf16.gmra.mxu0 %v5278
        %v5834 = vpop.f32.mrf.mxu0
        %v5835 = vadd.f32 0.0, %v5834
        %v5836 = vpop.f32.mrf.mxu0
        %v5837 = vpop.f32.mrf.mxu0
        %v5838 = vadd.f32 0.0, %v5837
        %v5839 = vpop.f32.mrf.mxu0
        %5840 = vmatprep.mubr.bf16.mxu0 %v5319
        %5841 = vmatmul.mubr.bf16.gmra.mxu0 %v5302
        %v5842 = vpop.f32.mrf.mxu0
        %v5843 = vadd.f32 0.0, %v5842
        %v5844 = vpop.f32.mrf.mxu0
        %v5845 = vpop.f32.mrf.mxu0
        %v5846 = vadd.f32 0.0, %v5845
        %v5847 = vpop.f32.mrf.mxu0
        %5848 = vmatprep.mubr.bf16.mxu0 %v5343
        %5849 = vmatmul.mubr.bf16.gmra.mxu0 %v5326
        %v5850 = vpop.f32.mrf.mxu0
        %v5851 = vadd.f32 0.0, %v5850
        %v5852 = vpop.f32.mrf.mxu0
        %v5853 = vpop.f32.mrf.mxu0
        %v5854 = vadd.f32 0.0, %v5853
        %v5855 = vpop.f32.mrf.mxu0
        %5856 = vmatprep.mubr.bf16.mxu0 %v5367
        %5857 = vmatmul.mubr.bf16.gmra.mxu0 %v5350
        %v5858 = vpop.f32.mrf.mxu0
        %v5859 = vadd.f32 0.0, %v5858
        %v5860 = vpop.f32.mrf.mxu0
        %v5861 = vpop.f32.mrf.mxu0
        %v5862 = vadd.f32 0.0, %v5861
        %v5863 = vpop.f32.mrf.mxu0
        %5864 = vmatprep.mubr.bf16.mxu0 %v5391
        %5865 = vmatmul.mubr.bf16.gmra.mxu0 %v5374
        %v5866 = vpop.f32.mrf.mxu0
        %v5867 = vadd.f32 0.0, %v5866
        %v5868 = vpop.f32.mrf.mxu0
        %v5869 = vpop.f32.mrf.mxu0
        %v5870 = vadd.f32 0.0, %v5869
        %v5871 = vpop.f32.mrf.mxu0
        %5872 = vmatprep.mubr.bf16.mxu0 %v5415
        %5873 = vmatmul.mubr.bf16.gmra.mxu0 %v5398
        %v5874 = vpop.f32.mrf.mxu0
        %v5875 = vadd.f32 0.0, %v5874
        %v5876 = vpop.f32.mrf.mxu0
        %v5877 = vpop.f32.mrf.mxu0
        %v5878 = vadd.f32 0.0, %v5877
        %v5879 = vpop.f32.mrf.mxu0
        %5880 = vmatprep.mubr.bf16.mxu0 %v5439
        %5881 = vmatmul.mubr.bf16.gmra.mxu0 %v5422
        %v5882 = vpop.f32.mrf.mxu0
        %v5883 = vadd.f32 0.0, %v5882
        %v5884 = vpop.f32.mrf.mxu0
        %v5885 = vpop.f32.mrf.mxu0
        %v5886 = vadd.f32 0.0, %v5885
        %v5887 = vpop.f32.mrf.mxu0
        %5888 = vmatprep.mubr.bf16.mxu0 %v5463
        %5889 = vmatmul.mubr.bf16.gmra.mxu0 %v5446
        %v5890 = vpop.f32.mrf.mxu0
        %v5891 = vadd.f32 0.0, %v5890
        %v5892 = vpop.f32.mrf.mxu0
        %v5893 = vpop.f32.mrf.mxu0
        %v5894 = vadd.f32 0.0, %v5893
        %v5895 = vpop.f32.mrf.mxu0
        %5896 = vmatprep.mubr.bf16.mxu0 %v5487
        %5897 = vmatmul.mubr.bf16.gmra.mxu0 %v5470
        %v5898 = vpop.f32.mrf.mxu0
        %v5899 = vadd.f32 0.0, %v5898
        %v5900 = vpop.f32.mrf.mxu0
        %v5901 = vpop.f32.mrf.mxu0
        %v5902 = vadd.f32 0.0, %v5901
        %v5903 = vpop.f32.mrf.mxu0
        %5904 = vmatprep.mubr.bf16.mxu0 %v5511
        %5905 = vmatmul.mubr.bf16.gmra.mxu0 %v5494
        %v5906 = vpop.f32.mrf.mxu0
        %v5907 = vadd.f32 0.0, %v5906
        %v5908 = vpop.f32.mrf.mxu0
        %v5909 = vpop.f32.mrf.mxu0
        %v5910 = vadd.f32 0.0, %v5909
        %v5911 = vpop.f32.mrf.mxu0
        %5912 = vmatprep.mubr.bf16.mxu0 %v5535
        %5913 = vmatmul.mubr.bf16.gmra.mxu0 %v5518
        %v5914 = vpop.f32.mrf.mxu0
        %v5915 = vadd.f32 0.0, %v5914
        %v5916 = vpop.f32.mrf.mxu0
        %v5917 = vpop.f32.mrf.mxu0
        %v5918 = vadd.f32 0.0, %v5917
        %v5919 = vpop.f32.mrf.mxu0
        %5920 = vmatprep.mubr.bf16.mxu0 %v5559
        %5921 = vmatmul.mubr.bf16.gmra.mxu0 %v5542
        %v5922 = vpop.f32.mrf.mxu0
        %v5923 = vadd.f32 0.0, %v5922
        %v5924 = vpop.f32.mrf.mxu0
        %v5925 = vpop.f32.mrf.mxu0
        %v5926 = vadd.f32 0.0, %v5925
        %v5927 = vpop.f32.mrf.mxu0
        %5928 = vmatprep.mubr.bf16.mxu0 %v5583
        %5929 = vmatmul.mubr.bf16.gmra.mxu0 %v5566
        %v5930 = vpop.f32.mrf.mxu0
        %v5931 = vadd.f32 0.0, %v5930
        %v5932 = vpop.f32.mrf.mxu0
        %v5933 = vpop.f32.mrf.mxu0
        %v5934 = vadd.f32 0.0, %v5933
        %v5935 = vpop.f32.mrf.mxu0
        %5936 = vmatprep.mubr.bf16.mxu0 %v5607
        %5937 = vmatmul.mubr.bf16.gmra.mxu0 %v5590
        %v5938 = vpop.f32.mrf.mxu0
        %v5939 = vadd.f32 0.0, %v5938
        %v5940 = vpop.f32.mrf.mxu0
        %v5941 = vpop.f32.mrf.mxu0
        %v5942 = vadd.f32 0.0, %v5941
        %v5943 = vpop.f32.mrf.mxu0
        %5944 = vmatprep.mubr.bf16.mxu0 %v5631
        %5945 = vmatmul.mubr.bf16.gmra.mxu0 %v5614
        %v5946 = vpop.f32.mrf.mxu0
        %v5947 = vadd.f32 0.0, %v5946
        %v5948 = vpop.f32.mrf.mxu0
        %v5949 = vpop.f32.mrf.mxu0
        %v5950 = vadd.f32 0.0, %v5949
        %v5951 = vpop.f32.mrf.mxu0
        %5952 = vdwg.mxu0
        %v5953 = vadd.f32 %v4848, %v5827
        %v5954 = vadd.f32 %v4849, %v5830
        %v5955 = vadd.f32 %v4850, %v5835
        %v5956 = vadd.f32 %v4851, %v5838
        %v5957 = vadd.f32 %v4852, %v5843
        %v5958 = vadd.f32 %v4853, %v5846
        %v5959 = vadd.f32 %v4854, %v5851
        %v5960 = vadd.f32 %v4855, %v5854
        %v5961 = vadd.f32 %v4856, %v5859
        %v5962 = vadd.f32 %v4857, %v5862
        %v5963 = vadd.f32 %v4858, %v5867
        %v5964 = vadd.f32 %v4859, %v5870
        %v5965 = vadd.f32 %v4860, %v5875
        %v5966 = vadd.f32 %v4861, %v5878
        %v5967 = vadd.f32 %v4862, %v5883
        %v5968 = vadd.f32 %v4863, %v5886
        %v5969 = vadd.f32 %v4864, %v5891
        %v5970 = vadd.f32 %v4865, %v5894
        %v5971 = vadd.f32 %v4866, %v5899
        %v5972 = vadd.f32 %v4867, %v5902
        %v5973 = vadd.f32 %v4868, %v5907
        %v5974 = vadd.f32 %v4869, %v5910
        %v5975 = vadd.f32 %v4870, %v5915
        %v5976 = vadd.f32 %v4871, %v5918
        %v5977 = vadd.f32 %v4872, %v5923
        %v5978 = vadd.f32 %v4873, %v5926
        %v5979 = vadd.f32 %v4874, %v5931
        %v5980 = vadd.f32 %v4875, %v5934
        %v5981 = vadd.f32 %v4876, %v5939
        %v5982 = vadd.f32 %v4877, %v5942
        %v5983 = vadd.f32 %v4878, %v5947
        %v5984 = vadd.f32 %v4879, %v5950
        %v5985 = vld [vmem:[#allocation2 + $0x10] sm:$0x7]
        %v5986 = vld [vmem:[#allocation2 + $0x24] sm:$0x7]
        %v5987 = vld [vmem:[#allocation2 + $0x38] sm:$0x7]
        %v5988 = vld [vmem:[#allocation2 + $0x4c] sm:$0x7]
        %v5989 = vld [vmem:[#allocation2 + $0x60] sm:$0x7]
        %v5990 = vld [vmem:[#allocation2 + $0x74] sm:$0x7]
        %v5991 = vld [vmem:[#allocation2 + $0x88] sm:$0x7]
        %v5992 = vld [vmem:[#allocation2 + $0x9c] sm:$0x7]
        %v5993 = vld [vmem:[#allocation2 + $0xb0] sm:$0x7]
        %v5994 = vld [vmem:[#allocation2 + $0xc4] sm:$0x7]
        %v5995 = vld [vmem:[#allocation2 + $0xd8] sm:$0x7]
        %v5996 = vld [vmem:[#allocation2 + $0xec] sm:$0x7]
        %v5997 = vld [vmem:[#allocation2 + $0x100] sm:$0x7]
        %v5998 = vld [vmem:[#allocation2 + $0x114] sm:$0x7]
        %v5999 = vld [vmem:[#allocation2 + $0x128] sm:$0x7]
        %v6000 = vld [vmem:[#allocation2 + $0x13c] sm:$0x7]
        %vm6001 = vsmask.f32 1280
        %vm6002 = vsmask.f32 5392
        %vm6003 = vmor %vm6001, %vm6002
        %v6005 = vshrl.u32 %v4896, 16
        %v6007 = vrot.slane %v6005, 6
        %v6008 = vshll.u32 %v4896, 16
        %v6010 = vrot.slane %v6008, 7
        %v6011 = vor.u32 %v6007, %v6010
        %v6012 = vrot.slane %v6011, 4
        %v6014 = vshrl.u32 %v3744, 16
        %v6016 = vrot.slane %v6014, 6
        %v6017 = vshll.u32 %v3744, 16
        %v6019 = vrot.slane %v6017, 7
        %v6020 = vor.u32 %v6016, %v6019
        %v6021 = vsel %vm6003, %v6012, %v6020
        %v6022 = vrot.slane %v6020, 4
        %v6024 = vshrl.u32 %v5985, 16
        %v6026 = vrot.slane %v6024, 6
        %v6027 = vshll.u32 %v5985, 16
        %v6029 = vrot.slane %v6027, 7
        %v6030 = vor.u32 %v6026, %v6029
        %v6031 = vsel %vm6003, %v6022, %v6030
        %v6033 = vshrl.u32 %v4897, 16
        %v6035 = vrot.slane %v6033, 6
        %v6036 = vshll.u32 %v4897, 16
        %v6038 = vrot.slane %v6036, 7
        %v6039 = vor.u32 %v6035, %v6038
        %v6040 = vrot.slane %v6039, 4
        %v6042 = vshrl.u32 %v3747, 16
        %v6044 = vrot.slane %v6042, 6
        %v6045 = vshll.u32 %v3747, 16
        %v6047 = vrot.slane %v6045, 7
        %v6048 = vor.u32 %v6044, %v6047
        %v6049 = vsel %vm6003, %v6040, %v6048
        %v6050 = vrot.slane %v6048, 4
        %v6052 = vshrl.u32 %v5986, 16
        %v6054 = vrot.slane %v6052, 6
        %v6055 = vshll.u32 %v5986, 16
        %v6057 = vrot.slane %v6055, 7
        %v6058 = vor.u32 %v6054, %v6057
        %v6059 = vsel %vm6003, %v6050, %v6058
        %v6061 = vshrl.u32 %v4898, 16
        %v6063 = vrot.slane %v6061, 6
        %v6064 = vshll.u32 %v4898, 16
        %v6066 = vrot.slane %v6064, 7
        %v6067 = vor.u32 %v6063, %v6066
        %v6068 = vrot.slane %v6067, 4
        %v6070 = vshrl.u32 %v3750, 16
        %v6072 = vrot.slane %v6070, 6
        %v6073 = vshll.u32 %v3750, 16
        %v6075 = vrot.slane %v6073, 7
        %v6076 = vor.u32 %v6072, %v6075
        %v6077 = vsel %vm6003, %v6068, %v6076
        %v6078 = vrot.slane %v6076, 4
        %v6080 = vshrl.u32 %v5987, 16
        %v6082 = vrot.slane %v6080, 6
        %v6083 = vshll.u32 %v5987, 16
        %v6085 = vrot.slane %v6083, 7
        %v6086 = vor.u32 %v6082, %v6085
        %v6087 = vsel %vm6003, %v6078, %v6086
        %v6089 = vshrl.u32 %v4899, 16
        %v6091 = vrot.slane %v6089, 6
        %v6092 = vshll.u32 %v4899, 16
        %v6094 = vrot.slane %v6092, 7
        %v6095 = vor.u32 %v6091, %v6094
        %v6096 = vrot.slane %v6095, 4
        %v6098 = vshrl.u32 %v3753, 16
        %v6100 = vrot.slane %v6098, 6
        %v6101 = vshll.u32 %v3753, 16
        %v6103 = vrot.slane %v6101, 7
        %v6104 = vor.u32 %v6100, %v6103
        %v6105 = vsel %vm6003, %v6096, %v6104
        %v6106 = vrot.slane %v6104, 4
        %v6108 = vshrl.u32 %v5988, 16
        %v6110 = vrot.slane %v6108, 6
        %v6111 = vshll.u32 %v5988, 16
        %v6113 = vrot.slane %v6111, 7
        %v6114 = vor.u32 %v6110, %v6113
        %v6115 = vsel %vm6003, %v6106, %v6114
        %v6117 = vshrl.u32 %v4900, 16
        %v6119 = vrot.slane %v6117, 6
        %v6120 = vshll.u32 %v4900, 16
        %v6122 = vrot.slane %v6120, 7
        %v6123 = vor.u32 %v6119, %v6122
        %v6124 = vrot.slane %v6123, 4
        %v6126 = vshrl.u32 %v3756, 16
        %v6128 = vrot.slane %v6126, 6
        %v6129 = vshll.u32 %v3756, 16
        %v6131 = vrot.slane %v6129, 7
        %v6132 = vor.u32 %v6128, %v6131
        %v6133 = vsel %vm6003, %v6124, %v6132
        %v6134 = vrot.slane %v6132, 4
        %v6136 = vshrl.u32 %v5989, 16
        %v6138 = vrot.slane %v6136, 6
        %v6139 = vshll.u32 %v5989, 16
        %v6141 = vrot.slane %v6139, 7
        %v6142 = vor.u32 %v6138, %v6141
        %v6143 = vsel %vm6003, %v6134, %v6142
        %v6145 = vshrl.u32 %v4901, 16
        %v6147 = vrot.slane %v6145, 6
        %v6148 = vshll.u32 %v4901, 16
        %v6150 = vrot.slane %v6148, 7
        %v6151 = vor.u32 %v6147, %v6150
        %v6152 = vrot.slane %v6151, 4
        %v6154 = vshrl.u32 %v3759, 16
        %v6156 = vrot.slane %v6154, 6
        %v6157 = vshll.u32 %v3759, 16
        %v6159 = vrot.slane %v6157, 7
        %v6160 = vor.u32 %v6156, %v6159
        %v6161 = vsel %vm6003, %v6152, %v6160
        %v6162 = vrot.slane %v6160, 4
        %v6164 = vshrl.u32 %v5990, 16
        %v6166 = vrot.slane %v6164, 6
        %v6167 = vshll.u32 %v5990, 16
        %v6169 = vrot.slane %v6167, 7
        %v6170 = vor.u32 %v6166, %v6169
        %v6171 = vsel %vm6003, %v6162, %v6170
        %v6173 = vshrl.u32 %v4902, 16
        %v6175 = vrot.slane %v6173, 6
        %v6176 = vshll.u32 %v4902, 16
        %v6178 = vrot.slane %v6176, 7
        %v6179 = vor.u32 %v6175, %v6178
        %v6180 = vrot.slane %v6179, 4
        %v6182 = vshrl.u32 %v3762, 16
        %v6184 = vrot.slane %v6182, 6
        %v6185 = vshll.u32 %v3762, 16
        %v6187 = vrot.slane %v6185, 7
        %v6188 = vor.u32 %v6184, %v6187
        %v6189 = vsel %vm6003, %v6180, %v6188
        %v6190 = vrot.slane %v6188, 4
        %v6192 = vshrl.u32 %v5991, 16
        %v6194 = vrot.slane %v6192, 6
        %v6195 = vshll.u32 %v5991, 16
        %v6197 = vrot.slane %v6195, 7
        %v6198 = vor.u32 %v6194, %v6197
        %v6199 = vsel %vm6003, %v6190, %v6198
        %v6201 = vshrl.u32 %v4903, 16
        %v6203 = vrot.slane %v6201, 6
        %v6204 = vshll.u32 %v4903, 16
        %v6206 = vrot.slane %v6204, 7
        %v6207 = vor.u32 %v6203, %v6206
        %v6208 = vrot.slane %v6207, 4
        %v6210 = vshrl.u32 %v3765, 16
        %v6212 = vrot.slane %v6210, 6
        %v6213 = vshll.u32 %v3765, 16
        %v6215 = vrot.slane %v6213, 7
        %v6216 = vor.u32 %v6212, %v6215
        %v6217 = vsel %vm6003, %v6208, %v6216
        %v6218 = vrot.slane %v6216, 4
        %v6220 = vshrl.u32 %v5992, 16
        %v6222 = vrot.slane %v6220, 6
        %v6223 = vshll.u32 %v5992, 16
        %v6225 = vrot.slane %v6223, 7
        %v6226 = vor.u32 %v6222, %v6225
        %v6227 = vsel %vm6003, %v6218, %v6226
        %v6229 = vshrl.u32 %v4904, 16
        %v6231 = vrot.slane %v6229, 6
        %v6232 = vshll.u32 %v4904, 16
        %v6234 = vrot.slane %v6232, 7
        %v6235 = vor.u32 %v6231, %v6234
        %v6236 = vrot.slane %v6235, 4
        %v6238 = vshrl.u32 %v3768, 16
        %v6240 = vrot.slane %v6238, 6
        %v6241 = vshll.u32 %v3768, 16
        %v6243 = vrot.slane %v6241, 7
        %v6244 = vor.u32 %v6240, %v6243
        %v6245 = vsel %vm6003, %v6236, %v6244
        %v6246 = vrot.slane %v6244, 4
        %v6248 = vshrl.u32 %v5993, 16
        %v6250 = vrot.slane %v6248, 6
        %v6251 = vshll.u32 %v5993, 16
        %v6253 = vrot.slane %v6251, 7
        %v6254 = vor.u32 %v6250, %v6253
        %v6255 = vsel %vm6003, %v6246, %v6254
        %v6257 = vshrl.u32 %v4905, 16
        %v6259 = vrot.slane %v6257, 6
        %v6260 = vshll.u32 %v4905, 16
        %v6262 = vrot.slane %v6260, 7
        %v6263 = vor.u32 %v6259, %v6262
        %v6264 = vrot.slane %v6263, 4
        %v6266 = vshrl.u32 %v3771, 16
        %v6268 = vrot.slane %v6266, 6
        %v6269 = vshll.u32 %v3771, 16
        %v6271 = vrot.slane %v6269, 7
        %v6272 = vor.u32 %v6268, %v6271
        %v6273 = vsel %vm6003, %v6264, %v6272
        %v6274 = vrot.slane %v6272, 4
        %v6276 = vshrl.u32 %v5994, 16
        %v6278 = vrot.slane %v6276, 6
        %v6279 = vshll.u32 %v5994, 16
        %v6281 = vrot.slane %v6279, 7
        %v6282 = vor.u32 %v6278, %v6281
        %v6283 = vsel %vm6003, %v6274, %v6282
        %v6285 = vshrl.u32 %v4906, 16
        %v6287 = vrot.slane %v6285, 6
        %v6288 = vshll.u32 %v4906, 16
        %v6290 = vrot.slane %v6288, 7
        %v6291 = vor.u32 %v6287, %v6290
        %v6292 = vrot.slane %v6291, 4
        %v6294 = vshrl.u32 %v3774, 16
        %v6296 = vrot.slane %v6294, 6
        %v6297 = vshll.u32 %v3774, 16
        %v6299 = vrot.slane %v6297, 7
        %v6300 = vor.u32 %v6296, %v6299
        %v6301 = vsel %vm6003, %v6292, %v6300
        %v6302 = vrot.slane %v6300, 4
        %v6304 = vshrl.u32 %v5995, 16
        %v6306 = vrot.slane %v6304, 6
        %v6307 = vshll.u32 %v5995, 16
        %v6309 = vrot.slane %v6307, 7
        %v6310 = vor.u32 %v6306, %v6309
        %v6311 = vsel %vm6003, %v6302, %v6310
        %v6313 = vshrl.u32 %v4907, 16
        %v6315 = vrot.slane %v6313, 6
        %v6316 = vshll.u32 %v4907, 16
        %v6318 = vrot.slane %v6316, 7
        %v6319 = vor.u32 %v6315, %v6318
        %v6320 = vrot.slane %v6319, 4
        %v6322 = vshrl.u32 %v3777, 16
        %v6324 = vrot.slane %v6322, 6
        %v6325 = vshll.u32 %v3777, 16
        %v6327 = vrot.slane %v6325, 7
        %v6328 = vor.u32 %v6324, %v6327
        %v6329 = vsel %vm6003, %v6320, %v6328
        %v6330 = vrot.slane %v6328, 4
        %v6332 = vshrl.u32 %v5996, 16
        %v6334 = vrot.slane %v6332, 6
        %v6335 = vshll.u32 %v5996, 16
        %v6337 = vrot.slane %v6335, 7
        %v6338 = vor.u32 %v6334, %v6337
        %v6339 = vsel %vm6003, %v6330, %v6338
        %v6341 = vshrl.u32 %v4908, 16
        %v6343 = vrot.slane %v6341, 6
        %v6344 = vshll.u32 %v4908, 16
        %v6346 = vrot.slane %v6344, 7
        %v6347 = vor.u32 %v6343, %v6346
        %v6348 = vrot.slane %v6347, 4
        %v6350 = vshrl.u32 %v3780, 16
        %v6352 = vrot.slane %v6350, 6
        %v6353 = vshll.u32 %v3780, 16
        %v6355 = vrot.slane %v6353, 7
        %v6356 = vor.u32 %v6352, %v6355
        %v6357 = vsel %vm6003, %v6348, %v6356
        %v6358 = vrot.slane %v6356, 4
        %v6360 = vshrl.u32 %v5997, 16
        %v6362 = vrot.slane %v6360, 6
        %v6363 = vshll.u32 %v5997, 16
        %v6365 = vrot.slane %v6363, 7
        %v6366 = vor.u32 %v6362, %v6365
        %v6367 = vsel %vm6003, %v6358, %v6366
        %v6369 = vshrl.u32 %v4909, 16
        %v6371 = vrot.slane %v6369, 6
        %v6372 = vshll.u32 %v4909, 16
        %v6374 = vrot.slane %v6372, 7
        %v6375 = vor.u32 %v6371, %v6374
        %v6376 = vrot.slane %v6375, 4
        %v6378 = vshrl.u32 %v3783, 16
        %v6380 = vrot.slane %v6378, 6
        %v6381 = vshll.u32 %v3783, 16
        %v6383 = vrot.slane %v6381, 7
        %v6384 = vor.u32 %v6380, %v6383
        %v6385 = vsel %vm6003, %v6376, %v6384
        %v6386 = vrot.slane %v6384, 4
        %v6388 = vshrl.u32 %v5998, 16
        %v6390 = vrot.slane %v6388, 6
        %v6391 = vshll.u32 %v5998, 16
        %v6393 = vrot.slane %v6391, 7
        %v6394 = vor.u32 %v6390, %v6393
        %v6395 = vsel %vm6003, %v6386, %v6394
        %v6397 = vshrl.u32 %v4910, 16
        %v6399 = vrot.slane %v6397, 6
        %v6400 = vshll.u32 %v4910, 16
        %v6402 = vrot.slane %v6400, 7
        %v6403 = vor.u32 %v6399, %v6402
        %v6404 = vrot.slane %v6403, 4
        %v6406 = vshrl.u32 %v3786, 16
        %v6408 = vrot.slane %v6406, 6
        %v6409 = vshll.u32 %v3786, 16
        %v6411 = vrot.slane %v6409, 7
        %v6412 = vor.u32 %v6408, %v6411
        %v6413 = vsel %vm6003, %v6404, %v6412
        %v6414 = vrot.slane %v6412, 4
        %v6416 = vshrl.u32 %v5999, 16
        %v6418 = vrot.slane %v6416, 6
        %v6419 = vshll.u32 %v5999, 16
        %v6421 = vrot.slane %v6419, 7
        %v6422 = vor.u32 %v6418, %v6421
        %v6423 = vsel %vm6003, %v6414, %v6422
        %v6425 = vshrl.u32 %v4911, 16
        %v6427 = vrot.slane %v6425, 6
        %v6428 = vshll.u32 %v4911, 16
        %v6430 = vrot.slane %v6428, 7
        %v6431 = vor.u32 %v6427, %v6430
        %v6432 = vrot.slane %v6431, 4
        %v6434 = vshrl.u32 %v3789, 16
        %v6436 = vrot.slane %v6434, 6
        %v6437 = vshll.u32 %v3789, 16
        %v6439 = vrot.slane %v6437, 7
        %v6440 = vor.u32 %v6436, %v6439
        %v6441 = vsel %vm6003, %v6432, %v6440
        %v6442 = vrot.slane %v6440, 4
        %v6444 = vshrl.u32 %v6000, 16
        %v6446 = vrot.slane %v6444, 6
        %v6447 = vshll.u32 %v6000, 16
        %v6449 = vrot.slane %v6447, 7
        %v6450 = vor.u32 %v6446, %v6449
        %v6451 = vsel %vm6003, %v6442, %v6450
        %v6452 = vld [vmem:[%s1 + $0x280] sm:$0xf]
        %v6453 = vld [vmem:[%s1 + $0x284] sm:$0xf]
        %v6454 = vld [vmem:[%s1 + $0x288] sm:$0xf]
        %v6455 = vld [vmem:[%s1 + $0x28c] sm:$0xf]
        %v6456 = vld [vmem:[%s1 + $0x290] sm:$0xf]
        %v6457 = vld [vmem:[%s1 + $0x294] sm:$0xf]
        %v6458 = vld [vmem:[%s1 + $0x298] sm:$0xf]
        %v6459 = vld [vmem:[%s1 + $0x29c] sm:$0xf]
        %v6460 = vld [vmem:[%s1 + $0x2a0] sm:$0xf]
        %v6461 = vld [vmem:[%s1 + $0x2a4] sm:$0xf]
        %v6462 = vld [vmem:[%s1 + $0x2a8] sm:$0xf]
        %v6463 = vld [vmem:[%s1 + $0x2ac] sm:$0xf]
        %v6464 = vld [vmem:[%s1 + $0x2b0] sm:$0xf]
        %v6465 = vld [vmem:[%s1 + $0x2b4] sm:$0xf]
        %v6466 = vld [vmem:[%s1 + $0x2b8] sm:$0xf]
        %v6467 = vld [vmem:[%s1 + $0x2bc] sm:$0xf]
        %v6468 = vunpack.c.l.b16 %v6021
        %v6469 = vunpack.c.l.b16 %v6031
        %v6470 = vunpack.c.l.b16 %v6049
        %v6471 = vunpack.c.l.b16 %v6059
        %v6472 = vunpack.c.l.b16 %v6077
        %v6473 = vunpack.c.l.b16 %v6087
        %v6474 = vunpack.c.l.b16 %v6105
        %v6475 = vunpack.c.l.b16 %v6115
        %v6476 = vunpack.c.l.b16 %v6133
        %v6477 = vunpack.c.l.b16 %v6143
        %v6478 = vunpack.c.l.b16 %v6161
        %v6479 = vunpack.c.l.b16 %v6171
        %v6480 = vunpack.c.l.b16 %v6189
        %v6481 = vunpack.c.l.b16 %v6199
        %v6482 = vunpack.c.l.b16 %v6217
        %v6483 = vunpack.c.l.b16 %v6227
        %v6484 = vunpack.c.l.b16 %v6245
        %v6485 = vunpack.c.l.b16 %v6255
        %v6486 = vunpack.c.l.b16 %v6273
        %v6487 = vunpack.c.l.b16 %v6283
        %v6488 = vunpack.c.l.b16 %v6301
        %v6489 = vunpack.c.l.b16 %v6311
        %v6490 = vunpack.c.l.b16 %v6329
        %v6491 = vunpack.c.l.b16 %v6339
        %v6492 = vunpack.c.l.b16 %v6357
        %v6493 = vunpack.c.l.b16 %v6367
        %v6494 = vunpack.c.l.b16 %v6385
        %v6495 = vunpack.c.l.b16 %v6395
        %v6496 = vunpack.c.l.b16 %v6413
        %v6497 = vunpack.c.l.b16 %v6423
        %v6498 = vunpack.c.l.b16 %v6441
        %v6499 = vunpack.c.l.b16 %v6451
        %v6500 = vpack.c.b16 %v6469, %v6468
        %v6501 = vpack.c.b16 %v6471, %v6470
        %v6502 = vpack.c.b16 %v6473, %v6472
        %v6503 = vpack.c.b16 %v6475, %v6474
        %v6504 = vpack.c.b16 %v6477, %v6476
        %v6505 = vpack.c.b16 %v6479, %v6478
        %v6506 = vpack.c.b16 %v6481, %v6480
        %v6507 = vpack.c.b16 %v6483, %v6482
        %v6508 = vpack.c.b16 %v6485, %v6484
        %v6509 = vpack.c.b16 %v6487, %v6486
        %v6510 = vpack.c.b16 %v6489, %v6488
        %v6511 = vpack.c.b16 %v6491, %v6490
        %v6512 = vpack.c.b16 %v6493, %v6492
        %v6513 = vpack.c.b16 %v6495, %v6494
        %v6514 = vpack.c.b16 %v6497, %v6496
        %v6515 = vpack.c.b16 %v6499, %v6498
        %v6548 = vunpack.c.l.b16 %v6452
        %v6549 = vunpack.c.l.b16 %v6453
        %v6550 = vunpack.c.l.b16 %v6454
        %v6551 = vunpack.c.l.b16 %v6455
        %v6552 = vunpack.c.l.b16 %v6456
        %v6553 = vunpack.c.l.b16 %v6457
        %v6554 = vunpack.c.l.b16 %v6458
        %v6555 = vunpack.c.l.b16 %v6459
        %v6556 = vunpack.c.l.b16 %v6460
        %v6557 = vunpack.c.l.b16 %v6461
        %v6558 = vunpack.c.l.b16 %v6462
        %v6559 = vunpack.c.l.b16 %v6463
        %v6560 = vunpack.c.l.b16 %v6464
        %v6561 = vunpack.c.l.b16 %v6465
        %v6562 = vunpack.c.l.b16 %v6466
        %v6563 = vunpack.c.l.b16 %v6467
        %v6564 = vpack.c.b16 %v6549, %v6548
        %v6565 = vpack.c.b16 %v6551, %v6550
        %v6566 = vpack.c.b16 %v6553, %v6552
        %v6567 = vpack.c.b16 %v6555, %v6554
        %v6568 = vpack.c.b16 %v6557, %v6556
        %v6569 = vpack.c.b16 %v6559, %v6558
        %v6570 = vpack.c.b16 %v6561, %v6560
        %v6571 = vpack.c.b16 %v6563, %v6562
        %6580 = vmatprep.subr.bf16.mxu0 0
        %6581 = vmatpush1.bf16.msra.mxu0 %v6571
        %6582 = vmatprep.subr.bf16.mxu0 0
        %6583 = vmatpush1.bf16.msra.mxu0 %v6570
        %6584 = vmatprep.subr.bf16.mxu0 0
        %6585 = vmatpush1.bf16.msra.mxu0 %v6569
        %6586 = vmatprep.subr.bf16.mxu0 0
        %6587 = vmatpush1.bf16.msra.mxu0 %v6568
        %6588 = vmatprep.subr.bf16.mxu0 0
        %6589 = vmatpush1.bf16.msra.mxu0 %v6567
        %6590 = vmatprep.subr.bf16.mxu0 0
        %6591 = vmatpush1.bf16.msra.mxu0 %v6566
        %6592 = vmatprep.subr.bf16.mxu0 0
        %6593 = vmatpush1.bf16.msra.mxu0 %v6565
        %6594 = vmatprep.subr.bf16.mxu0 0
        %6595 = vmatpush1.bf16.msra.mxu0 %v6564
        %6596 = vmatprep.subr.bf16.mxu0 0
        %6597 = vmatpush2.bf16.msra.mxu0 0
        %6598 = vmatprep.subr.bf16.mxu0 0
        %6599 = vmatpush2.bf16.msra.mxu0 0
        %6600 = vmatprep.subr.bf16.mxu0 0
        %6601 = vmatpush2.bf16.msra.mxu0 0
        %6602 = vmatprep.subr.bf16.mxu0 0
        %6603 = vmatpush2.bf16.msra.mxu0 0
        %6604 = vmatprep.subr.bf16.mxu0 0
        %6605 = vmatpush2.bf16.msra.mxu0 0
        %6606 = vmatprep.subr.bf16.mxu0 0
        %6607 = vmatpush2.bf16.msra.mxu0 0
        %6608 = vmatprep.subr.bf16.mxu0 0
        %6609 = vmatpush2.bf16.msra.mxu0 0
        %6610 = vmatprep.subr.bf16.mxu0 0
        %6611 = vmatpush2.bf16.msra.mxu0 0
        %6612 = vmatprep.mubr.bf16.mxu0 0
        %6613 = vmatmul.mubr.bf16.gmra.mxu0 %v6500
        %v6614 = vpop.f32.mrf.mxu0
        %v6615 = vadd.f32 0.0, %v6614
        %v6616 = vpop.f32.mrf.mxu0
        %v6617 = vpop.f32.mrf.mxu0
        %v6618 = vadd.f32 0.0, %v6617
        %v6619 = vpop.f32.mrf.mxu0
        %6620 = vmatprep.mubr.bf16.mxu0 0
        %6621 = vmatmul.mubr.bf16.gmra.mxu0 %v6501
        %v6622 = vpop.f32.mrf.mxu0
        %v6623 = vadd.f32 0.0, %v6622
        %v6624 = vpop.f32.mrf.mxu0
        %v6625 = vpop.f32.mrf.mxu0
        %v6626 = vadd.f32 0.0, %v6625
        %v6627 = vpop.f32.mrf.mxu0
        %6628 = vmatprep.mubr.bf16.mxu0 0
        %6629 = vmatmul.mubr.bf16.gmra.mxu0 %v6502
        %v6630 = vpop.f32.mrf.mxu0
        %v6631 = vadd.f32 0.0, %v6630
        %v6632 = vpop.f32.mrf.mxu0
        %v6633 = vpop.f32.mrf.mxu0
        %v6634 = vadd.f32 0.0, %v6633
        %v6635 = vpop.f32.mrf.mxu0
        %6636 = vmatprep.mubr.bf16.mxu0 0
        %6637 = vmatmul.mubr.bf16.gmra.mxu0 %v6503
        %v6638 = vpop.f32.mrf.mxu0
        %v6639 = vadd.f32 0.0, %v6638
        %v6640 = vpop.f32.mrf.mxu0
        %v6641 = vpop.f32.mrf.mxu0
        %v6642 = vadd.f32 0.0, %v6641
        %v6643 = vpop.f32.mrf.mxu0
        %6644 = vmatprep.mubr.bf16.mxu0 0
        %6645 = vmatmul.mubr.bf16.gmra.mxu0 %v6504
        %v6646 = vpop.f32.mrf.mxu0
        %v6647 = vadd.f32 0.0, %v6646
        %v6648 = vpop.f32.mrf.mxu0
        %v6649 = vpop.f32.mrf.mxu0
        %v6650 = vadd.f32 0.0, %v6649
        %v6651 = vpop.f32.mrf.mxu0
        %6652 = vmatprep.mubr.bf16.mxu0 0
        %6653 = vmatmul.mubr.bf16.gmra.mxu0 %v6505
        %v6654 = vpop.f32.mrf.mxu0
        %v6655 = vadd.f32 0.0, %v6654
        %v6656 = vpop.f32.mrf.mxu0
        %v6657 = vpop.f32.mrf.mxu0
        %v6658 = vadd.f32 0.0, %v6657
        %v6659 = vpop.f32.mrf.mxu0
        %6660 = vmatprep.mubr.bf16.mxu0 0
        %6661 = vmatmul.mubr.bf16.gmra.mxu0 %v6506
        %v6662 = vpop.f32.mrf.mxu0
        %v6663 = vadd.f32 0.0, %v6662
        %v6664 = vpop.f32.mrf.mxu0
        %v6665 = vpop.f32.mrf.mxu0
        %v6666 = vadd.f32 0.0, %v6665
        %v6667 = vpop.f32.mrf.mxu0
        %6668 = vmatprep.mubr.bf16.mxu0 0
        %6669 = vmatmul.mubr.bf16.gmra.mxu0 %v6507
        %v6670 = vpop.f32.mrf.mxu0
        %v6671 = vadd.f32 0.0, %v6670
        %v6672 = vpop.f32.mrf.mxu0
        %v6673 = vpop.f32.mrf.mxu0
        %v6674 = vadd.f32 0.0, %v6673
        %v6675 = vpop.f32.mrf.mxu0
        %6676 = vmatprep.mubr.bf16.mxu0 0
        %6677 = vmatmul.mubr.bf16.gmra.mxu0 %v6508
        %v6678 = vpop.f32.mrf.mxu0
        %v6679 = vadd.f32 0.0, %v6678
        %v6680 = vpop.f32.mrf.mxu0
        %v6681 = vpop.f32.mrf.mxu0
        %v6682 = vadd.f32 0.0, %v6681
        %v6683 = vpop.f32.mrf.mxu0
        %6684 = vmatprep.mubr.bf16.mxu0 0
        %6685 = vmatmul.mubr.bf16.gmra.mxu0 %v6509
        %v6686 = vpop.f32.mrf.mxu0
        %v6687 = vadd.f32 0.0, %v6686
        %v6688 = vpop.f32.mrf.mxu0
        %v6689 = vpop.f32.mrf.mxu0
        %v6690 = vadd.f32 0.0, %v6689
        %v6691 = vpop.f32.mrf.mxu0
        %6692 = vmatprep.mubr.bf16.mxu0 0
        %6693 = vmatmul.mubr.bf16.gmra.mxu0 %v6510
        %v6694 = vpop.f32.mrf.mxu0
        %v6695 = vadd.f32 0.0, %v6694
        %v6696 = vpop.f32.mrf.mxu0
        %v6697 = vpop.f32.mrf.mxu0
        %v6698 = vadd.f32 0.0, %v6697
        %v6699 = vpop.f32.mrf.mxu0
        %6700 = vmatprep.mubr.bf16.mxu0 0
        %6701 = vmatmul.mubr.bf16.gmra.mxu0 %v6511
        %v6702 = vpop.f32.mrf.mxu0
        %v6703 = vadd.f32 0.0, %v6702
        %v6704 = vpop.f32.mrf.mxu0
        %v6705 = vpop.f32.mrf.mxu0
        %v6706 = vadd.f32 0.0, %v6705
        %v6707 = vpop.f32.mrf.mxu0
        %6708 = vmatprep.mubr.bf16.mxu0 0
        %6709 = vmatmul.mubr.bf16.gmra.mxu0 %v6512
        %v6710 = vpop.f32.mrf.mxu0
        %v6711 = vadd.f32 0.0, %v6710
        %v6712 = vpop.f32.mrf.mxu0
        %v6713 = vpop.f32.mrf.mxu0
        %v6714 = vadd.f32 0.0, %v6713
        %v6715 = vpop.f32.mrf.mxu0
        %6716 = vmatprep.mubr.bf16.mxu0 0
        %6717 = vmatmul.mubr.bf16.gmra.mxu0 %v6513
        %v6718 = vpop.f32.mrf.mxu0
        %v6719 = vadd.f32 0.0, %v6718
        %v6720 = vpop.f32.mrf.mxu0
        %v6721 = vpop.f32.mrf.mxu0
        %v6722 = vadd.f32 0.0, %v6721
        %v6723 = vpop.f32.mrf.mxu0
        %6724 = vmatprep.mubr.bf16.mxu0 0
        %6725 = vmatmul.mubr.bf16.gmra.mxu0 %v6514
        %v6726 = vpop.f32.mrf.mxu0
        %v6727 = vadd.f32 0.0, %v6726
        %v6728 = vpop.f32.mrf.mxu0
        %v6729 = vpop.f32.mrf.mxu0
        %v6730 = vadd.f32 0.0, %v6729
        %v6731 = vpop.f32.mrf.mxu0
        %6732 = vmatprep.mubr.bf16.mxu0 0
        %6733 = vmatmul.mubr.bf16.gmra.mxu0 %v6515
        %v6734 = vpop.f32.mrf.mxu0
        %v6735 = vadd.f32 0.0, %v6734
        %v6736 = vpop.f32.mrf.mxu0
        %v6737 = vpop.f32.mrf.mxu0
        %v6738 = vadd.f32 0.0, %v6737
        %v6739 = vpop.f32.mrf.mxu0
        %6740 = vdwg.mxu0
        %v6741 = vadd.f32 %v5953, %v6615
        %v6742 = vadd.f32 %v5954, %v6618
        %v6743 = vadd.f32 %v5955, %v6623
        %v6744 = vadd.f32 %v5956, %v6626
        %v6745 = vadd.f32 %v5957, %v6631
        %v6746 = vadd.f32 %v5958, %v6634
        %v6747 = vadd.f32 %v5959, %v6639
        %v6748 = vadd.f32 %v5960, %v6642
        %v6749 = vadd.f32 %v5961, %v6647
        %v6750 = vadd.f32 %v5962, %v6650
        %v6751 = vadd.f32 %v5963, %v6655
        %v6752 = vadd.f32 %v5964, %v6658
        %v6753 = vadd.f32 %v5965, %v6663
        %v6754 = vadd.f32 %v5966, %v6666
        %v6755 = vadd.f32 %v5967, %v6671
        %v6756 = vadd.f32 %v5968, %v6674
        %v6757 = vadd.f32 %v5969, %v6679
        %v6758 = vadd.f32 %v5970, %v6682
        %v6759 = vadd.f32 %v5971, %v6687
        %v6760 = vadd.f32 %v5972, %v6690
        %v6761 = vadd.f32 %v5973, %v6695
        %v6762 = vadd.f32 %v5974, %v6698
        %v6763 = vadd.f32 %v5975, %v6703
        %v6764 = vadd.f32 %v5976, %v6706
        %v6765 = vadd.f32 %v5977, %v6711
        %v6766 = vadd.f32 %v5978, %v6714
        %v6767 = vadd.f32 %v5979, %v6719
        %v6768 = vadd.f32 %v5980, %v6722
        %v6769 = vadd.f32 %v5981, %v6727
        %v6770 = vadd.f32 %v5982, %v6730
        %v6771 = vadd.f32 %v5983, %v6735
        %v6772 = vadd.f32 %v5984, %v6738
        %v6773 = vld [vmem:[%s2] sm:$0x1]
        %v6775 = vlaneseq
        %v6776 = vshrl.u32 %v6775, 7
        %v6777 = vsub.s32 0, %v6776
        %v6778 = vrot.slane %v6773, %v6777
        %v6780 = vmul.f32 %v6741, %v6778
        %v6781 = vmul.f32 %v6742, %v6778
        %v6782 = vmul.f32 %v6743, %v6778
        %v6783 = vmul.f32 %v6744, %v6778
        %v6784 = vmul.f32 %v6745, %v6778
        %v6785 = vmul.f32 %v6746, %v6778
        %v6786 = vmul.f32 %v6747, %v6778
        %v6787 = vmul.f32 %v6748, %v6778
        %v6788 = vmul.f32 %v6749, %v6778
        %v6789 = vmul.f32 %v6750, %v6778
        %v6790 = vmul.f32 %v6751, %v6778
        %v6791 = vmul.f32 %v6752, %v6778
        %v6792 = vmul.f32 %v6753, %v6778
        %v6793 = vmul.f32 %v6754, %v6778
        %v6794 = vmul.f32 %v6755, %v6778
        %v6795 = vmul.f32 %v6756, %v6778
        %v6796 = vmul.f32 %v6757, %v6778
        %v6797 = vmul.f32 %v6758, %v6778
        %v6798 = vmul.f32 %v6759, %v6778
        %v6799 = vmul.f32 %v6760, %v6778
        %v6800 = vmul.f32 %v6761, %v6778
        %v6801 = vmul.f32 %v6762, %v6778
        %v6802 = vmul.f32 %v6763, %v6778
        %v6803 = vmul.f32 %v6764, %v6778
        %v6804 = vmul.f32 %v6765, %v6778
        %v6805 = vmul.f32 %v6766, %v6778
        %v6806 = vmul.f32 %v6767, %v6778
        %v6807 = vmul.f32 %v6768, %v6778
        %v6808 = vmul.f32 %v6769, %v6778
        %v6809 = vmul.f32 %v6770, %v6778
        %v6810 = vmul.f32 %v6771, %v6778
        %v6811 = vmul.f32 %v6772, %v6778
        %v6812 = vld [vmem:[%s3] sm:$0x1]
        %v6814 = vlaneseq
        %v6815 = vshrl.u32 %v6814, 7
        %v6816 = vsub.s32 0, %v6815
        %v6817 = vrot.slane %v6812, %v6816
        %v6819 = vadd.f32 %v6780, %v6817
        %v6820 = vadd.f32 %v6781, %v6817
        %v6821 = vadd.f32 %v6782, %v6817
        %v6822 = vadd.f32 %v6783, %v6817
        %v6823 = vadd.f32 %v6784, %v6817
        %v6824 = vadd.f32 %v6785, %v6817
        %v6825 = vadd.f32 %v6786, %v6817
        %v6826 = vadd.f32 %v6787, %v6817
        %v6827 = vadd.f32 %v6788, %v6817
        %v6828 = vadd.f32 %v6789, %v6817
        %v6829 = vadd.f32 %v6790, %v6817
        %v6830 = vadd.f32 %v6791, %v6817
        %v6831 = vadd.f32 %v6792, %v6817
        %v6832 = vadd.f32 %v6793, %v6817
        %v6833 = vadd.f32 %v6794, %v6817
        %v6834 = vadd.f32 %v6795, %v6817
        %v6835 = vadd.f32 %v6796, %v6817
        %v6836 = vadd.f32 %v6797, %v6817
        %v6837 = vadd.f32 %v6798, %v6817
        %v6838 = vadd.f32 %v6799, %v6817
        %v6839 = vadd.f32 %v6800, %v6817
        %v6840 = vadd.f32 %v6801, %v6817
        %v6841 = vadd.f32 %v6802, %v6817
        %v6842 = vadd.f32 %v6803, %v6817
        %v6843 = vadd.f32 %v6804, %v6817
        %v6844 = vadd.f32 %v6805, %v6817
        %v6845 = vadd.f32 %v6806, %v6817
        %v6846 = vadd.f32 %v6807, %v6817
        %v6847 = vadd.f32 %v6808, %v6817
        %v6848 = vadd.f32 %v6809, %v6817
        %v6849 = vadd.f32 %v6810, %v6817
        %v6850 = vadd.f32 %v6811, %v6817
        %v6851 = vmax.f32 %v6819, 0.0
        %v6852 = vmax.f32 %v6820, 0.0
        %v6853 = vmax.f32 %v6821, 0.0
        %v6854 = vmax.f32 %v6822, 0.0
        %v6855 = vmax.f32 %v6823, 0.0
        %v6856 = vmax.f32 %v6824, 0.0
        %v6857 = vmax.f32 %v6825, 0.0
        %v6858 = vmax.f32 %v6826, 0.0
        %v6859 = vmax.f32 %v6827, 0.0
        %v6860 = vmax.f32 %v6828, 0.0
        %v6861 = vmax.f32 %v6829, 0.0
        %v6862 = vmax.f32 %v6830, 0.0
        %v6863 = vmax.f32 %v6831, 0.0
        %v6864 = vmax.f32 %v6832, 0.0
        %v6865 = vmax.f32 %v6833, 0.0
        %v6866 = vmax.f32 %v6834, 0.0
        %v6867 = vmax.f32 %v6835, 0.0
        %v6868 = vmax.f32 %v6836, 0.0
        %v6869 = vmax.f32 %v6837, 0.0
        %v6870 = vmax.f32 %v6838, 0.0
        %v6871 = vmax.f32 %v6839, 0.0
        %v6872 = vmax.f32 %v6840, 0.0
        %v6873 = vmax.f32 %v6841, 0.0
        %v6874 = vmax.f32 %v6842, 0.0
        %v6875 = vmax.f32 %v6843, 0.0
        %v6876 = vmax.f32 %v6844, 0.0
        %v6877 = vmax.f32 %v6845, 0.0
        %v6878 = vmax.f32 %v6846, 0.0
        %v6879 = vmax.f32 %v6847, 0.0
        %v6880 = vmax.f32 %v6848, 0.0
        %v6881 = vmax.f32 %v6849, 0.0
        %v6882 = vmax.f32 %v6850, 0.0
        %v6883 = vpack.c.bf16 %v6852, %v6851
        %v6884 = vpack.c.bf16 %v6854, %v6853
        %v6885 = vpack.c.bf16 %v6856, %v6855
        %v6886 = vpack.c.bf16 %v6858, %v6857
        %v6887 = vpack.c.bf16 %v6860, %v6859
        %v6888 = vpack.c.bf16 %v6862, %v6861
        %v6889 = vpack.c.bf16 %v6864, %v6863
        %v6890 = vpack.c.bf16 %v6866, %v6865
        %v6891 = vpack.c.bf16 %v6868, %v6867
        %v6892 = vpack.c.bf16 %v6870, %v6869
        %v6893 = vpack.c.bf16 %v6872, %v6871
        %v6894 = vpack.c.bf16 %v6874, %v6873
        %v6895 = vpack.c.bf16 %v6876, %v6875
        %v6896 = vpack.c.bf16 %v6878, %v6877
        %v6897 = vpack.c.bf16 %v6880, %v6879
        %v6898 = vpack.c.bf16 %v6882, %v6881
        %v6915 = vunpack.c.l.b16 %v6883
        %v6916 = vunpack.c.h.b16 %v6883
        %v6917 = vunpack.c.l.b16 %v6884
        %v6918 = vunpack.c.h.b16 %v6884
        %v6919 = vunpack.c.l.b16 %v6885
        %v6920 = vunpack.c.h.b16 %v6885
        %v6921 = vunpack.c.l.b16 %v6886
        %v6922 = vunpack.c.h.b16 %v6886
        %v6923 = vunpack.c.l.b16 %v6887
        %v6924 = vunpack.c.h.b16 %v6887
        %v6925 = vunpack.c.l.b16 %v6888
        %v6926 = vunpack.c.h.b16 %v6888
        %v6927 = vunpack.c.l.b16 %v6889
        %v6928 = vunpack.c.h.b16 %v6889
        %v6929 = vunpack.c.l.b16 %v6890
        %v6930 = vunpack.c.h.b16 %v6890
        %v6931 = vunpack.c.l.b16 %v6891
        %v6932 = vunpack.c.h.b16 %v6891
        %v6933 = vunpack.c.l.b16 %v6892
        %v6934 = vunpack.c.h.b16 %v6892
        %v6935 = vunpack.c.l.b16 %v6893
        %v6936 = vunpack.c.h.b16 %v6893
        %v6937 = vunpack.c.l.b16 %v6894
        %v6938 = vunpack.c.h.b16 %v6894
        %v6939 = vunpack.c.l.b16 %v6895
        %v6940 = vunpack.c.h.b16 %v6895
        %v6941 = vunpack.c.l.b16 %v6896
        %v6942 = vunpack.c.h.b16 %v6896
        %v6943 = vunpack.c.l.b16 %v6897
        %v6944 = vunpack.c.h.b16 %v6897
        %v6945 = vunpack.c.l.b16 %v6898
        %v6946 = vunpack.c.h.b16 %v6898
        %v6947 = vpack.c.b16 %v6915, %v6915
        %v6948 = vpack.c.b16 %v6916, %v6916
        %v6949 = vpack.c.b16 %v6917, %v6917
        %v6950 = vpack.c.b16 %v6918, %v6918
        %v6951 = vpack.c.b16 %v6919, %v6919
        %v6952 = vpack.c.b16 %v6920, %v6920
        %v6953 = vpack.c.b16 %v6921, %v6921
        %v6954 = vpack.c.b16 %v6922, %v6922
        %v6955 = vpack.c.b16 %v6923, %v6923
        %v6956 = vpack.c.b16 %v6924, %v6924
        %v6957 = vpack.c.b16 %v6925, %v6925
        %v6958 = vpack.c.b16 %v6926, %v6926
        %v6959 = vpack.c.b16 %v6927, %v6927
        %v6960 = vpack.c.b16 %v6928, %v6928
        %v6961 = vpack.c.b16 %v6929, %v6929
        %v6962 = vpack.c.b16 %v6930, %v6930
        %v6963 = vpack.c.b16 %v6931, %v6931
        %v6964 = vpack.c.b16 %v6932, %v6932
        %v6965 = vpack.c.b16 %v6933, %v6933
        %v6966 = vpack.c.b16 %v6934, %v6934
        %v6967 = vpack.c.b16 %v6935, %v6935
        %v6968 = vpack.c.b16 %v6936, %v6936
        %v6969 = vpack.c.b16 %v6937, %v6937
        %v6970 = vpack.c.b16 %v6938, %v6938
        %v6971 = vpack.c.b16 %v6939, %v6939
        %v6972 = vpack.c.b16 %v6940, %v6940
        %v6973 = vpack.c.b16 %v6941, %v6941
        %v6974 = vpack.c.b16 %v6942, %v6942
        %v6975 = vpack.c.b16 %v6943, %v6943
        %v6976 = vpack.c.b16 %v6944, %v6944
        %v6977 = vpack.c.b16 %v6945, %v6945
        %v6978 = vpack.c.b16 %v6946, %v6946
        %7011 = vst [vmem:[#allocation2 + $0x8] sm:$0xf] %v6947
        %7012 = vst [vmem:[#allocation2 + $0xc] sm:$0xf] %v6948
        %7013 = vst [vmem:[#allocation2 + $0x1c] sm:$0xf] %v6949
        %7014 = vst [vmem:[#allocation2 + $0x20] sm:$0xf] %v6950
        %7015 = vst [vmem:[#allocation2 + $0x30] sm:$0xf] %v6951
        %7016 = vst [vmem:[#allocation2 + $0x34] sm:$0xf] %v6952
        %7017 = vst [vmem:[#allocation2 + $0x44] sm:$0xf] %v6953
        %7018 = vst [vmem:[#allocation2 + $0x48] sm:$0xf] %v6954
        %7019 = vst [vmem:[#allocation2 + $0x58] sm:$0xf] %v6955
        %7020 = vst [vmem:[#allocation2 + $0x5c] sm:$0xf] %v6956
        %7021 = vst [vmem:[#allocation2 + $0x6c] sm:$0xf] %v6957
        %7022 = vst [vmem:[#allocation2 + $0x70] sm:$0xf] %v6958
        %7023 = vst [vmem:[#allocation2 + $0x80] sm:$0xf] %v6959
        %7024 = vst [vmem:[#allocation2 + $0x84] sm:$0xf] %v6960
        %7025 = vst [vmem:[#allocation2 + $0x94] sm:$0xf] %v6961
        %7026 = vst [vmem:[#allocation2 + $0x98] sm:$0xf] %v6962
        %7027 = vst [vmem:[#allocation2 + $0xa8] sm:$0xf] %v6963
        %7028 = vst [vmem:[#allocation2 + $0xac] sm:$0xf] %v6964
        %7029 = vst [vmem:[#allocation2 + $0xbc] sm:$0xf] %v6965
        %7030 = vst [vmem:[#allocation2 + $0xc0] sm:$0xf] %v6966
        %7031 = vst [vmem:[#allocation2 + $0xd0] sm:$0xf] %v6967
        %7032 = vst [vmem:[#allocation2 + $0xd4] sm:$0xf] %v6968
        %7033 = vst [vmem:[#allocation2 + $0xe4] sm:$0xf] %v6969
        %7034 = vst [vmem:[#allocation2 + $0xe8] sm:$0xf] %v6970
        %7035 = vst [vmem:[#allocation2 + $0xf8] sm:$0xf] %v6971
        %7036 = vst [vmem:[#allocation2 + $0xfc] sm:$0xf] %v6972
        %7037 = vst [vmem:[#allocation2 + $0x10c] sm:$0xf] %v6973
        %7038 = vst [vmem:[#allocation2 + $0x110] sm:$0xf] %v6974
        %7039 = vst [vmem:[#allocation2 + $0x120] sm:$0xf] %v6975
        %7040 = vst [vmem:[#allocation2 + $0x124] sm:$0xf] %v6976
        %7041 = vst [vmem:[#allocation2 + $0x134] sm:$0xf] %v6977
        %7042 = vst [vmem:[#allocation2 + $0x138] sm:$0xf] %v6978
        %v7043 = vld [vmem:[#allocation2 + $0x4] sm:$0xe]
        %v7044 = vld [vmem:[#allocation2 + $0x8] sm:$0xf]
        %v7045 = vld [vmem:[#allocation2 + $0xc] sm:$0x3]
        %v7046 = vld [vmem:[#allocation2 + $0x18] sm:$0xe]
        %v7047 = vld [vmem:[#allocation2 + $0x1c] sm:$0xf]
        %v7048 = vld [vmem:[#allocation2 + $0x20] sm:$0x3]
        %v7049 = vld [vmem:[#allocation2 + $0x2c] sm:$0xe]
        %v7050 = vld [vmem:[#allocation2 + $0x30] sm:$0xf]
        %v7051 = vld [vmem:[#allocation2 + $0x34] sm:$0x3]
        %v7052 = vld [vmem:[#allocation2 + $0x40] sm:$0xe]
        %v7053 = vld [vmem:[#allocation2 + $0x44] sm:$0xf]
        %v7054 = vld [vmem:[#allocation2 + $0x48] sm:$0x3]
        %v7055 = vld [vmem:[#allocation2 + $0x54] sm:$0xe]
        %v7056 = vld [vmem:[#allocation2 + $0x58] sm:$0xf]
        %v7057 = vld [vmem:[#allocation2 + $0x5c] sm:$0x3]
        %v7058 = vld [vmem:[#allocation2 + $0x68] sm:$0xe]
        %v7059 = vld [vmem:[#allocation2 + $0x6c] sm:$0xf]
        %v7060 = vld [vmem:[#allocation2 + $0x70] sm:$0x3]
        %v7061 = vld [vmem:[#allocation2 + $0x7c] sm:$0xe]
        %v7062 = vld [vmem:[#allocation2 + $0x80] sm:$0xf]
        %v7063 = vld [vmem:[#allocation2 + $0x84] sm:$0x3]
        %v7064 = vld [vmem:[#allocation2 + $0x90] sm:$0xe]
        %v7065 = vld [vmem:[#allocation2 + $0x94] sm:$0xf]
        %v7066 = vld [vmem:[#allocation2 + $0x98] sm:$0x3]
        %v7067 = vld [vmem:[#allocation2 + $0xa4] sm:$0xe]
        %v7068 = vld [vmem:[#allocation2 + $0xa8] sm:$0xf]
        %v7069 = vld [vmem:[#allocation2 + $0xac] sm:$0x3]
        %v7070 = vld [vmem:[#allocation2 + $0xb8] sm:$0xe]
        %v7071 = vld [vmem:[#allocation2 + $0xbc] sm:$0xf]
        %v7072 = vld [vmem:[#allocation2 + $0xc0] sm:$0x3]
        %v7073 = vld [vmem:[#allocation2 + $0xcc] sm:$0xe]
        %v7074 = vld [vmem:[#allocation2 + $0xd0] sm:$0xf]
        %v7075 = vld [vmem:[#allocation2 + $0xd4] sm:$0x3]
        %v7076 = vld [vmem:[#allocation2 + $0xe0] sm:$0xe]
        %v7077 = vld [vmem:[#allocation2 + $0xe4] sm:$0xf]
        %v7078 = vld [vmem:[#allocation2 + $0xe8] sm:$0x3]
        %v7079 = vld [vmem:[#allocation2 + $0xf4] sm:$0xe]
        %v7080 = vld [vmem:[#allocation2 + $0xf8] sm:$0xf]
        %v7081 = vld [vmem:[#allocation2 + $0xfc] sm:$0x3]
        %v7082 = vld [vmem:[#allocation2 + $0x108] sm:$0xe]
        %v7083 = vld [vmem:[#allocation2 + $0x10c] sm:$0xf]
        %v7084 = vld [vmem:[#allocation2 + $0x110] sm:$0x3]
        %v7085 = vld [vmem:[#allocation2 + $0x11c] sm:$0xe]
        %v7086 = vld [vmem:[#allocation2 + $0x120] sm:$0xf]
        %v7087 = vld [vmem:[#allocation2 + $0x124] sm:$0x3]
        %v7088 = vld [vmem:[#allocation2 + $0x130] sm:$0xe]
        %v7089 = vld [vmem:[#allocation2 + $0x134] sm:$0xf]
        %v7090 = vld [vmem:[#allocation2 + $0x138] sm:$0x3]
        %v7091 = vld [vmem:[#allocation2 + $0x4] sm:$0xc]
        %v7092 = vld [vmem:[#allocation2 + $0x18] sm:$0xc]
        %v7093 = vld [vmem:[#allocation2 + $0x2c] sm:$0xc]
        %v7094 = vld [vmem:[#allocation2 + $0x40] sm:$0xc]
        %v7095 = vld [vmem:[#allocation2 + $0x54] sm:$0xc]
        %v7096 = vld [vmem:[#allocation2 + $0x68] sm:$0xc]
        %v7097 = vld [vmem:[#allocation2 + $0x7c] sm:$0xc]
        %v7098 = vld [vmem:[#allocation2 + $0x90] sm:$0xc]
        %v7099 = vld [vmem:[#allocation2 + $0xa4] sm:$0xc]
        %v7100 = vld [vmem:[#allocation2 + $0xb8] sm:$0xc]
        %v7101 = vld [vmem:[#allocation2 + $0xcc] sm:$0xc]
        %v7102 = vld [vmem:[#allocation2 + $0xe0] sm:$0xc]
        %v7103 = vld [vmem:[#allocation2 + $0xf4] sm:$0xc]
        %v7104 = vld [vmem:[#allocation2 + $0x108] sm:$0xc]
        %v7105 = vld [vmem:[#allocation2 + $0x11c] sm:$0xc]
        %v7106 = vld [vmem:[#allocation2 + $0x130] sm:$0xc]
        %v7155 = vunpack.c.l.b16 %v7043
        %v7156 = vunpack.c.l.b16 %v7044
        %v7157 = vunpack.c.l.b16 %v7045
        %v7158 = vunpack.c.l.b16 %v7046
        %v7159 = vunpack.c.l.b16 %v7047
        %v7160 = vunpack.c.l.b16 %v7048
        %v7161 = vunpack.c.l.b16 %v7049
        %v7162 = vunpack.c.l.b16 %v7050
        %v7163 = vunpack.c.l.b16 %v7051
        %v7164 = vunpack.c.l.b16 %v7052
        %v7165 = vunpack.c.l.b16 %v7053
        %v7166 = vunpack.c.l.b16 %v7054
        %v7167 = vunpack.c.l.b16 %v7055
        %v7168 = vunpack.c.l.b16 %v7056
        %v7169 = vunpack.c.l.b16 %v7057
        %v7170 = vunpack.c.l.b16 %v7058
        %v7171 = vunpack.c.l.b16 %v7059
        %v7172 = vunpack.c.l.b16 %v7060
        %v7173 = vunpack.c.l.b16 %v7061
        %v7174 = vunpack.c.l.b16 %v7062
        %v7175 = vunpack.c.l.b16 %v7063
        %v7176 = vunpack.c.l.b16 %v7064
        %v7177 = vunpack.c.l.b16 %v7065
        %v7178 = vunpack.c.l.b16 %v7066
        %v7179 = vunpack.c.l.b16 %v7067
        %v7180 = vunpack.c.l.b16 %v7068
        %v7181 = vunpack.c.l.b16 %v7069
        %v7182 = vunpack.c.l.b16 %v7070
        %v7183 = vunpack.c.l.b16 %v7071
        %v7184 = vunpack.c.l.b16 %v7072
        %v7185 = vunpack.c.l.b16 %v7073
        %v7186 = vunpack.c.l.b16 %v7074
        %v7187 = vunpack.c.l.b16 %v7075
        %v7188 = vunpack.c.l.b16 %v7076
        %v7189 = vunpack.c.l.b16 %v7077
        %v7190 = vunpack.c.l.b16 %v7078
        %v7191 = vunpack.c.l.b16 %v7079
        %v7192 = vunpack.c.l.b16 %v7080
        %v7193 = vunpack.c.l.b16 %v7081
        %v7194 = vunpack.c.l.b16 %v7082
        %v7195 = vunpack.c.l.b16 %v7083
        %v7196 = vunpack.c.l.b16 %v7084
        %v7197 = vunpack.c.l.b16 %v7085
        %v7198 = vunpack.c.l.b16 %v7086
        %v7199 = vunpack.c.l.b16 %v7087
        %v7200 = vunpack.c.l.b16 %v7088
        %v7201 = vunpack.c.l.b16 %v7089
        %v7202 = vunpack.c.l.b16 %v7090
        %v7203 = vpack.c.b16 %v7156, %v7155
        %v7204 = vpack.c.b16 %v7157, %v7157
        %v7205 = vpack.c.b16 %v7159, %v7158
        %v7206 = vpack.c.b16 %v7160, %v7160
        %v7207 = vpack.c.b16 %v7162, %v7161
        %v7208 = vpack.c.b16 %v7163, %v7163
        %v7209 = vpack.c.b16 %v7165, %v7164
        %v7210 = vpack.c.b16 %v7166, %v7166
        %v7211 = vpack.c.b16 %v7168, %v7167
        %v7212 = vpack.c.b16 %v7169, %v7169
        %v7213 = vpack.c.b16 %v7171, %v7170
        %v7214 = vpack.c.b16 %v7172, %v7172
        %v7215 = vpack.c.b16 %v7174, %v7173
        %v7216 = vpack.c.b16 %v7175, %v7175
        %v7217 = vpack.c.b16 %v7177, %v7176
        %v7218 = vpack.c.b16 %v7178, %v7178
        %v7219 = vpack.c.b16 %v7180, %v7179
        %v7220 = vpack.c.b16 %v7181, %v7181
        %v7221 = vpack.c.b16 %v7183, %v7182
        %v7222 = vpack.c.b16 %v7184, %v7184
        %v7223 = vpack.c.b16 %v7186, %v7185
        %v7224 = vpack.c.b16 %v7187, %v7187
        %v7225 = vpack.c.b16 %v7189, %v7188
        %v7226 = vpack.c.b16 %v7190, %v7190
        %v7227 = vpack.c.b16 %v7192, %v7191
        %v7228 = vpack.c.b16 %v7193, %v7193
        %v7229 = vpack.c.b16 %v7195, %v7194
        %v7230 = vpack.c.b16 %v7196, %v7196
        %v7231 = vpack.c.b16 %v7198, %v7197
        %v7232 = vpack.c.b16 %v7199, %v7199
        %v7233 = vpack.c.b16 %v7201, %v7200
        %v7234 = vpack.c.b16 %v7202, %v7202
        %v7251 = vunpack.c.l.b16 %v7091
        %v7252 = vunpack.c.l.b16 %v7092
        %v7253 = vunpack.c.l.b16 %v7093
        %v7254 = vunpack.c.l.b16 %v7094
        %v7255 = vunpack.c.l.b16 %v7095
        %v7256 = vunpack.c.l.b16 %v7096
        %v7257 = vunpack.c.l.b16 %v7097
        %v7258 = vunpack.c.l.b16 %v7098
        %v7259 = vunpack.c.l.b16 %v7099
        %v7260 = vunpack.c.l.b16 %v7100
        %v7261 = vunpack.c.l.b16 %v7101
        %v7262 = vunpack.c.l.b16 %v7102
        %v7263 = vunpack.c.l.b16 %v7103
        %v7264 = vunpack.c.l.b16 %v7104
        %v7265 = vunpack.c.l.b16 %v7105
        %v7266 = vunpack.c.l.b16 %v7106
        %v7267 = vpack.c.b16 %v7156, %v7251
        %v7268 = vpack.c.b16 %v7159, %v7252
        %v7269 = vpack.c.b16 %v7162, %v7253
        %v7270 = vpack.c.b16 %v7165, %v7254
        %v7271 = vpack.c.b16 %v7168, %v7255
        %v7272 = vpack.c.b16 %v7171, %v7256
        %v7273 = vpack.c.b16 %v7174, %v7257
        %v7274 = vpack.c.b16 %v7177, %v7258
        %v7275 = vpack.c.b16 %v7180, %v7259
        %v7276 = vpack.c.b16 %v7183, %v7260
        %v7277 = vpack.c.b16 %v7186, %v7261
        %v7278 = vpack.c.b16 %v7189, %v7262
        %v7279 = vpack.c.b16 %v7192, %v7263
        %v7280 = vpack.c.b16 %v7195, %v7264
        %v7281 = vpack.c.b16 %v7198, %v7265
        %v7282 = vpack.c.b16 %v7201, %v7266
        %v7284 = vshrl.u32 %v7267, 16
        %v7286 = vshll.u32 %v7267, 16
        %v7288 = vrot.slane %v7286, 1
        %v7289 = vor.u32 %v7284, %v7288
        %v7291 = vshll.u32 %v7204, 16
        %v7293 = vrot.slane %v7291, 1
        %v7294 = vsel %vm744, %v7289, %v7293
        %v7295 = vshrl.u32 %v7204, 16
        %v7297 = vor.u32 %v7295, %v7293
        %v7299 = vshrl.u32 %v7268, 16
        %v7301 = vshll.u32 %v7268, 16
        %v7303 = vrot.slane %v7301, 1
        %v7304 = vor.u32 %v7299, %v7303
        %v7306 = vshll.u32 %v7206, 16
        %v7308 = vrot.slane %v7306, 1
        %v7309 = vsel %vm744, %v7304, %v7308
        %v7310 = vshrl.u32 %v7206, 16
        %v7312 = vor.u32 %v7310, %v7308
        %v7314 = vshrl.u32 %v7269, 16
        %v7316 = vshll.u32 %v7269, 16
        %v7318 = vrot.slane %v7316, 1
        %v7319 = vor.u32 %v7314, %v7318
        %v7321 = vshll.u32 %v7208, 16
        %v7323 = vrot.slane %v7321, 1
        %v7324 = vsel %vm744, %v7319, %v7323
        %v7325 = vshrl.u32 %v7208, 16
        %v7327 = vor.u32 %v7325, %v7323
        %v7329 = vshrl.u32 %v7270, 16
        %v7331 = vshll.u32 %v7270, 16
        %v7333 = vrot.slane %v7331, 1
        %v7334 = vor.u32 %v7329, %v7333
        %v7336 = vshll.u32 %v7210, 16
        %v7338 = vrot.slane %v7336, 1
        %v7339 = vsel %vm744, %v7334, %v7338
        %v7340 = vshrl.u32 %v7210, 16
        %v7342 = vor.u32 %v7340, %v7338
        %v7344 = vshrl.u32 %v7271, 16
        %v7346 = vshll.u32 %v7271, 16
        %v7348 = vrot.slane %v7346, 1
        %v7349 = vor.u32 %v7344, %v7348
        %v7351 = vshll.u32 %v7212, 16
        %v7353 = vrot.slane %v7351, 1
        %v7354 = vsel %vm744, %v7349, %v7353
        %v7355 = vshrl.u32 %v7212, 16
        %v7357 = vor.u32 %v7355, %v7353
        %v7359 = vshrl.u32 %v7272, 16
        %v7361 = vshll.u32 %v7272, 16
        %v7363 = vrot.slane %v7361, 1
        %v7364 = vor.u32 %v7359, %v7363
        %v7366 = vshll.u32 %v7214, 16
        %v7368 = vrot.slane %v7366, 1
        %v7369 = vsel %vm744, %v7364, %v7368
        %v7370 = vshrl.u32 %v7214, 16
        %v7372 = vor.u32 %v7370, %v7368
        %v7374 = vshrl.u32 %v7273, 16
        %v7376 = vshll.u32 %v7273, 16
        %v7378 = vrot.slane %v7376, 1
        %v7379 = vor.u32 %v7374, %v7378
        %v7381 = vshll.u32 %v7216, 16
        %v7383 = vrot.slane %v7381, 1
        %v7384 = vsel %vm744, %v7379, %v7383
        %v7385 = vshrl.u32 %v7216, 16
        %v7387 = vor.u32 %v7385, %v7383
        %v7389 = vshrl.u32 %v7274, 16
        %v7391 = vshll.u32 %v7274, 16
        %v7393 = vrot.slane %v7391, 1
        %v7394 = vor.u32 %v7389, %v7393
        %v7396 = vshll.u32 %v7218, 16
        %v7398 = vrot.slane %v7396, 1
        %v7399 = vsel %vm744, %v7394, %v7398
        %v7400 = vshrl.u32 %v7218, 16
        %v7402 = vor.u32 %v7400, %v7398
        %v7404 = vshrl.u32 %v7275, 16
        %v7406 = vshll.u32 %v7275, 16
        %v7408 = vrot.slane %v7406, 1
        %v7409 = vor.u32 %v7404, %v7408
        %v7411 = vshll.u32 %v7220, 16
        %v7413 = vrot.slane %v7411, 1
        %v7414 = vsel %vm744, %v7409, %v7413
        %v7415 = vshrl.u32 %v7220, 16
        %v7417 = vor.u32 %v7415, %v7413
        %v7419 = vshrl.u32 %v7276, 16
        %v7421 = vshll.u32 %v7276, 16
        %v7423 = vrot.slane %v7421, 1
        %v7424 = vor.u32 %v7419, %v7423
        %v7426 = vshll.u32 %v7222, 16
        %v7428 = vrot.slane %v7426, 1
        %v7429 = vsel %vm744, %v7424, %v7428
        %v7430 = vshrl.u32 %v7222, 16
        %v7432 = vor.u32 %v7430, %v7428
        %v7434 = vshrl.u32 %v7277, 16
        %v7436 = vshll.u32 %v7277, 16
        %v7438 = vrot.slane %v7436, 1
        %v7439 = vor.u32 %v7434, %v7438
        %v7441 = vshll.u32 %v7224, 16
        %v7443 = vrot.slane %v7441, 1
        %v7444 = vsel %vm744, %v7439, %v7443
        %v7445 = vshrl.u32 %v7224, 16
        %v7447 = vor.u32 %v7445, %v7443
        %v7449 = vshrl.u32 %v7278, 16
        %v7451 = vshll.u32 %v7278, 16
        %v7453 = vrot.slane %v7451, 1
        %v7454 = vor.u32 %v7449, %v7453
        %v7456 = vshll.u32 %v7226, 16
        %v7458 = vrot.slane %v7456, 1
        %v7459 = vsel %vm744, %v7454, %v7458
        %v7460 = vshrl.u32 %v7226, 16
        %v7462 = vor.u32 %v7460, %v7458
        %v7464 = vshrl.u32 %v7279, 16
        %v7466 = vshll.u32 %v7279, 16
        %v7468 = vrot.slane %v7466, 1
        %v7469 = vor.u32 %v7464, %v7468
        %v7471 = vshll.u32 %v7228, 16
        %v7473 = vrot.slane %v7471, 1
        %v7474 = vsel %vm744, %v7469, %v7473
        %v7475 = vshrl.u32 %v7228, 16
        %v7477 = vor.u32 %v7475, %v7473
        %v7479 = vshrl.u32 %v7280, 16
        %v7481 = vshll.u32 %v7280, 16
        %v7483 = vrot.slane %v7481, 1
        %v7484 = vor.u32 %v7479, %v7483
        %v7486 = vshll.u32 %v7230, 16
        %v7488 = vrot.slane %v7486, 1
        %v7489 = vsel %vm744, %v7484, %v7488
        %v7490 = vshrl.u32 %v7230, 16
        %v7492 = vor.u32 %v7490, %v7488
        %v7494 = vshrl.u32 %v7281, 16
        %v7496 = vshll.u32 %v7281, 16
        %v7498 = vrot.slane %v7496, 1
        %v7499 = vor.u32 %v7494, %v7498
        %v7501 = vshll.u32 %v7232, 16
        %v7503 = vrot.slane %v7501, 1
        %v7504 = vsel %vm744, %v7499, %v7503
        %v7505 = vshrl.u32 %v7232, 16
        %v7507 = vor.u32 %v7505, %v7503
        %v7509 = vshrl.u32 %v7282, 16
        %v7511 = vshll.u32 %v7282, 16
        %v7513 = vrot.slane %v7511, 1
        %v7514 = vor.u32 %v7509, %v7513
        %v7516 = vshll.u32 %v7234, 16
        %v7518 = vrot.slane %v7516, 1
        %v7519 = vsel %vm744, %v7514, %v7518
        %v7520 = vshrl.u32 %v7234, 16
        %v7522 = vor.u32 %v7520, %v7518
        %v7524 = vshrl.u32 %v7203, 16
        %v7526 = vrot.slane %v7524, 1
        %v7527 = vshll.u32 %v7203, 16
        %v7529 = vrot.slane %v7527, 2
        %v7530 = vor.u32 %v7526, %v7529
        %v7531 = vrot.slane %v7295, 1
        %v7532 = vrot.slane %v7291, 2
        %v7533 = vor.u32 %v7531, %v7532
        %v7534 = vsel %vm985, %v7530, %v7533
        %v7536 = vshrl.u32 %v7294, 16
        %v7538 = vrot.slane %v7536, 1
        %v7539 = vshll.u32 %v7294, 16
        %v7541 = vrot.slane %v7539, 2
        %v7542 = vor.u32 %v7538, %v7541
        %v7544 = vshrl.u32 %v7297, 16
        %v7546 = vrot.slane %v7544, 1
        %v7547 = vshll.u32 %v7297, 16
        %v7549 = vrot.slane %v7547, 2
        %v7550 = vor.u32 %v7546, %v7549
        %v7551 = vsel %vm985, %v7542, %v7550
        %v7553 = vshrl.u32 %v7205, 16
        %v7555 = vrot.slane %v7553, 1
        %v7556 = vshll.u32 %v7205, 16
        %v7558 = vrot.slane %v7556, 2
        %v7559 = vor.u32 %v7555, %v7558
        %v7560 = vrot.slane %v7310, 1
        %v7561 = vrot.slane %v7306, 2
        %v7562 = vor.u32 %v7560, %v7561
        %v7563 = vsel %vm985, %v7559, %v7562
        %v7565 = vshrl.u32 %v7309, 16
        %v7567 = vrot.slane %v7565, 1
        %v7568 = vshll.u32 %v7309, 16
        %v7570 = vrot.slane %v7568, 2
        %v7571 = vor.u32 %v7567, %v7570
        %v7573 = vshrl.u32 %v7312, 16
        %v7575 = vrot.slane %v7573, 1
        %v7576 = vshll.u32 %v7312, 16
        %v7578 = vrot.slane %v7576, 2
        %v7579 = vor.u32 %v7575, %v7578
        %v7580 = vsel %vm985, %v7571, %v7579
        %v7582 = vshrl.u32 %v7207, 16
        %v7584 = vrot.slane %v7582, 1
        %v7585 = vshll.u32 %v7207, 16
        %v7587 = vrot.slane %v7585, 2
        %v7588 = vor.u32 %v7584, %v7587
        %v7589 = vrot.slane %v7325, 1
        %v7590 = vrot.slane %v7321, 2
        %v7591 = vor.u32 %v7589, %v7590
        %v7592 = vsel %vm985, %v7588, %v7591
        %v7594 = vshrl.u32 %v7324, 16
        %v7596 = vrot.slane %v7594, 1
        %v7597 = vshll.u32 %v7324, 16
        %v7599 = vrot.slane %v7597, 2
        %v7600 = vor.u32 %v7596, %v7599
        %v7602 = vshrl.u32 %v7327, 16
        %v7604 = vrot.slane %v7602, 1
        %v7605 = vshll.u32 %v7327, 16
        %v7607 = vrot.slane %v7605, 2
        %v7608 = vor.u32 %v7604, %v7607
        %v7609 = vsel %vm985, %v7600, %v7608
        %v7611 = vshrl.u32 %v7209, 16
        %v7613 = vrot.slane %v7611, 1
        %v7614 = vshll.u32 %v7209, 16
        %v7616 = vrot.slane %v7614, 2
        %v7617 = vor.u32 %v7613, %v7616
        %v7618 = vrot.slane %v7340, 1
        %v7619 = vrot.slane %v7336, 2
        %v7620 = vor.u32 %v7618, %v7619
        %v7621 = vsel %vm985, %v7617, %v7620
        %v7623 = vshrl.u32 %v7339, 16
        %v7625 = vrot.slane %v7623, 1
        %v7626 = vshll.u32 %v7339, 16
        %v7628 = vrot.slane %v7626, 2
        %v7629 = vor.u32 %v7625, %v7628
        %v7631 = vshrl.u32 %v7342, 16
        %v7633 = vrot.slane %v7631, 1
        %v7634 = vshll.u32 %v7342, 16
        %v7636 = vrot.slane %v7634, 2
        %v7637 = vor.u32 %v7633, %v7636
        %v7638 = vsel %vm985, %v7629, %v7637
        %v7640 = vshrl.u32 %v7211, 16
        %v7642 = vrot.slane %v7640, 1
        %v7643 = vshll.u32 %v7211, 16
        %v7645 = vrot.slane %v7643, 2
        %v7646 = vor.u32 %v7642, %v7645
        %v7647 = vrot.slane %v7355, 1
        %v7648 = vrot.slane %v7351, 2
        %v7649 = vor.u32 %v7647, %v7648
        %v7650 = vsel %vm985, %v7646, %v7649
        %v7652 = vshrl.u32 %v7354, 16
        %v7654 = vrot.slane %v7652, 1
        %v7655 = vshll.u32 %v7354, 16
        %v7657 = vrot.slane %v7655, 2
        %v7658 = vor.u32 %v7654, %v7657
        %v7660 = vshrl.u32 %v7357, 16
        %v7662 = vrot.slane %v7660, 1
        %v7663 = vshll.u32 %v7357, 16
        %v7665 = vrot.slane %v7663, 2
        %v7666 = vor.u32 %v7662, %v7665
        %v7667 = vsel %vm985, %v7658, %v7666
        %v7669 = vshrl.u32 %v7213, 16
        %v7671 = vrot.slane %v7669, 1
        %v7672 = vshll.u32 %v7213, 16
        %v7674 = vrot.slane %v7672, 2
        %v7675 = vor.u32 %v7671, %v7674
        %v7676 = vrot.slane %v7370, 1
        %v7677 = vrot.slane %v7366, 2
        %v7678 = vor.u32 %v7676, %v7677
        %v7679 = vsel %vm985, %v7675, %v7678
        %v7681 = vshrl.u32 %v7369, 16
        %v7683 = vrot.slane %v7681, 1
        %v7684 = vshll.u32 %v7369, 16
        %v7686 = vrot.slane %v7684, 2
        %v7687 = vor.u32 %v7683, %v7686
        %v7689 = vshrl.u32 %v7372, 16
        %v7691 = vrot.slane %v7689, 1
        %v7692 = vshll.u32 %v7372, 16
        %v7694 = vrot.slane %v7692, 2
        %v7695 = vor.u32 %v7691, %v7694
        %v7696 = vsel %vm985, %v7687, %v7695
        %v7698 = vshrl.u32 %v7215, 16
        %v7700 = vrot.slane %v7698, 1
        %v7701 = vshll.u32 %v7215, 16
        %v7703 = vrot.slane %v7701, 2
        %v7704 = vor.u32 %v7700, %v7703
        %v7705 = vrot.slane %v7385, 1
        %v7706 = vrot.slane %v7381, 2
        %v7707 = vor.u32 %v7705, %v7706
        %v7708 = vsel %vm985, %v7704, %v7707
        %v7710 = vshrl.u32 %v7384, 16
        %v7712 = vrot.slane %v7710, 1
        %v7713 = vshll.u32 %v7384, 16
        %v7715 = vrot.slane %v7713, 2
        %v7716 = vor.u32 %v7712, %v7715
        %v7718 = vshrl.u32 %v7387, 16
        %v7720 = vrot.slane %v7718, 1
        %v7721 = vshll.u32 %v7387, 16
        %v7723 = vrot.slane %v7721, 2
        %v7724 = vor.u32 %v7720, %v7723
        %v7725 = vsel %vm985, %v7716, %v7724
        %v7727 = vshrl.u32 %v7217, 16
        %v7729 = vrot.slane %v7727, 1
        %v7730 = vshll.u32 %v7217, 16
        %v7732 = vrot.slane %v7730, 2
        %v7733 = vor.u32 %v7729, %v7732
        %v7734 = vrot.slane %v7400, 1
        %v7735 = vrot.slane %v7396, 2
        %v7736 = vor.u32 %v7734, %v7735
        %v7737 = vsel %vm985, %v7733, %v7736
        %v7739 = vshrl.u32 %v7399, 16
        %v7741 = vrot.slane %v7739, 1
        %v7742 = vshll.u32 %v7399, 16
        %v7744 = vrot.slane %v7742, 2
        %v7745 = vor.u32 %v7741, %v7744
        %v7747 = vshrl.u32 %v7402, 16
        %v7749 = vrot.slane %v7747, 1
        %v7750 = vshll.u32 %v7402, 16
        %v7752 = vrot.slane %v7750, 2
        %v7753 = vor.u32 %v7749, %v7752
        %v7754 = vsel %vm985, %v7745, %v7753
        %v7756 = vshrl.u32 %v7219, 16
        %v7758 = vrot.slane %v7756, 1
        %v7759 = vshll.u32 %v7219, 16
        %v7761 = vrot.slane %v7759, 2
        %v7762 = vor.u32 %v7758, %v7761
        %v7763 = vrot.slane %v7415, 1
        %v7764 = vrot.slane %v7411, 2
        %v7765 = vor.u32 %v7763, %v7764
        %v7766 = vsel %vm985, %v7762, %v7765
        %v7768 = vshrl.u32 %v7414, 16
        %v7770 = vrot.slane %v7768, 1
        %v7771 = vshll.u32 %v7414, 16
        %v7773 = vrot.slane %v7771, 2
        %v7774 = vor.u32 %v7770, %v7773
        %v7776 = vshrl.u32 %v7417, 16
        %v7778 = vrot.slane %v7776, 1
        %v7779 = vshll.u32 %v7417, 16
        %v7781 = vrot.slane %v7779, 2
        %v7782 = vor.u32 %v7778, %v7781
        %v7783 = vsel %vm985, %v7774, %v7782
        %v7785 = vshrl.u32 %v7221, 16
        %v7787 = vrot.slane %v7785, 1
        %v7788 = vshll.u32 %v7221, 16
        %v7790 = vrot.slane %v7788, 2
        %v7791 = vor.u32 %v7787, %v7790
        %v7792 = vrot.slane %v7430, 1
        %v7793 = vrot.slane %v7426, 2
        %v7794 = vor.u32 %v7792, %v7793
        %v7795 = vsel %vm985, %v7791, %v7794
        %v7797 = vshrl.u32 %v7429, 16
        %v7799 = vrot.slane %v7797, 1
        %v7800 = vshll.u32 %v7429, 16
        %v7802 = vrot.slane %v7800, 2
        %v7803 = vor.u32 %v7799, %v7802
        %v7805 = vshrl.u32 %v7432, 16
        %v7807 = vrot.slane %v7805, 1
        %v7808 = vshll.u32 %v7432, 16
        %v7810 = vrot.slane %v7808, 2
        %v7811 = vor.u32 %v7807, %v7810
        %v7812 = vsel %vm985, %v7803, %v7811
        %v7814 = vshrl.u32 %v7223, 16
        %v7816 = vrot.slane %v7814, 1
        %v7817 = vshll.u32 %v7223, 16
        %v7819 = vrot.slane %v7817, 2
        %v7820 = vor.u32 %v7816, %v7819
        %v7821 = vrot.slane %v7445, 1
        %v7822 = vrot.slane %v7441, 2
        %v7823 = vor.u32 %v7821, %v7822
        %v7824 = vsel %vm985, %v7820, %v7823
        %v7826 = vshrl.u32 %v7444, 16
        %v7828 = vrot.slane %v7826, 1
        %v7829 = vshll.u32 %v7444, 16
        %v7831 = vrot.slane %v7829, 2
        %v7832 = vor.u32 %v7828, %v7831
        %v7834 = vshrl.u32 %v7447, 16
        %v7836 = vrot.slane %v7834, 1
        %v7837 = vshll.u32 %v7447, 16
        %v7839 = vrot.slane %v7837, 2
        %v7840 = vor.u32 %v7836, %v7839
        %v7841 = vsel %vm985, %v7832, %v7840
        %v7843 = vshrl.u32 %v7225, 16
        %v7845 = vrot.slane %v7843, 1
        %v7846 = vshll.u32 %v7225, 16
        %v7848 = vrot.slane %v7846, 2
        %v7849 = vor.u32 %v7845, %v7848
        %v7850 = vrot.slane %v7460, 1
        %v7851 = vrot.slane %v7456, 2
        %v7852 = vor.u32 %v7850, %v7851
        %v7853 = vsel %vm985, %v7849, %v7852
        %v7855 = vshrl.u32 %v7459, 16
        %v7857 = vrot.slane %v7855, 1
        %v7858 = vshll.u32 %v7459, 16
        %v7860 = vrot.slane %v7858, 2
        %v7861 = vor.u32 %v7857, %v7860
        %v7863 = vshrl.u32 %v7462, 16
        %v7865 = vrot.slane %v7863, 1
        %v7866 = vshll.u32 %v7462, 16
        %v7868 = vrot.slane %v7866, 2
        %v7869 = vor.u32 %v7865, %v7868
        %v7870 = vsel %vm985, %v7861, %v7869
        %v7872 = vshrl.u32 %v7227, 16
        %v7874 = vrot.slane %v7872, 1
        %v7875 = vshll.u32 %v7227, 16
        %v7877 = vrot.slane %v7875, 2
        %v7878 = vor.u32 %v7874, %v7877
        %v7879 = vrot.slane %v7475, 1
        %v7880 = vrot.slane %v7471, 2
        %v7881 = vor.u32 %v7879, %v7880
        %v7882 = vsel %vm985, %v7878, %v7881
        %v7884 = vshrl.u32 %v7474, 16
        %v7886 = vrot.slane %v7884, 1
        %v7887 = vshll.u32 %v7474, 16
        %v7889 = vrot.slane %v7887, 2
        %v7890 = vor.u32 %v7886, %v7889
        %v7892 = vshrl.u32 %v7477, 16
        %v7894 = vrot.slane %v7892, 1
        %v7895 = vshll.u32 %v7477, 16
        %v7897 = vrot.slane %v7895, 2
        %v7898 = vor.u32 %v7894, %v7897
        %v7899 = vsel %vm985, %v7890, %v7898
        %v7901 = vshrl.u32 %v7229, 16
        %v7903 = vrot.slane %v7901, 1
        %v7904 = vshll.u32 %v7229, 16
        %v7906 = vrot.slane %v7904, 2
        %v7907 = vor.u32 %v7903, %v7906
        %v7908 = vrot.slane %v7490, 1
        %v7909 = vrot.slane %v7486, 2
        %v7910 = vor.u32 %v7908, %v7909
        %v7911 = vsel %vm985, %v7907, %v7910
        %v7913 = vshrl.u32 %v7489, 16
        %v7915 = vrot.slane %v7913, 1
        %v7916 = vshll.u32 %v7489, 16
        %v7918 = vrot.slane %v7916, 2
        %v7919 = vor.u32 %v7915, %v7918
        %v7921 = vshrl.u32 %v7492, 16
        %v7923 = vrot.slane %v7921, 1
        %v7924 = vshll.u32 %v7492, 16
        %v7926 = vrot.slane %v7924, 2
        %v7927 = vor.u32 %v7923, %v7926
        %v7928 = vsel %vm985, %v7919, %v7927
        %v7930 = vshrl.u32 %v7231, 16
        %v7932 = vrot.slane %v7930, 1
        %v7933 = vshll.u32 %v7231, 16
        %v7935 = vrot.slane %v7933, 2
        %v7936 = vor.u32 %v7932, %v7935
        %v7937 = vrot.slane %v7505, 1
        %v7938 = vrot.slane %v7501, 2
        %v7939 = vor.u32 %v7937, %v7938
        %v7940 = vsel %vm985, %v7936, %v7939
        %v7942 = vshrl.u32 %v7504, 16
        %v7944 = vrot.slane %v7942, 1
        %v7945 = vshll.u32 %v7504, 16
        %v7947 = vrot.slane %v7945, 2
        %v7948 = vor.u32 %v7944, %v7947
        %v7950 = vshrl.u32 %v7507, 16
        %v7952 = vrot.slane %v7950, 1
        %v7953 = vshll.u32 %v7507, 16
        %v7955 = vrot.slane %v7953, 2
        %v7956 = vor.u32 %v7952, %v7955
        %v7957 = vsel %vm985, %v7948, %v7956
        %v7959 = vshrl.u32 %v7233, 16
        %v7961 = vrot.slane %v7959, 1
        %v7962 = vshll.u32 %v7233, 16
        %v7964 = vrot.slane %v7962, 2
        %v7965 = vor.u32 %v7961, %v7964
        %v7966 = vrot.slane %v7520, 1
        %v7967 = vrot.slane %v7516, 2
        %v7968 = vor.u32 %v7966, %v7967
        %v7969 = vsel %vm985, %v7965, %v7968
        %v7971 = vshrl.u32 %v7519, 16
        %v7973 = vrot.slane %v7971, 1
        %v7974 = vshll.u32 %v7519, 16
        %v7976 = vrot.slane %v7974, 2
        %v7977 = vor.u32 %v7973, %v7976
        %v7979 = vshrl.u32 %v7522, 16
        %v7981 = vrot.slane %v7979, 1
        %v7982 = vshll.u32 %v7522, 16
        %v7984 = vrot.slane %v7982, 2
        %v7985 = vor.u32 %v7981, %v7984
        %v7986 = vsel %vm985, %v7977, %v7985
        %v8019 = vld [vmem:[%s4] sm:$0xf]
        %v8020 = vld [vmem:[%s4 + $0x4] sm:$0xf]
        %v8021 = vld [vmem:[%s4 + $0x8] sm:$0xf]
        %v8022 = vld [vmem:[%s4 + $0xc] sm:$0xf]
        %v8023 = vld [vmem:[%s4 + $0x10] sm:$0xf]
        %v8024 = vld [vmem:[%s4 + $0x14] sm:$0xf]
        %v8025 = vld [vmem:[%s4 + $0x18] sm:$0xf]
        %v8026 = vld [vmem:[%s4 + $0x1c] sm:$0xf]
        %v8027 = vld [vmem:[%s4 + $0x20] sm:$0xf]
        %v8028 = vld [vmem:[%s4 + $0x24] sm:$0xf]
        %v8029 = vld [vmem:[%s4 + $0x28] sm:$0xf]
        %v8030 = vld [vmem:[%s4 + $0x2c] sm:$0xf]
        %v8031 = vld [vmem:[%s4 + $0x30] sm:$0xf]
        %v8032 = vld [vmem:[%s4 + $0x34] sm:$0xf]
        %v8033 = vld [vmem:[%s4 + $0x38] sm:$0xf]
        %v8034 = vld [vmem:[%s4 + $0x3c] sm:$0xf]
        %v8035 = vld [vmem:[%s4 + $0x40] sm:$0xf]
        %v8036 = vld [vmem:[%s4 + $0x44] sm:$0xf]
        %v8037 = vld [vmem:[%s4 + $0x48] sm:$0xf]
        %v8038 = vld [vmem:[%s4 + $0x4c] sm:$0xf]
        %v8039 = vld [vmem:[%s4 + $0x50] sm:$0xf]
        %v8040 = vld [vmem:[%s4 + $0x54] sm:$0xf]
        %v8041 = vld [vmem:[%s4 + $0x58] sm:$0xf]
        %v8042 = vld [vmem:[%s4 + $0x5c] sm:$0xf]
        %v8043 = vld [vmem:[%s4 + $0x60] sm:$0xf]
        %v8044 = vld [vmem:[%s4 + $0x64] sm:$0xf]
        %v8045 = vld [vmem:[%s4 + $0x68] sm:$0xf]
        %v8046 = vld [vmem:[%s4 + $0x6c] sm:$0xf]
        %v8047 = vld [vmem:[%s4 + $0x70] sm:$0xf]
        %v8048 = vld [vmem:[%s4 + $0x74] sm:$0xf]
        %v8049 = vld [vmem:[%s4 + $0x78] sm:$0xf]
        %v8050 = vld [vmem:[%s4 + $0x7c] sm:$0xf]
        %v8051 = vld [vmem:[#allocation2 + $0xc] sm:$0x7]
        %v8052 = vld [vmem:[#allocation2 + $0x20] sm:$0x7]
        %v8053 = vld [vmem:[#allocation2 + $0x34] sm:$0x7]
        %v8054 = vld [vmem:[#allocation2 + $0x48] sm:$0x7]
        %v8055 = vld [vmem:[#allocation2 + $0x5c] sm:$0x7]
        %v8056 = vld [vmem:[#allocation2 + $0x70] sm:$0x7]
        %v8057 = vld [vmem:[#allocation2 + $0x84] sm:$0x7]
        %v8058 = vld [vmem:[#allocation2 + $0x98] sm:$0x7]
        %v8059 = vld [vmem:[#allocation2 + $0xac] sm:$0x7]
        %v8060 = vld [vmem:[#allocation2 + $0xc0] sm:$0x7]
        %v8061 = vld [vmem:[#allocation2 + $0xd4] sm:$0x7]
        %v8062 = vld [vmem:[#allocation2 + $0xe8] sm:$0x7]
        %v8063 = vld [vmem:[#allocation2 + $0xfc] sm:$0x7]
        %v8064 = vld [vmem:[#allocation2 + $0x110] sm:$0x7]
        %v8065 = vld [vmem:[#allocation2 + $0x124] sm:$0x7]
        %v8066 = vld [vmem:[#allocation2 + $0x138] sm:$0x7]
        %v8067 = vld [vmem:[#allocation2 + $0x4] sm:$0x8]
        %v8068 = vld [vmem:[#allocation2 + $0x18] sm:$0x8]
        %v8069 = vld [vmem:[#allocation2 + $0x2c] sm:$0x8]
        %v8070 = vld [vmem:[#allocation2 + $0x40] sm:$0x8]
        %v8071 = vld [vmem:[#allocation2 + $0x54] sm:$0x8]
        %v8072 = vld [vmem:[#allocation2 + $0x68] sm:$0x8]
        %v8073 = vld [vmem:[#allocation2 + $0x7c] sm:$0x8]
        %v8074 = vld [vmem:[#allocation2 + $0x90] sm:$0x8]
        %v8075 = vld [vmem:[#allocation2 + $0xa4] sm:$0x8]
        %v8076 = vld [vmem:[#allocation2 + $0xb8] sm:$0x8]
        %v8077 = vld [vmem:[#allocation2 + $0xcc] sm:$0x8]
        %v8078 = vld [vmem:[#allocation2 + $0xe0] sm:$0x8]
        %v8079 = vld [vmem:[#allocation2 + $0xf4] sm:$0x8]
        %v8080 = vld [vmem:[#allocation2 + $0x108] sm:$0x8]
        %v8081 = vld [vmem:[#allocation2 + $0x11c] sm:$0x8]
        %v8082 = vld [vmem:[#allocation2 + $0x130] sm:$0x8]
        %v8099 = vunpack.c.l.b16 %v8051
        %v8100 = vunpack.c.l.b16 %v8052
        %v8101 = vunpack.c.l.b16 %v8053
        %v8102 = vunpack.c.l.b16 %v8054
        %v8103 = vunpack.c.l.b16 %v8055
        %v8104 = vunpack.c.l.b16 %v8056
        %v8105 = vunpack.c.l.b16 %v8057
        %v8106 = vunpack.c.l.b16 %v8058
        %v8107 = vunpack.c.l.b16 %v8059
        %v8108 = vunpack.c.l.b16 %v8060
        %v8109 = vunpack.c.l.b16 %v8061
        %v8110 = vunpack.c.l.b16 %v8062
        %v8111 = vunpack.c.l.b16 %v8063
        %v8112 = vunpack.c.l.b16 %v8064
        %v8113 = vunpack.c.l.b16 %v8065
        %v8114 = vunpack.c.l.b16 %v8066
        %v8115 = vpack.c.b16 %v8099, %v8099
        %v8116 = vpack.c.b16 %v8100, %v8100
        %v8117 = vpack.c.b16 %v8101, %v8101
        %v8118 = vpack.c.b16 %v8102, %v8102
        %v8119 = vpack.c.b16 %v8103, %v8103
        %v8120 = vpack.c.b16 %v8104, %v8104
        %v8121 = vpack.c.b16 %v8105, %v8105
        %v8122 = vpack.c.b16 %v8106, %v8106
        %v8123 = vpack.c.b16 %v8107, %v8107
        %v8124 = vpack.c.b16 %v8108, %v8108
        %v8125 = vpack.c.b16 %v8109, %v8109
        %v8126 = vpack.c.b16 %v8110, %v8110
        %v8127 = vpack.c.b16 %v8111, %v8111
        %v8128 = vpack.c.b16 %v8112, %v8112
        %v8129 = vpack.c.b16 %v8113, %v8113
        %v8130 = vpack.c.b16 %v8114, %v8114
        %v8147 = vunpack.c.l.b16 %v8067
        %v8148 = vunpack.c.l.b16 %v8068
        %v8149 = vunpack.c.l.b16 %v8069
        %v8150 = vunpack.c.l.b16 %v8070
        %v8151 = vunpack.c.l.b16 %v8071
        %v8152 = vunpack.c.l.b16 %v8072
        %v8153 = vunpack.c.l.b16 %v8073
        %v8154 = vunpack.c.l.b16 %v8074
        %v8155 = vunpack.c.l.b16 %v8075
        %v8156 = vunpack.c.l.b16 %v8076
        %v8157 = vunpack.c.l.b16 %v8077
        %v8158 = vunpack.c.l.b16 %v8078
        %v8159 = vunpack.c.l.b16 %v8079
        %v8160 = vunpack.c.l.b16 %v8080
        %v8161 = vunpack.c.l.b16 %v8081
        %v8162 = vunpack.c.l.b16 %v8082
        %v8163 = vpack.c.b16 %v7156, %v8147
        %v8164 = vpack.c.b16 %v7159, %v8148
        %v8165 = vpack.c.b16 %v7162, %v8149
        %v8166 = vpack.c.b16 %v7165, %v8150
        %v8167 = vpack.c.b16 %v7168, %v8151
        %v8168 = vpack.c.b16 %v7171, %v8152
        %v8169 = vpack.c.b16 %v7174, %v8153
        %v8170 = vpack.c.b16 %v7177, %v8154
        %v8171 = vpack.c.b16 %v7180, %v8155
        %v8172 = vpack.c.b16 %v7183, %v8156
        %v8173 = vpack.c.b16 %v7186, %v8157
        %v8174 = vpack.c.b16 %v7189, %v8158
        %v8175 = vpack.c.b16 %v7192, %v8159
        %v8176 = vpack.c.b16 %v7195, %v8160
        %v8177 = vpack.c.b16 %v7198, %v8161
        %v8178 = vpack.c.b16 %v7201, %v8162
        %v8180 = vshrl.u32 %v8163, 16
        %v8182 = vshll.u32 %v8163, 16
        %v8184 = vrot.slane %v8182, 1
        %v8185 = vor.u32 %v8180, %v8184
        %v8187 = vshll.u32 %v8115, 16
        %v8189 = vrot.slane %v8187, 1
        %v8190 = vsel %vm744, %v8185, %v8189
        %v8191 = vshrl.u32 %v8115, 16
        %v8193 = vor.u32 %v8191, %v8189
        %v8195 = vshrl.u32 %v8164, 16
        %v8197 = vshll.u32 %v8164, 16
        %v8199 = vrot.slane %v8197, 1
        %v8200 = vor.u32 %v8195, %v8199
        %v8202 = vshll.u32 %v8116, 16
        %v8204 = vrot.slane %v8202, 1
        %v8205 = vsel %vm744, %v8200, %v8204
        %v8206 = vshrl.u32 %v8116, 16
        %v8208 = vor.u32 %v8206, %v8204
        %v8210 = vshrl.u32 %v8165, 16
        %v8212 = vshll.u32 %v8165, 16
        %v8214 = vrot.slane %v8212, 1
        %v8215 = vor.u32 %v8210, %v8214
        %v8217 = vshll.u32 %v8117, 16
        %v8219 = vrot.slane %v8217, 1
        %v8220 = vsel %vm744, %v8215, %v8219
        %v8221 = vshrl.u32 %v8117, 16
        %v8223 = vor.u32 %v8221, %v8219
        %v8225 = vshrl.u32 %v8166, 16
        %v8227 = vshll.u32 %v8166, 16
        %v8229 = vrot.slane %v8227, 1
        %v8230 = vor.u32 %v8225, %v8229
        %v8232 = vshll.u32 %v8118, 16
        %v8234 = vrot.slane %v8232, 1
        %v8235 = vsel %vm744, %v8230, %v8234
        %v8236 = vshrl.u32 %v8118, 16
        %v8238 = vor.u32 %v8236, %v8234
        %v8240 = vshrl.u32 %v8167, 16
        %v8242 = vshll.u32 %v8167, 16
        %v8244 = vrot.slane %v8242, 1
        %v8245 = vor.u32 %v8240, %v8244
        %v8247 = vshll.u32 %v8119, 16
        %v8249 = vrot.slane %v8247, 1
        %v8250 = vsel %vm744, %v8245, %v8249
        %v8251 = vshrl.u32 %v8119, 16
        %v8253 = vor.u32 %v8251, %v8249
        %v8255 = vshrl.u32 %v8168, 16
        %v8257 = vshll.u32 %v8168, 16
        %v8259 = vrot.slane %v8257, 1
        %v8260 = vor.u32 %v8255, %v8259
        %v8262 = vshll.u32 %v8120, 16
        %v8264 = vrot.slane %v8262, 1
        %v8265 = vsel %vm744, %v8260, %v8264
        %v8266 = vshrl.u32 %v8120, 16
        %v8268 = vor.u32 %v8266, %v8264
        %v8270 = vshrl.u32 %v8169, 16
        %v8272 = vshll.u32 %v8169, 16
        %v8274 = vrot.slane %v8272, 1
        %v8275 = vor.u32 %v8270, %v8274
        %v8277 = vshll.u32 %v8121, 16
        %v8279 = vrot.slane %v8277, 1
        %v8280 = vsel %vm744, %v8275, %v8279
        %v8281 = vshrl.u32 %v8121, 16
        %v8283 = vor.u32 %v8281, %v8279
        %v8285 = vshrl.u32 %v8170, 16
        %v8287 = vshll.u32 %v8170, 16
        %v8289 = vrot.slane %v8287, 1
        %v8290 = vor.u32 %v8285, %v8289
        %v8292 = vshll.u32 %v8122, 16
        %v8294 = vrot.slane %v8292, 1
        %v8295 = vsel %vm744, %v8290, %v8294
        %v8296 = vshrl.u32 %v8122, 16
        %v8298 = vor.u32 %v8296, %v8294
        %v8300 = vshrl.u32 %v8171, 16
        %v8302 = vshll.u32 %v8171, 16
        %v8304 = vrot.slane %v8302, 1
        %v8305 = vor.u32 %v8300, %v8304
        %v8307 = vshll.u32 %v8123, 16
        %v8309 = vrot.slane %v8307, 1
        %v8310 = vsel %vm744, %v8305, %v8309
        %v8311 = vshrl.u32 %v8123, 16
        %v8313 = vor.u32 %v8311, %v8309
        %v8315 = vshrl.u32 %v8172, 16
        %v8317 = vshll.u32 %v8172, 16
        %v8319 = vrot.slane %v8317, 1
        %v8320 = vor.u32 %v8315, %v8319
        %v8322 = vshll.u32 %v8124, 16
        %v8324 = vrot.slane %v8322, 1
        %v8325 = vsel %vm744, %v8320, %v8324
        %v8326 = vshrl.u32 %v8124, 16
        %v8328 = vor.u32 %v8326, %v8324
        %v8330 = vshrl.u32 %v8173, 16
        %v8332 = vshll.u32 %v8173, 16
        %v8334 = vrot.slane %v8332, 1
        %v8335 = vor.u32 %v8330, %v8334
        %v8337 = vshll.u32 %v8125, 16
        %v8339 = vrot.slane %v8337, 1
        %v8340 = vsel %vm744, %v8335, %v8339
        %v8341 = vshrl.u32 %v8125, 16
        %v8343 = vor.u32 %v8341, %v8339
        %v8345 = vshrl.u32 %v8174, 16
        %v8347 = vshll.u32 %v8174, 16
        %v8349 = vrot.slane %v8347, 1
        %v8350 = vor.u32 %v8345, %v8349
        %v8352 = vshll.u32 %v8126, 16
        %v8354 = vrot.slane %v8352, 1
        %v8355 = vsel %vm744, %v8350, %v8354
        %v8356 = vshrl.u32 %v8126, 16
        %v8358 = vor.u32 %v8356, %v8354
        %v8360 = vshrl.u32 %v8175, 16
        %v8362 = vshll.u32 %v8175, 16
        %v8364 = vrot.slane %v8362, 1
        %v8365 = vor.u32 %v8360, %v8364
        %v8367 = vshll.u32 %v8127, 16
        %v8369 = vrot.slane %v8367, 1
        %v8370 = vsel %vm744, %v8365, %v8369
        %v8371 = vshrl.u32 %v8127, 16
        %v8373 = vor.u32 %v8371, %v8369
        %v8375 = vshrl.u32 %v8176, 16
        %v8377 = vshll.u32 %v8176, 16
        %v8379 = vrot.slane %v8377, 1
        %v8380 = vor.u32 %v8375, %v8379
        %v8382 = vshll.u32 %v8128, 16
        %v8384 = vrot.slane %v8382, 1
        %v8385 = vsel %vm744, %v8380, %v8384
        %v8386 = vshrl.u32 %v8128, 16
        %v8388 = vor.u32 %v8386, %v8384
        %v8390 = vshrl.u32 %v8177, 16
        %v8392 = vshll.u32 %v8177, 16
        %v8394 = vrot.slane %v8392, 1
        %v8395 = vor.u32 %v8390, %v8394
        %v8397 = vshll.u32 %v8129, 16
        %v8399 = vrot.slane %v8397, 1
        %v8400 = vsel %vm744, %v8395, %v8399
        %v8401 = vshrl.u32 %v8129, 16
        %v8403 = vor.u32 %v8401, %v8399
        %v8405 = vshrl.u32 %v8178, 16
        %v8407 = vshll.u32 %v8178, 16
        %v8409 = vrot.slane %v8407, 1
        %v8410 = vor.u32 %v8405, %v8409
        %v8412 = vshll.u32 %v8130, 16
        %v8414 = vrot.slane %v8412, 1
        %v8415 = vsel %vm744, %v8410, %v8414
        %v8416 = vshrl.u32 %v8130, 16
        %v8418 = vor.u32 %v8416, %v8414
        %v8419 = vrot.slane %v7284, 2
        %v8420 = vrot.slane %v7286, 3
        %v8421 = vor.u32 %v8419, %v8420
        %v8422 = vrot.slane %v8191, 2
        %v8423 = vrot.slane %v8187, 3
        %v8424 = vor.u32 %v8422, %v8423
        %v8425 = vsel %vm1882, %v8421, %v8424
        %v8427 = vshrl.u32 %v8190, 16
        %v8429 = vrot.slane %v8427, 2
        %v8430 = vshll.u32 %v8190, 16
        %v8432 = vrot.slane %v8430, 3
        %v8433 = vor.u32 %v8429, %v8432
        %v8435 = vshrl.u32 %v8193, 16
        %v8437 = vrot.slane %v8435, 2
        %v8438 = vshll.u32 %v8193, 16
        %v8440 = vrot.slane %v8438, 3
        %v8441 = vor.u32 %v8437, %v8440
        %v8442 = vsel %vm1882, %v8433, %v8441
        %v8443 = vrot.slane %v7299, 2
        %v8444 = vrot.slane %v7301, 3
        %v8445 = vor.u32 %v8443, %v8444
        %v8446 = vrot.slane %v8206, 2
        %v8447 = vrot.slane %v8202, 3
        %v8448 = vor.u32 %v8446, %v8447
        %v8449 = vsel %vm1882, %v8445, %v8448
        %v8451 = vshrl.u32 %v8205, 16
        %v8453 = vrot.slane %v8451, 2
        %v8454 = vshll.u32 %v8205, 16
        %v8456 = vrot.slane %v8454, 3
        %v8457 = vor.u32 %v8453, %v8456
        %v8459 = vshrl.u32 %v8208, 16
        %v8461 = vrot.slane %v8459, 2
        %v8462 = vshll.u32 %v8208, 16
        %v8464 = vrot.slane %v8462, 3
        %v8465 = vor.u32 %v8461, %v8464
        %v8466 = vsel %vm1882, %v8457, %v8465
        %v8467 = vrot.slane %v7314, 2
        %v8468 = vrot.slane %v7316, 3
        %v8469 = vor.u32 %v8467, %v8468
        %v8470 = vrot.slane %v8221, 2
        %v8471 = vrot.slane %v8217, 3
        %v8472 = vor.u32 %v8470, %v8471
        %v8473 = vsel %vm1882, %v8469, %v8472
        %v8475 = vshrl.u32 %v8220, 16
        %v8477 = vrot.slane %v8475, 2
        %v8478 = vshll.u32 %v8220, 16
        %v8480 = vrot.slane %v8478, 3
        %v8481 = vor.u32 %v8477, %v8480
        %v8483 = vshrl.u32 %v8223, 16
        %v8485 = vrot.slane %v8483, 2
        %v8486 = vshll.u32 %v8223, 16
        %v8488 = vrot.slane %v8486, 3
        %v8489 = vor.u32 %v8485, %v8488
        %v8490 = vsel %vm1882, %v8481, %v8489
        %v8491 = vrot.slane %v7329, 2
        %v8492 = vrot.slane %v7331, 3
        %v8493 = vor.u32 %v8491, %v8492
        %v8494 = vrot.slane %v8236, 2
        %v8495 = vrot.slane %v8232, 3
        %v8496 = vor.u32 %v8494, %v8495
        %v8497 = vsel %vm1882, %v8493, %v8496
        %v8499 = vshrl.u32 %v8235, 16
        %v8501 = vrot.slane %v8499, 2
        %v8502 = vshll.u32 %v8235, 16
        %v8504 = vrot.slane %v8502, 3
        %v8505 = vor.u32 %v8501, %v8504
        %v8507 = vshrl.u32 %v8238, 16
        %v8509 = vrot.slane %v8507, 2
        %v8510 = vshll.u32 %v8238, 16
        %v8512 = vrot.slane %v8510, 3
        %v8513 = vor.u32 %v8509, %v8512
        %v8514 = vsel %vm1882, %v8505, %v8513
        %v8515 = vrot.slane %v7344, 2
        %v8516 = vrot.slane %v7346, 3
        %v8517 = vor.u32 %v8515, %v8516
        %v8518 = vrot.slane %v8251, 2
        %v8519 = vrot.slane %v8247, 3
        %v8520 = vor.u32 %v8518, %v8519
        %v8521 = vsel %vm1882, %v8517, %v8520
        %v8523 = vshrl.u32 %v8250, 16
        %v8525 = vrot.slane %v8523, 2
        %v8526 = vshll.u32 %v8250, 16
        %v8528 = vrot.slane %v8526, 3
        %v8529 = vor.u32 %v8525, %v8528
        %v8531 = vshrl.u32 %v8253, 16
        %v8533 = vrot.slane %v8531, 2
        %v8534 = vshll.u32 %v8253, 16
        %v8536 = vrot.slane %v8534, 3
        %v8537 = vor.u32 %v8533, %v8536
        %v8538 = vsel %vm1882, %v8529, %v8537
        %v8539 = vrot.slane %v7359, 2
        %v8540 = vrot.slane %v7361, 3
        %v8541 = vor.u32 %v8539, %v8540
        %v8542 = vrot.slane %v8266, 2
        %v8543 = vrot.slane %v8262, 3
        %v8544 = vor.u32 %v8542, %v8543
        %v8545 = vsel %vm1882, %v8541, %v8544
        %v8547 = vshrl.u32 %v8265, 16
        %v8549 = vrot.slane %v8547, 2
        %v8550 = vshll.u32 %v8265, 16
        %v8552 = vrot.slane %v8550, 3
        %v8553 = vor.u32 %v8549, %v8552
        %v8555 = vshrl.u32 %v8268, 16
        %v8557 = vrot.slane %v8555, 2
        %v8558 = vshll.u32 %v8268, 16
        %v8560 = vrot.slane %v8558, 3
        %v8561 = vor.u32 %v8557, %v8560
        %v8562 = vsel %vm1882, %v8553, %v8561
        %v8563 = vrot.slane %v7374, 2
        %v8564 = vrot.slane %v7376, 3
        %v8565 = vor.u32 %v8563, %v8564
        %v8566 = vrot.slane %v8281, 2
        %v8567 = vrot.slane %v8277, 3
        %v8568 = vor.u32 %v8566, %v8567
        %v8569 = vsel %vm1882, %v8565, %v8568
        %v8571 = vshrl.u32 %v8280, 16
        %v8573 = vrot.slane %v8571, 2
        %v8574 = vshll.u32 %v8280, 16
        %v8576 = vrot.slane %v8574, 3
        %v8577 = vor.u32 %v8573, %v8576
        %v8579 = vshrl.u32 %v8283, 16
        %v8581 = vrot.slane %v8579, 2
        %v8582 = vshll.u32 %v8283, 16
        %v8584 = vrot.slane %v8582, 3
        %v8585 = vor.u32 %v8581, %v8584
        %v8586 = vsel %vm1882, %v8577, %v8585
        %v8587 = vrot.slane %v7389, 2
        %v8588 = vrot.slane %v7391, 3
        %v8589 = vor.u32 %v8587, %v8588
        %v8590 = vrot.slane %v8296, 2
        %v8591 = vrot.slane %v8292, 3
        %v8592 = vor.u32 %v8590, %v8591
        %v8593 = vsel %vm1882, %v8589, %v8592
        %v8595 = vshrl.u32 %v8295, 16
        %v8597 = vrot.slane %v8595, 2
        %v8598 = vshll.u32 %v8295, 16
        %v8600 = vrot.slane %v8598, 3
        %v8601 = vor.u32 %v8597, %v8600
        %v8603 = vshrl.u32 %v8298, 16
        %v8605 = vrot.slane %v8603, 2
        %v8606 = vshll.u32 %v8298, 16
        %v8608 = vrot.slane %v8606, 3
        %v8609 = vor.u32 %v8605, %v8608
        %v8610 = vsel %vm1882, %v8601, %v8609
        %v8611 = vrot.slane %v7404, 2
        %v8612 = vrot.slane %v7406, 3
        %v8613 = vor.u32 %v8611, %v8612
        %v8614 = vrot.slane %v8311, 2
        %v8615 = vrot.slane %v8307, 3
        %v8616 = vor.u32 %v8614, %v8615
        %v8617 = vsel %vm1882, %v8613, %v8616
        %v8619 = vshrl.u32 %v8310, 16
        %v8621 = vrot.slane %v8619, 2
        %v8622 = vshll.u32 %v8310, 16
        %v8624 = vrot.slane %v8622, 3
        %v8625 = vor.u32 %v8621, %v8624
        %v8627 = vshrl.u32 %v8313, 16
        %v8629 = vrot.slane %v8627, 2
        %v8630 = vshll.u32 %v8313, 16
        %v8632 = vrot.slane %v8630, 3
        %v8633 = vor.u32 %v8629, %v8632
        %v8634 = vsel %vm1882, %v8625, %v8633
        %v8635 = vrot.slane %v7419, 2
        %v8636 = vrot.slane %v7421, 3
        %v8637 = vor.u32 %v8635, %v8636
        %v8638 = vrot.slane %v8326, 2
        %v8639 = vrot.slane %v8322, 3
        %v8640 = vor.u32 %v8638, %v8639
        %v8641 = vsel %vm1882, %v8637, %v8640
        %v8643 = vshrl.u32 %v8325, 16
        %v8645 = vrot.slane %v8643, 2
        %v8646 = vshll.u32 %v8325, 16
        %v8648 = vrot.slane %v8646, 3
        %v8649 = vor.u32 %v8645, %v8648
        %v8651 = vshrl.u32 %v8328, 16
        %v8653 = vrot.slane %v8651, 2
        %v8654 = vshll.u32 %v8328, 16
        %v8656 = vrot.slane %v8654, 3
        %v8657 = vor.u32 %v8653, %v8656
        %v8658 = vsel %vm1882, %v8649, %v8657
        %v8659 = vrot.slane %v7434, 2
        %v8660 = vrot.slane %v7436, 3
        %v8661 = vor.u32 %v8659, %v8660
        %v8662 = vrot.slane %v8341, 2
        %v8663 = vrot.slane %v8337, 3
        %v8664 = vor.u32 %v8662, %v8663
        %v8665 = vsel %vm1882, %v8661, %v8664
        %v8667 = vshrl.u32 %v8340, 16
        %v8669 = vrot.slane %v8667, 2
        %v8670 = vshll.u32 %v8340, 16
        %v8672 = vrot.slane %v8670, 3
        %v8673 = vor.u32 %v8669, %v8672
        %v8675 = vshrl.u32 %v8343, 16
        %v8677 = vrot.slane %v8675, 2
        %v8678 = vshll.u32 %v8343, 16
        %v8680 = vrot.slane %v8678, 3
        %v8681 = vor.u32 %v8677, %v8680
        %v8682 = vsel %vm1882, %v8673, %v8681
        %v8683 = vrot.slane %v7449, 2
        %v8684 = vrot.slane %v7451, 3
        %v8685 = vor.u32 %v8683, %v8684
        %v8686 = vrot.slane %v8356, 2
        %v8687 = vrot.slane %v8352, 3
        %v8688 = vor.u32 %v8686, %v8687
        %v8689 = vsel %vm1882, %v8685, %v8688
        %v8691 = vshrl.u32 %v8355, 16
        %v8693 = vrot.slane %v8691, 2
        %v8694 = vshll.u32 %v8355, 16
        %v8696 = vrot.slane %v8694, 3
        %v8697 = vor.u32 %v8693, %v8696
        %v8699 = vshrl.u32 %v8358, 16
        %v8701 = vrot.slane %v8699, 2
        %v8702 = vshll.u32 %v8358, 16
        %v8704 = vrot.slane %v8702, 3
        %v8705 = vor.u32 %v8701, %v8704
        %v8706 = vsel %vm1882, %v8697, %v8705
        %v8707 = vrot.slane %v7464, 2
        %v8708 = vrot.slane %v7466, 3
        %v8709 = vor.u32 %v8707, %v8708
        %v8710 = vrot.slane %v8371, 2
        %v8711 = vrot.slane %v8367, 3
        %v8712 = vor.u32 %v8710, %v8711
        %v8713 = vsel %vm1882, %v8709, %v8712
        %v8715 = vshrl.u32 %v8370, 16
        %v8717 = vrot.slane %v8715, 2
        %v8718 = vshll.u32 %v8370, 16
        %v8720 = vrot.slane %v8718, 3
        %v8721 = vor.u32 %v8717, %v8720
        %v8723 = vshrl.u32 %v8373, 16
        %v8725 = vrot.slane %v8723, 2
        %v8726 = vshll.u32 %v8373, 16
        %v8728 = vrot.slane %v8726, 3
        %v8729 = vor.u32 %v8725, %v8728
        %v8730 = vsel %vm1882, %v8721, %v8729
        %v8731 = vrot.slane %v7479, 2
        %v8732 = vrot.slane %v7481, 3
        %v8733 = vor.u32 %v8731, %v8732
        %v8734 = vrot.slane %v8386, 2
        %v8735 = vrot.slane %v8382, 3
        %v8736 = vor.u32 %v8734, %v8735
        %v8737 = vsel %vm1882, %v8733, %v8736
        %v8739 = vshrl.u32 %v8385, 16
        %v8741 = vrot.slane %v8739, 2
        %v8742 = vshll.u32 %v8385, 16
        %v8744 = vrot.slane %v8742, 3
        %v8745 = vor.u32 %v8741, %v8744
        %v8747 = vshrl.u32 %v8388, 16
        %v8749 = vrot.slane %v8747, 2
        %v8750 = vshll.u32 %v8388, 16
        %v8752 = vrot.slane %v8750, 3
        %v8753 = vor.u32 %v8749, %v8752
        %v8754 = vsel %vm1882, %v8745, %v8753
        %v8755 = vrot.slane %v7494, 2
        %v8756 = vrot.slane %v7496, 3
        %v8757 = vor.u32 %v8755, %v8756
        %v8758 = vrot.slane %v8401, 2
        %v8759 = vrot.slane %v8397, 3
        %v8760 = vor.u32 %v8758, %v8759
        %v8761 = vsel %vm1882, %v8757, %v8760
        %v8763 = vshrl.u32 %v8400, 16
        %v8765 = vrot.slane %v8763, 2
        %v8766 = vshll.u32 %v8400, 16
        %v8768 = vrot.slane %v8766, 3
        %v8769 = vor.u32 %v8765, %v8768
        %v8771 = vshrl.u32 %v8403, 16
        %v8773 = vrot.slane %v8771, 2
        %v8774 = vshll.u32 %v8403, 16
        %v8776 = vrot.slane %v8774, 3
        %v8777 = vor.u32 %v8773, %v8776
        %v8778 = vsel %vm1882, %v8769, %v8777
        %v8779 = vrot.slane %v7509, 2
        %v8780 = vrot.slane %v7511, 3
        %v8781 = vor.u32 %v8779, %v8780
        %v8782 = vrot.slane %v8416, 2
        %v8783 = vrot.slane %v8412, 3
        %v8784 = vor.u32 %v8782, %v8783
        %v8785 = vsel %vm1882, %v8781, %v8784
        %v8787 = vshrl.u32 %v8415, 16
        %v8789 = vrot.slane %v8787, 2
        %v8790 = vshll.u32 %v8415, 16
        %v8792 = vrot.slane %v8790, 3
        %v8793 = vor.u32 %v8789, %v8792
        %v8795 = vshrl.u32 %v8418, 16
        %v8797 = vrot.slane %v8795, 2
        %v8798 = vshll.u32 %v8418, 16
        %v8800 = vrot.slane %v8798, 3
        %v8801 = vor.u32 %v8797, %v8800
        %v8802 = vsel %vm1882, %v8793, %v8801
        %v8835 = vld [vmem:[%s4 + $0x80] sm:$0xf]
        %v8836 = vld [vmem:[%s4 + $0x84] sm:$0xf]
        %v8837 = vld [vmem:[%s4 + $0x88] sm:$0xf]
        %v8838 = vld [vmem:[%s4 + $0x8c] sm:$0xf]
        %v8839 = vld [vmem:[%s4 + $0x90] sm:$0xf]
        %v8840 = vld [vmem:[%s4 + $0x94] sm:$0xf]
        %v8841 = vld [vmem:[%s4 + $0x98] sm:$0xf]
        %v8842 = vld [vmem:[%s4 + $0x9c] sm:$0xf]
        %v8843 = vld [vmem:[%s4 + $0xa0] sm:$0xf]
        %v8844 = vld [vmem:[%s4 + $0xa4] sm:$0xf]
        %v8845 = vld [vmem:[%s4 + $0xa8] sm:$0xf]
        %v8846 = vld [vmem:[%s4 + $0xac] sm:$0xf]
        %v8847 = vld [vmem:[%s4 + $0xb0] sm:$0xf]
        %v8848 = vld [vmem:[%s4 + $0xb4] sm:$0xf]
        %v8849 = vld [vmem:[%s4 + $0xb8] sm:$0xf]
        %v8850 = vld [vmem:[%s4 + $0xbc] sm:$0xf]
        %v8851 = vld [vmem:[%s4 + $0xc0] sm:$0xf]
        %v8852 = vld [vmem:[%s4 + $0xc4] sm:$0xf]
        %v8853 = vld [vmem:[%s4 + $0xc8] sm:$0xf]
        %v8854 = vld [vmem:[%s4 + $0xcc] sm:$0xf]
        %v8855 = vld [vmem:[%s4 + $0xd0] sm:$0xf]
        %v8856 = vld [vmem:[%s4 + $0xd4] sm:$0xf]
        %v8857 = vld [vmem:[%s4 + $0xd8] sm:$0xf]
        %v8858 = vld [vmem:[%s4 + $0xdc] sm:$0xf]
        %v8859 = vld [vmem:[%s4 + $0xe0] sm:$0xf]
        %v8860 = vld [vmem:[%s4 + $0xe4] sm:$0xf]
        %v8861 = vld [vmem:[%s4 + $0xe8] sm:$0xf]
        %v8862 = vld [vmem:[%s4 + $0xec] sm:$0xf]
        %v8863 = vld [vmem:[%s4 + $0xf0] sm:$0xf]
        %v8864 = vld [vmem:[%s4 + $0xf4] sm:$0xf]
        %v8865 = vld [vmem:[%s4 + $0xf8] sm:$0xf]
        %v8866 = vld [vmem:[%s4 + $0xfc] sm:$0xf]
        %v8899 = vunpack.c.l.b16 %v8835
        %v8900 = vunpack.c.l.b16 %v8836
        %v8901 = vunpack.c.l.b16 %v8837
        %v8902 = vunpack.c.l.b16 %v8838
        %v8903 = vunpack.c.l.b16 %v8839
        %v8904 = vunpack.c.l.b16 %v8840
        %v8905 = vunpack.c.l.b16 %v8841
        %v8906 = vunpack.c.l.b16 %v8842
        %v8907 = vunpack.c.l.b16 %v8843
        %v8908 = vunpack.c.l.b16 %v8844
        %v8909 = vunpack.c.l.b16 %v8845
        %v8910 = vunpack.c.l.b16 %v8846
        %v8911 = vunpack.c.l.b16 %v8847
        %v8912 = vunpack.c.l.b16 %v8848
        %v8913 = vunpack.c.l.b16 %v8849
        %v8914 = vunpack.c.l.b16 %v8850
        %v8915 = vunpack.c.l.b16 %v8851
        %v8916 = vunpack.c.l.b16 %v8852
        %v8917 = vunpack.c.l.b16 %v8853
        %v8918 = vunpack.c.l.b16 %v8854
        %v8919 = vunpack.c.l.b16 %v8855
        %v8920 = vunpack.c.l.b16 %v8856
        %v8921 = vunpack.c.l.b16 %v8857
        %v8922 = vunpack.c.l.b16 %v8858
        %v8923 = vunpack.c.l.b16 %v8859
        %v8924 = vunpack.c.l.b16 %v8860
        %v8925 = vunpack.c.l.b16 %v8861
        %v8926 = vunpack.c.l.b16 %v8862
        %v8927 = vunpack.c.l.b16 %v8863
        %v8928 = vunpack.c.l.b16 %v8864
        %v8929 = vunpack.c.l.b16 %v8865
        %v8930 = vunpack.c.l.b16 %v8866
        %v8931 = vpack.c.b16 %v8900, %v8899
        %v8932 = vpack.c.b16 %v8902, %v8901
        %v8933 = vpack.c.b16 %v8904, %v8903
        %v8934 = vpack.c.b16 %v8906, %v8905
        %v8935 = vpack.c.b16 %v8908, %v8907
        %v8936 = vpack.c.b16 %v8910, %v8909
        %v8937 = vpack.c.b16 %v8912, %v8911
        %v8938 = vpack.c.b16 %v8914, %v8913
        %v8939 = vpack.c.b16 %v8916, %v8915
        %v8940 = vpack.c.b16 %v8918, %v8917
        %v8941 = vpack.c.b16 %v8920, %v8919
        %v8942 = vpack.c.b16 %v8922, %v8921
        %v8943 = vpack.c.b16 %v8924, %v8923
        %v8944 = vpack.c.b16 %v8926, %v8925
        %v8945 = vpack.c.b16 %v8928, %v8927
        %v8946 = vpack.c.b16 %v8930, %v8929
        %8963 = vmatprep.subr.bf16.mxu0 0
        %8964 = vmatpush1.bf16.msra.mxu0 %v8938
        %8965 = vmatprep.subr.bf16.mxu0 0
        %8966 = vmatpush1.bf16.msra.mxu0 %v8937
        %8967 = vmatprep.subr.bf16.mxu0 0
        %8968 = vmatpush1.bf16.msra.mxu0 %v8936
        %8969 = vmatprep.subr.bf16.mxu0 0
        %8970 = vmatpush1.bf16.msra.mxu0 %v8935
        %8971 = vmatprep.subr.bf16.mxu0 0
        %8972 = vmatpush1.bf16.msra.mxu0 %v8934
        %8973 = vmatprep.subr.bf16.mxu0 0
        %8974 = vmatpush1.bf16.msra.mxu0 %v8933
        %8975 = vmatprep.subr.bf16.mxu0 0
        %8976 = vmatpush1.bf16.msra.mxu0 %v8932
        %8977 = vmatprep.subr.bf16.mxu0 0
        %8978 = vmatpush1.bf16.msra.mxu0 %v8931
        %8979 = vmatprep.subr.bf16.mxu0 0
        %8980 = vmatpush2.bf16.msra.mxu0 %v8946
        %8981 = vmatprep.subr.bf16.mxu0 0
        %8982 = vmatpush2.bf16.msra.mxu0 %v8945
        %8983 = vmatprep.subr.bf16.mxu0 0
        %8984 = vmatpush2.bf16.msra.mxu0 %v8944
        %8985 = vmatprep.subr.bf16.mxu0 0
        %8986 = vmatpush2.bf16.msra.mxu0 %v8943
        %8987 = vmatprep.subr.bf16.mxu0 0
        %8988 = vmatpush2.bf16.msra.mxu0 %v8942
        %8989 = vmatprep.subr.bf16.mxu0 0
        %8990 = vmatpush2.bf16.msra.mxu0 %v8941
        %8991 = vmatprep.subr.bf16.mxu0 0
        %8992 = vmatpush2.bf16.msra.mxu0 %v8940
        %8993 = vmatprep.subr.bf16.mxu0 0
        %8994 = vmatpush2.bf16.msra.mxu0 %v8939
        %8995 = vmatprep.mubr.bf16.mxu0 %v8442
        %8996 = vmatmul.mubr.bf16.gmra.mxu0 %v8425
        %v8997 = vpop.f32.mrf.mxu0
        %v8998 = vadd.f32 0.0, %v8997
        %v8999 = vpop.f32.mrf.mxu0
        %v9000 = vpop.f32.mrf.mxu0
        %v9001 = vadd.f32 0.0, %v9000
        %v9002 = vpop.f32.mrf.mxu0
        %9003 = vmatprep.mubr.bf16.mxu0 %v8466
        %9004 = vmatmul.mubr.bf16.gmra.mxu0 %v8449
        %v9005 = vpop.f32.mrf.mxu0
        %v9006 = vadd.f32 0.0, %v9005
        %v9007 = vpop.f32.mrf.mxu0
        %v9008 = vpop.f32.mrf.mxu0
        %v9009 = vadd.f32 0.0, %v9008
        %v9010 = vpop.f32.mrf.mxu0
        %9011 = vmatprep.mubr.bf16.mxu0 %v8490
        %9012 = vmatmul.mubr.bf16.gmra.mxu0 %v8473
        %v9013 = vpop.f32.mrf.mxu0
        %v9014 = vadd.f32 0.0, %v9013
        %v9015 = vpop.f32.mrf.mxu0
        %v9016 = vpop.f32.mrf.mxu0
        %v9017 = vadd.f32 0.0, %v9016
        %v9018 = vpop.f32.mrf.mxu0
        %9019 = vmatprep.mubr.bf16.mxu0 %v8514
        %9020 = vmatmul.mubr.bf16.gmra.mxu0 %v8497
        %v9021 = vpop.f32.mrf.mxu0
        %v9022 = vadd.f32 0.0, %v9021
        %v9023 = vpop.f32.mrf.mxu0
        %v9024 = vpop.f32.mrf.mxu0
        %v9025 = vadd.f32 0.0, %v9024
        %v9026 = vpop.f32.mrf.mxu0
        %9027 = vmatprep.mubr.bf16.mxu0 %v8538
        %9028 = vmatmul.mubr.bf16.gmra.mxu0 %v8521
        %v9029 = vpop.f32.mrf.mxu0
        %v9030 = vadd.f32 0.0, %v9029
        %v9031 = vpop.f32.mrf.mxu0
        %v9032 = vpop.f32.mrf.mxu0
        %v9033 = vadd.f32 0.0, %v9032
        %v9034 = vpop.f32.mrf.mxu0
        %9035 = vmatprep.mubr.bf16.mxu0 %v8562
        %9036 = vmatmul.mubr.bf16.gmra.mxu0 %v8545
        %v9037 = vpop.f32.mrf.mxu0
        %v9038 = vadd.f32 0.0, %v9037
        %v9039 = vpop.f32.mrf.mxu0
        %v9040 = vpop.f32.mrf.mxu0
        %v9041 = vadd.f32 0.0, %v9040
        %v9042 = vpop.f32.mrf.mxu0
        %9043 = vmatprep.mubr.bf16.mxu0 %v8586
        %9044 = vmatmul.mubr.bf16.gmra.mxu0 %v8569
        %v9045 = vpop.f32.mrf.mxu0
        %v9046 = vadd.f32 0.0, %v9045
        %v9047 = vpop.f32.mrf.mxu0
        %v9048 = vpop.f32.mrf.mxu0
        %v9049 = vadd.f32 0.0, %v9048
        %v9050 = vpop.f32.mrf.mxu0
        %9051 = vmatprep.mubr.bf16.mxu0 %v8610
        %9052 = vmatmul.mubr.bf16.gmra.mxu0 %v8593
        %v9053 = vpop.f32.mrf.mxu0
        %v9054 = vadd.f32 0.0, %v9053
        %v9055 = vpop.f32.mrf.mxu0
        %v9056 = vpop.f32.mrf.mxu0
        %v9057 = vadd.f32 0.0, %v9056
        %v9058 = vpop.f32.mrf.mxu0
        %9059 = vmatprep.mubr.bf16.mxu0 %v8634
        %9060 = vmatmul.mubr.bf16.gmra.mxu0 %v8617
        %v9061 = vpop.f32.mrf.mxu0
        %v9062 = vadd.f32 0.0, %v9061
        %v9063 = vpop.f32.mrf.mxu0
        %v9064 = vpop.f32.mrf.mxu0
        %v9065 = vadd.f32 0.0, %v9064
        %v9066 = vpop.f32.mrf.mxu0
        %9067 = vmatprep.mubr.bf16.mxu0 %v8658
        %9068 = vmatmul.mubr.bf16.gmra.mxu0 %v8641
        %v9069 = vpop.f32.mrf.mxu0
        %v9070 = vadd.f32 0.0, %v9069
        %v9071 = vpop.f32.mrf.mxu0
        %v9072 = vpop.f32.mrf.mxu0
        %v9073 = vadd.f32 0.0, %v9072
        %v9074 = vpop.f32.mrf.mxu0
        %9075 = vmatprep.mubr.bf16.mxu0 %v8682
        %9076 = vmatmul.mubr.bf16.gmra.mxu0 %v8665
        %v9077 = vpop.f32.mrf.mxu0
        %v9078 = vadd.f32 0.0, %v9077
        %v9079 = vpop.f32.mrf.mxu0
        %v9080 = vpop.f32.mrf.mxu0
        %v9081 = vadd.f32 0.0, %v9080
        %v9082 = vpop.f32.mrf.mxu0
        %9083 = vmatprep.mubr.bf16.mxu0 %v8706
        %9084 = vmatmul.mubr.bf16.gmra.mxu0 %v8689
        %v9085 = vpop.f32.mrf.mxu0
        %v9086 = vadd.f32 0.0, %v9085
        %v9087 = vpop.f32.mrf.mxu0
        %v9088 = vpop.f32.mrf.mxu0
        %v9089 = vadd.f32 0.0, %v9088
        %v9090 = vpop.f32.mrf.mxu0
        %9091 = vmatprep.mubr.bf16.mxu0 %v8730
        %9092 = vmatmul.mubr.bf16.gmra.mxu0 %v8713
        %v9093 = vpop.f32.mrf.mxu0
        %v9094 = vadd.f32 0.0, %v9093
        %v9095 = vpop.f32.mrf.mxu0
        %v9096 = vpop.f32.mrf.mxu0
        %v9097 = vadd.f32 0.0, %v9096
        %v9098 = vpop.f32.mrf.mxu0
        %9099 = vmatprep.mubr.bf16.mxu0 %v8754
        %9100 = vmatmul.mubr.bf16.gmra.mxu0 %v8737
        %v9101 = vpop.f32.mrf.mxu0
        %v9102 = vadd.f32 0.0, %v9101
        %v9103 = vpop.f32.mrf.mxu0
        %v9104 = vpop.f32.mrf.mxu0
        %v9105 = vadd.f32 0.0, %v9104
        %v9106 = vpop.f32.mrf.mxu0
        %9107 = vmatprep.mubr.bf16.mxu0 %v8778
        %9108 = vmatmul.mubr.bf16.gmra.mxu0 %v8761
        %v9109 = vpop.f32.mrf.mxu0
        %v9110 = vadd.f32 0.0, %v9109
        %v9111 = vpop.f32.mrf.mxu0
        %v9112 = vpop.f32.mrf.mxu0
        %v9113 = vadd.f32 0.0, %v9112
        %v9114 = vpop.f32.mrf.mxu0
        %9115 = vmatprep.mubr.bf16.mxu0 %v8802
        %9116 = vmatmul.mubr.bf16.gmra.mxu0 %v8785
        %v9117 = vpop.f32.mrf.mxu0
        %v9118 = vadd.f32 0.0, %v9117
        %v9119 = vpop.f32.mrf.mxu0
        %v9120 = vpop.f32.mrf.mxu0
        %v9121 = vadd.f32 0.0, %v9120
        %v9122 = vpop.f32.mrf.mxu0
        %9123 = vdwg.mxu0
        %v9156 = vunpack.c.l.b16 %v8019
        %v9157 = vunpack.c.l.b16 %v8020
        %v9158 = vunpack.c.l.b16 %v8021
        %v9159 = vunpack.c.l.b16 %v8022
        %v9160 = vunpack.c.l.b16 %v8023
        %v9161 = vunpack.c.l.b16 %v8024
        %v9162 = vunpack.c.l.b16 %v8025
        %v9163 = vunpack.c.l.b16 %v8026
        %v9164 = vunpack.c.l.b16 %v8027
        %v9165 = vunpack.c.l.b16 %v8028
        %v9166 = vunpack.c.l.b16 %v8029
        %v9167 = vunpack.c.l.b16 %v8030
        %v9168 = vunpack.c.l.b16 %v8031
        %v9169 = vunpack.c.l.b16 %v8032
        %v9170 = vunpack.c.l.b16 %v8033
        %v9171 = vunpack.c.l.b16 %v8034
        %v9172 = vunpack.c.l.b16 %v8035
        %v9173 = vunpack.c.l.b16 %v8036
        %v9174 = vunpack.c.l.b16 %v8037
        %v9175 = vunpack.c.l.b16 %v8038
        %v9176 = vunpack.c.l.b16 %v8039
        %v9177 = vunpack.c.l.b16 %v8040
        %v9178 = vunpack.c.l.b16 %v8041
        %v9179 = vunpack.c.l.b16 %v8042
        %v9180 = vunpack.c.l.b16 %v8043
        %v9181 = vunpack.c.l.b16 %v8044
        %v9182 = vunpack.c.l.b16 %v8045
        %v9183 = vunpack.c.l.b16 %v8046
        %v9184 = vunpack.c.l.b16 %v8047
        %v9185 = vunpack.c.l.b16 %v8048
        %v9186 = vunpack.c.l.b16 %v8049
        %v9187 = vunpack.c.l.b16 %v8050
        %v9188 = vpack.c.b16 %v9157, %v9156
        %v9189 = vpack.c.b16 %v9159, %v9158
        %v9190 = vpack.c.b16 %v9161, %v9160
        %v9191 = vpack.c.b16 %v9163, %v9162
        %v9192 = vpack.c.b16 %v9165, %v9164
        %v9193 = vpack.c.b16 %v9167, %v9166
        %v9194 = vpack.c.b16 %v9169, %v9168
        %v9195 = vpack.c.b16 %v9171, %v9170
        %v9196 = vpack.c.b16 %v9173, %v9172
        %v9197 = vpack.c.b16 %v9175, %v9174
        %v9198 = vpack.c.b16 %v9177, %v9176
        %v9199 = vpack.c.b16 %v9179, %v9178
        %v9200 = vpack.c.b16 %v9181, %v9180
        %v9201 = vpack.c.b16 %v9183, %v9182
        %v9202 = vpack.c.b16 %v9185, %v9184
        %v9203 = vpack.c.b16 %v9187, %v9186
        %9220 = vmatprep.subr.bf16.mxu0 0
        %9221 = vmatpush1.bf16.msra.mxu0 %v9195
        %9222 = vmatprep.subr.bf16.mxu0 0
        %9223 = vmatpush1.bf16.msra.mxu0 %v9194
        %9224 = vmatprep.subr.bf16.mxu0 0
        %9225 = vmatpush1.bf16.msra.mxu0 %v9193
        %9226 = vmatprep.subr.bf16.mxu0 0
        %9227 = vmatpush1.bf16.msra.mxu0 %v9192
        %9228 = vmatprep.subr.bf16.mxu0 0
        %9229 = vmatpush1.bf16.msra.mxu0 %v9191
        %9230 = vmatprep.subr.bf16.mxu0 0
        %9231 = vmatpush1.bf16.msra.mxu0 %v9190
        %9232 = vmatprep.subr.bf16.mxu0 0
        %9233 = vmatpush1.bf16.msra.mxu0 %v9189
        %9234 = vmatprep.subr.bf16.mxu0 0
        %9235 = vmatpush1.bf16.msra.mxu0 %v9188
        %9236 = vmatprep.subr.bf16.mxu0 0
        %9237 = vmatpush2.bf16.msra.mxu0 %v9203
        %9238 = vmatprep.subr.bf16.mxu0 0
        %9239 = vmatpush2.bf16.msra.mxu0 %v9202
        %9240 = vmatprep.subr.bf16.mxu0 0
        %9241 = vmatpush2.bf16.msra.mxu0 %v9201
        %9242 = vmatprep.subr.bf16.mxu0 0
        %9243 = vmatpush2.bf16.msra.mxu0 %v9200
        %9244 = vmatprep.subr.bf16.mxu0 0
        %9245 = vmatpush2.bf16.msra.mxu0 %v9199
        %9246 = vmatprep.subr.bf16.mxu0 0
        %9247 = vmatpush2.bf16.msra.mxu0 %v9198
        %9248 = vmatprep.subr.bf16.mxu0 0
        %9249 = vmatpush2.bf16.msra.mxu0 %v9197
        %9250 = vmatprep.subr.bf16.mxu0 0
        %9251 = vmatpush2.bf16.msra.mxu0 %v9196
        %9252 = vmatprep.mubr.bf16.mxu0 %v7551
        %9253 = vmatmul.mubr.bf16.gmra.mxu0 %v7534
        %v9254 = vpop.f32.mrf.mxu0
        %v9255 = vadd.f32 %v8998, %v9254
        %v9256 = vpop.f32.mrf.mxu0
        %v9257 = vpop.f32.mrf.mxu0
        %v9258 = vadd.f32 %v9001, %v9257
        %v9259 = vpop.f32.mrf.mxu0
        %9260 = vmatprep.mubr.bf16.mxu0 %v7580
        %9261 = vmatmul.mubr.bf16.gmra.mxu0 %v7563
        %v9262 = vpop.f32.mrf.mxu0
        %v9263 = vadd.f32 %v9006, %v9262
        %v9264 = vpop.f32.mrf.mxu0
        %v9265 = vpop.f32.mrf.mxu0
        %v9266 = vadd.f32 %v9009, %v9265
        %v9267 = vpop.f32.mrf.mxu0
        %9268 = vmatprep.mubr.bf16.mxu0 %v7609
        %9269 = vmatmul.mubr.bf16.gmra.mxu0 %v7592
        %v9270 = vpop.f32.mrf.mxu0
        %v9271 = vadd.f32 %v9014, %v9270
        %v9272 = vpop.f32.mrf.mxu0
        %v9273 = vpop.f32.mrf.mxu0
        %v9274 = vadd.f32 %v9017, %v9273
        %v9275 = vpop.f32.mrf.mxu0
        %9276 = vmatprep.mubr.bf16.mxu0 %v7638
        %9277 = vmatmul.mubr.bf16.gmra.mxu0 %v7621
        %v9278 = vpop.f32.mrf.mxu0
        %v9279 = vadd.f32 %v9022, %v9278
        %v9280 = vpop.f32.mrf.mxu0
        %v9281 = vpop.f32.mrf.mxu0
        %v9282 = vadd.f32 %v9025, %v9281
        %v9283 = vpop.f32.mrf.mxu0
        %9284 = vmatprep.mubr.bf16.mxu0 %v7667
        %9285 = vmatmul.mubr.bf16.gmra.mxu0 %v7650
        %v9286 = vpop.f32.mrf.mxu0
        %v9287 = vadd.f32 %v9030, %v9286
        %v9288 = vpop.f32.mrf.mxu0
        %v9289 = vpop.f32.mrf.mxu0
        %v9290 = vadd.f32 %v9033, %v9289
        %v9291 = vpop.f32.mrf.mxu0
        %9292 = vmatprep.mubr.bf16.mxu0 %v7696
        %9293 = vmatmul.mubr.bf16.gmra.mxu0 %v7679
        %v9294 = vpop.f32.mrf.mxu0
        %v9295 = vadd.f32 %v9038, %v9294
        %v9296 = vpop.f32.mrf.mxu0
        %v9297 = vpop.f32.mrf.mxu0
        %v9298 = vadd.f32 %v9041, %v9297
        %v9299 = vpop.f32.mrf.mxu0
        %9300 = vmatprep.mubr.bf16.mxu0 %v7725
        %9301 = vmatmul.mubr.bf16.gmra.mxu0 %v7708
        %v9302 = vpop.f32.mrf.mxu0
        %v9303 = vadd.f32 %v9046, %v9302
        %v9304 = vpop.f32.mrf.mxu0
        %v9305 = vpop.f32.mrf.mxu0
        %v9306 = vadd.f32 %v9049, %v9305
        %v9307 = vpop.f32.mrf.mxu0
        %9308 = vmatprep.mubr.bf16.mxu0 %v7754
        %9309 = vmatmul.mubr.bf16.gmra.mxu0 %v7737
        %v9310 = vpop.f32.mrf.mxu0
        %v9311 = vadd.f32 %v9054, %v9310
        %v9312 = vpop.f32.mrf.mxu0
        %v9313 = vpop.f32.mrf.mxu0
        %v9314 = vadd.f32 %v9057, %v9313
        %v9315 = vpop.f32.mrf.mxu0
        %9316 = vmatprep.mubr.bf16.mxu0 %v7783
        %9317 = vmatmul.mubr.bf16.gmra.mxu0 %v7766
        %v9318 = vpop.f32.mrf.mxu0
        %v9319 = vadd.f32 %v9062, %v9318
        %v9320 = vpop.f32.mrf.mxu0
        %v9321 = vpop.f32.mrf.mxu0
        %v9322 = vadd.f32 %v9065, %v9321
        %v9323 = vpop.f32.mrf.mxu0
        %9324 = vmatprep.mubr.bf16.mxu0 %v7812
        %9325 = vmatmul.mubr.bf16.gmra.mxu0 %v7795
        %v9326 = vpop.f32.mrf.mxu0
        %v9327 = vadd.f32 %v9070, %v9326
        %v9328 = vpop.f32.mrf.mxu0
        %v9329 = vpop.f32.mrf.mxu0
        %v9330 = vadd.f32 %v9073, %v9329
        %v9331 = vpop.f32.mrf.mxu0
        %9332 = vmatprep.mubr.bf16.mxu0 %v7841
        %9333 = vmatmul.mubr.bf16.gmra.mxu0 %v7824
        %v9334 = vpop.f32.mrf.mxu0
        %v9335 = vadd.f32 %v9078, %v9334
        %v9336 = vpop.f32.mrf.mxu0
        %v9337 = vpop.f32.mrf.mxu0
        %v9338 = vadd.f32 %v9081, %v9337
        %v9339 = vpop.f32.mrf.mxu0
        %9340 = vmatprep.mubr.bf16.mxu0 %v7870
        %9341 = vmatmul.mubr.bf16.gmra.mxu0 %v7853
        %v9342 = vpop.f32.mrf.mxu0
        %v9343 = vadd.f32 %v9086, %v9342
        %v9344 = vpop.f32.mrf.mxu0
        %v9345 = vpop.f32.mrf.mxu0
        %v9346 = vadd.f32 %v9089, %v9345
        %v9347 = vpop.f32.mrf.mxu0
        %9348 = vmatprep.mubr.bf16.mxu0 %v7899
        %9349 = vmatmul.mubr.bf16.gmra.mxu0 %v7882
        %v9350 = vpop.f32.mrf.mxu0
        %v9351 = vadd.f32 %v9094, %v9350
        %v9352 = vpop.f32.mrf.mxu0
        %v9353 = vpop.f32.mrf.mxu0
        %v9354 = vadd.f32 %v9097, %v9353
        %v9355 = vpop.f32.mrf.mxu0
        %9356 = vmatprep.mubr.bf16.mxu0 %v7928
        %9357 = vmatmul.mubr.bf16.gmra.mxu0 %v7911
        %v9358 = vpop.f32.mrf.mxu0
        %v9359 = vadd.f32 %v9102, %v9358
        %v9360 = vpop.f32.mrf.mxu0
        %v9361 = vpop.f32.mrf.mxu0
        %v9362 = vadd.f32 %v9105, %v9361
        %v9363 = vpop.f32.mrf.mxu0
        %9364 = vmatprep.mubr.bf16.mxu0 %v7957
        %9365 = vmatmul.mubr.bf16.gmra.mxu0 %v7940
        %v9366 = vpop.f32.mrf.mxu0
        %v9367 = vadd.f32 %v9110, %v9366
        %v9368 = vpop.f32.mrf.mxu0
        %v9369 = vpop.f32.mrf.mxu0
        %v9370 = vadd.f32 %v9113, %v9369
        %v9371 = vpop.f32.mrf.mxu0
        %9372 = vmatprep.mubr.bf16.mxu0 %v7986
        %9373 = vmatmul.mubr.bf16.gmra.mxu0 %v7969
        %v9374 = vpop.f32.mrf.mxu0
        %v9375 = vadd.f32 %v9118, %v9374
        %v9376 = vpop.f32.mrf.mxu0
        %v9377 = vpop.f32.mrf.mxu0
        %v9378 = vadd.f32 %v9121, %v9377
        %v9379 = vpop.f32.mrf.mxu0
        %9380 = vdwg.mxu0
        %v9381 = vld [vmem:[#allocation2 + $0xc] sm:$0xf]
        %v9382 = vld [vmem:[#allocation2 + $0x20] sm:$0xf]
        %v9383 = vld [vmem:[#allocation2 + $0x34] sm:$0xf]
        %v9384 = vld [vmem:[#allocation2 + $0x48] sm:$0xf]
        %v9385 = vld [vmem:[#allocation2 + $0x5c] sm:$0xf]
        %v9386 = vld [vmem:[#allocation2 + $0x70] sm:$0xf]
        %v9387 = vld [vmem:[#allocation2 + $0x84] sm:$0xf]
        %v9388 = vld [vmem:[#allocation2 + $0x98] sm:$0xf]
        %v9389 = vld [vmem:[#allocation2 + $0xac] sm:$0xf]
        %v9390 = vld [vmem:[#allocation2 + $0xc0] sm:$0xf]
        %v9391 = vld [vmem:[#allocation2 + $0xd4] sm:$0xf]
        %v9392 = vld [vmem:[#allocation2 + $0xe8] sm:$0xf]
        %v9393 = vld [vmem:[#allocation2 + $0xfc] sm:$0xf]
        %v9394 = vld [vmem:[#allocation2 + $0x110] sm:$0xf]
        %v9395 = vld [vmem:[#allocation2 + $0x124] sm:$0xf]
        %v9396 = vld [vmem:[#allocation2 + $0x138] sm:$0xf]
        %v9413 = vunpack.c.l.b16 %v9381
        %v9414 = vunpack.c.l.b16 %v9382
        %v9415 = vunpack.c.l.b16 %v9383
        %v9416 = vunpack.c.l.b16 %v9384
        %v9417 = vunpack.c.l.b16 %v9385
        %v9418 = vunpack.c.l.b16 %v9386
        %v9419 = vunpack.c.l.b16 %v9387
        %v9420 = vunpack.c.l.b16 %v9388
        %v9421 = vunpack.c.l.b16 %v9389
        %v9422 = vunpack.c.l.b16 %v9390
        %v9423 = vunpack.c.l.b16 %v9391
        %v9424 = vunpack.c.l.b16 %v9392
        %v9425 = vunpack.c.l.b16 %v9393
        %v9426 = vunpack.c.l.b16 %v9394
        %v9427 = vunpack.c.l.b16 %v9395
        %v9428 = vunpack.c.l.b16 %v9396
        %v9429 = vpack.c.b16 %v9413, %v9413
        %v9430 = vpack.c.b16 %v9414, %v9414
        %v9431 = vpack.c.b16 %v9415, %v9415
        %v9432 = vpack.c.b16 %v9416, %v9416
        %v9433 = vpack.c.b16 %v9417, %v9417
        %v9434 = vpack.c.b16 %v9418, %v9418
        %v9435 = vpack.c.b16 %v9419, %v9419
        %v9436 = vpack.c.b16 %v9420, %v9420
        %v9437 = vpack.c.b16 %v9421, %v9421
        %v9438 = vpack.c.b16 %v9422, %v9422
        %v9439 = vpack.c.b16 %v9423, %v9423
        %v9440 = vpack.c.b16 %v9424, %v9424
        %v9441 = vpack.c.b16 %v9425, %v9425
        %v9442 = vpack.c.b16 %v9426, %v9426
        %v9443 = vpack.c.b16 %v9427, %v9427
        %v9444 = vpack.c.b16 %v9428, %v9428
        %v9445 = vpack.c.b16 %v9413, %v7156
        %v9446 = vpack.c.b16 %v9414, %v7159
        %v9447 = vpack.c.b16 %v9415, %v7162
        %v9448 = vpack.c.b16 %v9416, %v7165
        %v9449 = vpack.c.b16 %v9417, %v7168
        %v9450 = vpack.c.b16 %v9418, %v7171
        %v9451 = vpack.c.b16 %v9419, %v7174
        %v9452 = vpack.c.b16 %v9420, %v7177
        %v9453 = vpack.c.b16 %v9421, %v7180
        %v9454 = vpack.c.b16 %v9422, %v7183
        %v9455 = vpack.c.b16 %v9423, %v7186
        %v9456 = vpack.c.b16 %v9424, %v7189
        %v9457 = vpack.c.b16 %v9425, %v7192
        %v9458 = vpack.c.b16 %v9426, %v7195
        %v9459 = vpack.c.b16 %v9427, %v7198
        %v9460 = vpack.c.b16 %v9428, %v7201
        %v9462 = vshrl.u32 %v9445, 16
        %v9464 = vrot.slane %v9462, 4
        %v9465 = vshll.u32 %v9445, 16
        %v9467 = vrot.slane %v9465, 5
        %v9468 = vor.u32 %v9464, %v9467
        %v9470 = vshrl.u32 %v9446, 16
        %v9472 = vrot.slane %v9470, 4
        %v9473 = vshll.u32 %v9446, 16
        %v9475 = vrot.slane %v9473, 5
        %v9476 = vor.u32 %v9472, %v9475
        %v9478 = vshrl.u32 %v9447, 16
        %v9480 = vrot.slane %v9478, 4
        %v9481 = vshll.u32 %v9447, 16
        %v9483 = vrot.slane %v9481, 5
        %v9484 = vor.u32 %v9480, %v9483
        %v9486 = vshrl.u32 %v9448, 16
        %v9488 = vrot.slane %v9486, 4
        %v9489 = vshll.u32 %v9448, 16
        %v9491 = vrot.slane %v9489, 5
        %v9492 = vor.u32 %v9488, %v9491
        %v9494 = vshrl.u32 %v9449, 16
        %v9496 = vrot.slane %v9494, 4
        %v9497 = vshll.u32 %v9449, 16
        %v9499 = vrot.slane %v9497, 5
        %v9500 = vor.u32 %v9496, %v9499
        %v9502 = vshrl.u32 %v9450, 16
        %v9504 = vrot.slane %v9502, 4
        %v9505 = vshll.u32 %v9450, 16
        %v9507 = vrot.slane %v9505, 5
        %v9508 = vor.u32 %v9504, %v9507
        %v9510 = vshrl.u32 %v9451, 16
        %v9512 = vrot.slane %v9510, 4
        %v9513 = vshll.u32 %v9451, 16
        %v9515 = vrot.slane %v9513, 5
        %v9516 = vor.u32 %v9512, %v9515
        %v9518 = vshrl.u32 %v9452, 16
        %v9520 = vrot.slane %v9518, 4
        %v9521 = vshll.u32 %v9452, 16
        %v9523 = vrot.slane %v9521, 5
        %v9524 = vor.u32 %v9520, %v9523
        %v9526 = vshrl.u32 %v9453, 16
        %v9528 = vrot.slane %v9526, 4
        %v9529 = vshll.u32 %v9453, 16
        %v9531 = vrot.slane %v9529, 5
        %v9532 = vor.u32 %v9528, %v9531
        %v9534 = vshrl.u32 %v9454, 16
        %v9536 = vrot.slane %v9534, 4
        %v9537 = vshll.u32 %v9454, 16
        %v9539 = vrot.slane %v9537, 5
        %v9540 = vor.u32 %v9536, %v9539
        %v9542 = vshrl.u32 %v9455, 16
        %v9544 = vrot.slane %v9542, 4
        %v9545 = vshll.u32 %v9455, 16
        %v9547 = vrot.slane %v9545, 5
        %v9548 = vor.u32 %v9544, %v9547
        %v9550 = vshrl.u32 %v9456, 16
        %v9552 = vrot.slane %v9550, 4
        %v9553 = vshll.u32 %v9456, 16
        %v9555 = vrot.slane %v9553, 5
        %v9556 = vor.u32 %v9552, %v9555
        %v9558 = vshrl.u32 %v9457, 16
        %v9560 = vrot.slane %v9558, 4
        %v9561 = vshll.u32 %v9457, 16
        %v9563 = vrot.slane %v9561, 5
        %v9564 = vor.u32 %v9560, %v9563
        %v9566 = vshrl.u32 %v9458, 16
        %v9568 = vrot.slane %v9566, 4
        %v9569 = vshll.u32 %v9458, 16
        %v9571 = vrot.slane %v9569, 5
        %v9572 = vor.u32 %v9568, %v9571
        %v9574 = vshrl.u32 %v9459, 16
        %v9576 = vrot.slane %v9574, 4
        %v9577 = vshll.u32 %v9459, 16
        %v9579 = vrot.slane %v9577, 5
        %v9580 = vor.u32 %v9576, %v9579
        %v9582 = vshrl.u32 %v9460, 16
        %v9584 = vrot.slane %v9582, 4
        %v9585 = vshll.u32 %v9460, 16
        %v9587 = vrot.slane %v9585, 5
        %v9588 = vor.u32 %v9584, %v9587
        %v9589 = vrot.slane %v8180, 3
        %v9590 = vrot.slane %v8182, 4
        %v9591 = vor.u32 %v9589, %v9590
        %v9593 = vshrl.u32 %v9429, 16
        %v9595 = vrot.slane %v9593, 3
        %v9596 = vshll.u32 %v9429, 16
        %v9598 = vrot.slane %v9596, 4
        %v9599 = vor.u32 %v9595, %v9598
        %v9600 = vsel %vm3053, %v9591, %v9599
        %v9602 = vshrl.u32 %v9468, 16
        %v9604 = vrot.slane %v9602, 3
        %v9605 = vshll.u32 %v9468, 16
        %v9607 = vrot.slane %v9605, 4
        %v9608 = vor.u32 %v9604, %v9607
        %v9609 = vsel %vm3053, %v9608, %v9608
        %v9610 = vrot.slane %v8195, 3
        %v9611 = vrot.slane %v8197, 4
        %v9612 = vor.u32 %v9610, %v9611
        %v9614 = vshrl.u32 %v9430, 16
        %v9616 = vrot.slane %v9614, 3
        %v9617 = vshll.u32 %v9430, 16
        %v9619 = vrot.slane %v9617, 4
        %v9620 = vor.u32 %v9616, %v9619
        %v9621 = vsel %vm3053, %v9612, %v9620
        %v9623 = vshrl.u32 %v9476, 16
        %v9625 = vrot.slane %v9623, 3
        %v9626 = vshll.u32 %v9476, 16
        %v9628 = vrot.slane %v9626, 4
        %v9629 = vor.u32 %v9625, %v9628
        %v9630 = vsel %vm3053, %v9629, %v9629
        %v9631 = vrot.slane %v8210, 3
        %v9632 = vrot.slane %v8212, 4
        %v9633 = vor.u32 %v9631, %v9632
        %v9635 = vshrl.u32 %v9431, 16
        %v9637 = vrot.slane %v9635, 3
        %v9638 = vshll.u32 %v9431, 16
        %v9640 = vrot.slane %v9638, 4
        %v9641 = vor.u32 %v9637, %v9640
        %v9642 = vsel %vm3053, %v9633, %v9641
        %v9644 = vshrl.u32 %v9484, 16
        %v9646 = vrot.slane %v9644, 3
        %v9647 = vshll.u32 %v9484, 16
        %v9649 = vrot.slane %v9647, 4
        %v9650 = vor.u32 %v9646, %v9649
        %v9651 = vsel %vm3053, %v9650, %v9650
        %v9652 = vrot.slane %v8225, 3
        %v9653 = vrot.slane %v8227, 4
        %v9654 = vor.u32 %v9652, %v9653
        %v9656 = vshrl.u32 %v9432, 16
        %v9658 = vrot.slane %v9656, 3
        %v9659 = vshll.u32 %v9432, 16
        %v9661 = vrot.slane %v9659, 4
        %v9662 = vor.u32 %v9658, %v9661
        %v9663 = vsel %vm3053, %v9654, %v9662
        %v9665 = vshrl.u32 %v9492, 16
        %v9667 = vrot.slane %v9665, 3
        %v9668 = vshll.u32 %v9492, 16
        %v9670 = vrot.slane %v9668, 4
        %v9671 = vor.u32 %v9667, %v9670
        %v9672 = vsel %vm3053, %v9671, %v9671
        %v9673 = vrot.slane %v8240, 3
        %v9674 = vrot.slane %v8242, 4
        %v9675 = vor.u32 %v9673, %v9674
        %v9677 = vshrl.u32 %v9433, 16
        %v9679 = vrot.slane %v9677, 3
        %v9680 = vshll.u32 %v9433, 16
        %v9682 = vrot.slane %v9680, 4
        %v9683 = vor.u32 %v9679, %v9682
        %v9684 = vsel %vm3053, %v9675, %v9683
        %v9686 = vshrl.u32 %v9500, 16
        %v9688 = vrot.slane %v9686, 3
        %v9689 = vshll.u32 %v9500, 16
        %v9691 = vrot.slane %v9689, 4
        %v9692 = vor.u32 %v9688, %v9691
        %v9693 = vsel %vm3053, %v9692, %v9692
        %v9694 = vrot.slane %v8255, 3
        %v9695 = vrot.slane %v8257, 4
        %v9696 = vor.u32 %v9694, %v9695
        %v9698 = vshrl.u32 %v9434, 16
        %v9700 = vrot.slane %v9698, 3
        %v9701 = vshll.u32 %v9434, 16
        %v9703 = vrot.slane %v9701, 4
        %v9704 = vor.u32 %v9700, %v9703
        %v9705 = vsel %vm3053, %v9696, %v9704
        %v9707 = vshrl.u32 %v9508, 16
        %v9709 = vrot.slane %v9707, 3
        %v9710 = vshll.u32 %v9508, 16
        %v9712 = vrot.slane %v9710, 4
        %v9713 = vor.u32 %v9709, %v9712
        %v9714 = vsel %vm3053, %v9713, %v9713
        %v9715 = vrot.slane %v8270, 3
        %v9716 = vrot.slane %v8272, 4
        %v9717 = vor.u32 %v9715, %v9716
        %v9719 = vshrl.u32 %v9435, 16
        %v9721 = vrot.slane %v9719, 3
        %v9722 = vshll.u32 %v9435, 16
        %v9724 = vrot.slane %v9722, 4
        %v9725 = vor.u32 %v9721, %v9724
        %v9726 = vsel %vm3053, %v9717, %v9725
        %v9728 = vshrl.u32 %v9516, 16
        %v9730 = vrot.slane %v9728, 3
        %v9731 = vshll.u32 %v9516, 16
        %v9733 = vrot.slane %v9731, 4
        %v9734 = vor.u32 %v9730, %v9733
        %v9735 = vsel %vm3053, %v9734, %v9734
        %v9736 = vrot.slane %v8285, 3
        %v9737 = vrot.slane %v8287, 4
        %v9738 = vor.u32 %v9736, %v9737
        %v9740 = vshrl.u32 %v9436, 16
        %v9742 = vrot.slane %v9740, 3
        %v9743 = vshll.u32 %v9436, 16
        %v9745 = vrot.slane %v9743, 4
        %v9746 = vor.u32 %v9742, %v9745
        %v9747 = vsel %vm3053, %v9738, %v9746
        %v9749 = vshrl.u32 %v9524, 16
        %v9751 = vrot.slane %v9749, 3
        %v9752 = vshll.u32 %v9524, 16
        %v9754 = vrot.slane %v9752, 4
        %v9755 = vor.u32 %v9751, %v9754
        %v9756 = vsel %vm3053, %v9755, %v9755
        %v9757 = vrot.slane %v8300, 3
        %v9758 = vrot.slane %v8302, 4
        %v9759 = vor.u32 %v9757, %v9758
        %v9761 = vshrl.u32 %v9437, 16
        %v9763 = vrot.slane %v9761, 3
        %v9764 = vshll.u32 %v9437, 16
        %v9766 = vrot.slane %v9764, 4
        %v9767 = vor.u32 %v9763, %v9766
        %v9768 = vsel %vm3053, %v9759, %v9767
        %v9770 = vshrl.u32 %v9532, 16
        %v9772 = vrot.slane %v9770, 3
        %v9773 = vshll.u32 %v9532, 16
        %v9775 = vrot.slane %v9773, 4
        %v9776 = vor.u32 %v9772, %v9775
        %v9777 = vsel %vm3053, %v9776, %v9776
        %v9778 = vrot.slane %v8315, 3
        %v9779 = vrot.slane %v8317, 4
        %v9780 = vor.u32 %v9778, %v9779
        %v9782 = vshrl.u32 %v9438, 16
        %v9784 = vrot.slane %v9782, 3
        %v9785 = vshll.u32 %v9438, 16
        %v9787 = vrot.slane %v9785, 4
        %v9788 = vor.u32 %v9784, %v9787
        %v9789 = vsel %vm3053, %v9780, %v9788
        %v9791 = vshrl.u32 %v9540, 16
        %v9793 = vrot.slane %v9791, 3
        %v9794 = vshll.u32 %v9540, 16
        %v9796 = vrot.slane %v9794, 4
        %v9797 = vor.u32 %v9793, %v9796
        %v9798 = vsel %vm3053, %v9797, %v9797
        %v9799 = vrot.slane %v8330, 3
        %v9800 = vrot.slane %v8332, 4
        %v9801 = vor.u32 %v9799, %v9800
        %v9803 = vshrl.u32 %v9439, 16
        %v9805 = vrot.slane %v9803, 3
        %v9806 = vshll.u32 %v9439, 16
        %v9808 = vrot.slane %v9806, 4
        %v9809 = vor.u32 %v9805, %v9808
        %v9810 = vsel %vm3053, %v9801, %v9809
        %v9812 = vshrl.u32 %v9548, 16
        %v9814 = vrot.slane %v9812, 3
        %v9815 = vshll.u32 %v9548, 16
        %v9817 = vrot.slane %v9815, 4
        %v9818 = vor.u32 %v9814, %v9817
        %v9819 = vsel %vm3053, %v9818, %v9818
        %v9820 = vrot.slane %v8345, 3
        %v9821 = vrot.slane %v8347, 4
        %v9822 = vor.u32 %v9820, %v9821
        %v9824 = vshrl.u32 %v9440, 16
        %v9826 = vrot.slane %v9824, 3
        %v9827 = vshll.u32 %v9440, 16
        %v9829 = vrot.slane %v9827, 4
        %v9830 = vor.u32 %v9826, %v9829
        %v9831 = vsel %vm3053, %v9822, %v9830
        %v9833 = vshrl.u32 %v9556, 16
        %v9835 = vrot.slane %v9833, 3
        %v9836 = vshll.u32 %v9556, 16
        %v9838 = vrot.slane %v9836, 4
        %v9839 = vor.u32 %v9835, %v9838
        %v9840 = vsel %vm3053, %v9839, %v9839
        %v9841 = vrot.slane %v8360, 3
        %v9842 = vrot.slane %v8362, 4
        %v9843 = vor.u32 %v9841, %v9842
        %v9845 = vshrl.u32 %v9441, 16
        %v9847 = vrot.slane %v9845, 3
        %v9848 = vshll.u32 %v9441, 16
        %v9850 = vrot.slane %v9848, 4
        %v9851 = vor.u32 %v9847, %v9850
        %v9852 = vsel %vm3053, %v9843, %v9851
        %v9854 = vshrl.u32 %v9564, 16
        %v9856 = vrot.slane %v9854, 3
        %v9857 = vshll.u32 %v9564, 16
        %v9859 = vrot.slane %v9857, 4
        %v9860 = vor.u32 %v9856, %v9859
        %v9861 = vsel %vm3053, %v9860, %v9860
        %v9862 = vrot.slane %v8375, 3
        %v9863 = vrot.slane %v8377, 4
        %v9864 = vor.u32 %v9862, %v9863
        %v9866 = vshrl.u32 %v9442, 16
        %v9868 = vrot.slane %v9866, 3
        %v9869 = vshll.u32 %v9442, 16
        %v9871 = vrot.slane %v9869, 4
        %v9872 = vor.u32 %v9868, %v9871
        %v9873 = vsel %vm3053, %v9864, %v9872
        %v9875 = vshrl.u32 %v9572, 16
        %v9877 = vrot.slane %v9875, 3
        %v9878 = vshll.u32 %v9572, 16
        %v9880 = vrot.slane %v9878, 4
        %v9881 = vor.u32 %v9877, %v9880
        %v9882 = vsel %vm3053, %v9881, %v9881
        %v9883 = vrot.slane %v8390, 3
        %v9884 = vrot.slane %v8392, 4
        %v9885 = vor.u32 %v9883, %v9884
        %v9887 = vshrl.u32 %v9443, 16
        %v9889 = vrot.slane %v9887, 3
        %v9890 = vshll.u32 %v9443, 16
        %v9892 = vrot.slane %v9890, 4
        %v9893 = vor.u32 %v9889, %v9892
        %v9894 = vsel %vm3053, %v9885, %v9893
        %v9896 = vshrl.u32 %v9580, 16
        %v9898 = vrot.slane %v9896, 3
        %v9899 = vshll.u32 %v9580, 16
        %v9901 = vrot.slane %v9899, 4
        %v9902 = vor.u32 %v9898, %v9901
        %v9903 = vsel %vm3053, %v9902, %v9902
        %v9904 = vrot.slane %v8405, 3
        %v9905 = vrot.slane %v8407, 4
        %v9906 = vor.u32 %v9904, %v9905
        %v9908 = vshrl.u32 %v9444, 16
        %v9910 = vrot.slane %v9908, 3
        %v9911 = vshll.u32 %v9444, 16
        %v9913 = vrot.slane %v9911, 4
        %v9914 = vor.u32 %v9910, %v9913
        %v9915 = vsel %vm3053, %v9906, %v9914
        %v9917 = vshrl.u32 %v9588, 16
        %v9919 = vrot.slane %v9917, 3
        %v9920 = vshll.u32 %v9588, 16
        %v9922 = vrot.slane %v9920, 4
        %v9923 = vor.u32 %v9919, %v9922
        %v9924 = vsel %vm3053, %v9923, %v9923
        %v9957 = vld [vmem:[%s4 + $0x100] sm:$0xf]
        %v9958 = vld [vmem:[%s4 + $0x104] sm:$0xf]
        %v9959 = vld [vmem:[%s4 + $0x108] sm:$0xf]
        %v9960 = vld [vmem:[%s4 + $0x10c] sm:$0xf]
        %v9961 = vld [vmem:[%s4 + $0x110] sm:$0xf]
        %v9962 = vld [vmem:[%s4 + $0x114] sm:$0xf]
        %v9963 = vld [vmem:[%s4 + $0x118] sm:$0xf]
        %v9964 = vld [vmem:[%s4 + $0x11c] sm:$0xf]
        %v9965 = vld [vmem:[%s4 + $0x120] sm:$0xf]
        %v9966 = vld [vmem:[%s4 + $0x124] sm:$0xf]
        %v9967 = vld [vmem:[%s4 + $0x128] sm:$0xf]
        %v9968 = vld [vmem:[%s4 + $0x12c] sm:$0xf]
        %v9969 = vld [vmem:[%s4 + $0x130] sm:$0xf]
        %v9970 = vld [vmem:[%s4 + $0x134] sm:$0xf]
        %v9971 = vld [vmem:[%s4 + $0x138] sm:$0xf]
        %v9972 = vld [vmem:[%s4 + $0x13c] sm:$0xf]
        %v9973 = vld [vmem:[%s4 + $0x140] sm:$0xf]
        %v9974 = vld [vmem:[%s4 + $0x144] sm:$0xf]
        %v9975 = vld [vmem:[%s4 + $0x148] sm:$0xf]
        %v9976 = vld [vmem:[%s4 + $0x14c] sm:$0xf]
        %v9977 = vld [vmem:[%s4 + $0x150] sm:$0xf]
        %v9978 = vld [vmem:[%s4 + $0x154] sm:$0xf]
        %v9979 = vld [vmem:[%s4 + $0x158] sm:$0xf]
        %v9980 = vld [vmem:[%s4 + $0x15c] sm:$0xf]
        %v9981 = vld [vmem:[%s4 + $0x160] sm:$0xf]
        %v9982 = vld [vmem:[%s4 + $0x164] sm:$0xf]
        %v9983 = vld [vmem:[%s4 + $0x168] sm:$0xf]
        %v9984 = vld [vmem:[%s4 + $0x16c] sm:$0xf]
        %v9985 = vld [vmem:[%s4 + $0x170] sm:$0xf]
        %v9986 = vld [vmem:[%s4 + $0x174] sm:$0xf]
        %v9987 = vld [vmem:[%s4 + $0x178] sm:$0xf]
        %v9988 = vld [vmem:[%s4 + $0x17c] sm:$0xf]
        %v10021 = vunpack.c.l.b16 %v9957
        %v10022 = vunpack.c.l.b16 %v9958
        %v10023 = vunpack.c.l.b16 %v9959
        %v10024 = vunpack.c.l.b16 %v9960
        %v10025 = vunpack.c.l.b16 %v9961
        %v10026 = vunpack.c.l.b16 %v9962
        %v10027 = vunpack.c.l.b16 %v9963
        %v10028 = vunpack.c.l.b16 %v9964
        %v10029 = vunpack.c.l.b16 %v9965
        %v10030 = vunpack.c.l.b16 %v9966
        %v10031 = vunpack.c.l.b16 %v9967
        %v10032 = vunpack.c.l.b16 %v9968
        %v10033 = vunpack.c.l.b16 %v9969
        %v10034 = vunpack.c.l.b16 %v9970
        %v10035 = vunpack.c.l.b16 %v9971
        %v10036 = vunpack.c.l.b16 %v9972
        %v10037 = vunpack.c.l.b16 %v9973
        %v10038 = vunpack.c.l.b16 %v9974
        %v10039 = vunpack.c.l.b16 %v9975
        %v10040 = vunpack.c.l.b16 %v9976
        %v10041 = vunpack.c.l.b16 %v9977
        %v10042 = vunpack.c.l.b16 %v9978
        %v10043 = vunpack.c.l.b16 %v9979
        %v10044 = vunpack.c.l.b16 %v9980
        %v10045 = vunpack.c.l.b16 %v9981
        %v10046 = vunpack.c.l.b16 %v9982
        %v10047 = vunpack.c.l.b16 %v9983
        %v10048 = vunpack.c.l.b16 %v9984
        %v10049 = vunpack.c.l.b16 %v9985
        %v10050 = vunpack.c.l.b16 %v9986
        %v10051 = vunpack.c.l.b16 %v9987
        %v10052 = vunpack.c.l.b16 %v9988
        %v10053 = vpack.c.b16 %v10022, %v10021
        %v10054 = vpack.c.b16 %v10024, %v10023
        %v10055 = vpack.c.b16 %v10026, %v10025
        %v10056 = vpack.c.b16 %v10028, %v10027
        %v10057 = vpack.c.b16 %v10030, %v10029
        %v10058 = vpack.c.b16 %v10032, %v10031
        %v10059 = vpack.c.b16 %v10034, %v10033
        %v10060 = vpack.c.b16 %v10036, %v10035
        %v10061 = vpack.c.b16 %v10038, %v10037
        %v10062 = vpack.c.b16 %v10040, %v10039
        %v10063 = vpack.c.b16 %v10042, %v10041
        %v10064 = vpack.c.b16 %v10044, %v10043
        %v10065 = vpack.c.b16 %v10046, %v10045
        %v10066 = vpack.c.b16 %v10048, %v10047
        %v10067 = vpack.c.b16 %v10050, %v10049
        %v10068 = vpack.c.b16 %v10052, %v10051
        %10085 = vmatprep.subr.bf16.mxu0 0
        %10086 = vmatpush1.bf16.msra.mxu0 %v10060
        %10087 = vmatprep.subr.bf16.mxu0 0
        %10088 = vmatpush1.bf16.msra.mxu0 %v10059
        %10089 = vmatprep.subr.bf16.mxu0 0
        %10090 = vmatpush1.bf16.msra.mxu0 %v10058
        %10091 = vmatprep.subr.bf16.mxu0 0
        %10092 = vmatpush1.bf16.msra.mxu0 %v10057
        %10093 = vmatprep.subr.bf16.mxu0 0
        %10094 = vmatpush1.bf16.msra.mxu0 %v10056
        %10095 = vmatprep.subr.bf16.mxu0 0
        %10096 = vmatpush1.bf16.msra.mxu0 %v10055
        %10097 = vmatprep.subr.bf16.mxu0 0
        %10098 = vmatpush1.bf16.msra.mxu0 %v10054
        %10099 = vmatprep.subr.bf16.mxu0 0
        %10100 = vmatpush1.bf16.msra.mxu0 %v10053
        %10101 = vmatprep.subr.bf16.mxu0 0
        %10102 = vmatpush2.bf16.msra.mxu0 %v10068
        %10103 = vmatprep.subr.bf16.mxu0 0
        %10104 = vmatpush2.bf16.msra.mxu0 %v10067
        %10105 = vmatprep.subr.bf16.mxu0 0
        %10106 = vmatpush2.bf16.msra.mxu0 %v10066
        %10107 = vmatprep.subr.bf16.mxu0 0
        %10108 = vmatpush2.bf16.msra.mxu0 %v10065
        %10109 = vmatprep.subr.bf16.mxu0 0
        %10110 = vmatpush2.bf16.msra.mxu0 %v10064
        %10111 = vmatprep.subr.bf16.mxu0 0
        %10112 = vmatpush2.bf16.msra.mxu0 %v10063
        %10113 = vmatprep.subr.bf16.mxu0 0
        %10114 = vmatpush2.bf16.msra.mxu0 %v10062
        %10115 = vmatprep.subr.bf16.mxu0 0
        %10116 = vmatpush2.bf16.msra.mxu0 %v10061
        %10117 = vmatprep.mubr.bf16.mxu0 %v9609
        %10118 = vmatmul.mubr.bf16.gmra.mxu0 %v9600
        %v10119 = vpop.f32.mrf.mxu0
        %v10120 = vadd.f32 0.0, %v10119
        %v10121 = vpop.f32.mrf.mxu0
        %v10122 = vpop.f32.mrf.mxu0
        %v10123 = vadd.f32 0.0, %v10122
        %v10124 = vpop.f32.mrf.mxu0
        %10125 = vmatprep.mubr.bf16.mxu0 %v9630
        %10126 = vmatmul.mubr.bf16.gmra.mxu0 %v9621
        %v10127 = vpop.f32.mrf.mxu0
        %v10128 = vadd.f32 0.0, %v10127
        %v10129 = vpop.f32.mrf.mxu0
        %v10130 = vpop.f32.mrf.mxu0
        %v10131 = vadd.f32 0.0, %v10130
        %v10132 = vpop.f32.mrf.mxu0
        %10133 = vmatprep.mubr.bf16.mxu0 %v9651
        %10134 = vmatmul.mubr.bf16.gmra.mxu0 %v9642
        %v10135 = vpop.f32.mrf.mxu0
        %v10136 = vadd.f32 0.0, %v10135
        %v10137 = vpop.f32.mrf.mxu0
        %v10138 = vpop.f32.mrf.mxu0
        %v10139 = vadd.f32 0.0, %v10138
        %v10140 = vpop.f32.mrf.mxu0
        %10141 = vmatprep.mubr.bf16.mxu0 %v9672
        %10142 = vmatmul.mubr.bf16.gmra.mxu0 %v9663
        %v10143 = vpop.f32.mrf.mxu0
        %v10144 = vadd.f32 0.0, %v10143
        %v10145 = vpop.f32.mrf.mxu0
        %v10146 = vpop.f32.mrf.mxu0
        %v10147 = vadd.f32 0.0, %v10146
        %v10148 = vpop.f32.mrf.mxu0
        %10149 = vmatprep.mubr.bf16.mxu0 %v9693
        %10150 = vmatmul.mubr.bf16.gmra.mxu0 %v9684
        %v10151 = vpop.f32.mrf.mxu0
        %v10152 = vadd.f32 0.0, %v10151
        %v10153 = vpop.f32.mrf.mxu0
        %v10154 = vpop.f32.mrf.mxu0
        %v10155 = vadd.f32 0.0, %v10154
        %v10156 = vpop.f32.mrf.mxu0
        %10157 = vmatprep.mubr.bf16.mxu0 %v9714
        %10158 = vmatmul.mubr.bf16.gmra.mxu0 %v9705
        %v10159 = vpop.f32.mrf.mxu0
        %v10160 = vadd.f32 0.0, %v10159
        %v10161 = vpop.f32.mrf.mxu0
        %v10162 = vpop.f32.mrf.mxu0
        %v10163 = vadd.f32 0.0, %v10162
        %v10164 = vpop.f32.mrf.mxu0
        %10165 = vmatprep.mubr.bf16.mxu0 %v9735
        %10166 = vmatmul.mubr.bf16.gmra.mxu0 %v9726
        %v10167 = vpop.f32.mrf.mxu0
        %v10168 = vadd.f32 0.0, %v10167
        %v10169 = vpop.f32.mrf.mxu0
        %v10170 = vpop.f32.mrf.mxu0
        %v10171 = vadd.f32 0.0, %v10170
        %v10172 = vpop.f32.mrf.mxu0
        %10173 = vmatprep.mubr.bf16.mxu0 %v9756
        %10174 = vmatmul.mubr.bf16.gmra.mxu0 %v9747
        %v10175 = vpop.f32.mrf.mxu0
        %v10176 = vadd.f32 0.0, %v10175
        %v10177 = vpop.f32.mrf.mxu0
        %v10178 = vpop.f32.mrf.mxu0
        %v10179 = vadd.f32 0.0, %v10178
        %v10180 = vpop.f32.mrf.mxu0
        %10181 = vmatprep.mubr.bf16.mxu0 %v9777
        %10182 = vmatmul.mubr.bf16.gmra.mxu0 %v9768
        %v10183 = vpop.f32.mrf.mxu0
        %v10184 = vadd.f32 0.0, %v10183
        %v10185 = vpop.f32.mrf.mxu0
        %v10186 = vpop.f32.mrf.mxu0
        %v10187 = vadd.f32 0.0, %v10186
        %v10188 = vpop.f32.mrf.mxu0
        %10189 = vmatprep.mubr.bf16.mxu0 %v9798
        %10190 = vmatmul.mubr.bf16.gmra.mxu0 %v9789
        %v10191 = vpop.f32.mrf.mxu0
        %v10192 = vadd.f32 0.0, %v10191
        %v10193 = vpop.f32.mrf.mxu0
        %v10194 = vpop.f32.mrf.mxu0
        %v10195 = vadd.f32 0.0, %v10194
        %v10196 = vpop.f32.mrf.mxu0
        %10197 = vmatprep.mubr.bf16.mxu0 %v9819
        %10198 = vmatmul.mubr.bf16.gmra.mxu0 %v9810
        %v10199 = vpop.f32.mrf.mxu0
        %v10200 = vadd.f32 0.0, %v10199
        %v10201 = vpop.f32.mrf.mxu0
        %v10202 = vpop.f32.mrf.mxu0
        %v10203 = vadd.f32 0.0, %v10202
        %v10204 = vpop.f32.mrf.mxu0
        %10205 = vmatprep.mubr.bf16.mxu0 %v9840
        %10206 = vmatmul.mubr.bf16.gmra.mxu0 %v9831
        %v10207 = vpop.f32.mrf.mxu0
        %v10208 = vadd.f32 0.0, %v10207
        %v10209 = vpop.f32.mrf.mxu0
        %v10210 = vpop.f32.mrf.mxu0
        %v10211 = vadd.f32 0.0, %v10210
        %v10212 = vpop.f32.mrf.mxu0
        %10213 = vmatprep.mubr.bf16.mxu0 %v9861
        %10214 = vmatmul.mubr.bf16.gmra.mxu0 %v9852
        %v10215 = vpop.f32.mrf.mxu0
        %v10216 = vadd.f32 0.0, %v10215
        %v10217 = vpop.f32.mrf.mxu0
        %v10218 = vpop.f32.mrf.mxu0
        %v10219 = vadd.f32 0.0, %v10218
        %v10220 = vpop.f32.mrf.mxu0
        %10221 = vmatprep.mubr.bf16.mxu0 %v9882
        %10222 = vmatmul.mubr.bf16.gmra.mxu0 %v9873
        %v10223 = vpop.f32.mrf.mxu0
        %v10224 = vadd.f32 0.0, %v10223
        %v10225 = vpop.f32.mrf.mxu0
        %v10226 = vpop.f32.mrf.mxu0
        %v10227 = vadd.f32 0.0, %v10226
        %v10228 = vpop.f32.mrf.mxu0
        %10229 = vmatprep.mubr.bf16.mxu0 %v9903
        %10230 = vmatmul.mubr.bf16.gmra.mxu0 %v9894
        %v10231 = vpop.f32.mrf.mxu0
        %v10232 = vadd.f32 0.0, %v10231
        %v10233 = vpop.f32.mrf.mxu0
        %v10234 = vpop.f32.mrf.mxu0
        %v10235 = vadd.f32 0.0, %v10234
        %v10236 = vpop.f32.mrf.mxu0
        %10237 = vmatprep.mubr.bf16.mxu0 %v9924
        %10238 = vmatmul.mubr.bf16.gmra.mxu0 %v9915
        %v10239 = vpop.f32.mrf.mxu0
        %v10240 = vadd.f32 0.0, %v10239
        %v10241 = vpop.f32.mrf.mxu0
        %v10242 = vpop.f32.mrf.mxu0
        %v10243 = vadd.f32 0.0, %v10242
        %v10244 = vpop.f32.mrf.mxu0
        %10245 = vdwg.mxu0
        %v10246 = vadd.f32 %v9255, %v10120
        %v10247 = vadd.f32 %v9258, %v10123
        %v10248 = vadd.f32 %v9263, %v10128
        %v10249 = vadd.f32 %v9266, %v10131
        %v10250 = vadd.f32 %v9271, %v10136
        %v10251 = vadd.f32 %v9274, %v10139
        %v10252 = vadd.f32 %v9279, %v10144
        %v10253 = vadd.f32 %v9282, %v10147
        %v10254 = vadd.f32 %v9287, %v10152
        %v10255 = vadd.f32 %v9290, %v10155
        %v10256 = vadd.f32 %v9295, %v10160
        %v10257 = vadd.f32 %v9298, %v10163
        %v10258 = vadd.f32 %v9303, %v10168
        %v10259 = vadd.f32 %v9306, %v10171
        %v10260 = vadd.f32 %v9311, %v10176
        %v10261 = vadd.f32 %v9314, %v10179
        %v10262 = vadd.f32 %v9319, %v10184
        %v10263 = vadd.f32 %v9322, %v10187
        %v10264 = vadd.f32 %v9327, %v10192
        %v10265 = vadd.f32 %v9330, %v10195
        %v10266 = vadd.f32 %v9335, %v10200
        %v10267 = vadd.f32 %v9338, %v10203
        %v10268 = vadd.f32 %v9343, %v10208
        %v10269 = vadd.f32 %v9346, %v10211
        %v10270 = vadd.f32 %v9351, %v10216
        %v10271 = vadd.f32 %v9354, %v10219
        %v10272 = vadd.f32 %v9359, %v10224
        %v10273 = vadd.f32 %v9362, %v10227
        %v10274 = vadd.f32 %v9367, %v10232
        %v10275 = vadd.f32 %v9370, %v10235
        %v10276 = vadd.f32 %v9375, %v10240
        %v10277 = vadd.f32 %v9378, %v10243
        %v10278 = vld [vmem:[#allocation2 + $0x8] sm:$0xf]
        %v10279 = vld [vmem:[#allocation2 + $0xc] sm:$0xf]
        %v10280 = vld [vmem:[#allocation2 + $0x10] sm:$0x1]
        %v10281 = vld [vmem:[#allocation2 + $0x1c] sm:$0xf]
        %v10282 = vld [vmem:[#allocation2 + $0x20] sm:$0xf]
        %v10283 = vld [vmem:[#allocation2 + $0x24] sm:$0x1]
        %v10284 = vld [vmem:[#allocation2 + $0x30] sm:$0xf]
        %v10285 = vld [vmem:[#allocation2 + $0x34] sm:$0xf]
        %v10286 = vld [vmem:[#allocation2 + $0x38] sm:$0x1]
        %v10287 = vld [vmem:[#allocation2 + $0x44] sm:$0xf]
        %v10288 = vld [vmem:[#allocation2 + $0x48] sm:$0xf]
        %v10289 = vld [vmem:[#allocation2 + $0x4c] sm:$0x1]
        %v10290 = vld [vmem:[#allocation2 + $0x58] sm:$0xf]
        %v10291 = vld [vmem:[#allocation2 + $0x5c] sm:$0xf]
        %v10292 = vld [vmem:[#allocation2 + $0x60] sm:$0x1]
        %v10293 = vld [vmem:[#allocation2 + $0x6c] sm:$0xf]
        %v10294 = vld [vmem:[#allocation2 + $0x70] sm:$0xf]
        %v10295 = vld [vmem:[#allocation2 + $0x74] sm:$0x1]
        %v10296 = vld [vmem:[#allocation2 + $0x80] sm:$0xf]
        %v10297 = vld [vmem:[#allocation2 + $0x84] sm:$0xf]
        %v10298 = vld [vmem:[#allocation2 + $0x88] sm:$0x1]
        %v10299 = vld [vmem:[#allocation2 + $0x94] sm:$0xf]
        %v10300 = vld [vmem:[#allocation2 + $0x98] sm:$0xf]
        %v10301 = vld [vmem:[#allocation2 + $0x9c] sm:$0x1]
        %v10302 = vld [vmem:[#allocation2 + $0xa8] sm:$0xf]
        %v10303 = vld [vmem:[#allocation2 + $0xac] sm:$0xf]
        %v10304 = vld [vmem:[#allocation2 + $0xb0] sm:$0x1]
        %v10305 = vld [vmem:[#allocation2 + $0xbc] sm:$0xf]
        %v10306 = vld [vmem:[#allocation2 + $0xc0] sm:$0xf]
        %v10307 = vld [vmem:[#allocation2 + $0xc4] sm:$0x1]
        %v10308 = vld [vmem:[#allocation2 + $0xd0] sm:$0xf]
        %v10309 = vld [vmem:[#allocation2 + $0xd4] sm:$0xf]
        %v10310 = vld [vmem:[#allocation2 + $0xd8] sm:$0x1]
        %v10311 = vld [vmem:[#allocation2 + $0xe4] sm:$0xf]
        %v10312 = vld [vmem:[#allocation2 + $0xe8] sm:$0xf]
        %v10313 = vld [vmem:[#allocation2 + $0xec] sm:$0x1]
        %v10314 = vld [vmem:[#allocation2 + $0xf8] sm:$0xf]
        %v10315 = vld [vmem:[#allocation2 + $0xfc] sm:$0xf]
        %v10316 = vld [vmem:[#allocation2 + $0x100] sm:$0x1]
        %v10317 = vld [vmem:[#allocation2 + $0x10c] sm:$0xf]
        %v10318 = vld [vmem:[#allocation2 + $0x110] sm:$0xf]
        %v10319 = vld [vmem:[#allocation2 + $0x114] sm:$0x1]
        %v10320 = vld [vmem:[#allocation2 + $0x120] sm:$0xf]
        %v10321 = vld [vmem:[#allocation2 + $0x124] sm:$0xf]
        %v10322 = vld [vmem:[#allocation2 + $0x128] sm:$0x1]
        %v10323 = vld [vmem:[#allocation2 + $0x134] sm:$0xf]
        %v10324 = vld [vmem:[#allocation2 + $0x138] sm:$0xf]
        %v10325 = vld [vmem:[#allocation2 + $0x13c] sm:$0x1]
        %v10326 = vld [vmem:[#allocation2 + $0x8] sm:$0xe]
        %v10327 = vld [vmem:[#allocation2 + $0x1c] sm:$0xe]
        %v10328 = vld [vmem:[#allocation2 + $0x30] sm:$0xe]
        %v10329 = vld [vmem:[#allocation2 + $0x44] sm:$0xe]
        %v10330 = vld [vmem:[#allocation2 + $0x58] sm:$0xe]
        %v10331 = vld [vmem:[#allocation2 + $0x6c] sm:$0xe]
        %v10332 = vld [vmem:[#allocation2 + $0x80] sm:$0xe]
        %v10333 = vld [vmem:[#allocation2 + $0x94] sm:$0xe]
        %v10334 = vld [vmem:[#allocation2 + $0xa8] sm:$0xe]
        %v10335 = vld [vmem:[#allocation2 + $0xbc] sm:$0xe]
        %v10336 = vld [vmem:[#allocation2 + $0xd0] sm:$0xe]
        %v10337 = vld [vmem:[#allocation2 + $0xe4] sm:$0xe]
        %v10338 = vld [vmem:[#allocation2 + $0xf8] sm:$0xe]
        %v10339 = vld [vmem:[#allocation2 + $0x10c] sm:$0xe]
        %v10340 = vld [vmem:[#allocation2 + $0x120] sm:$0xe]
        %v10341 = vld [vmem:[#allocation2 + $0x134] sm:$0xe]
        %v10390 = vunpack.c.l.b16 %v10278
        %v10391 = vunpack.c.l.b16 %v10279
        %v10392 = vunpack.c.l.b16 %v10280
        %v10393 = vunpack.c.l.b16 %v10281
        %v10394 = vunpack.c.l.b16 %v10282
        %v10395 = vunpack.c.l.b16 %v10283
        %v10396 = vunpack.c.l.b16 %v10284
        %v10397 = vunpack.c.l.b16 %v10285
        %v10398 = vunpack.c.l.b16 %v10286
        %v10399 = vunpack.c.l.b16 %v10287
        %v10400 = vunpack.c.l.b16 %v10288
        %v10401 = vunpack.c.l.b16 %v10289
        %v10402 = vunpack.c.l.b16 %v10290
        %v10403 = vunpack.c.l.b16 %v10291
        %v10404 = vunpack.c.l.b16 %v10292
        %v10405 = vunpack.c.l.b16 %v10293
        %v10406 = vunpack.c.l.b16 %v10294
        %v10407 = vunpack.c.l.b16 %v10295
        %v10408 = vunpack.c.l.b16 %v10296
        %v10409 = vunpack.c.l.b16 %v10297
        %v10410 = vunpack.c.l.b16 %v10298
        %v10411 = vunpack.c.l.b16 %v10299
        %v10412 = vunpack.c.l.b16 %v10300
        %v10413 = vunpack.c.l.b16 %v10301
        %v10414 = vunpack.c.l.b16 %v10302
        %v10415 = vunpack.c.l.b16 %v10303
        %v10416 = vunpack.c.l.b16 %v10304
        %v10417 = vunpack.c.l.b16 %v10305
        %v10418 = vunpack.c.l.b16 %v10306
        %v10419 = vunpack.c.l.b16 %v10307
        %v10420 = vunpack.c.l.b16 %v10308
        %v10421 = vunpack.c.l.b16 %v10309
        %v10422 = vunpack.c.l.b16 %v10310
        %v10423 = vunpack.c.l.b16 %v10311
        %v10424 = vunpack.c.l.b16 %v10312
        %v10425 = vunpack.c.l.b16 %v10313
        %v10426 = vunpack.c.l.b16 %v10314
        %v10427 = vunpack.c.l.b16 %v10315
        %v10428 = vunpack.c.l.b16 %v10316
        %v10429 = vunpack.c.l.b16 %v10317
        %v10430 = vunpack.c.l.b16 %v10318
        %v10431 = vunpack.c.l.b16 %v10319
        %v10432 = vunpack.c.l.b16 %v10320
        %v10433 = vunpack.c.l.b16 %v10321
        %v10434 = vunpack.c.l.b16 %v10322
        %v10435 = vunpack.c.l.b16 %v10323
        %v10436 = vunpack.c.l.b16 %v10324
        %v10437 = vunpack.c.l.b16 %v10325
        %v10438 = vpack.c.b16 %v10391, %v10390
        %v10439 = vpack.c.b16 %v10392, %v10392
        %v10440 = vpack.c.b16 %v10394, %v10393
        %v10441 = vpack.c.b16 %v10395, %v10395
        %v10442 = vpack.c.b16 %v10397, %v10396
        %v10443 = vpack.c.b16 %v10398, %v10398
        %v10444 = vpack.c.b16 %v10400, %v10399
        %v10445 = vpack.c.b16 %v10401, %v10401
        %v10446 = vpack.c.b16 %v10403, %v10402
        %v10447 = vpack.c.b16 %v10404, %v10404
        %v10448 = vpack.c.b16 %v10406, %v10405
        %v10449 = vpack.c.b16 %v10407, %v10407
        %v10450 = vpack.c.b16 %v10409, %v10408
        %v10451 = vpack.c.b16 %v10410, %v10410
        %v10452 = vpack.c.b16 %v10412, %v10411
        %v10453 = vpack.c.b16 %v10413, %v10413
        %v10454 = vpack.c.b16 %v10415, %v10414
        %v10455 = vpack.c.b16 %v10416, %v10416
        %v10456 = vpack.c.b16 %v10418, %v10417
        %v10457 = vpack.c.b16 %v10419, %v10419
        %v10458 = vpack.c.b16 %v10421, %v10420
        %v10459 = vpack.c.b16 %v10422, %v10422
        %v10460 = vpack.c.b16 %v10424, %v10423
        %v10461 = vpack.c.b16 %v10425, %v10425
        %v10462 = vpack.c.b16 %v10427, %v10426
        %v10463 = vpack.c.b16 %v10428, %v10428
        %v10464 = vpack.c.b16 %v10430, %v10429
        %v10465 = vpack.c.b16 %v10431, %v10431
        %v10466 = vpack.c.b16 %v10433, %v10432
        %v10467 = vpack.c.b16 %v10434, %v10434
        %v10468 = vpack.c.b16 %v10436, %v10435
        %v10469 = vpack.c.b16 %v10437, %v10437
        %v10486 = vunpack.c.l.b16 %v10326
        %v10487 = vunpack.c.l.b16 %v10327
        %v10488 = vunpack.c.l.b16 %v10328
        %v10489 = vunpack.c.l.b16 %v10329
        %v10490 = vunpack.c.l.b16 %v10330
        %v10491 = vunpack.c.l.b16 %v10331
        %v10492 = vunpack.c.l.b16 %v10332
        %v10493 = vunpack.c.l.b16 %v10333
        %v10494 = vunpack.c.l.b16 %v10334
        %v10495 = vunpack.c.l.b16 %v10335
        %v10496 = vunpack.c.l.b16 %v10336
        %v10497 = vunpack.c.l.b16 %v10337
        %v10498 = vunpack.c.l.b16 %v10338
        %v10499 = vunpack.c.l.b16 %v10339
        %v10500 = vunpack.c.l.b16 %v10340
        %v10501 = vunpack.c.l.b16 %v10341
        %v10502 = vpack.c.b16 %v10391, %v10486
        %v10503 = vpack.c.b16 %v10394, %v10487
        %v10504 = vpack.c.b16 %v10397, %v10488
        %v10505 = vpack.c.b16 %v10400, %v10489
        %v10506 = vpack.c.b16 %v10403, %v10490
        %v10507 = vpack.c.b16 %v10406, %v10491
        %v10508 = vpack.c.b16 %v10409, %v10492
        %v10509 = vpack.c.b16 %v10412, %v10493
        %v10510 = vpack.c.b16 %v10415, %v10494
        %v10511 = vpack.c.b16 %v10418, %v10495
        %v10512 = vpack.c.b16 %v10421, %v10496
        %v10513 = vpack.c.b16 %v10424, %v10497
        %v10514 = vpack.c.b16 %v10427, %v10498
        %v10515 = vpack.c.b16 %v10430, %v10499
        %v10516 = vpack.c.b16 %v10433, %v10500
        %v10517 = vpack.c.b16 %v10436, %v10501
        %v10519 = vshrl.u32 %v10502, 16
        %v10521 = vshll.u32 %v10502, 16
        %v10523 = vrot.slane %v10521, 1
        %v10524 = vor.u32 %v10519, %v10523
        %v10526 = vshll.u32 %v10439, 16
        %v10528 = vrot.slane %v10526, 1
        %v10529 = vsel %vm744, %v10524, %v10528
        %v10530 = vshrl.u32 %v10439, 16
        %v10533 = vshrl.u32 %v10503, 16
        %v10535 = vshll.u32 %v10503, 16
        %v10537 = vrot.slane %v10535, 1
        %v10538 = vor.u32 %v10533, %v10537
        %v10540 = vshll.u32 %v10441, 16
        %v10542 = vrot.slane %v10540, 1
        %v10543 = vsel %vm744, %v10538, %v10542
        %v10544 = vshrl.u32 %v10441, 16
        %v10547 = vshrl.u32 %v10504, 16
        %v10549 = vshll.u32 %v10504, 16
        %v10551 = vrot.slane %v10549, 1
        %v10552 = vor.u32 %v10547, %v10551
        %v10554 = vshll.u32 %v10443, 16
        %v10556 = vrot.slane %v10554, 1
        %v10557 = vsel %vm744, %v10552, %v10556
        %v10558 = vshrl.u32 %v10443, 16
        %v10561 = vshrl.u32 %v10505, 16
        %v10563 = vshll.u32 %v10505, 16
        %v10565 = vrot.slane %v10563, 1
        %v10566 = vor.u32 %v10561, %v10565
        %v10568 = vshll.u32 %v10445, 16
        %v10570 = vrot.slane %v10568, 1
        %v10571 = vsel %vm744, %v10566, %v10570
        %v10572 = vshrl.u32 %v10445, 16
        %v10575 = vshrl.u32 %v10506, 16
        %v10577 = vshll.u32 %v10506, 16
        %v10579 = vrot.slane %v10577, 1
        %v10580 = vor.u32 %v10575, %v10579
        %v10582 = vshll.u32 %v10447, 16
        %v10584 = vrot.slane %v10582, 1
        %v10585 = vsel %vm744, %v10580, %v10584
        %v10586 = vshrl.u32 %v10447, 16
        %v10589 = vshrl.u32 %v10507, 16
        %v10591 = vshll.u32 %v10507, 16
        %v10593 = vrot.slane %v10591, 1
        %v10594 = vor.u32 %v10589, %v10593
        %v10596 = vshll.u32 %v10449, 16
        %v10598 = vrot.slane %v10596, 1
        %v10599 = vsel %vm744, %v10594, %v10598
        %v10600 = vshrl.u32 %v10449, 16
        %v10603 = vshrl.u32 %v10508, 16
        %v10605 = vshll.u32 %v10508, 16
        %v10607 = vrot.slane %v10605, 1
        %v10608 = vor.u32 %v10603, %v10607
        %v10610 = vshll.u32 %v10451, 16
        %v10612 = vrot.slane %v10610, 1
        %v10613 = vsel %vm744, %v10608, %v10612
        %v10614 = vshrl.u32 %v10451, 16
        %v10617 = vshrl.u32 %v10509, 16
        %v10619 = vshll.u32 %v10509, 16
        %v10621 = vrot.slane %v10619, 1
        %v10622 = vor.u32 %v10617, %v10621
        %v10624 = vshll.u32 %v10453, 16
        %v10626 = vrot.slane %v10624, 1
        %v10627 = vsel %vm744, %v10622, %v10626
        %v10628 = vshrl.u32 %v10453, 16
        %v10631 = vshrl.u32 %v10510, 16
        %v10633 = vshll.u32 %v10510, 16
        %v10635 = vrot.slane %v10633, 1
        %v10636 = vor.u32 %v10631, %v10635
        %v10638 = vshll.u32 %v10455, 16
        %v10640 = vrot.slane %v10638, 1
        %v10641 = vsel %vm744, %v10636, %v10640
        %v10642 = vshrl.u32 %v10455, 16
        %v10645 = vshrl.u32 %v10511, 16
        %v10647 = vshll.u32 %v10511, 16
        %v10649 = vrot.slane %v10647, 1
        %v10650 = vor.u32 %v10645, %v10649
        %v10652 = vshll.u32 %v10457, 16
        %v10654 = vrot.slane %v10652, 1
        %v10655 = vsel %vm744, %v10650, %v10654
        %v10656 = vshrl.u32 %v10457, 16
        %v10659 = vshrl.u32 %v10512, 16
        %v10661 = vshll.u32 %v10512, 16
        %v10663 = vrot.slane %v10661, 1
        %v10664 = vor.u32 %v10659, %v10663
        %v10666 = vshll.u32 %v10459, 16
        %v10668 = vrot.slane %v10666, 1
        %v10669 = vsel %vm744, %v10664, %v10668
        %v10670 = vshrl.u32 %v10459, 16
        %v10673 = vshrl.u32 %v10513, 16
        %v10675 = vshll.u32 %v10513, 16
        %v10677 = vrot.slane %v10675, 1
        %v10678 = vor.u32 %v10673, %v10677
        %v10680 = vshll.u32 %v10461, 16
        %v10682 = vrot.slane %v10680, 1
        %v10683 = vsel %vm744, %v10678, %v10682
        %v10684 = vshrl.u32 %v10461, 16
        %v10687 = vshrl.u32 %v10514, 16
        %v10689 = vshll.u32 %v10514, 16
        %v10691 = vrot.slane %v10689, 1
        %v10692 = vor.u32 %v10687, %v10691
        %v10694 = vshll.u32 %v10463, 16
        %v10696 = vrot.slane %v10694, 1
        %v10697 = vsel %vm744, %v10692, %v10696
        %v10698 = vshrl.u32 %v10463, 16
        %v10701 = vshrl.u32 %v10515, 16
        %v10703 = vshll.u32 %v10515, 16
        %v10705 = vrot.slane %v10703, 1
        %v10706 = vor.u32 %v10701, %v10705
        %v10708 = vshll.u32 %v10465, 16
        %v10710 = vrot.slane %v10708, 1
        %v10711 = vsel %vm744, %v10706, %v10710
        %v10712 = vshrl.u32 %v10465, 16
        %v10715 = vshrl.u32 %v10516, 16
        %v10717 = vshll.u32 %v10516, 16
        %v10719 = vrot.slane %v10717, 1
        %v10720 = vor.u32 %v10715, %v10719
        %v10722 = vshll.u32 %v10467, 16
        %v10724 = vrot.slane %v10722, 1
        %v10725 = vsel %vm744, %v10720, %v10724
        %v10726 = vshrl.u32 %v10467, 16
        %v10729 = vshrl.u32 %v10517, 16
        %v10731 = vshll.u32 %v10517, 16
        %v10733 = vrot.slane %v10731, 1
        %v10734 = vor.u32 %v10729, %v10733
        %v10736 = vshll.u32 %v10469, 16
        %v10738 = vrot.slane %v10736, 1
        %v10739 = vsel %vm744, %v10734, %v10738
        %v10740 = vshrl.u32 %v10469, 16
        %v10743 = vshrl.u32 %v10438, 16
        %v10745 = vshll.u32 %v10438, 16
        %v10747 = vrot.slane %v10745, 1
        %v10748 = vor.u32 %v10743, %v10747
        %v10749 = vsel %vm744, %v10748, %v10528
        %v10751 = vshrl.u32 %v10529, 16
        %v10753 = vshll.u32 %v10529, 16
        %v10755 = vrot.slane %v10753, 1
        %v10756 = vor.u32 %v10751, %v10755
        %v10758 = vshll.u32 %v10530, 16
        %v10760 = vrot.slane %v10758, 1
        %v10761 = vsel %vm744, %v10756, %v10760
        %v10763 = vshrl.u32 %v10440, 16
        %v10765 = vshll.u32 %v10440, 16
        %v10767 = vrot.slane %v10765, 1
        %v10768 = vor.u32 %v10763, %v10767
        %v10769 = vsel %vm744, %v10768, %v10542
        %v10771 = vshrl.u32 %v10543, 16
        %v10773 = vshll.u32 %v10543, 16
        %v10775 = vrot.slane %v10773, 1
        %v10776 = vor.u32 %v10771, %v10775
        %v10778 = vshll.u32 %v10544, 16
        %v10780 = vrot.slane %v10778, 1
        %v10781 = vsel %vm744, %v10776, %v10780
        %v10783 = vshrl.u32 %v10442, 16
        %v10785 = vshll.u32 %v10442, 16
        %v10787 = vrot.slane %v10785, 1
        %v10788 = vor.u32 %v10783, %v10787
        %v10789 = vsel %vm744, %v10788, %v10556
        %v10791 = vshrl.u32 %v10557, 16
        %v10793 = vshll.u32 %v10557, 16
        %v10795 = vrot.slane %v10793, 1
        %v10796 = vor.u32 %v10791, %v10795
        %v10798 = vshll.u32 %v10558, 16
        %v10800 = vrot.slane %v10798, 1
        %v10801 = vsel %vm744, %v10796, %v10800
        %v10803 = vshrl.u32 %v10444, 16
        %v10805 = vshll.u32 %v10444, 16
        %v10807 = vrot.slane %v10805, 1
        %v10808 = vor.u32 %v10803, %v10807
        %v10809 = vsel %vm744, %v10808, %v10570
        %v10811 = vshrl.u32 %v10571, 16
        %v10813 = vshll.u32 %v10571, 16
        %v10815 = vrot.slane %v10813, 1
        %v10816 = vor.u32 %v10811, %v10815
        %v10818 = vshll.u32 %v10572, 16
        %v10820 = vrot.slane %v10818, 1
        %v10821 = vsel %vm744, %v10816, %v10820
        %v10823 = vshrl.u32 %v10446, 16
        %v10825 = vshll.u32 %v10446, 16
        %v10827 = vrot.slane %v10825, 1
        %v10828 = vor.u32 %v10823, %v10827
        %v10829 = vsel %vm744, %v10828, %v10584
        %v10831 = vshrl.u32 %v10585, 16
        %v10833 = vshll.u32 %v10585, 16
        %v10835 = vrot.slane %v10833, 1
        %v10836 = vor.u32 %v10831, %v10835
        %v10838 = vshll.u32 %v10586, 16
        %v10840 = vrot.slane %v10838, 1
        %v10841 = vsel %vm744, %v10836, %v10840
        %v10843 = vshrl.u32 %v10448, 16
        %v10845 = vshll.u32 %v10448, 16
        %v10847 = vrot.slane %v10845, 1
        %v10848 = vor.u32 %v10843, %v10847
        %v10849 = vsel %vm744, %v10848, %v10598
        %v10851 = vshrl.u32 %v10599, 16
        %v10853 = vshll.u32 %v10599, 16
        %v10855 = vrot.slane %v10853, 1
        %v10856 = vor.u32 %v10851, %v10855
        %v10858 = vshll.u32 %v10600, 16
        %v10860 = vrot.slane %v10858, 1
        %v10861 = vsel %vm744, %v10856, %v10860
        %v10863 = vshrl.u32 %v10450, 16
        %v10865 = vshll.u32 %v10450, 16
        %v10867 = vrot.slane %v10865, 1
        %v10868 = vor.u32 %v10863, %v10867
        %v10869 = vsel %vm744, %v10868, %v10612
        %v10871 = vshrl.u32 %v10613, 16
        %v10873 = vshll.u32 %v10613, 16
        %v10875 = vrot.slane %v10873, 1
        %v10876 = vor.u32 %v10871, %v10875
        %v10878 = vshll.u32 %v10614, 16
        %v10880 = vrot.slane %v10878, 1
        %v10881 = vsel %vm744, %v10876, %v10880
        %v10883 = vshrl.u32 %v10452, 16
        %v10885 = vshll.u32 %v10452, 16
        %v10887 = vrot.slane %v10885, 1
        %v10888 = vor.u32 %v10883, %v10887
        %v10889 = vsel %vm744, %v10888, %v10626
        %v10891 = vshrl.u32 %v10627, 16
        %v10893 = vshll.u32 %v10627, 16
        %v10895 = vrot.slane %v10893, 1
        %v10896 = vor.u32 %v10891, %v10895
        %v10898 = vshll.u32 %v10628, 16
        %v10900 = vrot.slane %v10898, 1
        %v10901 = vsel %vm744, %v10896, %v10900
        %v10903 = vshrl.u32 %v10454, 16
        %v10905 = vshll.u32 %v10454, 16
        %v10907 = vrot.slane %v10905, 1
        %v10908 = vor.u32 %v10903, %v10907
        %v10909 = vsel %vm744, %v10908, %v10640
        %v10911 = vshrl.u32 %v10641, 16
        %v10913 = vshll.u32 %v10641, 16
        %v10915 = vrot.slane %v10913, 1
        %v10916 = vor.u32 %v10911, %v10915
        %v10918 = vshll.u32 %v10642, 16
        %v10920 = vrot.slane %v10918, 1
        %v10921 = vsel %vm744, %v10916, %v10920
        %v10923 = vshrl.u32 %v10456, 16
        %v10925 = vshll.u32 %v10456, 16
        %v10927 = vrot.slane %v10925, 1
        %v10928 = vor.u32 %v10923, %v10927
        %v10929 = vsel %vm744, %v10928, %v10654
        %v10931 = vshrl.u32 %v10655, 16
        %v10933 = vshll.u32 %v10655, 16
        %v10935 = vrot.slane %v10933, 1
        %v10936 = vor.u32 %v10931, %v10935
        %v10938 = vshll.u32 %v10656, 16
        %v10940 = vrot.slane %v10938, 1
        %v10941 = vsel %vm744, %v10936, %v10940
        %v10943 = vshrl.u32 %v10458, 16
        %v10945 = vshll.u32 %v10458, 16
        %v10947 = vrot.slane %v10945, 1
        %v10948 = vor.u32 %v10943, %v10947
        %v10949 = vsel %vm744, %v10948, %v10668
        %v10951 = vshrl.u32 %v10669, 16
        %v10953 = vshll.u32 %v10669, 16
        %v10955 = vrot.slane %v10953, 1
        %v10956 = vor.u32 %v10951, %v10955
        %v10958 = vshll.u32 %v10670, 16
        %v10960 = vrot.slane %v10958, 1
        %v10961 = vsel %vm744, %v10956, %v10960
        %v10963 = vshrl.u32 %v10460, 16
        %v10965 = vshll.u32 %v10460, 16
        %v10967 = vrot.slane %v10965, 1
        %v10968 = vor.u32 %v10963, %v10967
        %v10969 = vsel %vm744, %v10968, %v10682
        %v10971 = vshrl.u32 %v10683, 16
        %v10973 = vshll.u32 %v10683, 16
        %v10975 = vrot.slane %v10973, 1
        %v10976 = vor.u32 %v10971, %v10975
        %v10978 = vshll.u32 %v10684, 16
        %v10980 = vrot.slane %v10978, 1
        %v10981 = vsel %vm744, %v10976, %v10980
        %v10983 = vshrl.u32 %v10462, 16
        %v10985 = vshll.u32 %v10462, 16
        %v10987 = vrot.slane %v10985, 1
        %v10988 = vor.u32 %v10983, %v10987
        %v10989 = vsel %vm744, %v10988, %v10696
        %v10991 = vshrl.u32 %v10697, 16
        %v10993 = vshll.u32 %v10697, 16
        %v10995 = vrot.slane %v10993, 1
        %v10996 = vor.u32 %v10991, %v10995
        %v10998 = vshll.u32 %v10698, 16
        %v11000 = vrot.slane %v10998, 1
        %v11001 = vsel %vm744, %v10996, %v11000
        %v11003 = vshrl.u32 %v10464, 16
        %v11005 = vshll.u32 %v10464, 16
        %v11007 = vrot.slane %v11005, 1
        %v11008 = vor.u32 %v11003, %v11007
        %v11009 = vsel %vm744, %v11008, %v10710
        %v11011 = vshrl.u32 %v10711, 16
        %v11013 = vshll.u32 %v10711, 16
        %v11015 = vrot.slane %v11013, 1
        %v11016 = vor.u32 %v11011, %v11015
        %v11018 = vshll.u32 %v10712, 16
        %v11020 = vrot.slane %v11018, 1
        %v11021 = vsel %vm744, %v11016, %v11020
        %v11023 = vshrl.u32 %v10466, 16
        %v11025 = vshll.u32 %v10466, 16
        %v11027 = vrot.slane %v11025, 1
        %v11028 = vor.u32 %v11023, %v11027
        %v11029 = vsel %vm744, %v11028, %v10724
        %v11031 = vshrl.u32 %v10725, 16
        %v11033 = vshll.u32 %v10725, 16
        %v11035 = vrot.slane %v11033, 1
        %v11036 = vor.u32 %v11031, %v11035
        %v11038 = vshll.u32 %v10726, 16
        %v11040 = vrot.slane %v11038, 1
        %v11041 = vsel %vm744, %v11036, %v11040
        %v11043 = vshrl.u32 %v10468, 16
        %v11045 = vshll.u32 %v10468, 16
        %v11047 = vrot.slane %v11045, 1
        %v11048 = vor.u32 %v11043, %v11047
        %v11049 = vsel %vm744, %v11048, %v10738
        %v11051 = vshrl.u32 %v10739, 16
        %v11053 = vshll.u32 %v10739, 16
        %v11055 = vrot.slane %v11053, 1
        %v11056 = vor.u32 %v11051, %v11055
        %v11058 = vshll.u32 %v10740, 16
        %v11060 = vrot.slane %v11058, 1
        %v11061 = vsel %vm744, %v11056, %v11060
        %v11094 = vld [vmem:[%s4 + $0x180] sm:$0xf]
        %v11095 = vld [vmem:[%s4 + $0x184] sm:$0xf]
        %v11096 = vld [vmem:[%s4 + $0x188] sm:$0xf]
        %v11097 = vld [vmem:[%s4 + $0x18c] sm:$0xf]
        %v11098 = vld [vmem:[%s4 + $0x190] sm:$0xf]
        %v11099 = vld [vmem:[%s4 + $0x194] sm:$0xf]
        %v11100 = vld [vmem:[%s4 + $0x198] sm:$0xf]
        %v11101 = vld [vmem:[%s4 + $0x19c] sm:$0xf]
        %v11102 = vld [vmem:[%s4 + $0x1a0] sm:$0xf]
        %v11103 = vld [vmem:[%s4 + $0x1a4] sm:$0xf]
        %v11104 = vld [vmem:[%s4 + $0x1a8] sm:$0xf]
        %v11105 = vld [vmem:[%s4 + $0x1ac] sm:$0xf]
        %v11106 = vld [vmem:[%s4 + $0x1b0] sm:$0xf]
        %v11107 = vld [vmem:[%s4 + $0x1b4] sm:$0xf]
        %v11108 = vld [vmem:[%s4 + $0x1b8] sm:$0xf]
        %v11109 = vld [vmem:[%s4 + $0x1bc] sm:$0xf]
        %v11110 = vld [vmem:[%s4 + $0x1c0] sm:$0xf]
        %v11111 = vld [vmem:[%s4 + $0x1c4] sm:$0xf]
        %v11112 = vld [vmem:[%s4 + $0x1c8] sm:$0xf]
        %v11113 = vld [vmem:[%s4 + $0x1cc] sm:$0xf]
        %v11114 = vld [vmem:[%s4 + $0x1d0] sm:$0xf]
        %v11115 = vld [vmem:[%s4 + $0x1d4] sm:$0xf]
        %v11116 = vld [vmem:[%s4 + $0x1d8] sm:$0xf]
        %v11117 = vld [vmem:[%s4 + $0x1dc] sm:$0xf]
        %v11118 = vld [vmem:[%s4 + $0x1e0] sm:$0xf]
        %v11119 = vld [vmem:[%s4 + $0x1e4] sm:$0xf]
        %v11120 = vld [vmem:[%s4 + $0x1e8] sm:$0xf]
        %v11121 = vld [vmem:[%s4 + $0x1ec] sm:$0xf]
        %v11122 = vld [vmem:[%s4 + $0x1f0] sm:$0xf]
        %v11123 = vld [vmem:[%s4 + $0x1f4] sm:$0xf]
        %v11124 = vld [vmem:[%s4 + $0x1f8] sm:$0xf]
        %v11125 = vld [vmem:[%s4 + $0x1fc] sm:$0xf]
        %v11158 = vunpack.c.l.b16 %v11094
        %v11159 = vunpack.c.l.b16 %v11095
        %v11160 = vunpack.c.l.b16 %v11096
        %v11161 = vunpack.c.l.b16 %v11097
        %v11162 = vunpack.c.l.b16 %v11098
        %v11163 = vunpack.c.l.b16 %v11099
        %v11164 = vunpack.c.l.b16 %v11100
        %v11165 = vunpack.c.l.b16 %v11101
        %v11166 = vunpack.c.l.b16 %v11102
        %v11167 = vunpack.c.l.b16 %v11103
        %v11168 = vunpack.c.l.b16 %v11104
        %v11169 = vunpack.c.l.b16 %v11105
        %v11170 = vunpack.c.l.b16 %v11106
        %v11171 = vunpack.c.l.b16 %v11107
        %v11172 = vunpack.c.l.b16 %v11108
        %v11173 = vunpack.c.l.b16 %v11109
        %v11174 = vunpack.c.l.b16 %v11110
        %v11175 = vunpack.c.l.b16 %v11111
        %v11176 = vunpack.c.l.b16 %v11112
        %v11177 = vunpack.c.l.b16 %v11113
        %v11178 = vunpack.c.l.b16 %v11114
        %v11179 = vunpack.c.l.b16 %v11115
        %v11180 = vunpack.c.l.b16 %v11116
        %v11181 = vunpack.c.l.b16 %v11117
        %v11182 = vunpack.c.l.b16 %v11118
        %v11183 = vunpack.c.l.b16 %v11119
        %v11184 = vunpack.c.l.b16 %v11120
        %v11185 = vunpack.c.l.b16 %v11121
        %v11186 = vunpack.c.l.b16 %v11122
        %v11187 = vunpack.c.l.b16 %v11123
        %v11188 = vunpack.c.l.b16 %v11124
        %v11189 = vunpack.c.l.b16 %v11125
        %v11190 = vpack.c.b16 %v11159, %v11158
        %v11191 = vpack.c.b16 %v11161, %v11160
        %v11192 = vpack.c.b16 %v11163, %v11162
        %v11193 = vpack.c.b16 %v11165, %v11164
        %v11194 = vpack.c.b16 %v11167, %v11166
        %v11195 = vpack.c.b16 %v11169, %v11168
        %v11196 = vpack.c.b16 %v11171, %v11170
        %v11197 = vpack.c.b16 %v11173, %v11172
        %v11198 = vpack.c.b16 %v11175, %v11174
        %v11199 = vpack.c.b16 %v11177, %v11176
        %v11200 = vpack.c.b16 %v11179, %v11178
        %v11201 = vpack.c.b16 %v11181, %v11180
        %v11202 = vpack.c.b16 %v11183, %v11182
        %v11203 = vpack.c.b16 %v11185, %v11184
        %v11204 = vpack.c.b16 %v11187, %v11186
        %v11205 = vpack.c.b16 %v11189, %v11188
        %11222 = vmatprep.subr.bf16.mxu0 0
        %11223 = vmatpush1.bf16.msra.mxu0 %v11197
        %11224 = vmatprep.subr.bf16.mxu0 0
        %11225 = vmatpush1.bf16.msra.mxu0 %v11196
        %11226 = vmatprep.subr.bf16.mxu0 0
        %11227 = vmatpush1.bf16.msra.mxu0 %v11195
        %11228 = vmatprep.subr.bf16.mxu0 0
        %11229 = vmatpush1.bf16.msra.mxu0 %v11194
        %11230 = vmatprep.subr.bf16.mxu0 0
        %11231 = vmatpush1.bf16.msra.mxu0 %v11193
        %11232 = vmatprep.subr.bf16.mxu0 0
        %11233 = vmatpush1.bf16.msra.mxu0 %v11192
        %11234 = vmatprep.subr.bf16.mxu0 0
        %11235 = vmatpush1.bf16.msra.mxu0 %v11191
        %11236 = vmatprep.subr.bf16.mxu0 0
        %11237 = vmatpush1.bf16.msra.mxu0 %v11190
        %11238 = vmatprep.subr.bf16.mxu0 0
        %11239 = vmatpush2.bf16.msra.mxu0 %v11205
        %11240 = vmatprep.subr.bf16.mxu0 0
        %11241 = vmatpush2.bf16.msra.mxu0 %v11204
        %11242 = vmatprep.subr.bf16.mxu0 0
        %11243 = vmatpush2.bf16.msra.mxu0 %v11203
        %11244 = vmatprep.subr.bf16.mxu0 0
        %11245 = vmatpush2.bf16.msra.mxu0 %v11202
        %11246 = vmatprep.subr.bf16.mxu0 0
        %11247 = vmatpush2.bf16.msra.mxu0 %v11201
        %11248 = vmatprep.subr.bf16.mxu0 0
        %11249 = vmatpush2.bf16.msra.mxu0 %v11200
        %11250 = vmatprep.subr.bf16.mxu0 0
        %11251 = vmatpush2.bf16.msra.mxu0 %v11199
        %11252 = vmatprep.subr.bf16.mxu0 0
        %11253 = vmatpush2.bf16.msra.mxu0 %v11198
        %11254 = vmatprep.mubr.bf16.mxu0 %v10761
        %11255 = vmatmul.mubr.bf16.gmra.mxu0 %v10749
        %v11256 = vpop.f32.mrf.mxu0
        %v11257 = vadd.f32 0.0, %v11256
        %v11258 = vpop.f32.mrf.mxu0
        %v11259 = vpop.f32.mrf.mxu0
        %v11260 = vadd.f32 0.0, %v11259
        %v11261 = vpop.f32.mrf.mxu0
        %11262 = vmatprep.mubr.bf16.mxu0 %v10781
        %11263 = vmatmul.mubr.bf16.gmra.mxu0 %v10769
        %v11264 = vpop.f32.mrf.mxu0
        %v11265 = vadd.f32 0.0, %v11264
        %v11266 = vpop.f32.mrf.mxu0
        %v11267 = vpop.f32.mrf.mxu0
        %v11268 = vadd.f32 0.0, %v11267
        %v11269 = vpop.f32.mrf.mxu0
        %11270 = vmatprep.mubr.bf16.mxu0 %v10801
        %11271 = vmatmul.mubr.bf16.gmra.mxu0 %v10789
        %v11272 = vpop.f32.mrf.mxu0
        %v11273 = vadd.f32 0.0, %v11272
        %v11274 = vpop.f32.mrf.mxu0
        %v11275 = vpop.f32.mrf.mxu0
        %v11276 = vadd.f32 0.0, %v11275
        %v11277 = vpop.f32.mrf.mxu0
        %11278 = vmatprep.mubr.bf16.mxu0 %v10821
        %11279 = vmatmul.mubr.bf16.gmra.mxu0 %v10809
        %v11280 = vpop.f32.mrf.mxu0
        %v11281 = vadd.f32 0.0, %v11280
        %v11282 = vpop.f32.mrf.mxu0
        %v11283 = vpop.f32.mrf.mxu0
        %v11284 = vadd.f32 0.0, %v11283
        %v11285 = vpop.f32.mrf.mxu0
        %11286 = vmatprep.mubr.bf16.mxu0 %v10841
        %11287 = vmatmul.mubr.bf16.gmra.mxu0 %v10829
        %v11288 = vpop.f32.mrf.mxu0
        %v11289 = vadd.f32 0.0, %v11288
        %v11290 = vpop.f32.mrf.mxu0
        %v11291 = vpop.f32.mrf.mxu0
        %v11292 = vadd.f32 0.0, %v11291
        %v11293 = vpop.f32.mrf.mxu0
        %11294 = vmatprep.mubr.bf16.mxu0 %v10861
        %11295 = vmatmul.mubr.bf16.gmra.mxu0 %v10849
        %v11296 = vpop.f32.mrf.mxu0
        %v11297 = vadd.f32 0.0, %v11296
        %v11298 = vpop.f32.mrf.mxu0
        %v11299 = vpop.f32.mrf.mxu0
        %v11300 = vadd.f32 0.0, %v11299
        %v11301 = vpop.f32.mrf.mxu0
        %11302 = vmatprep.mubr.bf16.mxu0 %v10881
        %11303 = vmatmul.mubr.bf16.gmra.mxu0 %v10869
        %v11304 = vpop.f32.mrf.mxu0
        %v11305 = vadd.f32 0.0, %v11304
        %v11306 = vpop.f32.mrf.mxu0
        %v11307 = vpop.f32.mrf.mxu0
        %v11308 = vadd.f32 0.0, %v11307
        %v11309 = vpop.f32.mrf.mxu0
        %11310 = vmatprep.mubr.bf16.mxu0 %v10901
        %11311 = vmatmul.mubr.bf16.gmra.mxu0 %v10889
        %v11312 = vpop.f32.mrf.mxu0
        %v11313 = vadd.f32 0.0, %v11312
        %v11314 = vpop.f32.mrf.mxu0
        %v11315 = vpop.f32.mrf.mxu0
        %v11316 = vadd.f32 0.0, %v11315
        %v11317 = vpop.f32.mrf.mxu0
        %11318 = vmatprep.mubr.bf16.mxu0 %v10921
        %11319 = vmatmul.mubr.bf16.gmra.mxu0 %v10909
        %v11320 = vpop.f32.mrf.mxu0
        %v11321 = vadd.f32 0.0, %v11320
        %v11322 = vpop.f32.mrf.mxu0
        %v11323 = vpop.f32.mrf.mxu0
        %v11324 = vadd.f32 0.0, %v11323
        %v11325 = vpop.f32.mrf.mxu0
        %11326 = vmatprep.mubr.bf16.mxu0 %v10941
        %11327 = vmatmul.mubr.bf16.gmra.mxu0 %v10929
        %v11328 = vpop.f32.mrf.mxu0
        %v11329 = vadd.f32 0.0, %v11328
        %v11330 = vpop.f32.mrf.mxu0
        %v11331 = vpop.f32.mrf.mxu0
        %v11332 = vadd.f32 0.0, %v11331
        %v11333 = vpop.f32.mrf.mxu0
        %11334 = vmatprep.mubr.bf16.mxu0 %v10961
        %11335 = vmatmul.mubr.bf16.gmra.mxu0 %v10949
        %v11336 = vpop.f32.mrf.mxu0
        %v11337 = vadd.f32 0.0, %v11336
        %v11338 = vpop.f32.mrf.mxu0
        %v11339 = vpop.f32.mrf.mxu0
        %v11340 = vadd.f32 0.0, %v11339
        %v11341 = vpop.f32.mrf.mxu0
        %11342 = vmatprep.mubr.bf16.mxu0 %v10981
        %11343 = vmatmul.mubr.bf16.gmra.mxu0 %v10969
        %v11344 = vpop.f32.mrf.mxu0
        %v11345 = vadd.f32 0.0, %v11344
        %v11346 = vpop.f32.mrf.mxu0
        %v11347 = vpop.f32.mrf.mxu0
        %v11348 = vadd.f32 0.0, %v11347
        %v11349 = vpop.f32.mrf.mxu0
        %11350 = vmatprep.mubr.bf16.mxu0 %v11001
        %11351 = vmatmul.mubr.bf16.gmra.mxu0 %v10989
        %v11352 = vpop.f32.mrf.mxu0
        %v11353 = vadd.f32 0.0, %v11352
        %v11354 = vpop.f32.mrf.mxu0
        %v11355 = vpop.f32.mrf.mxu0
        %v11356 = vadd.f32 0.0, %v11355
        %v11357 = vpop.f32.mrf.mxu0
        %11358 = vmatprep.mubr.bf16.mxu0 %v11021
        %11359 = vmatmul.mubr.bf16.gmra.mxu0 %v11009
        %v11360 = vpop.f32.mrf.mxu0
        %v11361 = vadd.f32 0.0, %v11360
        %v11362 = vpop.f32.mrf.mxu0
        %v11363 = vpop.f32.mrf.mxu0
        %v11364 = vadd.f32 0.0, %v11363
        %v11365 = vpop.f32.mrf.mxu0
        %11366 = vmatprep.mubr.bf16.mxu0 %v11041
        %11367 = vmatmul.mubr.bf16.gmra.mxu0 %v11029
        %v11368 = vpop.f32.mrf.mxu0
        %v11369 = vadd.f32 0.0, %v11368
        %v11370 = vpop.f32.mrf.mxu0
        %v11371 = vpop.f32.mrf.mxu0
        %v11372 = vadd.f32 0.0, %v11371
        %v11373 = vpop.f32.mrf.mxu0
        %11374 = vmatprep.mubr.bf16.mxu0 %v11061
        %11375 = vmatmul.mubr.bf16.gmra.mxu0 %v11049
        %v11376 = vpop.f32.mrf.mxu0
        %v11377 = vadd.f32 0.0, %v11376
        %v11378 = vpop.f32.mrf.mxu0
        %v11379 = vpop.f32.mrf.mxu0
        %v11380 = vadd.f32 0.0, %v11379
        %v11381 = vpop.f32.mrf.mxu0
        %11382 = vdwg.mxu0
        %v11383 = vadd.f32 %v10246, %v11257
        %v11384 = vadd.f32 %v10247, %v11260
        %v11385 = vadd.f32 %v10248, %v11265
        %v11386 = vadd.f32 %v10249, %v11268
        %v11387 = vadd.f32 %v10250, %v11273
        %v11388 = vadd.f32 %v10251, %v11276
        %v11389 = vadd.f32 %v10252, %v11281
        %v11390 = vadd.f32 %v10253, %v11284
        %v11391 = vadd.f32 %v10254, %v11289
        %v11392 = vadd.f32 %v10255, %v11292
        %v11393 = vadd.f32 %v10256, %v11297
        %v11394 = vadd.f32 %v10257, %v11300
        %v11395 = vadd.f32 %v10258, %v11305
        %v11396 = vadd.f32 %v10259, %v11308
        %v11397 = vadd.f32 %v10260, %v11313
        %v11398 = vadd.f32 %v10261, %v11316
        %v11399 = vadd.f32 %v10262, %v11321
        %v11400 = vadd.f32 %v10263, %v11324
        %v11401 = vadd.f32 %v10264, %v11329
        %v11402 = vadd.f32 %v10265, %v11332
        %v11403 = vadd.f32 %v10266, %v11337
        %v11404 = vadd.f32 %v10267, %v11340
        %v11405 = vadd.f32 %v10268, %v11345
        %v11406 = vadd.f32 %v10269, %v11348
        %v11407 = vadd.f32 %v10270, %v11353
        %v11408 = vadd.f32 %v10271, %v11356
        %v11409 = vadd.f32 %v10272, %v11361
        %v11410 = vadd.f32 %v10273, %v11364
        %v11411 = vadd.f32 %v10274, %v11369
        %v11412 = vadd.f32 %v10275, %v11372
        %v11413 = vadd.f32 %v10276, %v11377
        %v11414 = vadd.f32 %v10277, %v11380
        %v11415 = vld [vmem:[#allocation2 + $0x10] sm:$0x3]
        %v11416 = vld [vmem:[#allocation2 + $0x24] sm:$0x3]
        %v11417 = vld [vmem:[#allocation2 + $0x38] sm:$0x3]
        %v11418 = vld [vmem:[#allocation2 + $0x4c] sm:$0x3]
        %v11419 = vld [vmem:[#allocation2 + $0x60] sm:$0x3]
        %v11420 = vld [vmem:[#allocation2 + $0x74] sm:$0x3]
        %v11421 = vld [vmem:[#allocation2 + $0x88] sm:$0x3]
        %v11422 = vld [vmem:[#allocation2 + $0x9c] sm:$0x3]
        %v11423 = vld [vmem:[#allocation2 + $0xb0] sm:$0x3]
        %v11424 = vld [vmem:[#allocation2 + $0xc4] sm:$0x3]
        %v11425 = vld [vmem:[#allocation2 + $0xd8] sm:$0x3]
        %v11426 = vld [vmem:[#allocation2 + $0xec] sm:$0x3]
        %v11427 = vld [vmem:[#allocation2 + $0x100] sm:$0x3]
        %v11428 = vld [vmem:[#allocation2 + $0x114] sm:$0x3]
        %v11429 = vld [vmem:[#allocation2 + $0x128] sm:$0x3]
        %v11430 = vld [vmem:[#allocation2 + $0x13c] sm:$0x3]
        %v11431 = vld [vmem:[#allocation2 + $0x8] sm:$0xc]
        %v11432 = vld [vmem:[#allocation2 + $0x1c] sm:$0xc]
        %v11433 = vld [vmem:[#allocation2 + $0x30] sm:$0xc]
        %v11434 = vld [vmem:[#allocation2 + $0x44] sm:$0xc]
        %v11435 = vld [vmem:[#allocation2 + $0x58] sm:$0xc]
        %v11436 = vld [vmem:[#allocation2 + $0x6c] sm:$0xc]
        %v11437 = vld [vmem:[#allocation2 + $0x80] sm:$0xc]
        %v11438 = vld [vmem:[#allocation2 + $0x94] sm:$0xc]
        %v11439 = vld [vmem:[#allocation2 + $0xa8] sm:$0xc]
        %v11440 = vld [vmem:[#allocation2 + $0xbc] sm:$0xc]
        %v11441 = vld [vmem:[#allocation2 + $0xd0] sm:$0xc]
        %v11442 = vld [vmem:[#allocation2 + $0xe4] sm:$0xc]
        %v11443 = vld [vmem:[#allocation2 + $0xf8] sm:$0xc]
        %v11444 = vld [vmem:[#allocation2 + $0x10c] sm:$0xc]
        %v11445 = vld [vmem:[#allocation2 + $0x120] sm:$0xc]
        %v11446 = vld [vmem:[#allocation2 + $0x134] sm:$0xc]
        %v11463 = vunpack.c.l.b16 %v11415
        %v11464 = vunpack.c.l.b16 %v11416
        %v11465 = vunpack.c.l.b16 %v11417
        %v11466 = vunpack.c.l.b16 %v11418
        %v11467 = vunpack.c.l.b16 %v11419
        %v11468 = vunpack.c.l.b16 %v11420
        %v11469 = vunpack.c.l.b16 %v11421
        %v11470 = vunpack.c.l.b16 %v11422
        %v11471 = vunpack.c.l.b16 %v11423
        %v11472 = vunpack.c.l.b16 %v11424
        %v11473 = vunpack.c.l.b16 %v11425
        %v11474 = vunpack.c.l.b16 %v11426
        %v11475 = vunpack.c.l.b16 %v11427
        %v11476 = vunpack.c.l.b16 %v11428
        %v11477 = vunpack.c.l.b16 %v11429
        %v11478 = vunpack.c.l.b16 %v11430
        %v11479 = vpack.c.b16 %v11463, %v11463
        %v11480 = vpack.c.b16 %v11464, %v11464
        %v11481 = vpack.c.b16 %v11465, %v11465
        %v11482 = vpack.c.b16 %v11466, %v11466
        %v11483 = vpack.c.b16 %v11467, %v11467
        %v11484 = vpack.c.b16 %v11468, %v11468
        %v11485 = vpack.c.b16 %v11469, %v11469
        %v11486 = vpack.c.b16 %v11470, %v11470
        %v11487 = vpack.c.b16 %v11471, %v11471
        %v11488 = vpack.c.b16 %v11472, %v11472
        %v11489 = vpack.c.b16 %v11473, %v11473
        %v11490 = vpack.c.b16 %v11474, %v11474
        %v11491 = vpack.c.b16 %v11475, %v11475
        %v11492 = vpack.c.b16 %v11476, %v11476
        %v11493 = vpack.c.b16 %v11477, %v11477
        %v11494 = vpack.c.b16 %v11478, %v11478
        %v11511 = vunpack.c.l.b16 %v11431
        %v11512 = vunpack.c.l.b16 %v11432
        %v11513 = vunpack.c.l.b16 %v11433
        %v11514 = vunpack.c.l.b16 %v11434
        %v11515 = vunpack.c.l.b16 %v11435
        %v11516 = vunpack.c.l.b16 %v11436
        %v11517 = vunpack.c.l.b16 %v11437
        %v11518 = vunpack.c.l.b16 %v11438
        %v11519 = vunpack.c.l.b16 %v11439
        %v11520 = vunpack.c.l.b16 %v11440
        %v11521 = vunpack.c.l.b16 %v11441
        %v11522 = vunpack.c.l.b16 %v11442
        %v11523 = vunpack.c.l.b16 %v11443
        %v11524 = vunpack.c.l.b16 %v11444
        %v11525 = vunpack.c.l.b16 %v11445
        %v11526 = vunpack.c.l.b16 %v11446
        %v11527 = vpack.c.b16 %v10391, %v11511
        %v11528 = vpack.c.b16 %v10394, %v11512
        %v11529 = vpack.c.b16 %v10397, %v11513
        %v11530 = vpack.c.b16 %v10400, %v11514
        %v11531 = vpack.c.b16 %v10403, %v11515
        %v11532 = vpack.c.b16 %v10406, %v11516
        %v11533 = vpack.c.b16 %v10409, %v11517
        %v11534 = vpack.c.b16 %v10412, %v11518
        %v11535 = vpack.c.b16 %v10415, %v11519
        %v11536 = vpack.c.b16 %v10418, %v11520
        %v11537 = vpack.c.b16 %v10421, %v11521
        %v11538 = vpack.c.b16 %v10424, %v11522
        %v11539 = vpack.c.b16 %v10427, %v11523
        %v11540 = vpack.c.b16 %v10430, %v11524
        %v11541 = vpack.c.b16 %v10433, %v11525
        %v11542 = vpack.c.b16 %v10436, %v11526
        %v11544 = vshrl.u32 %v11527, 16
        %v11546 = vshll.u32 %v11527, 16
        %v11548 = vrot.slane %v11546, 1
        %v11549 = vor.u32 %v11544, %v11548
        %v11551 = vshll.u32 %v11479, 16
        %v11553 = vrot.slane %v11551, 1
        %v11554 = vsel %vm744, %v11549, %v11553
        %v11555 = vshrl.u32 %v11479, 16
        %v11557 = vor.u32 %v11555, %v11553
        %v11559 = vshrl.u32 %v11528, 16
        %v11561 = vshll.u32 %v11528, 16
        %v11563 = vrot.slane %v11561, 1
        %v11564 = vor.u32 %v11559, %v11563
        %v11566 = vshll.u32 %v11480, 16
        %v11568 = vrot.slane %v11566, 1
        %v11569 = vsel %vm744, %v11564, %v11568
        %v11570 = vshrl.u32 %v11480, 16
        %v11572 = vor.u32 %v11570, %v11568
        %v11574 = vshrl.u32 %v11529, 16
        %v11576 = vshll.u32 %v11529, 16
        %v11578 = vrot.slane %v11576, 1
        %v11579 = vor.u32 %v11574, %v11578
        %v11581 = vshll.u32 %v11481, 16
        %v11583 = vrot.slane %v11581, 1
        %v11584 = vsel %vm744, %v11579, %v11583
        %v11585 = vshrl.u32 %v11481, 16
        %v11587 = vor.u32 %v11585, %v11583
        %v11589 = vshrl.u32 %v11530, 16
        %v11591 = vshll.u32 %v11530, 16
        %v11593 = vrot.slane %v11591, 1
        %v11594 = vor.u32 %v11589, %v11593
        %v11596 = vshll.u32 %v11482, 16
        %v11598 = vrot.slane %v11596, 1
        %v11599 = vsel %vm744, %v11594, %v11598
        %v11600 = vshrl.u32 %v11482, 16
        %v11602 = vor.u32 %v11600, %v11598
        %v11604 = vshrl.u32 %v11531, 16
        %v11606 = vshll.u32 %v11531, 16
        %v11608 = vrot.slane %v11606, 1
        %v11609 = vor.u32 %v11604, %v11608
        %v11611 = vshll.u32 %v11483, 16
        %v11613 = vrot.slane %v11611, 1
        %v11614 = vsel %vm744, %v11609, %v11613
        %v11615 = vshrl.u32 %v11483, 16
        %v11617 = vor.u32 %v11615, %v11613
        %v11619 = vshrl.u32 %v11532, 16
        %v11621 = vshll.u32 %v11532, 16
        %v11623 = vrot.slane %v11621, 1
        %v11624 = vor.u32 %v11619, %v11623
        %v11626 = vshll.u32 %v11484, 16
        %v11628 = vrot.slane %v11626, 1
        %v11629 = vsel %vm744, %v11624, %v11628
        %v11630 = vshrl.u32 %v11484, 16
        %v11632 = vor.u32 %v11630, %v11628
        %v11634 = vshrl.u32 %v11533, 16
        %v11636 = vshll.u32 %v11533, 16
        %v11638 = vrot.slane %v11636, 1
        %v11639 = vor.u32 %v11634, %v11638
        %v11641 = vshll.u32 %v11485, 16
        %v11643 = vrot.slane %v11641, 1
        %v11644 = vsel %vm744, %v11639, %v11643
        %v11645 = vshrl.u32 %v11485, 16
        %v11647 = vor.u32 %v11645, %v11643
        %v11649 = vshrl.u32 %v11534, 16
        %v11651 = vshll.u32 %v11534, 16
        %v11653 = vrot.slane %v11651, 1
        %v11654 = vor.u32 %v11649, %v11653
        %v11656 = vshll.u32 %v11486, 16
        %v11658 = vrot.slane %v11656, 1
        %v11659 = vsel %vm744, %v11654, %v11658
        %v11660 = vshrl.u32 %v11486, 16
        %v11662 = vor.u32 %v11660, %v11658
        %v11664 = vshrl.u32 %v11535, 16
        %v11666 = vshll.u32 %v11535, 16
        %v11668 = vrot.slane %v11666, 1
        %v11669 = vor.u32 %v11664, %v11668
        %v11671 = vshll.u32 %v11487, 16
        %v11673 = vrot.slane %v11671, 1
        %v11674 = vsel %vm744, %v11669, %v11673
        %v11675 = vshrl.u32 %v11487, 16
        %v11677 = vor.u32 %v11675, %v11673
        %v11679 = vshrl.u32 %v11536, 16
        %v11681 = vshll.u32 %v11536, 16
        %v11683 = vrot.slane %v11681, 1
        %v11684 = vor.u32 %v11679, %v11683
        %v11686 = vshll.u32 %v11488, 16
        %v11688 = vrot.slane %v11686, 1
        %v11689 = vsel %vm744, %v11684, %v11688
        %v11690 = vshrl.u32 %v11488, 16
        %v11692 = vor.u32 %v11690, %v11688
        %v11694 = vshrl.u32 %v11537, 16
        %v11696 = vshll.u32 %v11537, 16
        %v11698 = vrot.slane %v11696, 1
        %v11699 = vor.u32 %v11694, %v11698
        %v11701 = vshll.u32 %v11489, 16
        %v11703 = vrot.slane %v11701, 1
        %v11704 = vsel %vm744, %v11699, %v11703
        %v11705 = vshrl.u32 %v11489, 16
        %v11707 = vor.u32 %v11705, %v11703
        %v11709 = vshrl.u32 %v11538, 16
        %v11711 = vshll.u32 %v11538, 16
        %v11713 = vrot.slane %v11711, 1
        %v11714 = vor.u32 %v11709, %v11713
        %v11716 = vshll.u32 %v11490, 16
        %v11718 = vrot.slane %v11716, 1
        %v11719 = vsel %vm744, %v11714, %v11718
        %v11720 = vshrl.u32 %v11490, 16
        %v11722 = vor.u32 %v11720, %v11718
        %v11724 = vshrl.u32 %v11539, 16
        %v11726 = vshll.u32 %v11539, 16
        %v11728 = vrot.slane %v11726, 1
        %v11729 = vor.u32 %v11724, %v11728
        %v11731 = vshll.u32 %v11491, 16
        %v11733 = vrot.slane %v11731, 1
        %v11734 = vsel %vm744, %v11729, %v11733
        %v11735 = vshrl.u32 %v11491, 16
        %v11737 = vor.u32 %v11735, %v11733
        %v11739 = vshrl.u32 %v11540, 16
        %v11741 = vshll.u32 %v11540, 16
        %v11743 = vrot.slane %v11741, 1
        %v11744 = vor.u32 %v11739, %v11743
        %v11746 = vshll.u32 %v11492, 16
        %v11748 = vrot.slane %v11746, 1
        %v11749 = vsel %vm744, %v11744, %v11748
        %v11750 = vshrl.u32 %v11492, 16
        %v11752 = vor.u32 %v11750, %v11748
        %v11754 = vshrl.u32 %v11541, 16
        %v11756 = vshll.u32 %v11541, 16
        %v11758 = vrot.slane %v11756, 1
        %v11759 = vor.u32 %v11754, %v11758
        %v11761 = vshll.u32 %v11493, 16
        %v11763 = vrot.slane %v11761, 1
        %v11764 = vsel %vm744, %v11759, %v11763
        %v11765 = vshrl.u32 %v11493, 16
        %v11767 = vor.u32 %v11765, %v11763
        %v11769 = vshrl.u32 %v11542, 16
        %v11771 = vshll.u32 %v11542, 16
        %v11773 = vrot.slane %v11771, 1
        %v11774 = vor.u32 %v11769, %v11773
        %v11776 = vshll.u32 %v11494, 16
        %v11778 = vrot.slane %v11776, 1
        %v11779 = vsel %vm744, %v11774, %v11778
        %v11780 = vshrl.u32 %v11494, 16
        %v11782 = vor.u32 %v11780, %v11778
        %v11783 = vrot.slane %v10519, 1
        %v11784 = vrot.slane %v10521, 2
        %v11785 = vor.u32 %v11783, %v11784
        %v11786 = vrot.slane %v11555, 1
        %v11787 = vrot.slane %v11551, 2
        %v11788 = vor.u32 %v11786, %v11787
        %v11789 = vsel %vm985, %v11785, %v11788
        %v11791 = vshrl.u32 %v11554, 16
        %v11793 = vrot.slane %v11791, 1
        %v11794 = vshll.u32 %v11554, 16
        %v11796 = vrot.slane %v11794, 2
        %v11797 = vor.u32 %v11793, %v11796
        %v11799 = vshrl.u32 %v11557, 16
        %v11801 = vrot.slane %v11799, 1
        %v11802 = vshll.u32 %v11557, 16
        %v11804 = vrot.slane %v11802, 2
        %v11805 = vor.u32 %v11801, %v11804
        %v11806 = vsel %vm985, %v11797, %v11805
        %v11807 = vrot.slane %v10533, 1
        %v11808 = vrot.slane %v10535, 2
        %v11809 = vor.u32 %v11807, %v11808
        %v11810 = vrot.slane %v11570, 1
        %v11811 = vrot.slane %v11566, 2
        %v11812 = vor.u32 %v11810, %v11811
        %v11813 = vsel %vm985, %v11809, %v11812
        %v11815 = vshrl.u32 %v11569, 16
        %v11817 = vrot.slane %v11815, 1
        %v11818 = vshll.u32 %v11569, 16
        %v11820 = vrot.slane %v11818, 2
        %v11821 = vor.u32 %v11817, %v11820
        %v11823 = vshrl.u32 %v11572, 16
        %v11825 = vrot.slane %v11823, 1
        %v11826 = vshll.u32 %v11572, 16
        %v11828 = vrot.slane %v11826, 2
        %v11829 = vor.u32 %v11825, %v11828
        %v11830 = vsel %vm985, %v11821, %v11829
        %v11831 = vrot.slane %v10547, 1
        %v11832 = vrot.slane %v10549, 2
        %v11833 = vor.u32 %v11831, %v11832
        %v11834 = vrot.slane %v11585, 1
        %v11835 = vrot.slane %v11581, 2
        %v11836 = vor.u32 %v11834, %v11835
        %v11837 = vsel %vm985, %v11833, %v11836
        %v11839 = vshrl.u32 %v11584, 16
        %v11841 = vrot.slane %v11839, 1
        %v11842 = vshll.u32 %v11584, 16
        %v11844 = vrot.slane %v11842, 2
        %v11845 = vor.u32 %v11841, %v11844
        %v11847 = vshrl.u32 %v11587, 16
        %v11849 = vrot.slane %v11847, 1
        %v11850 = vshll.u32 %v11587, 16
        %v11852 = vrot.slane %v11850, 2
        %v11853 = vor.u32 %v11849, %v11852
        %v11854 = vsel %vm985, %v11845, %v11853
        %v11855 = vrot.slane %v10561, 1
        %v11856 = vrot.slane %v10563, 2
        %v11857 = vor.u32 %v11855, %v11856
        %v11858 = vrot.slane %v11600, 1
        %v11859 = vrot.slane %v11596, 2
        %v11860 = vor.u32 %v11858, %v11859
        %v11861 = vsel %vm985, %v11857, %v11860
        %v11863 = vshrl.u32 %v11599, 16
        %v11865 = vrot.slane %v11863, 1
        %v11866 = vshll.u32 %v11599, 16
        %v11868 = vrot.slane %v11866, 2
        %v11869 = vor.u32 %v11865, %v11868
        %v11871 = vshrl.u32 %v11602, 16
        %v11873 = vrot.slane %v11871, 1
        %v11874 = vshll.u32 %v11602, 16
        %v11876 = vrot.slane %v11874, 2
        %v11877 = vor.u32 %v11873, %v11876
        %v11878 = vsel %vm985, %v11869, %v11877
        %v11879 = vrot.slane %v10575, 1
        %v11880 = vrot.slane %v10577, 2
        %v11881 = vor.u32 %v11879, %v11880
        %v11882 = vrot.slane %v11615, 1
        %v11883 = vrot.slane %v11611, 2
        %v11884 = vor.u32 %v11882, %v11883
        %v11885 = vsel %vm985, %v11881, %v11884
        %v11887 = vshrl.u32 %v11614, 16
        %v11889 = vrot.slane %v11887, 1
        %v11890 = vshll.u32 %v11614, 16
        %v11892 = vrot.slane %v11890, 2
        %v11893 = vor.u32 %v11889, %v11892
        %v11895 = vshrl.u32 %v11617, 16
        %v11897 = vrot.slane %v11895, 1
        %v11898 = vshll.u32 %v11617, 16
        %v11900 = vrot.slane %v11898, 2
        %v11901 = vor.u32 %v11897, %v11900
        %v11902 = vsel %vm985, %v11893, %v11901
        %v11903 = vrot.slane %v10589, 1
        %v11904 = vrot.slane %v10591, 2
        %v11905 = vor.u32 %v11903, %v11904
        %v11906 = vrot.slane %v11630, 1
        %v11907 = vrot.slane %v11626, 2
        %v11908 = vor.u32 %v11906, %v11907
        %v11909 = vsel %vm985, %v11905, %v11908
        %v11911 = vshrl.u32 %v11629, 16
        %v11913 = vrot.slane %v11911, 1
        %v11914 = vshll.u32 %v11629, 16
        %v11916 = vrot.slane %v11914, 2
        %v11917 = vor.u32 %v11913, %v11916
        %v11919 = vshrl.u32 %v11632, 16
        %v11921 = vrot.slane %v11919, 1
        %v11922 = vshll.u32 %v11632, 16
        %v11924 = vrot.slane %v11922, 2
        %v11925 = vor.u32 %v11921, %v11924
        %v11926 = vsel %vm985, %v11917, %v11925
        %v11927 = vrot.slane %v10603, 1
        %v11928 = vrot.slane %v10605, 2
        %v11929 = vor.u32 %v11927, %v11928
        %v11930 = vrot.slane %v11645, 1
        %v11931 = vrot.slane %v11641, 2
        %v11932 = vor.u32 %v11930, %v11931
        %v11933 = vsel %vm985, %v11929, %v11932
        %v11935 = vshrl.u32 %v11644, 16
        %v11937 = vrot.slane %v11935, 1
        %v11938 = vshll.u32 %v11644, 16
        %v11940 = vrot.slane %v11938, 2
        %v11941 = vor.u32 %v11937, %v11940
        %v11943 = vshrl.u32 %v11647, 16
        %v11945 = vrot.slane %v11943, 1
        %v11946 = vshll.u32 %v11647, 16
        %v11948 = vrot.slane %v11946, 2
        %v11949 = vor.u32 %v11945, %v11948
        %v11950 = vsel %vm985, %v11941, %v11949
        %v11951 = vrot.slane %v10617, 1
        %v11952 = vrot.slane %v10619, 2
        %v11953 = vor.u32 %v11951, %v11952
        %v11954 = vrot.slane %v11660, 1
        %v11955 = vrot.slane %v11656, 2
        %v11956 = vor.u32 %v11954, %v11955
        %v11957 = vsel %vm985, %v11953, %v11956
        %v11959 = vshrl.u32 %v11659, 16
        %v11961 = vrot.slane %v11959, 1
        %v11962 = vshll.u32 %v11659, 16
        %v11964 = vrot.slane %v11962, 2
        %v11965 = vor.u32 %v11961, %v11964
        %v11967 = vshrl.u32 %v11662, 16
        %v11969 = vrot.slane %v11967, 1
        %v11970 = vshll.u32 %v11662, 16
        %v11972 = vrot.slane %v11970, 2
        %v11973 = vor.u32 %v11969, %v11972
        %v11974 = vsel %vm985, %v11965, %v11973
        %v11975 = vrot.slane %v10631, 1
        %v11976 = vrot.slane %v10633, 2
        %v11977 = vor.u32 %v11975, %v11976
        %v11978 = vrot.slane %v11675, 1
        %v11979 = vrot.slane %v11671, 2
        %v11980 = vor.u32 %v11978, %v11979
        %v11981 = vsel %vm985, %v11977, %v11980
        %v11983 = vshrl.u32 %v11674, 16
        %v11985 = vrot.slane %v11983, 1
        %v11986 = vshll.u32 %v11674, 16
        %v11988 = vrot.slane %v11986, 2
        %v11989 = vor.u32 %v11985, %v11988
        %v11991 = vshrl.u32 %v11677, 16
        %v11993 = vrot.slane %v11991, 1
        %v11994 = vshll.u32 %v11677, 16
        %v11996 = vrot.slane %v11994, 2
        %v11997 = vor.u32 %v11993, %v11996
        %v11998 = vsel %vm985, %v11989, %v11997
        %v11999 = vrot.slane %v10645, 1
        %v12000 = vrot.slane %v10647, 2
        %v12001 = vor.u32 %v11999, %v12000
        %v12002 = vrot.slane %v11690, 1
        %v12003 = vrot.slane %v11686, 2
        %v12004 = vor.u32 %v12002, %v12003
        %v12005 = vsel %vm985, %v12001, %v12004
        %v12007 = vshrl.u32 %v11689, 16
        %v12009 = vrot.slane %v12007, 1
        %v12010 = vshll.u32 %v11689, 16
        %v12012 = vrot.slane %v12010, 2
        %v12013 = vor.u32 %v12009, %v12012
        %v12015 = vshrl.u32 %v11692, 16
        %v12017 = vrot.slane %v12015, 1
        %v12018 = vshll.u32 %v11692, 16
        %v12020 = vrot.slane %v12018, 2
        %v12021 = vor.u32 %v12017, %v12020
        %v12022 = vsel %vm985, %v12013, %v12021
        %v12023 = vrot.slane %v10659, 1
        %v12024 = vrot.slane %v10661, 2
        %v12025 = vor.u32 %v12023, %v12024
        %v12026 = vrot.slane %v11705, 1
        %v12027 = vrot.slane %v11701, 2
        %v12028 = vor.u32 %v12026, %v12027
        %v12029 = vsel %vm985, %v12025, %v12028
        %v12031 = vshrl.u32 %v11704, 16
        %v12033 = vrot.slane %v12031, 1
        %v12034 = vshll.u32 %v11704, 16
        %v12036 = vrot.slane %v12034, 2
        %v12037 = vor.u32 %v12033, %v12036
        %v12039 = vshrl.u32 %v11707, 16
        %v12041 = vrot.slane %v12039, 1
        %v12042 = vshll.u32 %v11707, 16
        %v12044 = vrot.slane %v12042, 2
        %v12045 = vor.u32 %v12041, %v12044
        %v12046 = vsel %vm985, %v12037, %v12045
        %v12047 = vrot.slane %v10673, 1
        %v12048 = vrot.slane %v10675, 2
        %v12049 = vor.u32 %v12047, %v12048
        %v12050 = vrot.slane %v11720, 1
        %v12051 = vrot.slane %v11716, 2
        %v12052 = vor.u32 %v12050, %v12051
        %v12053 = vsel %vm985, %v12049, %v12052
        %v12055 = vshrl.u32 %v11719, 16
        %v12057 = vrot.slane %v12055, 1
        %v12058 = vshll.u32 %v11719, 16
        %v12060 = vrot.slane %v12058, 2
        %v12061 = vor.u32 %v12057, %v12060
        %v12063 = vshrl.u32 %v11722, 16
        %v12065 = vrot.slane %v12063, 1
        %v12066 = vshll.u32 %v11722, 16
        %v12068 = vrot.slane %v12066, 2
        %v12069 = vor.u32 %v12065, %v12068
        %v12070 = vsel %vm985, %v12061, %v12069
        %v12071 = vrot.slane %v10687, 1
        %v12072 = vrot.slane %v10689, 2
        %v12073 = vor.u32 %v12071, %v12072
        %v12074 = vrot.slane %v11735, 1
        %v12075 = vrot.slane %v11731, 2
        %v12076 = vor.u32 %v12074, %v12075
        %v12077 = vsel %vm985, %v12073, %v12076
        %v12079 = vshrl.u32 %v11734, 16
        %v12081 = vrot.slane %v12079, 1
        %v12082 = vshll.u32 %v11734, 16
        %v12084 = vrot.slane %v12082, 2
        %v12085 = vor.u32 %v12081, %v12084
        %v12087 = vshrl.u32 %v11737, 16
        %v12089 = vrot.slane %v12087, 1
        %v12090 = vshll.u32 %v11737, 16
        %v12092 = vrot.slane %v12090, 2
        %v12093 = vor.u32 %v12089, %v12092
        %v12094 = vsel %vm985, %v12085, %v12093
        %v12095 = vrot.slane %v10701, 1
        %v12096 = vrot.slane %v10703, 2
        %v12097 = vor.u32 %v12095, %v12096
        %v12098 = vrot.slane %v11750, 1
        %v12099 = vrot.slane %v11746, 2
        %v12100 = vor.u32 %v12098, %v12099
        %v12101 = vsel %vm985, %v12097, %v12100
        %v12103 = vshrl.u32 %v11749, 16
        %v12105 = vrot.slane %v12103, 1
        %v12106 = vshll.u32 %v11749, 16
        %v12108 = vrot.slane %v12106, 2
        %v12109 = vor.u32 %v12105, %v12108
        %v12111 = vshrl.u32 %v11752, 16
        %v12113 = vrot.slane %v12111, 1
        %v12114 = vshll.u32 %v11752, 16
        %v12116 = vrot.slane %v12114, 2
        %v12117 = vor.u32 %v12113, %v12116
        %v12118 = vsel %vm985, %v12109, %v12117
        %v12119 = vrot.slane %v10715, 1
        %v12120 = vrot.slane %v10717, 2
        %v12121 = vor.u32 %v12119, %v12120
        %v12122 = vrot.slane %v11765, 1
        %v12123 = vrot.slane %v11761, 2
        %v12124 = vor.u32 %v12122, %v12123
        %v12125 = vsel %vm985, %v12121, %v12124
        %v12127 = vshrl.u32 %v11764, 16
        %v12129 = vrot.slane %v12127, 1
        %v12130 = vshll.u32 %v11764, 16
        %v12132 = vrot.slane %v12130, 2
        %v12133 = vor.u32 %v12129, %v12132
        %v12135 = vshrl.u32 %v11767, 16
        %v12137 = vrot.slane %v12135, 1
        %v12138 = vshll.u32 %v11767, 16
        %v12140 = vrot.slane %v12138, 2
        %v12141 = vor.u32 %v12137, %v12140
        %v12142 = vsel %vm985, %v12133, %v12141
        %v12143 = vrot.slane %v10729, 1
        %v12144 = vrot.slane %v10731, 2
        %v12145 = vor.u32 %v12143, %v12144
        %v12146 = vrot.slane %v11780, 1
        %v12147 = vrot.slane %v11776, 2
        %v12148 = vor.u32 %v12146, %v12147
        %v12149 = vsel %vm985, %v12145, %v12148
        %v12151 = vshrl.u32 %v11779, 16
        %v12153 = vrot.slane %v12151, 1
        %v12154 = vshll.u32 %v11779, 16
        %v12156 = vrot.slane %v12154, 2
        %v12157 = vor.u32 %v12153, %v12156
        %v12159 = vshrl.u32 %v11782, 16
        %v12161 = vrot.slane %v12159, 1
        %v12162 = vshll.u32 %v11782, 16
        %v12164 = vrot.slane %v12162, 2
        %v12165 = vor.u32 %v12161, %v12164
        %v12166 = vsel %vm985, %v12157, %v12165
        %v12199 = vld [vmem:[%s4 + $0x200] sm:$0xf]
        %v12200 = vld [vmem:[%s4 + $0x204] sm:$0xf]
        %v12201 = vld [vmem:[%s4 + $0x208] sm:$0xf]
        %v12202 = vld [vmem:[%s4 + $0x20c] sm:$0xf]
        %v12203 = vld [vmem:[%s4 + $0x210] sm:$0xf]
        %v12204 = vld [vmem:[%s4 + $0x214] sm:$0xf]
        %v12205 = vld [vmem:[%s4 + $0x218] sm:$0xf]
        %v12206 = vld [vmem:[%s4 + $0x21c] sm:$0xf]
        %v12207 = vld [vmem:[%s4 + $0x220] sm:$0xf]
        %v12208 = vld [vmem:[%s4 + $0x224] sm:$0xf]
        %v12209 = vld [vmem:[%s4 + $0x228] sm:$0xf]
        %v12210 = vld [vmem:[%s4 + $0x22c] sm:$0xf]
        %v12211 = vld [vmem:[%s4 + $0x230] sm:$0xf]
        %v12212 = vld [vmem:[%s4 + $0x234] sm:$0xf]
        %v12213 = vld [vmem:[%s4 + $0x238] sm:$0xf]
        %v12214 = vld [vmem:[%s4 + $0x23c] sm:$0xf]
        %v12215 = vld [vmem:[%s4 + $0x240] sm:$0xf]
        %v12216 = vld [vmem:[%s4 + $0x244] sm:$0xf]
        %v12217 = vld [vmem:[%s4 + $0x248] sm:$0xf]
        %v12218 = vld [vmem:[%s4 + $0x24c] sm:$0xf]
        %v12219 = vld [vmem:[%s4 + $0x250] sm:$0xf]
        %v12220 = vld [vmem:[%s4 + $0x254] sm:$0xf]
        %v12221 = vld [vmem:[%s4 + $0x258] sm:$0xf]
        %v12222 = vld [vmem:[%s4 + $0x25c] sm:$0xf]
        %v12223 = vld [vmem:[%s4 + $0x260] sm:$0xf]
        %v12224 = vld [vmem:[%s4 + $0x264] sm:$0xf]
        %v12225 = vld [vmem:[%s4 + $0x268] sm:$0xf]
        %v12226 = vld [vmem:[%s4 + $0x26c] sm:$0xf]
        %v12227 = vld [vmem:[%s4 + $0x270] sm:$0xf]
        %v12228 = vld [vmem:[%s4 + $0x274] sm:$0xf]
        %v12229 = vld [vmem:[%s4 + $0x278] sm:$0xf]
        %v12230 = vld [vmem:[%s4 + $0x27c] sm:$0xf]
        %v12263 = vunpack.c.l.b16 %v12199
        %v12264 = vunpack.c.l.b16 %v12200
        %v12265 = vunpack.c.l.b16 %v12201
        %v12266 = vunpack.c.l.b16 %v12202
        %v12267 = vunpack.c.l.b16 %v12203
        %v12268 = vunpack.c.l.b16 %v12204
        %v12269 = vunpack.c.l.b16 %v12205
        %v12270 = vunpack.c.l.b16 %v12206
        %v12271 = vunpack.c.l.b16 %v12207
        %v12272 = vunpack.c.l.b16 %v12208
        %v12273 = vunpack.c.l.b16 %v12209
        %v12274 = vunpack.c.l.b16 %v12210
        %v12275 = vunpack.c.l.b16 %v12211
        %v12276 = vunpack.c.l.b16 %v12212
        %v12277 = vunpack.c.l.b16 %v12213
        %v12278 = vunpack.c.l.b16 %v12214
        %v12279 = vunpack.c.l.b16 %v12215
        %v12280 = vunpack.c.l.b16 %v12216
        %v12281 = vunpack.c.l.b16 %v12217
        %v12282 = vunpack.c.l.b16 %v12218
        %v12283 = vunpack.c.l.b16 %v12219
        %v12284 = vunpack.c.l.b16 %v12220
        %v12285 = vunpack.c.l.b16 %v12221
        %v12286 = vunpack.c.l.b16 %v12222
        %v12287 = vunpack.c.l.b16 %v12223
        %v12288 = vunpack.c.l.b16 %v12224
        %v12289 = vunpack.c.l.b16 %v12225
        %v12290 = vunpack.c.l.b16 %v12226
        %v12291 = vunpack.c.l.b16 %v12227
        %v12292 = vunpack.c.l.b16 %v12228
        %v12293 = vunpack.c.l.b16 %v12229
        %v12294 = vunpack.c.l.b16 %v12230
        %v12295 = vpack.c.b16 %v12264, %v12263
        %v12296 = vpack.c.b16 %v12266, %v12265
        %v12297 = vpack.c.b16 %v12268, %v12267
        %v12298 = vpack.c.b16 %v12270, %v12269
        %v12299 = vpack.c.b16 %v12272, %v12271
        %v12300 = vpack.c.b16 %v12274, %v12273
        %v12301 = vpack.c.b16 %v12276, %v12275
        %v12302 = vpack.c.b16 %v12278, %v12277
        %v12303 = vpack.c.b16 %v12280, %v12279
        %v12304 = vpack.c.b16 %v12282, %v12281
        %v12305 = vpack.c.b16 %v12284, %v12283
        %v12306 = vpack.c.b16 %v12286, %v12285
        %v12307 = vpack.c.b16 %v12288, %v12287
        %v12308 = vpack.c.b16 %v12290, %v12289
        %v12309 = vpack.c.b16 %v12292, %v12291
        %v12310 = vpack.c.b16 %v12294, %v12293
        %12327 = vmatprep.subr.bf16.mxu0 0
        %12328 = vmatpush1.bf16.msra.mxu0 %v12302
        %12329 = vmatprep.subr.bf16.mxu0 0
        %12330 = vmatpush1.bf16.msra.mxu0 %v12301
        %12331 = vmatprep.subr.bf16.mxu0 0
        %12332 = vmatpush1.bf16.msra.mxu0 %v12300
        %12333 = vmatprep.subr.bf16.mxu0 0
        %12334 = vmatpush1.bf16.msra.mxu0 %v12299
        %12335 = vmatprep.subr.bf16.mxu0 0
        %12336 = vmatpush1.bf16.msra.mxu0 %v12298
        %12337 = vmatprep.subr.bf16.mxu0 0
        %12338 = vmatpush1.bf16.msra.mxu0 %v12297
        %12339 = vmatprep.subr.bf16.mxu0 0
        %12340 = vmatpush1.bf16.msra.mxu0 %v12296
        %12341 = vmatprep.subr.bf16.mxu0 0
        %12342 = vmatpush1.bf16.msra.mxu0 %v12295
        %12343 = vmatprep.subr.bf16.mxu0 0
        %12344 = vmatpush2.bf16.msra.mxu0 %v12310
        %12345 = vmatprep.subr.bf16.mxu0 0
        %12346 = vmatpush2.bf16.msra.mxu0 %v12309
        %12347 = vmatprep.subr.bf16.mxu0 0
        %12348 = vmatpush2.bf16.msra.mxu0 %v12308
        %12349 = vmatprep.subr.bf16.mxu0 0
        %12350 = vmatpush2.bf16.msra.mxu0 %v12307
        %12351 = vmatprep.subr.bf16.mxu0 0
        %12352 = vmatpush2.bf16.msra.mxu0 %v12306
        %12353 = vmatprep.subr.bf16.mxu0 0
        %12354 = vmatpush2.bf16.msra.mxu0 %v12305
        %12355 = vmatprep.subr.bf16.mxu0 0
        %12356 = vmatpush2.bf16.msra.mxu0 %v12304
        %12357 = vmatprep.subr.bf16.mxu0 0
        %12358 = vmatpush2.bf16.msra.mxu0 %v12303
        %12359 = vmatprep.mubr.bf16.mxu0 %v11806
        %12360 = vmatmul.mubr.bf16.gmra.mxu0 %v11789
        %v12361 = vpop.f32.mrf.mxu0
        %v12362 = vadd.f32 0.0, %v12361
        %v12363 = vpop.f32.mrf.mxu0
        %v12364 = vpop.f32.mrf.mxu0
        %v12365 = vadd.f32 0.0, %v12364
        %v12366 = vpop.f32.mrf.mxu0
        %12367 = vmatprep.mubr.bf16.mxu0 %v11830
        %12368 = vmatmul.mubr.bf16.gmra.mxu0 %v11813
        %v12369 = vpop.f32.mrf.mxu0
        %v12370 = vadd.f32 0.0, %v12369
        %v12371 = vpop.f32.mrf.mxu0
        %v12372 = vpop.f32.mrf.mxu0
        %v12373 = vadd.f32 0.0, %v12372
        %v12374 = vpop.f32.mrf.mxu0
        %12375 = vmatprep.mubr.bf16.mxu0 %v11854
        %12376 = vmatmul.mubr.bf16.gmra.mxu0 %v11837
        %v12377 = vpop.f32.mrf.mxu0
        %v12378 = vadd.f32 0.0, %v12377
        %v12379 = vpop.f32.mrf.mxu0
        %v12380 = vpop.f32.mrf.mxu0
        %v12381 = vadd.f32 0.0, %v12380
        %v12382 = vpop.f32.mrf.mxu0
        %12383 = vmatprep.mubr.bf16.mxu0 %v11878
        %12384 = vmatmul.mubr.bf16.gmra.mxu0 %v11861
        %v12385 = vpop.f32.mrf.mxu0
        %v12386 = vadd.f32 0.0, %v12385
        %v12387 = vpop.f32.mrf.mxu0
        %v12388 = vpop.f32.mrf.mxu0
        %v12389 = vadd.f32 0.0, %v12388
        %v12390 = vpop.f32.mrf.mxu0
        %12391 = vmatprep.mubr.bf16.mxu0 %v11902
        %12392 = vmatmul.mubr.bf16.gmra.mxu0 %v11885
        %v12393 = vpop.f32.mrf.mxu0
        %v12394 = vadd.f32 0.0, %v12393
        %v12395 = vpop.f32.mrf.mxu0
        %v12396 = vpop.f32.mrf.mxu0
        %v12397 = vadd.f32 0.0, %v12396
        %v12398 = vpop.f32.mrf.mxu0
        %12399 = vmatprep.mubr.bf16.mxu0 %v11926
        %12400 = vmatmul.mubr.bf16.gmra.mxu0 %v11909
        %v12401 = vpop.f32.mrf.mxu0
        %v12402 = vadd.f32 0.0, %v12401
        %v12403 = vpop.f32.mrf.mxu0
        %v12404 = vpop.f32.mrf.mxu0
        %v12405 = vadd.f32 0.0, %v12404
        %v12406 = vpop.f32.mrf.mxu0
        %12407 = vmatprep.mubr.bf16.mxu0 %v11950
        %12408 = vmatmul.mubr.bf16.gmra.mxu0 %v11933
        %v12409 = vpop.f32.mrf.mxu0
        %v12410 = vadd.f32 0.0, %v12409
        %v12411 = vpop.f32.mrf.mxu0
        %v12412 = vpop.f32.mrf.mxu0
        %v12413 = vadd.f32 0.0, %v12412
        %v12414 = vpop.f32.mrf.mxu0
        %12415 = vmatprep.mubr.bf16.mxu0 %v11974
        %12416 = vmatmul.mubr.bf16.gmra.mxu0 %v11957
        %v12417 = vpop.f32.mrf.mxu0
        %v12418 = vadd.f32 0.0, %v12417
        %v12419 = vpop.f32.mrf.mxu0
        %v12420 = vpop.f32.mrf.mxu0
        %v12421 = vadd.f32 0.0, %v12420
        %v12422 = vpop.f32.mrf.mxu0
        %12423 = vmatprep.mubr.bf16.mxu0 %v11998
        %12424 = vmatmul.mubr.bf16.gmra.mxu0 %v11981
        %v12425 = vpop.f32.mrf.mxu0
        %v12426 = vadd.f32 0.0, %v12425
        %v12427 = vpop.f32.mrf.mxu0
        %v12428 = vpop.f32.mrf.mxu0
        %v12429 = vadd.f32 0.0, %v12428
        %v12430 = vpop.f32.mrf.mxu0
        %12431 = vmatprep.mubr.bf16.mxu0 %v12022
        %12432 = vmatmul.mubr.bf16.gmra.mxu0 %v12005
        %v12433 = vpop.f32.mrf.mxu0
        %v12434 = vadd.f32 0.0, %v12433
        %v12435 = vpop.f32.mrf.mxu0
        %v12436 = vpop.f32.mrf.mxu0
        %v12437 = vadd.f32 0.0, %v12436
        %v12438 = vpop.f32.mrf.mxu0
        %12439 = vmatprep.mubr.bf16.mxu0 %v12046
        %12440 = vmatmul.mubr.bf16.gmra.mxu0 %v12029
        %v12441 = vpop.f32.mrf.mxu0
        %v12442 = vadd.f32 0.0, %v12441
        %v12443 = vpop.f32.mrf.mxu0
        %v12444 = vpop.f32.mrf.mxu0
        %v12445 = vadd.f32 0.0, %v12444
        %v12446 = vpop.f32.mrf.mxu0
        %12447 = vmatprep.mubr.bf16.mxu0 %v12070
        %12448 = vmatmul.mubr.bf16.gmra.mxu0 %v12053
        %v12449 = vpop.f32.mrf.mxu0
        %v12450 = vadd.f32 0.0, %v12449
        %v12451 = vpop.f32.mrf.mxu0
        %v12452 = vpop.f32.mrf.mxu0
        %v12453 = vadd.f32 0.0, %v12452
        %v12454 = vpop.f32.mrf.mxu0
        %12455 = vmatprep.mubr.bf16.mxu0 %v12094
        %12456 = vmatmul.mubr.bf16.gmra.mxu0 %v12077
        %v12457 = vpop.f32.mrf.mxu0
        %v12458 = vadd.f32 0.0, %v12457
        %v12459 = vpop.f32.mrf.mxu0
        %v12460 = vpop.f32.mrf.mxu0
        %v12461 = vadd.f32 0.0, %v12460
        %v12462 = vpop.f32.mrf.mxu0
        %12463 = vmatprep.mubr.bf16.mxu0 %v12118
        %12464 = vmatmul.mubr.bf16.gmra.mxu0 %v12101
        %v12465 = vpop.f32.mrf.mxu0
        %v12466 = vadd.f32 0.0, %v12465
        %v12467 = vpop.f32.mrf.mxu0
        %v12468 = vpop.f32.mrf.mxu0
        %v12469 = vadd.f32 0.0, %v12468
        %v12470 = vpop.f32.mrf.mxu0
        %12471 = vmatprep.mubr.bf16.mxu0 %v12142
        %12472 = vmatmul.mubr.bf16.gmra.mxu0 %v12125
        %v12473 = vpop.f32.mrf.mxu0
        %v12474 = vadd.f32 0.0, %v12473
        %v12475 = vpop.f32.mrf.mxu0
        %v12476 = vpop.f32.mrf.mxu0
        %v12477 = vadd.f32 0.0, %v12476
        %v12478 = vpop.f32.mrf.mxu0
        %12479 = vmatprep.mubr.bf16.mxu0 %v12166
        %12480 = vmatmul.mubr.bf16.gmra.mxu0 %v12149
        %v12481 = vpop.f32.mrf.mxu0
        %v12482 = vadd.f32 0.0, %v12481
        %v12483 = vpop.f32.mrf.mxu0
        %v12484 = vpop.f32.mrf.mxu0
        %v12485 = vadd.f32 0.0, %v12484
        %v12486 = vpop.f32.mrf.mxu0
        %12487 = vdwg.mxu0
        %v12488 = vadd.f32 %v11383, %v12362
        %v12489 = vadd.f32 %v11384, %v12365
        %v12490 = vadd.f32 %v11385, %v12370
        %v12491 = vadd.f32 %v11386, %v12373
        %v12492 = vadd.f32 %v11387, %v12378
        %v12493 = vadd.f32 %v11388, %v12381
        %v12494 = vadd.f32 %v11389, %v12386
        %v12495 = vadd.f32 %v11390, %v12389
        %v12496 = vadd.f32 %v11391, %v12394
        %v12497 = vadd.f32 %v11392, %v12397
        %v12498 = vadd.f32 %v11393, %v12402
        %v12499 = vadd.f32 %v11394, %v12405
        %v12500 = vadd.f32 %v11395, %v12410
        %v12501 = vadd.f32 %v11396, %v12413
        %v12502 = vadd.f32 %v11397, %v12418
        %v12503 = vadd.f32 %v11398, %v12421
        %v12504 = vadd.f32 %v11399, %v12426
        %v12505 = vadd.f32 %v11400, %v12429
        %v12506 = vadd.f32 %v11401, %v12434
        %v12507 = vadd.f32 %v11402, %v12437
        %v12508 = vadd.f32 %v11403, %v12442
        %v12509 = vadd.f32 %v11404, %v12445
        %v12510 = vadd.f32 %v11405, %v12450
        %v12511 = vadd.f32 %v11406, %v12453
        %v12512 = vadd.f32 %v11407, %v12458
        %v12513 = vadd.f32 %v11408, %v12461
        %v12514 = vadd.f32 %v11409, %v12466
        %v12515 = vadd.f32 %v11410, %v12469
        %v12516 = vadd.f32 %v11411, %v12474
        %v12517 = vadd.f32 %v11412, %v12477
        %v12518 = vadd.f32 %v11413, %v12482
        %v12519 = vadd.f32 %v11414, %v12485
        %v12520 = vld [vmem:[#allocation2 + $0x10] sm:$0x7]
        %v12521 = vld [vmem:[#allocation2 + $0x24] sm:$0x7]
        %v12522 = vld [vmem:[#allocation2 + $0x38] sm:$0x7]
        %v12523 = vld [vmem:[#allocation2 + $0x4c] sm:$0x7]
        %v12524 = vld [vmem:[#allocation2 + $0x60] sm:$0x7]
        %v12525 = vld [vmem:[#allocation2 + $0x74] sm:$0x7]
        %v12526 = vld [vmem:[#allocation2 + $0x88] sm:$0x7]
        %v12527 = vld [vmem:[#allocation2 + $0x9c] sm:$0x7]
        %v12528 = vld [vmem:[#allocation2 + $0xb0] sm:$0x7]
        %v12529 = vld [vmem:[#allocation2 + $0xc4] sm:$0x7]
        %v12530 = vld [vmem:[#allocation2 + $0xd8] sm:$0x7]
        %v12531 = vld [vmem:[#allocation2 + $0xec] sm:$0x7]
        %v12532 = vld [vmem:[#allocation2 + $0x100] sm:$0x7]
        %v12533 = vld [vmem:[#allocation2 + $0x114] sm:$0x7]
        %v12534 = vld [vmem:[#allocation2 + $0x128] sm:$0x7]
        %v12535 = vld [vmem:[#allocation2 + $0x13c] sm:$0x7]
        %v12537 = vshrl.u32 %v11431, 16
        %v12539 = vrot.slane %v12537, 6
        %v12540 = vshll.u32 %v11431, 16
        %v12542 = vrot.slane %v12540, 7
        %v12543 = vor.u32 %v12539, %v12542
        %v12544 = vrot.slane %v12543, 4
        %v12546 = vshrl.u32 %v10279, 16
        %v12548 = vrot.slane %v12546, 6
        %v12549 = vshll.u32 %v10279, 16
        %v12551 = vrot.slane %v12549, 7
        %v12552 = vor.u32 %v12548, %v12551
        %v12553 = vsel %vm6003, %v12544, %v12552
        %v12554 = vrot.slane %v12552, 4
        %v12556 = vshrl.u32 %v12520, 16
        %v12558 = vrot.slane %v12556, 6
        %v12559 = vshll.u32 %v12520, 16
        %v12561 = vrot.slane %v12559, 7
        %v12562 = vor.u32 %v12558, %v12561
        %v12563 = vsel %vm6003, %v12554, %v12562
        %v12565 = vshrl.u32 %v11432, 16
        %v12567 = vrot.slane %v12565, 6
        %v12568 = vshll.u32 %v11432, 16
        %v12570 = vrot.slane %v12568, 7
        %v12571 = vor.u32 %v12567, %v12570
        %v12572 = vrot.slane %v12571, 4
        %v12574 = vshrl.u32 %v10282, 16
        %v12576 = vrot.slane %v12574, 6
        %v12577 = vshll.u32 %v10282, 16
        %v12579 = vrot.slane %v12577, 7
        %v12580 = vor.u32 %v12576, %v12579
        %v12581 = vsel %vm6003, %v12572, %v12580
        %v12582 = vrot.slane %v12580, 4
        %v12584 = vshrl.u32 %v12521, 16
        %v12586 = vrot.slane %v12584, 6
        %v12587 = vshll.u32 %v12521, 16
        %v12589 = vrot.slane %v12587, 7
        %v12590 = vor.u32 %v12586, %v12589
        %v12591 = vsel %vm6003, %v12582, %v12590
        %v12593 = vshrl.u32 %v11433, 16
        %v12595 = vrot.slane %v12593, 6
        %v12596 = vshll.u32 %v11433, 16
        %v12598 = vrot.slane %v12596, 7
        %v12599 = vor.u32 %v12595, %v12598
        %v12600 = vrot.slane %v12599, 4
        %v12602 = vshrl.u32 %v10285, 16
        %v12604 = vrot.slane %v12602, 6
        %v12605 = vshll.u32 %v10285, 16
        %v12607 = vrot.slane %v12605, 7
        %v12608 = vor.u32 %v12604, %v12607
        %v12609 = vsel %vm6003, %v12600, %v12608
        %v12610 = vrot.slane %v12608, 4
        %v12612 = vshrl.u32 %v12522, 16
        %v12614 = vrot.slane %v12612, 6
        %v12615 = vshll.u32 %v12522, 16
        %v12617 = vrot.slane %v12615, 7
        %v12618 = vor.u32 %v12614, %v12617
        %v12619 = vsel %vm6003, %v12610, %v12618
        %v12621 = vshrl.u32 %v11434, 16
        %v12623 = vrot.slane %v12621, 6
        %v12624 = vshll.u32 %v11434, 16
        %v12626 = vrot.slane %v12624, 7
        %v12627 = vor.u32 %v12623, %v12626
        %v12628 = vrot.slane %v12627, 4
        %v12630 = vshrl.u32 %v10288, 16
        %v12632 = vrot.slane %v12630, 6
        %v12633 = vshll.u32 %v10288, 16
        %v12635 = vrot.slane %v12633, 7
        %v12636 = vor.u32 %v12632, %v12635
        %v12637 = vsel %vm6003, %v12628, %v12636
        %v12638 = vrot.slane %v12636, 4
        %v12640 = vshrl.u32 %v12523, 16
        %v12642 = vrot.slane %v12640, 6
        %v12643 = vshll.u32 %v12523, 16
        %v12645 = vrot.slane %v12643, 7
        %v12646 = vor.u32 %v12642, %v12645
        %v12647 = vsel %vm6003, %v12638, %v12646
        %v12649 = vshrl.u32 %v11435, 16
        %v12651 = vrot.slane %v12649, 6
        %v12652 = vshll.u32 %v11435, 16
        %v12654 = vrot.slane %v12652, 7
        %v12655 = vor.u32 %v12651, %v12654
        %v12656 = vrot.slane %v12655, 4
        %v12658 = vshrl.u32 %v10291, 16
        %v12660 = vrot.slane %v12658, 6
        %v12661 = vshll.u32 %v10291, 16
        %v12663 = vrot.slane %v12661, 7
        %v12664 = vor.u32 %v12660, %v12663
        %v12665 = vsel %vm6003, %v12656, %v12664
        %v12666 = vrot.slane %v12664, 4
        %v12668 = vshrl.u32 %v12524, 16
        %v12670 = vrot.slane %v12668, 6
        %v12671 = vshll.u32 %v12524, 16
        %v12673 = vrot.slane %v12671, 7
        %v12674 = vor.u32 %v12670, %v12673
        %v12675 = vsel %vm6003, %v12666, %v12674
        %v12677 = vshrl.u32 %v11436, 16
        %v12679 = vrot.slane %v12677, 6
        %v12680 = vshll.u32 %v11436, 16
        %v12682 = vrot.slane %v12680, 7
        %v12683 = vor.u32 %v12679, %v12682
        %v12684 = vrot.slane %v12683, 4
        %v12686 = vshrl.u32 %v10294, 16
        %v12688 = vrot.slane %v12686, 6
        %v12689 = vshll.u32 %v10294, 16
        %v12691 = vrot.slane %v12689, 7
        %v12692 = vor.u32 %v12688, %v12691
        %v12693 = vsel %vm6003, %v12684, %v12692
        %v12694 = vrot.slane %v12692, 4
        %v12696 = vshrl.u32 %v12525, 16
        %v12698 = vrot.slane %v12696, 6
        %v12699 = vshll.u32 %v12525, 16
        %v12701 = vrot.slane %v12699, 7
        %v12702 = vor.u32 %v12698, %v12701
        %v12703 = vsel %vm6003, %v12694, %v12702
        %v12705 = vshrl.u32 %v11437, 16
        %v12707 = vrot.slane %v12705, 6
        %v12708 = vshll.u32 %v11437, 16
        %v12710 = vrot.slane %v12708, 7
        %v12711 = vor.u32 %v12707, %v12710
        %v12712 = vrot.slane %v12711, 4
        %v12714 = vshrl.u32 %v10297, 16
        %v12716 = vrot.slane %v12714, 6
        %v12717 = vshll.u32 %v10297, 16
        %v12719 = vrot.slane %v12717, 7
        %v12720 = vor.u32 %v12716, %v12719
        %v12721 = vsel %vm6003, %v12712, %v12720
        %v12722 = vrot.slane %v12720, 4
        %v12724 = vshrl.u32 %v12526, 16
        %v12726 = vrot.slane %v12724, 6
        %v12727 = vshll.u32 %v12526, 16
        %v12729 = vrot.slane %v12727, 7
        %v12730 = vor.u32 %v12726, %v12729
        %v12731 = vsel %vm6003, %v12722, %v12730
        %v12733 = vshrl.u32 %v11438, 16
        %v12735 = vrot.slane %v12733, 6
        %v12736 = vshll.u32 %v11438, 16
        %v12738 = vrot.slane %v12736, 7
        %v12739 = vor.u32 %v12735, %v12738
        %v12740 = vrot.slane %v12739, 4
        %v12742 = vshrl.u32 %v10300, 16
        %v12744 = vrot.slane %v12742, 6
        %v12745 = vshll.u32 %v10300, 16
        %v12747 = vrot.slane %v12745, 7
        %v12748 = vor.u32 %v12744, %v12747
        %v12749 = vsel %vm6003, %v12740, %v12748
        %v12750 = vrot.slane %v12748, 4
        %v12752 = vshrl.u32 %v12527, 16
        %v12754 = vrot.slane %v12752, 6
        %v12755 = vshll.u32 %v12527, 16
        %v12757 = vrot.slane %v12755, 7
        %v12758 = vor.u32 %v12754, %v12757
        %v12759 = vsel %vm6003, %v12750, %v12758
        %v12761 = vshrl.u32 %v11439, 16
        %v12763 = vrot.slane %v12761, 6
        %v12764 = vshll.u32 %v11439, 16
        %v12766 = vrot.slane %v12764, 7
        %v12767 = vor.u32 %v12763, %v12766
        %v12768 = vrot.slane %v12767, 4
        %v12770 = vshrl.u32 %v10303, 16
        %v12772 = vrot.slane %v12770, 6
        %v12773 = vshll.u32 %v10303, 16
        %v12775 = vrot.slane %v12773, 7
        %v12776 = vor.u32 %v12772, %v12775
        %v12777 = vsel %vm6003, %v12768, %v12776
        %v12778 = vrot.slane %v12776, 4
        %v12780 = vshrl.u32 %v12528, 16
        %v12782 = vrot.slane %v12780, 6
        %v12783 = vshll.u32 %v12528, 16
        %v12785 = vrot.slane %v12783, 7
        %v12786 = vor.u32 %v12782, %v12785
        %v12787 = vsel %vm6003, %v12778, %v12786
        %v12789 = vshrl.u32 %v11440, 16
        %v12791 = vrot.slane %v12789, 6
        %v12792 = vshll.u32 %v11440, 16
        %v12794 = vrot.slane %v12792, 7
        %v12795 = vor.u32 %v12791, %v12794
        %v12796 = vrot.slane %v12795, 4
        %v12798 = vshrl.u32 %v10306, 16
        %v12800 = vrot.slane %v12798, 6
        %v12801 = vshll.u32 %v10306, 16
        %v12803 = vrot.slane %v12801, 7
        %v12804 = vor.u32 %v12800, %v12803
        %v12805 = vsel %vm6003, %v12796, %v12804
        %v12806 = vrot.slane %v12804, 4
        %v12808 = vshrl.u32 %v12529, 16
        %v12810 = vrot.slane %v12808, 6
        %v12811 = vshll.u32 %v12529, 16
        %v12813 = vrot.slane %v12811, 7
        %v12814 = vor.u32 %v12810, %v12813
        %v12815 = vsel %vm6003, %v12806, %v12814
        %v12817 = vshrl.u32 %v11441, 16
        %v12819 = vrot.slane %v12817, 6
        %v12820 = vshll.u32 %v11441, 16
        %v12822 = vrot.slane %v12820, 7
        %v12823 = vor.u32 %v12819, %v12822
        %v12824 = vrot.slane %v12823, 4
        %v12826 = vshrl.u32 %v10309, 16
        %v12828 = vrot.slane %v12826, 6
        %v12829 = vshll.u32 %v10309, 16
        %v12831 = vrot.slane %v12829, 7
        %v12832 = vor.u32 %v12828, %v12831
        %v12833 = vsel %vm6003, %v12824, %v12832
        %v12834 = vrot.slane %v12832, 4
        %v12836 = vshrl.u32 %v12530, 16
        %v12838 = vrot.slane %v12836, 6
        %v12839 = vshll.u32 %v12530, 16
        %v12841 = vrot.slane %v12839, 7
        %v12842 = vor.u32 %v12838, %v12841
        %v12843 = vsel %vm6003, %v12834, %v12842
        %v12845 = vshrl.u32 %v11442, 16
        %v12847 = vrot.slane %v12845, 6
        %v12848 = vshll.u32 %v11442, 16
        %v12850 = vrot.slane %v12848, 7
        %v12851 = vor.u32 %v12847, %v12850
        %v12852 = vrot.slane %v12851, 4
        %v12854 = vshrl.u32 %v10312, 16
        %v12856 = vrot.slane %v12854, 6
        %v12857 = vshll.u32 %v10312, 16
        %v12859 = vrot.slane %v12857, 7
        %v12860 = vor.u32 %v12856, %v12859
        %v12861 = vsel %vm6003, %v12852, %v12860
        %v12862 = vrot.slane %v12860, 4
        %v12864 = vshrl.u32 %v12531, 16
        %v12866 = vrot.slane %v12864, 6
        %v12867 = vshll.u32 %v12531, 16
        %v12869 = vrot.slane %v12867, 7
        %v12870 = vor.u32 %v12866, %v12869
        %v12871 = vsel %vm6003, %v12862, %v12870
        %v12873 = vshrl.u32 %v11443, 16
        %v12875 = vrot.slane %v12873, 6
        %v12876 = vshll.u32 %v11443, 16
        %v12878 = vrot.slane %v12876, 7
        %v12879 = vor.u32 %v12875, %v12878
        %v12880 = vrot.slane %v12879, 4
        %v12882 = vshrl.u32 %v10315, 16
        %v12884 = vrot.slane %v12882, 6
        %v12885 = vshll.u32 %v10315, 16
        %v12887 = vrot.slane %v12885, 7
        %v12888 = vor.u32 %v12884, %v12887
        %v12889 = vsel %vm6003, %v12880, %v12888
        %v12890 = vrot.slane %v12888, 4
        %v12892 = vshrl.u32 %v12532, 16
        %v12894 = vrot.slane %v12892, 6
        %v12895 = vshll.u32 %v12532, 16
        %v12897 = vrot.slane %v12895, 7
        %v12898 = vor.u32 %v12894, %v12897
        %v12899 = vsel %vm6003, %v12890, %v12898
        %v12901 = vshrl.u32 %v11444, 16
        %v12903 = vrot.slane %v12901, 6
        %v12904 = vshll.u32 %v11444, 16
        %v12906 = vrot.slane %v12904, 7
        %v12907 = vor.u32 %v12903, %v12906
        %v12908 = vrot.slane %v12907, 4
        %v12910 = vshrl.u32 %v10318, 16
        %v12912 = vrot.slane %v12910, 6
        %v12913 = vshll.u32 %v10318, 16
        %v12915 = vrot.slane %v12913, 7
        %v12916 = vor.u32 %v12912, %v12915
        %v12917 = vsel %vm6003, %v12908, %v12916
        %v12918 = vrot.slane %v12916, 4
        %v12920 = vshrl.u32 %v12533, 16
        %v12922 = vrot.slane %v12920, 6
        %v12923 = vshll.u32 %v12533, 16
        %v12925 = vrot.slane %v12923, 7
        %v12926 = vor.u32 %v12922, %v12925
        %v12927 = vsel %vm6003, %v12918, %v12926
        %v12929 = vshrl.u32 %v11445, 16
        %v12931 = vrot.slane %v12929, 6
        %v12932 = vshll.u32 %v11445, 16
        %v12934 = vrot.slane %v12932, 7
        %v12935 = vor.u32 %v12931, %v12934
        %v12936 = vrot.slane %v12935, 4
        %v12938 = vshrl.u32 %v10321, 16
        %v12940 = vrot.slane %v12938, 6
        %v12941 = vshll.u32 %v10321, 16
        %v12943 = vrot.slane %v12941, 7
        %v12944 = vor.u32 %v12940, %v12943
        %v12945 = vsel %vm6003, %v12936, %v12944
        %v12946 = vrot.slane %v12944, 4
        %v12948 = vshrl.u32 %v12534, 16
        %v12950 = vrot.slane %v12948, 6
        %v12951 = vshll.u32 %v12534, 16
        %v12953 = vrot.slane %v12951, 7
        %v12954 = vor.u32 %v12950, %v12953
        %v12955 = vsel %vm6003, %v12946, %v12954
        %v12957 = vshrl.u32 %v11446, 16
        %v12959 = vrot.slane %v12957, 6
        %v12960 = vshll.u32 %v11446, 16
        %v12962 = vrot.slane %v12960, 7
        %v12963 = vor.u32 %v12959, %v12962
        %v12964 = vrot.slane %v12963, 4
        %v12966 = vshrl.u32 %v10324, 16
        %v12968 = vrot.slane %v12966, 6
        %v12969 = vshll.u32 %v10324, 16
        %v12971 = vrot.slane %v12969, 7
        %v12972 = vor.u32 %v12968, %v12971
        %v12973 = vsel %vm6003, %v12964, %v12972
        %v12974 = vrot.slane %v12972, 4
        %v12976 = vshrl.u32 %v12535, 16
        %v12978 = vrot.slane %v12976, 6
        %v12979 = vshll.u32 %v12535, 16
        %v12981 = vrot.slane %v12979, 7
        %v12982 = vor.u32 %v12978, %v12981
        %v12983 = vsel %vm6003, %v12974, %v12982
        %v12984 = vld [vmem:[%s4 + $0x280] sm:$0xf]
        %v12985 = vld [vmem:[%s4 + $0x284] sm:$0xf]
        %v12986 = vld [vmem:[%s4 + $0x288] sm:$0xf]
        %v12987 = vld [vmem:[%s4 + $0x28c] sm:$0xf]
        %v12988 = vld [vmem:[%s4 + $0x290] sm:$0xf]
        %v12989 = vld [vmem:[%s4 + $0x294] sm:$0xf]
        %v12990 = vld [vmem:[%s4 + $0x298] sm:$0xf]
        %v12991 = vld [vmem:[%s4 + $0x29c] sm:$0xf]
        %v12992 = vld [vmem:[%s4 + $0x2a0] sm:$0xf]
        %v12993 = vld [vmem:[%s4 + $0x2a4] sm:$0xf]
        %v12994 = vld [vmem:[%s4 + $0x2a8] sm:$0xf]
        %v12995 = vld [vmem:[%s4 + $0x2ac] sm:$0xf]
        %v12996 = vld [vmem:[%s4 + $0x2b0] sm:$0xf]
        %v12997 = vld [vmem:[%s4 + $0x2b4] sm:$0xf]
        %v12998 = vld [vmem:[%s4 + $0x2b8] sm:$0xf]
        %v12999 = vld [vmem:[%s4 + $0x2bc] sm:$0xf]
        %v13000 = vunpack.c.l.b16 %v12553
        %v13001 = vunpack.c.l.b16 %v12563
        %v13002 = vunpack.c.l.b16 %v12581
        %v13003 = vunpack.c.l.b16 %v12591
        %v13004 = vunpack.c.l.b16 %v12609
        %v13005 = vunpack.c.l.b16 %v12619
        %v13006 = vunpack.c.l.b16 %v12637
        %v13007 = vunpack.c.l.b16 %v12647
        %v13008 = vunpack.c.l.b16 %v12665
        %v13009 = vunpack.c.l.b16 %v12675
        %v13010 = vunpack.c.l.b16 %v12693
        %v13011 = vunpack.c.l.b16 %v12703
        %v13012 = vunpack.c.l.b16 %v12721
        %v13013 = vunpack.c.l.b16 %v12731
        %v13014 = vunpack.c.l.b16 %v12749
        %v13015 = vunpack.c.l.b16 %v12759
        %v13016 = vunpack.c.l.b16 %v12777
        %v13017 = vunpack.c.l.b16 %v12787
        %v13018 = vunpack.c.l.b16 %v12805
        %v13019 = vunpack.c.l.b16 %v12815
        %v13020 = vunpack.c.l.b16 %v12833
        %v13021 = vunpack.c.l.b16 %v12843
        %v13022 = vunpack.c.l.b16 %v12861
        %v13023 = vunpack.c.l.b16 %v12871
        %v13024 = vunpack.c.l.b16 %v12889
        %v13025 = vunpack.c.l.b16 %v12899
        %v13026 = vunpack.c.l.b16 %v12917
        %v13027 = vunpack.c.l.b16 %v12927
        %v13028 = vunpack.c.l.b16 %v12945
        %v13029 = vunpack.c.l.b16 %v12955
        %v13030 = vunpack.c.l.b16 %v12973
        %v13031 = vunpack.c.l.b16 %v12983
        %v13032 = vpack.c.b16 %v13001, %v13000
        %v13033 = vpack.c.b16 %v13003, %v13002
        %v13034 = vpack.c.b16 %v13005, %v13004
        %v13035 = vpack.c.b16 %v13007, %v13006
        %v13036 = vpack.c.b16 %v13009, %v13008
        %v13037 = vpack.c.b16 %v13011, %v13010
        %v13038 = vpack.c.b16 %v13013, %v13012
        %v13039 = vpack.c.b16 %v13015, %v13014
        %v13040 = vpack.c.b16 %v13017, %v13016
        %v13041 = vpack.c.b16 %v13019, %v13018
        %v13042 = vpack.c.b16 %v13021, %v13020
        %v13043 = vpack.c.b16 %v13023, %v13022
        %v13044 = vpack.c.b16 %v13025, %v13024
        %v13045 = vpack.c.b16 %v13027, %v13026
        %v13046 = vpack.c.b16 %v13029, %v13028
        %v13047 = vpack.c.b16 %v13031, %v13030
        %v13080 = vunpack.c.l.b16 %v12984
        %v13081 = vunpack.c.l.b16 %v12985
        %v13082 = vunpack.c.l.b16 %v12986
        %v13083 = vunpack.c.l.b16 %v12987
        %v13084 = vunpack.c.l.b16 %v12988
        %v13085 = vunpack.c.l.b16 %v12989
        %v13086 = vunpack.c.l.b16 %v12990
        %v13087 = vunpack.c.l.b16 %v12991
        %v13088 = vunpack.c.l.b16 %v12992
        %v13089 = vunpack.c.l.b16 %v12993
        %v13090 = vunpack.c.l.b16 %v12994
        %v13091 = vunpack.c.l.b16 %v12995
        %v13092 = vunpack.c.l.b16 %v12996
        %v13093 = vunpack.c.l.b16 %v12997
        %v13094 = vunpack.c.l.b16 %v12998
        %v13095 = vunpack.c.l.b16 %v12999
        %v13096 = vpack.c.b16 %v13081, %v13080
        %v13097 = vpack.c.b16 %v13083, %v13082
        %v13098 = vpack.c.b16 %v13085, %v13084
        %v13099 = vpack.c.b16 %v13087, %v13086
        %v13100 = vpack.c.b16 %v13089, %v13088
        %v13101 = vpack.c.b16 %v13091, %v13090
        %v13102 = vpack.c.b16 %v13093, %v13092
        %v13103 = vpack.c.b16 %v13095, %v13094
        %13112 = vmatprep.subr.bf16.mxu0 0
        %13113 = vmatpush1.bf16.msra.mxu0 %v13103
        %13114 = vmatprep.subr.bf16.mxu0 0
        %13115 = vmatpush1.bf16.msra.mxu0 %v13102
        %13116 = vmatprep.subr.bf16.mxu0 0
        %13117 = vmatpush1.bf16.msra.mxu0 %v13101
        %13118 = vmatprep.subr.bf16.mxu0 0
        %13119 = vmatpush1.bf16.msra.mxu0 %v13100
        %13120 = vmatprep.subr.bf16.mxu0 0
        %13121 = vmatpush1.bf16.msra.mxu0 %v13099
        %13122 = vmatprep.subr.bf16.mxu0 0
        %13123 = vmatpush1.bf16.msra.mxu0 %v13098
        %13124 = vmatprep.subr.bf16.mxu0 0
        %13125 = vmatpush1.bf16.msra.mxu0 %v13097
        %13126 = vmatprep.subr.bf16.mxu0 0
        %13127 = vmatpush1.bf16.msra.mxu0 %v13096
        %13128 = vmatprep.subr.bf16.mxu0 0
        %13129 = vmatpush2.bf16.msra.mxu0 0
        %13130 = vmatprep.subr.bf16.mxu0 0
        %13131 = vmatpush2.bf16.msra.mxu0 0
        %13132 = vmatprep.subr.bf16.mxu0 0
        %13133 = vmatpush2.bf16.msra.mxu0 0
        %13134 = vmatprep.subr.bf16.mxu0 0
        %13135 = vmatpush2.bf16.msra.mxu0 0
        %13136 = vmatprep.subr.bf16.mxu0 0
        %13137 = vmatpush2.bf16.msra.mxu0 0
        %13138 = vmatprep.subr.bf16.mxu0 0
        %13139 = vmatpush2.bf16.msra.mxu0 0
        %13140 = vmatprep.subr.bf16.mxu0 0
        %13141 = vmatpush2.bf16.msra.mxu0 0
        %13142 = vmatprep.subr.bf16.mxu0 0
        %13143 = vmatpush2.bf16.msra.mxu0 0
        %13144 = vmatprep.mubr.bf16.mxu0 0
        %13145 = vmatmul.mubr.bf16.gmra.mxu0 %v13032
        %v13146 = vpop.f32.mrf.mxu0
        %v13147 = vadd.f32 0.0, %v13146
        %v13148 = vpop.f32.mrf.mxu0
        %v13149 = vpop.f32.mrf.mxu0
        %v13150 = vadd.f32 0.0, %v13149
        %v13151 = vpop.f32.mrf.mxu0
        %13152 = vmatprep.mubr.bf16.mxu0 0
        %13153 = vmatmul.mubr.bf16.gmra.mxu0 %v13033
        %v13154 = vpop.f32.mrf.mxu0
        %v13155 = vadd.f32 0.0, %v13154
        %v13156 = vpop.f32.mrf.mxu0
        %v13157 = vpop.f32.mrf.mxu0
        %v13158 = vadd.f32 0.0, %v13157
        %v13159 = vpop.f32.mrf.mxu0
        %13160 = vmatprep.mubr.bf16.mxu0 0
        %13161 = vmatmul.mubr.bf16.gmra.mxu0 %v13034
        %v13162 = vpop.f32.mrf.mxu0
        %v13163 = vadd.f32 0.0, %v13162
        %v13164 = vpop.f32.mrf.mxu0
        %v13165 = vpop.f32.mrf.mxu0
        %v13166 = vadd.f32 0.0, %v13165
        %v13167 = vpop.f32.mrf.mxu0
        %13168 = vmatprep.mubr.bf16.mxu0 0
        %13169 = vmatmul.mubr.bf16.gmra.mxu0 %v13035
        %v13170 = vpop.f32.mrf.mxu0
        %v13171 = vadd.f32 0.0, %v13170
        %v13172 = vpop.f32.mrf.mxu0
        %v13173 = vpop.f32.mrf.mxu0
        %v13174 = vadd.f32 0.0, %v13173
        %v13175 = vpop.f32.mrf.mxu0
        %13176 = vmatprep.mubr.bf16.mxu0 0
        %13177 = vmatmul.mubr.bf16.gmra.mxu0 %v13036
        %v13178 = vpop.f32.mrf.mxu0
        %v13179 = vadd.f32 0.0, %v13178
        %v13180 = vpop.f32.mrf.mxu0
        %v13181 = vpop.f32.mrf.mxu0
        %v13182 = vadd.f32 0.0, %v13181
        %v13183 = vpop.f32.mrf.mxu0
        %13184 = vmatprep.mubr.bf16.mxu0 0
        %13185 = vmatmul.mubr.bf16.gmra.mxu0 %v13037
        %v13186 = vpop.f32.mrf.mxu0
        %v13187 = vadd.f32 0.0, %v13186
        %v13188 = vpop.f32.mrf.mxu0
        %v13189 = vpop.f32.mrf.mxu0
        %v13190 = vadd.f32 0.0, %v13189
        %v13191 = vpop.f32.mrf.mxu0
        %13192 = vmatprep.mubr.bf16.mxu0 0
        %13193 = vmatmul.mubr.bf16.gmra.mxu0 %v13038
        %v13194 = vpop.f32.mrf.mxu0
        %v13195 = vadd.f32 0.0, %v13194
        %v13196 = vpop.f32.mrf.mxu0
        %v13197 = vpop.f32.mrf.mxu0
        %v13198 = vadd.f32 0.0, %v13197
        %v13199 = vpop.f32.mrf.mxu0
        %13200 = vmatprep.mubr.bf16.mxu0 0
        %13201 = vmatmul.mubr.bf16.gmra.mxu0 %v13039
        %v13202 = vpop.f32.mrf.mxu0
        %v13203 = vadd.f32 0.0, %v13202
        %v13204 = vpop.f32.mrf.mxu0
        %v13205 = vpop.f32.mrf.mxu0
        %v13206 = vadd.f32 0.0, %v13205
        %v13207 = vpop.f32.mrf.mxu0
        %13208 = vmatprep.mubr.bf16.mxu0 0
        %13209 = vmatmul.mubr.bf16.gmra.mxu0 %v13040
        %v13210 = vpop.f32.mrf.mxu0
        %v13211 = vadd.f32 0.0, %v13210
        %v13212 = vpop.f32.mrf.mxu0
        %v13213 = vpop.f32.mrf.mxu0
        %v13214 = vadd.f32 0.0, %v13213
        %v13215 = vpop.f32.mrf.mxu0
        %13216 = vmatprep.mubr.bf16.mxu0 0
        %13217 = vmatmul.mubr.bf16.gmra.mxu0 %v13041
        %v13218 = vpop.f32.mrf.mxu0
        %v13219 = vadd.f32 0.0, %v13218
        %v13220 = vpop.f32.mrf.mxu0
        %v13221 = vpop.f32.mrf.mxu0
        %v13222 = vadd.f32 0.0, %v13221
        %v13223 = vpop.f32.mrf.mxu0
        %13224 = vmatprep.mubr.bf16.mxu0 0
        %13225 = vmatmul.mubr.bf16.gmra.mxu0 %v13042
        %v13226 = vpop.f32.mrf.mxu0
        %v13227 = vadd.f32 0.0, %v13226
        %v13228 = vpop.f32.mrf.mxu0
        %v13229 = vpop.f32.mrf.mxu0
        %v13230 = vadd.f32 0.0, %v13229
        %v13231 = vpop.f32.mrf.mxu0
        %13232 = vmatprep.mubr.bf16.mxu0 0
        %13233 = vmatmul.mubr.bf16.gmra.mxu0 %v13043
        %v13234 = vpop.f32.mrf.mxu0
        %v13235 = vadd.f32 0.0, %v13234
        %v13236 = vpop.f32.mrf.mxu0
        %v13237 = vpop.f32.mrf.mxu0
        %v13238 = vadd.f32 0.0, %v13237
        %v13239 = vpop.f32.mrf.mxu0
        %13240 = vmatprep.mubr.bf16.mxu0 0
        %13241 = vmatmul.mubr.bf16.gmra.mxu0 %v13044
        %v13242 = vpop.f32.mrf.mxu0
        %v13243 = vadd.f32 0.0, %v13242
        %v13244 = vpop.f32.mrf.mxu0
        %v13245 = vpop.f32.mrf.mxu0
        %v13246 = vadd.f32 0.0, %v13245
        %v13247 = vpop.f32.mrf.mxu0
        %13248 = vmatprep.mubr.bf16.mxu0 0
        %13249 = vmatmul.mubr.bf16.gmra.mxu0 %v13045
        %v13250 = vpop.f32.mrf.mxu0
        %v13251 = vadd.f32 0.0, %v13250
        %v13252 = vpop.f32.mrf.mxu0
        %v13253 = vpop.f32.mrf.mxu0
        %v13254 = vadd.f32 0.0, %v13253
        %v13255 = vpop.f32.mrf.mxu0
        %13256 = vmatprep.mubr.bf16.mxu0 0
        %13257 = vmatmul.mubr.bf16.gmra.mxu0 %v13046
        %v13258 = vpop.f32.mrf.mxu0
        %v13259 = vadd.f32 0.0, %v13258
        %v13260 = vpop.f32.mrf.mxu0
        %v13261 = vpop.f32.mrf.mxu0
        %v13262 = vadd.f32 0.0, %v13261
        %v13263 = vpop.f32.mrf.mxu0
        %13264 = vmatprep.mubr.bf16.mxu0 0
        %13265 = vmatmul.mubr.bf16.gmra.mxu0 %v13047
        %v13266 = vpop.f32.mrf.mxu0
        %v13267 = vadd.f32 0.0, %v13266
        %v13268 = vpop.f32.mrf.mxu0
        %v13269 = vpop.f32.mrf.mxu0
        %v13270 = vadd.f32 0.0, %v13269
        %v13271 = vpop.f32.mrf.mxu0
        %13272 = vdwg.mxu0
        %v13273 = vadd.f32 %v12488, %v13147
        %v13274 = vadd.f32 %v12489, %v13150
        %v13275 = vadd.f32 %v12490, %v13155
        %v13276 = vadd.f32 %v12491, %v13158
        %v13277 = vadd.f32 %v12492, %v13163
        %v13278 = vadd.f32 %v12493, %v13166
        %v13279 = vadd.f32 %v12494, %v13171
        %v13280 = vadd.f32 %v12495, %v13174
        %v13281 = vadd.f32 %v12496, %v13179
        %v13282 = vadd.f32 %v12497, %v13182
        %v13283 = vadd.f32 %v12498, %v13187
        %v13284 = vadd.f32 %v12499, %v13190
        %v13285 = vadd.f32 %v12500, %v13195
        %v13286 = vadd.f32 %v12501, %v13198
        %v13287 = vadd.f32 %v12502, %v13203
        %v13288 = vadd.f32 %v12503, %v13206
        %v13289 = vadd.f32 %v12504, %v13211
        %v13290 = vadd.f32 %v12505, %v13214
        %v13291 = vadd.f32 %v12506, %v13219
        %v13292 = vadd.f32 %v12507, %v13222
        %v13293 = vadd.f32 %v12508, %v13227
        %v13294 = vadd.f32 %v12509, %v13230
        %v13295 = vadd.f32 %v12510, %v13235
        %v13296 = vadd.f32 %v12511, %v13238
        %v13297 = vadd.f32 %v12512, %v13243
        %v13298 = vadd.f32 %v12513, %v13246
        %v13299 = vadd.f32 %v12514, %v13251
        %v13300 = vadd.f32 %v12515, %v13254
        %v13301 = vadd.f32 %v12516, %v13259
        %v13302 = vadd.f32 %v12517, %v13262
        %v13303 = vadd.f32 %v12518, %v13267
        %v13304 = vadd.f32 %v12519, %v13270
        %v13305 = vld [vmem:[%s5] sm:$0x1]
        %v13307 = vlaneseq
        %v13308 = vshrl.u32 %v13307, 7
        %v13309 = vsub.s32 0, %v13308
        %v13310 = vrot.slane %v13305, %v13309
        %v13312 = vmul.f32 %v13273, %v13310
        %v13313 = vmul.f32 %v13274, %v13310
        %v13314 = vmul.f32 %v13275, %v13310
        %v13315 = vmul.f32 %v13276, %v13310
        %v13316 = vmul.f32 %v13277, %v13310
        %v13317 = vmul.f32 %v13278, %v13310
        %v13318 = vmul.f32 %v13279, %v13310
        %v13319 = vmul.f32 %v13280, %v13310
        %v13320 = vmul.f32 %v13281, %v13310
        %v13321 = vmul.f32 %v13282, %v13310
        %v13322 = vmul.f32 %v13283, %v13310
        %v13323 = vmul.f32 %v13284, %v13310
        %v13324 = vmul.f32 %v13285, %v13310
        %v13325 = vmul.f32 %v13286, %v13310
        %v13326 = vmul.f32 %v13287, %v13310
        %v13327 = vmul.f32 %v13288, %v13310
        %v13328 = vmul.f32 %v13289, %v13310
        %v13329 = vmul.f32 %v13290, %v13310
        %v13330 = vmul.f32 %v13291, %v13310
        %v13331 = vmul.f32 %v13292, %v13310
        %v13332 = vmul.f32 %v13293, %v13310
        %v13333 = vmul.f32 %v13294, %v13310
        %v13334 = vmul.f32 %v13295, %v13310
        %v13335 = vmul.f32 %v13296, %v13310
        %v13336 = vmul.f32 %v13297, %v13310
        %v13337 = vmul.f32 %v13298, %v13310
        %v13338 = vmul.f32 %v13299, %v13310
        %v13339 = vmul.f32 %v13300, %v13310
        %v13340 = vmul.f32 %v13301, %v13310
        %v13341 = vmul.f32 %v13302, %v13310
        %v13342 = vmul.f32 %v13303, %v13310
        %v13343 = vmul.f32 %v13304, %v13310
        %v13344 = vld [vmem:[%s6] sm:$0x1]
        %v13346 = vlaneseq
        %v13347 = vshrl.u32 %v13346, 7
        %v13348 = vsub.s32 0, %v13347
        %v13349 = vrot.slane %v13344, %v13348
        %v13351 = vadd.f32 %v13312, %v13349
        %v13352 = vadd.f32 %v13313, %v13349
        %v13353 = vadd.f32 %v13314, %v13349
        %v13354 = vadd.f32 %v13315, %v13349
        %v13355 = vadd.f32 %v13316, %v13349
        %v13356 = vadd.f32 %v13317, %v13349
        %v13357 = vadd.f32 %v13318, %v13349
        %v13358 = vadd.f32 %v13319, %v13349
        %v13359 = vadd.f32 %v13320, %v13349
        %v13360 = vadd.f32 %v13321, %v13349
        %v13361 = vadd.f32 %v13322, %v13349
        %v13362 = vadd.f32 %v13323, %v13349
        %v13363 = vadd.f32 %v13324, %v13349
        %v13364 = vadd.f32 %v13325, %v13349
        %v13365 = vadd.f32 %v13326, %v13349
        %v13366 = vadd.f32 %v13327, %v13349
        %v13367 = vadd.f32 %v13328, %v13349
        %v13368 = vadd.f32 %v13329, %v13349
        %v13369 = vadd.f32 %v13330, %v13349
        %v13370 = vadd.f32 %v13331, %v13349
        %v13371 = vadd.f32 %v13332, %v13349
        %v13372 = vadd.f32 %v13333, %v13349
        %v13373 = vadd.f32 %v13334, %v13349
        %v13374 = vadd.f32 %v13335, %v13349
        %v13375 = vadd.f32 %v13336, %v13349
        %v13376 = vadd.f32 %v13337, %v13349
        %v13377 = vadd.f32 %v13338, %v13349
        %v13378 = vadd.f32 %v13339, %v13349
        %v13379 = vadd.f32 %v13340, %v13349
        %v13380 = vadd.f32 %v13341, %v13349
        %v13381 = vadd.f32 %v13342, %v13349
        %v13382 = vadd.f32 %v13343, %v13349
        %v13383 = vadd.f32 %v13351, %v13352
        %v13384 = vadd.f32 %v13383, %v13353
        %v13385 = vadd.f32 %v13384, %v13354
        %v13386 = vadd.f32 %v13385, %v13355
        %v13387 = vadd.f32 %v13386, %v13356
        %v13388 = vadd.f32 %v13387, %v13357
        %v13389 = vadd.f32 %v13388, %v13358
        %v13390 = vrot.slane %v13389, 4
        %v13391 = vadd.f32 %v13389, %v13390
        %v13392 = vrot.slane %v13391, 2
        %v13393 = vadd.f32 %v13391, %v13392
        %v13394 = vrot.slane %v13393, 1
        %v13395 = vadd.f32 %v13393, %v13394
        %v13396 = vadd.f32 %v13359, %v13360
        %v13397 = vadd.f32 %v13396, %v13361
        %v13398 = vadd.f32 %v13397, %v13362
        %v13399 = vadd.f32 %v13398, %v13363
        %v13400 = vadd.f32 %v13399, %v13364
        %v13401 = vadd.f32 %v13400, %v13365
        %v13402 = vadd.f32 %v13401, %v13366
        %v13403 = vrot.slane %v13402, 4
        %v13404 = vadd.f32 %v13402, %v13403
        %v13405 = vrot.slane %v13404, 2
        %v13406 = vadd.f32 %v13404, %v13405
        %v13407 = vrot.slane %v13406, 1
        %v13408 = vadd.f32 %v13406, %v13407
        %v13409 = vadd.f32 %v13367, %v13368
        %v13410 = vadd.f32 %v13409, %v13369
        %v13411 = vadd.f32 %v13410, %v13370
        %v13412 = vadd.f32 %v13411, %v13371
        %v13413 = vadd.f32 %v13412, %v13372
        %v13414 = vadd.f32 %v13413, %v13373
        %v13415 = vadd.f32 %v13414, %v13374
        %v13416 = vrot.slane %v13415, 4
        %v13417 = vadd.f32 %v13415, %v13416
        %v13418 = vrot.slane %v13417, 2
        %v13419 = vadd.f32 %v13417, %v13418
        %v13420 = vrot.slane %v13419, 1
        %v13421 = vadd.f32 %v13419, %v13420
        %v13422 = vadd.f32 %v13375, %v13376
        %v13423 = vadd.f32 %v13422, %v13377
        %v13424 = vadd.f32 %v13423, %v13378
        %v13425 = vadd.f32 %v13424, %v13379
        %v13426 = vadd.f32 %v13425, %v13380
        %v13427 = vadd.f32 %v13426, %v13381
        %v13428 = vadd.f32 %v13427, %v13382
        %v13429 = vrot.slane %v13428, 4
        %v13430 = vadd.f32 %v13428, %v13429
        %v13431 = vrot.slane %v13430, 2
        %v13432 = vadd.f32 %v13430, %v13431
        %v13433 = vrot.slane %v13432, 1
        %v13434 = vadd.f32 %v13432, %v13433
        %v13435 = vmul.f32 %v13395, 0.015625
        %v13436 = vmul.f32 %v13408, 0.015625
        %v13437 = vmul.f32 %v13421, 0.015625
        %v13438 = vmul.f32 %v13434, 0.015625
        %v13439 = vld [vmem:[%s7] sm:$0xff]
        %v13440 = vld [vmem:[%s7 + $0x8] sm:$0xff]
        %v13441 = vld [vmem:[%s7 + $0x10] sm:$0xff]
        %v13442 = vld [vmem:[%s7 + $0x18] sm:$0xff]
        %v13443 = vld [vmem:[%s7 + $0x20] sm:$0xff]
        %v13444 = vld [vmem:[%s7 + $0x28] sm:$0xff]
        %v13445 = vld [vmem:[%s7 + $0x30] sm:$0xff]
        %v13446 = vld [vmem:[%s7 + $0x38] sm:$0xff]
        %v13447 = vld [vmem:[%s7 + $0x40] sm:$0xff]
        %v13448 = vld [vmem:[%s7 + $0x48] sm:$0xff]
        %v13449 = vld [vmem:[%s7 + $0x50] sm:$0xff]
        %v13450 = vld [vmem:[%s7 + $0x58] sm:$0xff]
        %v13451 = vld [vmem:[%s7 + $0x60] sm:$0xff]
        %v13452 = vld [vmem:[%s7 + $0x68] sm:$0xff]
        %v13453 = vld [vmem:[%s7 + $0x70] sm:$0xff]
        %v13454 = vld [vmem:[%s7 + $0x78] sm:$0xff]
        %vm13459 = vcmask 1041409
        %v13460 = vsel %vm13459, %v13436, %v13435
        %vm13461 = vcmask 1042434
        %v13462 = vsel %vm13461, %v13437, %v13460
        %vm13463 = vcmask 1043459
        %v13464 = vsel %vm13463, %v13438, %v13462
        %13466 = vmatprep.subr.mxu0 0.0
        %13467 = vmatpush1.msra.mxu0 %v13454
        %13468 = vmatprep.subr.mxu0 0.0
        %13469 = vmatpush1.msra.mxu0 %v13453
        %13470 = vmatprep.subr.mxu0 0.0
        %13471 = vmatpush1.msra.mxu0 %v13452
        %13472 = vmatprep.subr.mxu0 0.0
        %13473 = vmatpush1.msra.mxu0 %v13451
        %13474 = vmatprep.subr.mxu0 0.0
        %13475 = vmatpush1.msra.mxu0 %v13450
        %13476 = vmatprep.subr.mxu0 0.0
        %13477 = vmatpush1.msra.mxu0 %v13449
        %13478 = vmatprep.subr.mxu0 0.0
        %13479 = vmatpush1.msra.mxu0 %v13448
        %13480 = vmatprep.subr.mxu0 0.0
        %13481 = vmatpush1.msra.mxu0 %v13447
        %13482 = vmatprep.subr.mxu0 0.0
        %13483 = vmatpush1.msra.mxu0 %v13446
        %13484 = vmatprep.subr.mxu0 0.0
        %13485 = vmatpush1.msra.mxu0 %v13445
        %13486 = vmatprep.subr.mxu0 0.0
        %13487 = vmatpush1.msra.mxu0 %v13444
        %13488 = vmatprep.subr.mxu0 0.0
        %13489 = vmatpush1.msra.mxu0 %v13443
        %13490 = vmatprep.subr.mxu0 0.0
        %13491 = vmatpush1.msra.mxu0 %v13442
        %13492 = vmatprep.subr.mxu0 0.0
        %13493 = vmatpush1.msra.mxu0 %v13441
        %13494 = vmatprep.subr.mxu0 0.0
        %13495 = vmatpush1.msra.mxu0 %v13440
        %13496 = vmatprep.subr.mxu0 0.0
        %13497 = vmatpush1.msra.mxu0 %v13439
        %13498 = vmatprep.subr.mxu0 0.0
        %13499 = vmatpush2.msra.mxu0 0.0
        %13500 = vmatprep.subr.mxu0 0.0
        %13501 = vmatpush2.msra.mxu0 0.0
        %13502 = vmatprep.subr.mxu0 0.0
        %13503 = vmatpush2.msra.mxu0 0.0
        %13504 = vmatprep.subr.mxu0 0.0
        %13505 = vmatpush2.msra.mxu0 0.0
        %13506 = vmatprep.subr.mxu0 0.0
        %13507 = vmatpush2.msra.mxu0 0.0
        %13508 = vmatprep.subr.mxu0 0.0
        %13509 = vmatpush2.msra.mxu0 0.0
        %13510 = vmatprep.subr.mxu0 0.0
        %13511 = vmatpush2.msra.mxu0 0.0
        %13512 = vmatprep.subr.mxu0 0.0
        %13513 = vmatpush2.msra.mxu0 0.0
        %13514 = vmatprep.subr.mxu0 0.0
        %13515 = vmatpush2.msra.mxu0 0.0
        %13516 = vmatprep.subr.mxu0 0.0
        %13517 = vmatpush2.msra.mxu0 0.0
        %13518 = vmatprep.subr.mxu0 0.0
        %13519 = vmatpush2.msra.mxu0 0.0
        %13520 = vmatprep.subr.mxu0 0.0
        %13521 = vmatpush2.msra.mxu0 0.0
        %13522 = vmatprep.subr.mxu0 0.0
        %13523 = vmatpush2.msra.mxu0 0.0
        %13524 = vmatprep.subr.mxu0 0.0
        %13525 = vmatpush2.msra.mxu0 0.0
        %13526 = vmatprep.subr.mxu0 0.0
        %13527 = vmatpush2.msra.mxu0 0.0
        %13528 = vmatprep.subr.mxu0 0.0
        %13529 = vmatpush2.msra.mxu0 0.0
        %13530 = vmatprep.mubr.f32.mxu0 0.0
        %13531 = vmatmul.mubr.f32.gmra.mxu0 %v13464
        %v13532 = vpop.f32.mrf.mxu0
        %v13533 = vadd.f32 0.0, %v13532
        %v13534 = vpop.f32.mrf.mxu0
        %13535 = vdwg.mxu0
        %v13536 = vmax.f32 %v13533, 0.0
        %v13537 = vld [vmem:[%s8] sm:$0xff]
        %vm13538 = vcmask 64512
        %v13540 = vsel %vm13538, %v13536, 0
        %13542 = vmatprep.subr.mxu0 0.0
        %13543 = vmatpush1.msra.mxu0 0.0
        %13544 = vmatprep.subr.mxu0 0.0
        %13545 = vmatpush1.msra.mxu0 0.0
        %13546 = vmatprep.subr.mxu0 0.0
        %13547 = vmatpush1.msra.mxu0 0.0
        %13548 = vmatprep.subr.mxu0 0.0
        %13549 = vmatpush1.msra.mxu0 0.0
        %13550 = vmatprep.subr.mxu0 0.0
        %13551 = vmatpush1.msra.mxu0 0.0
        %13552 = vmatprep.subr.mxu0 0.0
        %13553 = vmatpush1.msra.mxu0 0.0
        %13554 = vmatprep.subr.mxu0 0.0
        %13555 = vmatpush1.msra.mxu0 0.0
        %13556 = vmatprep.subr.mxu0 0.0
        %13557 = vmatpush1.msra.mxu0 0.0
        %13558 = vmatprep.subr.mxu0 0.0
        %13559 = vmatpush1.msra.mxu0 0.0
        %13560 = vmatprep.subr.mxu0 0.0
        %13561 = vmatpush1.msra.mxu0 0.0
        %13562 = vmatprep.subr.mxu0 0.0
        %13563 = vmatpush1.msra.mxu0 0.0
        %13564 = vmatprep.subr.mxu0 0.0
        %13565 = vmatpush1.msra.mxu0 0.0
        %13566 = vmatprep.subr.mxu0 0.0
        %13567 = vmatpush1.msra.mxu0 0.0
        %13568 = vmatprep.subr.mxu0 0.0
        %13569 = vmatpush1.msra.mxu0 0.0
        %13570 = vmatprep.subr.mxu0 0.0
        %13571 = vmatpush1.msra.mxu0 0.0
        %13572 = vmatprep.subr.mxu0 0.0
        %13573 = vmatpush1.msra.mxu0 %v13537
        %13574 = vmatprep.subr.mxu0 0.0
        %13575 = vmatpush2.msra.mxu0 0.0
        %13576 = vmatprep.subr.mxu0 0.0
        %13577 = vmatpush2.msra.mxu0 0.0
        %13578 = vmatprep.subr.mxu0 0.0
        %13579 = vmatpush2.msra.mxu0 0.0
        %13580 = vmatprep.subr.mxu0 0.0
        %13581 = vmatpush2.msra.mxu0 0.0
        %13582 = vmatprep.subr.mxu0 0.0
        %13583 = vmatpush2.msra.mxu0 0.0
        %13584 = vmatprep.subr.mxu0 0.0
        %13585 = vmatpush2.msra.mxu0 0.0
        %13586 = vmatprep.subr.mxu0 0.0
        %13587 = vmatpush2.msra.mxu0 0.0
        %13588 = vmatprep.subr.mxu0 0.0
        %13589 = vmatpush2.msra.mxu0 0.0
        %13590 = vmatprep.subr.mxu0 0.0
        %13591 = vmatpush2.msra.mxu0 0.0
        %13592 = vmatprep.subr.mxu0 0.0
        %13593 = vmatpush2.msra.mxu0 0.0
        %13594 = vmatprep.subr.mxu0 0.0
        %13595 = vmatpush2.msra.mxu0 0.0
        %13596 = vmatprep.subr.mxu0 0.0
        %13597 = vmatpush2.msra.mxu0 0.0
        %13598 = vmatprep.subr.mxu0 0.0
        %13599 = vmatpush2.msra.mxu0 0.0
        %13600 = vmatprep.subr.mxu0 0.0
        %13601 = vmatpush2.msra.mxu0 0.0
        %13602 = vmatprep.subr.mxu0 0.0
        %13603 = vmatpush2.msra.mxu0 0.0
        %13604 = vmatprep.subr.mxu0 0.0
        %13605 = vmatpush2.msra.mxu0 0.0
        %13606 = vmatprep.mubr.f32.mxu0 0.0
        %13607 = vmatmul.mubr.f32.gmra.mxu0 %v13540
        %v13608 = vpop.f32.mrf.mxu0
        %v13609 = vadd.f32 0.0, %v13608
        %v13610 = vpop.f32.mrf.mxu0
        %13611 = vdwg.mxu0
        %v13612 = vxor.u32 %v13609, 2147483648
        %v13613 = vmul.f32 %v13612, 1.442695
        %v13614 = vpow.pop %v13613
        %v13615 = vadd.f32 %v13614, 1.0
        %v13616 = vrcp.pop %v13615
        %v13617 = vmul.f32 1.0, %v13616
        %v13618 = vld [vmem:[%s334] sm:$0xf]
        %v13619 = vld [vmem:[%s334 + $0x4] sm:$0xf]
        %v13620 = vld [vmem:[%s334 + $0x8] sm:$0xf]
        %v13621 = vld [vmem:[%s334 + $0xc] sm:$0xf]
        %v13622 = vld [vmem:[%s334 + $0x10] sm:$0xf]
        %v13623 = vld [vmem:[%s334 + $0x14] sm:$0xf]
        %v13624 = vld [vmem:[%s334 + $0x18] sm:$0xf]
        %v13625 = vld [vmem:[%s334 + $0x1c] sm:$0xf]
        %v13626 = vld [vmem:[%s334 + $0x20] sm:$0xf]
        %v13627 = vld [vmem:[%s334 + $0x24] sm:$0xf]
        %v13628 = vld [vmem:[%s334 + $0x28] sm:$0xf]
        %v13629 = vld [vmem:[%s334 + $0x2c] sm:$0xf]
        %v13630 = vld [vmem:[%s334 + $0x30] sm:$0xf]
        %v13631 = vld [vmem:[%s334 + $0x34] sm:$0xf]
        %v13632 = vld [vmem:[%s334 + $0x38] sm:$0xf]
        %v13633 = vld [vmem:[%s334 + $0x3c] sm:$0xf]
        %v13634 = vld [vmem:[%s334 + $0x40] sm:$0xf]
        %v13635 = vld [vmem:[%s334 + $0x44] sm:$0xf]
        %v13636 = vld [vmem:[%s334 + $0x48] sm:$0xf]
        %v13637 = vld [vmem:[%s334 + $0x4c] sm:$0xf]
        %v13638 = vld [vmem:[%s334 + $0x50] sm:$0xf]
        %v13639 = vld [vmem:[%s334 + $0x54] sm:$0xf]
        %v13640 = vld [vmem:[%s334 + $0x58] sm:$0xf]
        %v13641 = vld [vmem:[%s334 + $0x5c] sm:$0xf]
        %v13642 = vld [vmem:[%s334 + $0x60] sm:$0xf]
        %v13643 = vld [vmem:[%s334 + $0x64] sm:$0xf]
        %v13644 = vld [vmem:[%s334 + $0x68] sm:$0xf]
        %v13645 = vld [vmem:[%s334 + $0x6c] sm:$0xf]
        %v13646 = vld [vmem:[%s334 + $0x70] sm:$0xf]
        %v13647 = vld [vmem:[%s334 + $0x74] sm:$0xf]
        %v13648 = vld [vmem:[%s334 + $0x78] sm:$0xf]
        %v13649 = vld [vmem:[%s334 + $0x7c] sm:$0xf]
        %v13650 = vunpack.c.l.bf16 %v13618
        %v13651 = vunpack.c.l.bf16 %v13619
        %v13652 = vunpack.c.l.bf16 %v13620
        %v13653 = vunpack.c.l.bf16 %v13621
        %v13654 = vunpack.c.l.bf16 %v13622
        %v13655 = vunpack.c.l.bf16 %v13623
        %v13656 = vunpack.c.l.bf16 %v13624
        %v13657 = vunpack.c.l.bf16 %v13625
        %v13658 = vunpack.c.l.bf16 %v13626
        %v13659 = vunpack.c.l.bf16 %v13627
        %v13660 = vunpack.c.l.bf16 %v13628
        %v13661 = vunpack.c.l.bf16 %v13629
        %v13662 = vunpack.c.l.bf16 %v13630
        %v13663 = vunpack.c.l.bf16 %v13631
        %v13664 = vunpack.c.l.bf16 %v13632
        %v13665 = vunpack.c.l.bf16 %v13633
        %v13666 = vunpack.c.l.bf16 %v13634
        %v13667 = vunpack.c.l.bf16 %v13635
        %v13668 = vunpack.c.l.bf16 %v13636
        %v13669 = vunpack.c.l.bf16 %v13637
        %v13670 = vunpack.c.l.bf16 %v13638
        %v13671 = vunpack.c.l.bf16 %v13639
        %v13672 = vunpack.c.l.bf16 %v13640
        %v13673 = vunpack.c.l.bf16 %v13641
        %v13674 = vunpack.c.l.bf16 %v13642
        %v13675 = vunpack.c.l.bf16 %v13643
        %v13676 = vunpack.c.l.bf16 %v13644
        %v13677 = vunpack.c.l.bf16 %v13645
        %v13678 = vunpack.c.l.bf16 %v13646
        %v13679 = vunpack.c.l.bf16 %v13647
        %v13680 = vunpack.c.l.bf16 %v13648
        %v13681 = vunpack.c.l.bf16 %v13649
        %v13684 = vunpack.c.l.s4 1966171168
        %v13685 = vunpack.c.0.s8 %v13684
        %v13686 = vlaneseq
        %v13687 = vshrl.u32 %v13686, 7
        %v13688 = vsub.s32 %v13685, %v13687
        %v13689 = vrot.slane %v13617, %v13688
        %v13690 = vcombine.high %v13689, %v13689
        %v13692 = vunpack.c.l.s4 1966171168
        %v13693 = vunpack.c.0.s8 %v13692
        %v13694 = vlaneseq
        %v13695 = vshrl.u32 %v13694, 7
        %v13696 = vsub.s32 %v13693, %v13695
        %v13697 = vrot.slane %v13689, %v13696
        %v13699 = vunpack.c.l.s4 1966171168
        %v13700 = vunpack.c.0.s8 %v13699
        %v13701 = vlaneseq
        %v13702 = vshrl.u32 %v13701, 7
        %v13703 = vsub.s32 %v13700, %v13702
        %v13704 = vrot.slane %v13690, %v13703
        %v13705 = vcombine.high %v13697, %v13697
        %v13706 = vcombine.high %v13704, %v13704
        %v13707 = vlaneseq
        %v13708 = vshrl.u32 %v13707, 7
        %v13709 = vsub.s32 0, %v13708
        %v13710 = vrot.slane %v13697, %v13709
        %v13711 = vlaneseq
        %v13712 = vshrl.u32 %v13711, 7
        %v13713 = vsub.s32 0, %v13712
        %v13714 = vrot.slane %v13704, %v13713
        %v13715 = vlaneseq
        %v13716 = vshrl.u32 %v13715, 7
        %v13717 = vsub.s32 0, %v13716
        %v13718 = vrot.slane %v13705, %v13717
        %v13719 = vlaneseq
        %v13720 = vshrl.u32 %v13719, 7
        %v13721 = vsub.s32 0, %v13720
        %v13722 = vrot.slane %v13706, %v13721
        %v13727 = vmul.f32 %v13351, %v13710
        %v13728 = vmul.f32 %v13352, %v13710
        %v13729 = vmul.f32 %v13353, %v13710
        %v13730 = vmul.f32 %v13354, %v13710
        %v13731 = vmul.f32 %v13355, %v13710
        %v13732 = vmul.f32 %v13356, %v13710
        %v13733 = vmul.f32 %v13357, %v13710
        %v13734 = vmul.f32 %v13358, %v13710
        %v13735 = vmul.f32 %v13359, %v13714
        %v13736 = vmul.f32 %v13360, %v13714
        %v13737 = vmul.f32 %v13361, %v13714
        %v13738 = vmul.f32 %v13362, %v13714
        %v13739 = vmul.f32 %v13363, %v13714
        %v13740 = vmul.f32 %v13364, %v13714
        %v13741 = vmul.f32 %v13365, %v13714
        %v13742 = vmul.f32 %v13366, %v13714
        %v13743 = vmul.f32 %v13367, %v13718
        %v13744 = vmul.f32 %v13368, %v13718
        %v13745 = vmul.f32 %v13369, %v13718
        %v13746 = vmul.f32 %v13370, %v13718
        %v13747 = vmul.f32 %v13371, %v13718
        %v13748 = vmul.f32 %v13372, %v13718
        %v13749 = vmul.f32 %v13373, %v13718
        %v13750 = vmul.f32 %v13374, %v13718
        %v13751 = vmul.f32 %v13375, %v13722
        %v13752 = vmul.f32 %v13376, %v13722
        %v13753 = vmul.f32 %v13377, %v13722
        %v13754 = vmul.f32 %v13378, %v13722
        %v13755 = vmul.f32 %v13379, %v13722
        %v13756 = vmul.f32 %v13380, %v13722
        %v13757 = vmul.f32 %v13381, %v13722
        %v13758 = vmul.f32 %v13382, %v13722
        %v13759 = vadd.f32 %v13727, %v13650
        %v13760 = vadd.f32 %v13728, %v13651
        %v13761 = vadd.f32 %v13729, %v13652
        %v13762 = vadd.f32 %v13730, %v13653
        %v13763 = vadd.f32 %v13731, %v13654
        %v13764 = vadd.f32 %v13732, %v13655
        %v13765 = vadd.f32 %v13733, %v13656
        %v13766 = vadd.f32 %v13734, %v13657
        %v13767 = vadd.f32 %v13735, %v13658
        %v13768 = vadd.f32 %v13736, %v13659
        %v13769 = vadd.f32 %v13737, %v13660
        %v13770 = vadd.f32 %v13738, %v13661
        %v13771 = vadd.f32 %v13739, %v13662
        %v13772 = vadd.f32 %v13740, %v13663
        %v13773 = vadd.f32 %v13741, %v13664
        %v13774 = vadd.f32 %v13742, %v13665
        %v13775 = vadd.f32 %v13743, %v13666
        %v13776 = vadd.f32 %v13744, %v13667
        %v13777 = vadd.f32 %v13745, %v13668
        %v13778 = vadd.f32 %v13746, %v13669
        %v13779 = vadd.f32 %v13747, %v13670
        %v13780 = vadd.f32 %v13748, %v13671
        %v13781 = vadd.f32 %v13749, %v13672
        %v13782 = vadd.f32 %v13750, %v13673
        %v13783 = vadd.f32 %v13751, %v13674
        %v13784 = vadd.f32 %v13752, %v13675
        %v13785 = vadd.f32 %v13753, %v13676
        %v13786 = vadd.f32 %v13754, %v13677
        %v13787 = vadd.f32 %v13755, %v13678
        %v13788 = vadd.f32 %v13756, %v13679
        %v13789 = vadd.f32 %v13757, %v13680
        %v13790 = vadd.f32 %v13758, %v13681
        %v13791 = vmax.f32 %v13759, 0.0
        %v13792 = vmax.f32 %v13760, 0.0
        %v13793 = vmax.f32 %v13761, 0.0
        %v13794 = vmax.f32 %v13762, 0.0
        %v13795 = vmax.f32 %v13763, 0.0
        %v13796 = vmax.f32 %v13764, 0.0
        %v13797 = vmax.f32 %v13765, 0.0
        %v13798 = vmax.f32 %v13766, 0.0
        %v13799 = vmax.f32 %v13767, 0.0
        %v13800 = vmax.f32 %v13768, 0.0
        %v13801 = vmax.f32 %v13769, 0.0
        %v13802 = vmax.f32 %v13770, 0.0
        %v13803 = vmax.f32 %v13771, 0.0
        %v13804 = vmax.f32 %v13772, 0.0
        %v13805 = vmax.f32 %v13773, 0.0
        %v13806 = vmax.f32 %v13774, 0.0
        %v13807 = vmax.f32 %v13775, 0.0
        %v13808 = vmax.f32 %v13776, 0.0
        %v13809 = vmax.f32 %v13777, 0.0
        %v13810 = vmax.f32 %v13778, 0.0
        %v13811 = vmax.f32 %v13779, 0.0
        %v13812 = vmax.f32 %v13780, 0.0
        %v13813 = vmax.f32 %v13781, 0.0
        %v13814 = vmax.f32 %v13782, 0.0
        %v13815 = vmax.f32 %v13783, 0.0
        %v13816 = vmax.f32 %v13784, 0.0
        %v13817 = vmax.f32 %v13785, 0.0
        %v13818 = vmax.f32 %v13786, 0.0
        %v13819 = vmax.f32 %v13787, 0.0
        %v13820 = vmax.f32 %v13788, 0.0
        %v13821 = vmax.f32 %v13789, 0.0
        %v13822 = vmax.f32 %v13790, 0.0
        %v13823 = vpack.c.bf16 %v13792, %v13791
        %v13824 = vpack.c.bf16 %v13794, %v13793
        %v13825 = vpack.c.bf16 %v13796, %v13795
        %v13826 = vpack.c.bf16 %v13798, %v13797
        %v13827 = vpack.c.bf16 %v13800, %v13799
        %v13828 = vpack.c.bf16 %v13802, %v13801
        %v13829 = vpack.c.bf16 %v13804, %v13803
        %v13830 = vpack.c.bf16 %v13806, %v13805
        %v13831 = vpack.c.bf16 %v13808, %v13807
        %v13832 = vpack.c.bf16 %v13810, %v13809
        %v13833 = vpack.c.bf16 %v13812, %v13811
        %v13834 = vpack.c.bf16 %v13814, %v13813
        %v13835 = vpack.c.bf16 %v13816, %v13815
        %v13836 = vpack.c.bf16 %v13818, %v13817
        %v13837 = vpack.c.bf16 %v13820, %v13819
        %v13838 = vpack.c.bf16 %v13822, %v13821
        %v13855 = vunpack.c.l.b16 %v13823
        %v13856 = vunpack.c.h.b16 %v13823
        %v13857 = vunpack.c.l.b16 %v13824
        %v13858 = vunpack.c.h.b16 %v13824
        %v13859 = vunpack.c.l.b16 %v13825
        %v13860 = vunpack.c.h.b16 %v13825
        %v13861 = vunpack.c.l.b16 %v13826
        %v13862 = vunpack.c.h.b16 %v13826
        %v13863 = vunpack.c.l.b16 %v13827
        %v13864 = vunpack.c.h.b16 %v13827
        %v13865 = vunpack.c.l.b16 %v13828
        %v13866 = vunpack.c.h.b16 %v13828
        %v13867 = vunpack.c.l.b16 %v13829
        %v13868 = vunpack.c.h.b16 %v13829
        %v13869 = vunpack.c.l.b16 %v13830
        %v13870 = vunpack.c.h.b16 %v13830
        %v13871 = vunpack.c.l.b16 %v13831
        %v13872 = vunpack.c.h.b16 %v13831
        %v13873 = vunpack.c.l.b16 %v13832
        %v13874 = vunpack.c.h.b16 %v13832
        %v13875 = vunpack.c.l.b16 %v13833
        %v13876 = vunpack.c.h.b16 %v13833
        %v13877 = vunpack.c.l.b16 %v13834
        %v13878 = vunpack.c.h.b16 %v13834
        %v13879 = vunpack.c.l.b16 %v13835
        %v13880 = vunpack.c.h.b16 %v13835
        %v13881 = vunpack.c.l.b16 %v13836
        %v13882 = vunpack.c.h.b16 %v13836
        %v13883 = vunpack.c.l.b16 %v13837
        %v13884 = vunpack.c.h.b16 %v13837
        %v13885 = vunpack.c.l.b16 %v13838
        %v13886 = vunpack.c.h.b16 %v13838
        %v13887 = vpack.c.b16 %v13855, %v13855
        %v13888 = vpack.c.b16 %v13856, %v13856
        %v13889 = vpack.c.b16 %v13857, %v13857
        %v13890 = vpack.c.b16 %v13858, %v13858
        %v13891 = vpack.c.b16 %v13859, %v13859
        %v13892 = vpack.c.b16 %v13860, %v13860
        %v13893 = vpack.c.b16 %v13861, %v13861
        %v13894 = vpack.c.b16 %v13862, %v13862
        %v13895 = vpack.c.b16 %v13863, %v13863
        %v13896 = vpack.c.b16 %v13864, %v13864
        %v13897 = vpack.c.b16 %v13865, %v13865
        %v13898 = vpack.c.b16 %v13866, %v13866
        %v13899 = vpack.c.b16 %v13867, %v13867
        %v13900 = vpack.c.b16 %v13868, %v13868
        %v13901 = vpack.c.b16 %v13869, %v13869
        %v13902 = vpack.c.b16 %v13870, %v13870
        %v13903 = vpack.c.b16 %v13871, %v13871
        %v13904 = vpack.c.b16 %v13872, %v13872
        %v13905 = vpack.c.b16 %v13873, %v13873
        %v13906 = vpack.c.b16 %v13874, %v13874
        %v13907 = vpack.c.b16 %v13875, %v13875
        %v13908 = vpack.c.b16 %v13876, %v13876
        %v13909 = vpack.c.b16 %v13877, %v13877
        %v13910 = vpack.c.b16 %v13878, %v13878
        %v13911 = vpack.c.b16 %v13879, %v13879
        %v13912 = vpack.c.b16 %v13880, %v13880
        %v13913 = vpack.c.b16 %v13881, %v13881
        %v13914 = vpack.c.b16 %v13882, %v13882
        %v13915 = vpack.c.b16 %v13883, %v13883
        %v13916 = vpack.c.b16 %v13884, %v13884
        %v13917 = vpack.c.b16 %v13885, %v13885
        %v13918 = vpack.c.b16 %v13886, %v13886
        %13951 = vst [vmem:[%s328] sm:$0xf] %v13887
        %13952 = vst [vmem:[%s328 + $0x4] sm:$0xf] %v13888
        %13953 = vst [vmem:[%s328 + $0x8] sm:$0xf] %v13889
        %13954 = vst [vmem:[%s328 + $0xc] sm:$0xf] %v13890
        %13955 = vst [vmem:[%s328 + $0x10] sm:$0xf] %v13891
        %13956 = vst [vmem:[%s328 + $0x14] sm:$0xf] %v13892
        %13957 = vst [vmem:[%s328 + $0x18] sm:$0xf] %v13893
        %13958 = vst [vmem:[%s328 + $0x1c] sm:$0xf] %v13894
        %13959 = vst [vmem:[%s328 + $0x20] sm:$0xf] %v13895
        %13960 = vst [vmem:[%s328 + $0x24] sm:$0xf] %v13896
        %13961 = vst [vmem:[%s328 + $0x28] sm:$0xf] %v13897
        %13962 = vst [vmem:[%s328 + $0x2c] sm:$0xf] %v13898
        %13963 = vst [vmem:[%s328 + $0x30] sm:$0xf] %v13899
        %13964 = vst [vmem:[%s328 + $0x34] sm:$0xf] %v13900
        %13965 = vst [vmem:[%s328 + $0x38] sm:$0xf] %v13901
        %13966 = vst [vmem:[%s328 + $0x3c] sm:$0xf] %v13902
        %13967 = vst [vmem:[%s328 + $0x40] sm:$0xf] %v13903
        %13968 = vst [vmem:[%s328 + $0x44] sm:$0xf] %v13904
        %13969 = vst [vmem:[%s328 + $0x48] sm:$0xf] %v13905
        %13970 = vst [vmem:[%s328 + $0x4c] sm:$0xf] %v13906
        %13971 = vst [vmem:[%s328 + $0x50] sm:$0xf] %v13907
        %13972 = vst [vmem:[%s328 + $0x54] sm:$0xf] %v13908
        %13973 = vst [vmem:[%s328 + $0x58] sm:$0xf] %v13909
        %13974 = vst [vmem:[%s328 + $0x5c] sm:$0xf] %v13910
        %13975 = vst [vmem:[%s328 + $0x60] sm:$0xf] %v13911
        %13976 = vst [vmem:[%s328 + $0x64] sm:$0xf] %v13912
        %13977 = vst [vmem:[%s328 + $0x68] sm:$0xf] %v13913
        %13978 = vst [vmem:[%s328 + $0x6c] sm:$0xf] %v13914
        %13979 = vst [vmem:[%s328 + $0x70] sm:$0xf] %v13915
        %13980 = vst [vmem:[%s328 + $0x74] sm:$0xf] %v13916
        %13981 = vst [vmem:[%s328 + $0x78] sm:$0xf] %v13917
        %13982 = vst [vmem:[%s328 + $0x7c] sm:$0xf] %v13918
        %s13983 = sand.u32 %s225, 1
        %s13984 = scalar_lea.sflag [#allocation4], %s13983
        %s13985 = sand.u32 %s225, 1
        %s13986 = smul.addr %s13985, 128
        %s13987 = scalar_lea.vmem [#allocation3], %s13986
        // Predicated region
        $region57: #{block_forward_nhwc.1} parent=55 // pred_check
          %p13988 = pneg %p235
        $region58: #{block_forward_nhwc.1} parent=55 // pred_check_branch
          %13990 = sbr.rel (%p13988) target = $region60
        $region59: #{block_forward_nhwc.1} parent=55 // pred_region
          %s13991 = smul.u32 4, %s23
          %s13993 = ssub.s32 2048, 2048
          %13994 = vsyncadd %s13984, %s13993
          %s13995 = smul.addr %s13991, 8
          %s13996 = smul.addr %s13995, 64
          %s13997 = scalar_lea.hbm %s9, %s13996
          %s13998 = sshll.u32 %s13987, 4
          %s13999 = int_to_ptr.vmem [resolvable:$true] %s13998
          %14004 = dma.vmem_to_hbm [thread:$0]  %s13999, 2048, %s13997, %s13984, 64, 64, 4
        $region60: #{block_forward_nhwc.1} parent=55 // pred_fallthru
          _
      $region56: #{block_forward_nhwc.1} parent=5 // pred_fallthru
        _
      %p14005 = scmp.le.s32.totalorder 2, %s18
      // Predicated region
      $region61: #{block_forward_nhwc.1} parent=5 // pred_check
        %p14006 = pneg %p14005
      $region62: #{block_forward_nhwc.1} parent=5 // pred_check_branch
        %14008 = sbr.rel (%p14006) target = $region64
      $region63: #{block_forward_nhwc.1} parent=5 // pred_region
        %s14009 = ssub.s32 %s18, 2
        // Predicated region
        $region65: #{block_forward_nhwc.1} parent=63 // pred_check
          %p14010 = pneg %p241
        $region66: #{block_forward_nhwc.1} parent=63 // pred_check_branch
          %14012 = sbr.rel (%p14010) target = $region68
        $region67: #{block_forward_nhwc.1} parent=63 // pred_region
          %s14013 = sand.u32 %s226, 1
          %s14014 = scalar_lea.sflag [#allocation4], %s14013
          %s14015 = sand.u32 %s226, 1
          %s14016 = smul.addr %s14015, 128
          %s14017 = scalar_lea.vmem [#allocation3], %s14016
          %14018 = dma.done %s14014, 2048
        $region68: #{block_forward_nhwc.1} parent=63 // pred_fallthru
          _
      $region64: #{block_forward_nhwc.1} parent=5 // pred_fallthru
        _
    $region6: #{block_forward_nhwc.1} parent=1 // loop_footer
      %s22 = sadd.s32 1, %s18
    $region7: #{block_forward_nhwc.1} parent=1 // loop_footer_branch
      %17 = sbr.rel target = $region3
    $region8: #{block_forward_nhwc.1} parent=1 // loop_exit
      _
    %14019 = vsyncpa [#allocation4], 1
    %s14020 = scalar_lea.sflag [#allocation4], 1
    %14021 = vsyncpa %s14020, 1

</llo_original>
